<compile_context>
chip_gen: v7x
topology: tpu7x:2x2x1
jax: 0.10.0
libtpu: 0.0.40
codegen_flags: <defaults>
</compile_context>

<pallas_src>
import jax
import jax.numpy as jnp
from jax.experimental import pallas as pl
from jax.experimental.pallas import tpu as pltpu


def _resblock_kernel(x_ref, w1_ref, w2_ref, o_ref, pad_ref):
    _, H, W, C = x_ref.shape
    eps = jnp.float32(1e-5)
    inv_hw = jnp.float32(1.0 / (H * W))

    def set_reflect_borders():
        # ReflectionPad2d(1) borders, reading back from pad_ref itself so the
        # interior write can be fused with arbitrary producers.
        # left / right padded columns reflect interior columns 2 / W-1
        pad_ref[1:H + 1, 0:1, :] = pad_ref[1:H + 1, 2:3, :]
        pad_ref[1:H + 1, W + 1:W + 2, :] = pad_ref[1:H + 1, W - 1:W, :]
        # top / bottom padded rows reflect interior rows 2 / H-1 over the full
        # padded width (corners come out as x[1,1] etc., matching PyTorch).
        pad_ref[0:1, 0:W + 2, :] = pad_ref[2:3, 0:W + 2, :]
        pad_ref[H + 1:H + 2, 0:W + 2, :] = pad_ref[H - 1:H, 0:W + 2, :]

    def conv3x3(w_ref):
        # 3x3 conv as 9 shifted channel contractions (bf16 MXU, f32 acc).
        # Sequential accumulation keeps the live set to ~2 (H,W,C) f32 tiles
        # and maps to MRB in-place accumulation on v7x.
        acc = None
        for dj in range(3):
            # width (sublane) shift hoisted: one slice per dj, reused for 3 di
            tp_j = pad_ref[:, dj:dj + W, :]            # (H+2, W, C) bf16
            for di in range(3):
                patch = tp_j[di:di + H, :, :]          # leading-dim slice: cheap
                d = jnp.dot(patch, w_ref[di, dj],
                            preferred_element_type=jnp.float32)
                acc = d if acc is None else acc + d
        return acc                                     # (H, W, C) f32
        # NOTE: conv bias intentionally omitted -- cancelled by InstanceNorm.

    def norm_stats(t):
        # InstanceNorm2d(affine=False) statistics, single data sweep in f32.
        s1 = jnp.sum(t, axis=(0, 1), keepdims=True)        # (1,1,C)
        s2 = jnp.sum(t * t, axis=(0, 1), keepdims=True)    # (1,1,C)
        mean = s1 * inv_hw
        var = jnp.maximum(s2 * inv_hw - mean * mean, 0.0)
        inv_std = jax.lax.rsqrt(var + eps)                 # tiny tensor -> EUP
        return mean, inv_std

    # --- reflection-pad x into the persistent VMEM scratch -----------------
    pad_ref[1:H + 1, 1:W + 1, :] = x_ref[0]
    set_reflect_borders()

    # --- conv1 -> instance norm -> ReLU, written straight into pad scratch --
    y = conv3x3(w1_ref)
    mean, inv_std = norm_stats(y)
    pad_ref[1:H + 1, 1:W + 1, :] = jnp.maximum(
        (y - mean) * inv_std, 0.0).astype(pad_ref.dtype)
    set_reflect_borders()

    # --- conv2 -> instance norm --------------------------------------------
    y = conv3x3(w2_ref)
    mean, inv_std = norm_stats(y)
    o_ref[0] = ((y - mean) * inv_std).astype(o_ref.dtype)


def _pick_vmem_limit_bytes():
    # v5e/v6e: 128 MiB physical -> ~96 MiB scoped; v7x: 64 MiB -> ~48 MiB.
    cap = 64 * 1024 * 1024
    try:
        info = pltpu.get_tpu_info()
        cap = int(getattr(info, "vmem_capacity_bytes", cap))
    except Exception:
        pass
    return int(min(96 * 1024 * 1024, (cap * 3) // 4))


def residual_block_nhwc(x_nhwc, w1k, w2k):
    """Core entry point (use this when chaining blocks / the full Generator).

    x_nhwc: (N, H, W, Cp) bf16 with Cp a multiple of 128 (zero-padded channels
            beyond the real C stay exactly zero through conv/norm/relu).
    w*k:    (3, 3, Cp, Cp) bf16 in HWIO layout, zero-padded channels.
    Returns (N, H, W, Cp) bf16.
    """
    N, H, W, Cp = x_nhwc.shape
    assert Cp % 128 == 0
    assert H >= 2 and W >= 2, "ReflectionPad2d(1) needs H, W >= 2"
    Wp = ((W + 2 + 15) // 16) * 16   # bf16: 16 sublane rows per vreg

    def weight_spec():
        # constant block index across the grid -> single-buffer it.
        return pl.BlockSpec((3, 3, Cp, Cp), lambda n: (0, 0, 0, 0),
                            pipeline_mode=pl.Buffered(1))

    return pl.pallas_call(
        _resblock_kernel,
        out_shape=jax.ShapeDtypeStruct((N, H, W, Cp), jnp.bfloat16),
        grid_spec=pltpu.PrefetchScalarGridSpec(
            num_scalar_prefetch=0,
            grid=(N,),
            in_specs=[
                pl.BlockSpec((1, H, W, Cp), lambda n: (n, 0, 0, 0)),
                weight_spec(),
                weight_spec(),
            ],
            out_specs=pl.BlockSpec((1, H, W, Cp), lambda n: (n, 0, 0, 0)),
            # pad columns [W+2:Wp] are never read (do not widen reads to Wp
            # without initializing them).
            scratch_shapes=[pltpu.VMEM((H + 2, Wp, Cp), jnp.bfloat16)],
        ),
        compiler_params=pltpu.CompilerParams(
            dimension_semantics=("parallel",),
            vmem_limit_bytes=_pick_vmem_limit_bytes(),
        ),
    )(x_nhwc, w1k, w2k)


def _prep_weight(w, Cp):
    """(Cout, Cin, 3, 3) f32 -> (3, 3, Cin_p, Cout_p) bf16, channel-padded."""
    C = w.shape[0]
    wk = jnp.transpose(w.astype(jnp.bfloat16), (2, 3, 1, 0))   # (3,3,Cin,Cout)
    return jnp.pad(wk, ((0, 0), (0, 0), (0, Cp - C), (0, Cp - C)))


def residual_block_forward(x_nchw, w1, b1, w2, b2):
    """Convenience NCHW f32 interface matching the PyTorch module.

    b1/b2 are accepted for interface parity with nn.Conv2d(bias=True) but are
    ignored: each conv is immediately followed by InstanceNorm2d(affine=False),
    whose per-channel mean subtraction exactly cancels a per-channel bias.
    """
    del b1, b2
    N, C, H, W = x_nchw.shape
    Cp = ((C + 127) // 128) * 128          # lane-dense channel count

    # cast to bf16 BEFORE the layout change -> half the transpose HBM bytes.
    x = jnp.transpose(x_nchw.astype(jnp.bfloat16), (0, 2, 3, 1))  # NHWC bf16
    x = jnp.pad(x, ((0, 0), (0, 0), (0, 0), (0, Cp - C)))

    out = residual_block_nhwc(x, _prep_weight(w1, Cp), _prep_weight(w2, Cp))

    out = out[..., :C].astype(jnp.float32)                 # drop padded channels
    return jnp.transpose(out, (0, 3, 1, 2))                # back to NCHW


def _reference_forward(x, w1, b1, w2, b2):
    """Pure-JAX f32 reference of the PyTorch module (NCHW), biases included."""
    def conv(t, w, b):
        tp = jnp.pad(t, ((0, 0), (0, 0), (1, 1), (1, 1)), mode="reflect")
        y = jax.lax.conv_general_dilated(
            tp, w, window_strides=(1, 1), padding="VALID",
            dimension_numbers=("NCHW", "OIHW", "NCHW"))
        return y + b[None, :, None, None]

    def inorm(t):
        m = jnp.mean(t, axis=(2, 3), keepdims=True)
        v = jnp.mean((t - m) ** 2, axis=(2, 3), keepdims=True)
        return (t - m) / jnp.sqrt(v + 1e-5)

    h = jnp.maximum(inorm(conv(x, w1, b1)), 0.0)
    return inorm(conv(h, w2, b2))


if __name__ == "__main__":
    N, C, H, W = 2, 4, 16, 16
    key = jax.random.PRNGKey(0)
    kx, kw1, kb1, kw2, kb2 = jax.random.split(key, 5)

    x = jax.random.normal(kx, (N, C, H, W), jnp.float32)
    w1 = jax.random.normal(kw1, (C, C, 3, 3), jnp.float32) * 0.1
    b1 = jax.random.normal(kb1, (C,), jnp.float32) * 0.1
    w2 = jax.random.normal(kw2, (C, C, 3, 3), jnp.float32) * 0.1
    b2 = jax.random.normal(kb2, (C,), jnp.float32) * 0.1

    out = jax.block_until_ready(residual_block_forward(x, w1, b1, w2, b2))
    ref = jax.block_until_ready(_reference_forward(x, w1, b1, w2, b2))

    assert out.shape == (N, C, H, W)
    # bf16 matmul operands + bf16 output -> bf16-appropriate tolerance
    # (outputs are instance-normalized, O(1); observed error is a few e-3).
    assert jnp.allclose(out, ref, atol=5e-2, rtol=5e-2), "mismatch vs reference"

    print("KERNEL_OK")
</pallas_src>

<mosaic_0001>
module attributes {stable_mosaic.version = 11 : i64} {
  func.func @_resblock_kernel(%arg0: i32, %arg1: memref<1x16x16x128xbf16, #tpu.memory_space<vmem>>, %arg2: memref<3x3x128x128xbf16, #tpu.memory_space<vmem>>, %arg3: memref<3x3x128x128xbf16, #tpu.memory_space<vmem>>, %arg4: memref<1x16x16x128xbf16, #tpu.memory_space<vmem>>, %arg5: memref<18x32x128xbf16, #tpu.memory_space<vmem>>) attributes {dimension_semantics = [#tpu.dimension_semantics<parallel>], iteration_bounds = array<i64: 2>, scalar_prefetch = 0 : i64, scratch_operands = 1 : i64, tpu.core_type = #tpu.core_type<tc>, window_params = [{transform_indices = @transform_0, window_bounds = array<i64: 1, 16, 16, 128>}, {pipeline_mode = #tpu.pipeline_mode<synchronous>, transform_indices = @transform_1, window_bounds = array<i64: 3, 3, 128, 128>}, {pipeline_mode = #tpu.pipeline_mode<synchronous>, transform_indices = @transform_2, window_bounds = array<i64: 3, 3, 128, 128>}, {transform_indices = @transform_3, window_bounds = array<i64: 1, 16, 16, 128>}]} {
    %c0 = arith.constant 0 : index
    %c0_0 = arith.constant 0 : index
    %c0_1 = arith.constant 0 : index
    %c0_2 = arith.constant 0 : index
    %0 = vector.load %arg1[%c0, %c0_0, %c0_1, %c0_2] : memref<1x16x16x128xbf16, #tpu.memory_space<vmem>>, vector<1x16x16x128xbf16>
    %1 = vector.shape_cast %0 : vector<1x16x16x128xbf16> to vector<16x16x128xbf16>
    %c1 = arith.constant 1 : index
    %c1_3 = arith.constant 1 : index
    %c0_4 = arith.constant 0 : index
    %2 = vector.load %arg5[%c1, %c1_3, %c0_4] : memref<18x32x128xbf16, #tpu.memory_space<vmem>>, vector<16x16x128xbf16>
    tpu.vector_store %arg5[%c1, %c1_3, %c0_4], %1 {strides = array<i32>} : memref<18x32x128xbf16, #tpu.memory_space<vmem>>, vector<16x16x128xbf16>,
    %c1_5 = arith.constant 1 : index
    %c2 = arith.constant 2 : index
    %c0_6 = arith.constant 0 : index
    %3 = vector.load %arg5[%c1_5, %c2, %c0_6] : memref<18x32x128xbf16, #tpu.memory_space<vmem>>, vector<16x1x128xbf16>
    %c1_7 = arith.constant 1 : index
    %c0_8 = arith.constant 0 : index
    %c0_9 = arith.constant 0 : index
    %4 = vector.load %arg5[%c1_7, %c0_8, %c0_9] : memref<18x32x128xbf16, #tpu.memory_space<vmem>>, vector<16x1x128xbf16>
    tpu.vector_store %arg5[%c1_7, %c0_8, %c0_9], %3 {strides = array<i32>} : memref<18x32x128xbf16, #tpu.memory_space<vmem>>, vector<16x1x128xbf16>,
    %c1_10 = arith.constant 1 : index
    %c15 = arith.constant 15 : index
    %c0_11 = arith.constant 0 : index
    %5 = vector.load %arg5[%c1_10, %c15, %c0_11] : memref<18x32x128xbf16, #tpu.memory_space<vmem>>, vector<16x1x128xbf16>
    %c1_12 = arith.constant 1 : index
    %c17 = arith.constant 17 : index
    %c0_13 = arith.constant 0 : index
    %6 = vector.load %arg5[%c1_12, %c17, %c0_13] : memref<18x32x128xbf16, #tpu.memory_space<vmem>>, vector<16x1x128xbf16>
    tpu.vector_store %arg5[%c1_12, %c17, %c0_13], %5 {strides = array<i32>} : memref<18x32x128xbf16, #tpu.memory_space<vmem>>, vector<16x1x128xbf16>,
    %c2_14 = arith.constant 2 : index
    %c0_15 = arith.constant 0 : index
    %c0_16 = arith.constant 0 : index
    %7 = vector.load %arg5[%c2_14, %c0_15, %c0_16] : memref<18x32x128xbf16, #tpu.memory_space<vmem>>, vector<1x18x128xbf16>
    %c0_17 = arith.constant 0 : index
    %c0_18 = arith.constant 0 : index
    %c0_19 = arith.constant 0 : index
    %8 = vector.load %arg5[%c0_17, %c0_18, %c0_19] : memref<18x32x128xbf16, #tpu.memory_space<vmem>>, vector<1x18x128xbf16>
    tpu.vector_store %arg5[%c0_17, %c0_18, %c0_19], %7 {strides = array<i32>} : memref<18x32x128xbf16, #tpu.memory_space<vmem>>, vector<1x18x128xbf16>,
    %c15_20 = arith.constant 15 : index
    %c0_21 = arith.constant 0 : index
    %c0_22 = arith.constant 0 : index
    %9 = vector.load %arg5[%c15_20, %c0_21, %c0_22] : memref<18x32x128xbf16, #tpu.memory_space<vmem>>, vector<1x18x128xbf16>
    %c17_23 = arith.constant 17 : index
    %c0_24 = arith.constant 0 : index
    %c0_25 = arith.constant 0 : index
    %10 = vector.load %arg5[%c17_23, %c0_24, %c0_25] : memref<18x32x128xbf16, #tpu.memory_space<vmem>>, vector<1x18x128xbf16>
    tpu.vector_store %arg5[%c17_23, %c0_24, %c0_25], %9 {strides = array<i32>} : memref<18x32x128xbf16, #tpu.memory_space<vmem>>, vector<1x18x128xbf16>,
    %c0_26 = arith.constant 0 : index
    %c0_27 = arith.constant 0 : index
    %c0_28 = arith.constant 0 : index
    %11 = vector.load %arg5[%c0_26, %c0_27, %c0_28] : memref<18x32x128xbf16, #tpu.memory_space<vmem>>, vector<18x16x128xbf16>
    %12 = vector.extract_strided_slice %11 {offsets = [0, 0, 0], sizes = [16, 16, 128], strides = [1, 1, 1]} : vector<18x16x128xbf16> to vector<16x16x128xbf16>
    %c0_29 = arith.constant 0 : index
    %c0_30 = arith.constant 0 : index
    %c0_31 = arith.constant 0 : index
    %c0_32 = arith.constant 0 : index
    %13 = vector.load %arg2[%c0_29, %c0_30, %c0_31, %c0_32] : memref<3x3x128x128xbf16, #tpu.memory_space<vmem>>, vector<1x1x128x128xbf16>
    %14 = vector.shape_cast %13 : vector<1x1x128x128xbf16> to vector<128x128xbf16>
    %cst = arith.constant dense<0.000000e+00> : vector<16x16x128xf32>
    %15 = tpu.matmul %12, %14, %cst {dimension_numbers = #tpu.dot_dimension_numbers<[2], [0], [0, 1], [1], [0, 0, 0, 1, 1, 1], [], []>} : vector<16x16x128xbf16>, vector<128x128xbf16>, vector<16x16x128xf32> -> vector<16x16x128xf32>
    %16 = vector.extract_strided_slice %11 {offsets = [1, 0, 0], sizes = [16, 16, 128], strides = [1, 1, 1]} : vector<18x16x128xbf16> to vector<16x16x128xbf16>
    %c1_33 = arith.constant 1 : index
    %c0_34 = arith.constant 0 : index
    %c0_35 = arith.constant 0 : index
    %c0_36 = arith.constant 0 : index
    %17 = vector.load %arg2[%c1_33, %c0_34, %c0_35, %c0_36] : memref<3x3x128x128xbf16, #tpu.memory_space<vmem>>, vector<1x1x128x128xbf16>
    %18 = vector.shape_cast %17 : vector<1x1x128x128xbf16> to vector<128x128xbf16>
    %cst_37 = arith.constant dense<0.000000e+00> : vector<16x16x128xf32>
    %19 = tpu.matmul %16, %18, %cst_37 {dimension_numbers = #tpu.dot_dimension_numbers<[2], [0], [0, 1], [1], [0, 0, 0, 1, 1, 1], [], []>} : vector<16x16x128xbf16>, vector<128x128xbf16>, vector<16x16x128xf32> -> vector<16x16x128xf32>
    %20 = arith.addf %15, %19 : vector<16x16x128xf32>
    %21 = vector.extract_strided_slice %11 {offsets = [2, 0, 0], sizes = [16, 16, 128], strides = [1, 1, 1]} : vector<18x16x128xbf16> to vector<16x16x128xbf16>
    %c2_38 = arith.constant 2 : index
    %c0_39 = arith.constant 0 : index
    %c0_40 = arith.constant 0 : index
    %c0_41 = arith.constant 0 : index
    %22 = vector.load %arg2[%c2_38, %c0_39, %c0_40, %c0_41] : memref<3x3x128x128xbf16, #tpu.memory_space<vmem>>, vector<1x1x128x128xbf16>
    %23 = vector.shape_cast %22 : vector<1x1x128x128xbf16> to vector<128x128xbf16>
    %cst_42 = arith.constant dense<0.000000e+00> : vector<16x16x128xf32>
    %24 = tpu.matmul %21, %23, %cst_42 {dimension_numbers = #tpu.dot_dimension_numbers<[2], [0], [0, 1], [1], [0, 0, 0, 1, 1, 1], [], []>} : vector<16x16x128xbf16>, vector<128x128xbf16>, vector<16x16x128xf32> -> vector<16x16x128xf32>
    %25 = arith.addf %20, %24 : vector<16x16x128xf32>
    %c0_43 = arith.constant 0 : index
    %c1_44 = arith.constant 1 : index
    %c0_45 = arith.constant 0 : index
    %26 = vector.load %arg5[%c0_43, %c1_44, %c0_45] : memref<18x32x128xbf16, #tpu.memory_space<vmem>>, vector<18x16x128xbf16>
    %27 = vector.extract_strided_slice %26 {offsets = [0, 0, 0], sizes = [16, 16, 128], strides = [1, 1, 1]} : vector<18x16x128xbf16> to vector<16x16x128xbf16>
    %c0_46 = arith.constant 0 : index
    %c1_47 = arith.constant 1 : index
    %c0_48 = arith.constant 0 : index
    %c0_49 = arith.constant 0 : index
    %28 = vector.load %arg2[%c0_46, %c1_47, %c0_48, %c0_49] : memref<3x3x128x128xbf16, #tpu.memory_space<vmem>>, vector<1x1x128x128xbf16>
    %29 = vector.shape_cast %28 : vector<1x1x128x128xbf16> to vector<128x128xbf16>
    %cst_50 = arith.constant dense<0.000000e+00> : vector<16x16x128xf32>
    %30 = tpu.matmul %27, %29, %cst_50 {dimension_numbers = #tpu.dot_dimension_numbers<[2], [0], [0, 1], [1], [0, 0, 0, 1, 1, 1], [], []>} : vector<16x16x128xbf16>, vector<128x128xbf16>, vector<16x16x128xf32> -> vector<16x16x128xf32>
    %31 = arith.addf %25, %30 : vector<16x16x128xf32>
    %32 = vector.extract_strided_slice %26 {offsets = [1, 0, 0], sizes = [16, 16, 128], strides = [1, 1, 1]} : vector<18x16x128xbf16> to vector<16x16x128xbf16>
    %c1_51 = arith.constant 1 : index
    %c1_52 = arith.constant 1 : index
    %c0_53 = arith.constant 0 : index
    %c0_54 = arith.constant 0 : index
    %33 = vector.load %arg2[%c1_51, %c1_52, %c0_53, %c0_54] : memref<3x3x128x128xbf16, #tpu.memory_space<vmem>>, vector<1x1x128x128xbf16>
    %34 = vector.shape_cast %33 : vector<1x1x128x128xbf16> to vector<128x128xbf16>
    %cst_55 = arith.constant dense<0.000000e+00> : vector<16x16x128xf32>
    %35 = tpu.matmul %32, %34, %cst_55 {dimension_numbers = #tpu.dot_dimension_numbers<[2], [0], [0, 1], [1], [0, 0, 0, 1, 1, 1], [], []>} : vector<16x16x128xbf16>, vector<128x128xbf16>, vector<16x16x128xf32> -> vector<16x16x128xf32>
    %36 = arith.addf %31, %35 : vector<16x16x128xf32>
    %37 = vector.extract_strided_slice %26 {offsets = [2, 0, 0], sizes = [16, 16, 128], strides = [1, 1, 1]} : vector<18x16x128xbf16> to vector<16x16x128xbf16>
    %c2_56 = arith.constant 2 : index
    %c1_57 = arith.constant 1 : index
    %c0_58 = arith.constant 0 : index
    %c0_59 = arith.constant 0 : index
    %38 = vector.load %arg2[%c2_56, %c1_57, %c0_58, %c0_59] : memref<3x3x128x128xbf16, #tpu.memory_space<vmem>>, vector<1x1x128x128xbf16>
    %39 = vector.shape_cast %38 : vector<1x1x128x128xbf16> to vector<128x128xbf16>
    %cst_60 = arith.constant dense<0.000000e+00> : vector<16x16x128xf32>
    %40 = tpu.matmul %37, %39, %cst_60 {dimension_numbers = #tpu.dot_dimension_numbers<[2], [0], [0, 1], [1], [0, 0, 0, 1, 1, 1], [], []>} : vector<16x16x128xbf16>, vector<128x128xbf16>, vector<16x16x128xf32> -> vector<16x16x128xf32>
    %41 = arith.addf %36, %40 : vector<16x16x128xf32>
    %c0_61 = arith.constant 0 : index
    %c2_62 = arith.constant 2 : index
    %c0_63 = arith.constant 0 : index
    %42 = vector.load %arg5[%c0_61, %c2_62, %c0_63] : memref<18x32x128xbf16, #tpu.memory_space<vmem>>, vector<18x16x128xbf16>
    %43 = vector.extract_strided_slice %42 {offsets = [0, 0, 0], sizes = [16, 16, 128], strides = [1, 1, 1]} : vector<18x16x128xbf16> to vector<16x16x128xbf16>
    %c0_64 = arith.constant 0 : index
    %c2_65 = arith.constant 2 : index
    %c0_66 = arith.constant 0 : index
    %c0_67 = arith.constant 0 : index
    %44 = vector.load %arg2[%c0_64, %c2_65, %c0_66, %c0_67] : memref<3x3x128x128xbf16, #tpu.memory_space<vmem>>, vector<1x1x128x128xbf16>
    %45 = vector.shape_cast %44 : vector<1x1x128x128xbf16> to vector<128x128xbf16>
    %cst_68 = arith.constant dense<0.000000e+00> : vector<16x16x128xf32>
    %46 = tpu.matmul %43, %45, %cst_68 {dimension_numbers = #tpu.dot_dimension_numbers<[2], [0], [0, 1], [1], [0, 0, 0, 1, 1, 1], [], []>} : vector<16x16x128xbf16>, vector<128x128xbf16>, vector<16x16x128xf32> -> vector<16x16x128xf32>
    %47 = arith.addf %41, %46 : vector<16x16x128xf32>
    %48 = vector.extract_strided_slice %42 {offsets = [1, 0, 0], sizes = [16, 16, 128], strides = [1, 1, 1]} : vector<18x16x128xbf16> to vector<16x16x128xbf16>
    %c1_69 = arith.constant 1 : index
    %c2_70 = arith.constant 2 : index
    %c0_71 = arith.constant 0 : index
    %c0_72 = arith.constant 0 : index
    %49 = vector.load %arg2[%c1_69, %c2_70, %c0_71, %c0_72] : memref<3x3x128x128xbf16, #tpu.memory_space<vmem>>, vector<1x1x128x128xbf16>
    %50 = vector.shape_cast %49 : vector<1x1x128x128xbf16> to vector<128x128xbf16>
    %cst_73 = arith.constant dense<0.000000e+00> : vector<16x16x128xf32>
    %51 = tpu.matmul %48, %50, %cst_73 {dimension_numbers = #tpu.dot_dimension_numbers<[2], [0], [0, 1], [1], [0, 0, 0, 1, 1, 1], [], []>} : vector<16x16x128xbf16>, vector<128x128xbf16>, vector<16x16x128xf32> -> vector<16x16x128xf32>
    %52 = arith.addf %47, %51 : vector<16x16x128xf32>
    %53 = vector.extract_strided_slice %42 {offsets = [2, 0, 0], sizes = [16, 16, 128], strides = [1, 1, 1]} : vector<18x16x128xbf16> to vector<16x16x128xbf16>
    %c2_74 = arith.constant 2 : index
    %c2_75 = arith.constant 2 : index
    %c0_76 = arith.constant 0 : index
    %c0_77 = arith.constant 0 : index
    %54 = vector.load %arg2[%c2_74, %c2_75, %c0_76, %c0_77] : memref<3x3x128x128xbf16, #tpu.memory_space<vmem>>, vector<1x1x128x128xbf16>
    %55 = vector.shape_cast %54 : vector<1x1x128x128xbf16> to vector<128x128xbf16>
    %cst_78 = arith.constant dense<0.000000e+00> : vector<16x16x128xf32>
    %56 = tpu.matmul %53, %55, %cst_78 {dimension_numbers = #tpu.dot_dimension_numbers<[2], [0], [0, 1], [1], [0, 0, 0, 1, 1, 1], [], []>} : vector<16x16x128xbf16>, vector<128x128xbf16>, vector<16x16x128xf32> -> vector<16x16x128xf32>
    %57 = arith.addf %52, %56 : vector<16x16x128xf32>
    %cst_79 = arith.constant dense<0.000000e+00> : vector<128xf32>
    %58 = vector.multi_reduction <add>, %57, %cst_79 [0, 1] : vector<16x16x128xf32> to vector<128xf32>
    %59 = vector.shape_cast %58 : vector<128xf32> to vector<1x1x128xf32>
    %60 = arith.mulf %57, %57 : vector<16x16x128xf32>
    %cst_80 = arith.constant dense<0.000000e+00> : vector<128xf32>
    %61 = vector.multi_reduction <add>, %60, %cst_80 [0, 1] : vector<16x16x128xf32> to vector<128xf32>
    %62 = vector.shape_cast %61 : vector<128xf32> to vector<1x1x128xf32>
    %cst_81 = arith.constant 3.906250e-03 : f32
    %63 = vector.broadcast %cst_81 : f32 to vector<1x1x128xf32>
    %64 = arith.mulf %59, %63 : vector<1x1x128xf32>
    %cst_82 = arith.constant 3.906250e-03 : f32
    %65 = vector.broadcast %cst_82 : f32 to vector<1x1x128xf32>
    %66 = arith.mulf %62, %65 : vector<1x1x128xf32>
    %67 = arith.mulf %64, %64 : vector<1x1x128xf32>
    %68 = arith.subf %66, %67 : vector<1x1x128xf32>
    %cst_83 = arith.constant 0.000000e+00 : f32
    %69 = vector.broadcast %cst_83 : f32 to vector<1x1x128xf32>
    %70 = arith.maximumf %68, %69 : vector<1x1x128xf32>
    %cst_84 = arith.constant 9.99999974E-6 : f32
    %71 = vector.broadcast %cst_84 : f32 to vector<1x1x128xf32>
    %72 = arith.addf %70, %71 : vector<1x1x128xf32>
    %73 = math.rsqrt %72 : vector<1x1x128xf32>
    %74 = vector.broadcast %64 : vector<1x1x128xf32> to vector<16x16x128xf32>
    %75 = arith.subf %57, %74 : vector<16x16x128xf32>
    %76 = vector.broadcast %73 : vector<1x1x128xf32> to vector<16x16x128xf32>
    %77 = arith.mulf %75, %76 : vector<16x16x128xf32>
    %cst_85 = arith.constant 0.000000e+00 : f32
    %78 = vector.broadcast %cst_85 : f32 to vector<16x16x128xf32>
    %79 = arith.maximumf %77, %78 : vector<16x16x128xf32>
    %80 = arith.truncf %79 : vector<16x16x128xf32> to vector<16x16x128xbf16>
    %c1_86 = arith.constant 1 : index
    %c1_87 = arith.constant 1 : index
    %c0_88 = arith.constant 0 : index
    %81 = vector.load %arg5[%c1_86, %c1_87, %c0_88] : memref<18x32x128xbf16, #tpu.memory_space<vmem>>, vector<16x16x128xbf16>
    tpu.vector_store %arg5[%c1_86, %c1_87, %c0_88], %80 {strides = array<i32>} : memref<18x32x128xbf16, #tpu.memory_space<vmem>>, vector<16x16x128xbf16>,
    %c1_89 = arith.constant 1 : index
    %c2_90 = arith.constant 2 : index
    %c0_91 = arith.constant 0 : index
    %82 = vector.load %arg5[%c1_89, %c2_90, %c0_91] : memref<18x32x128xbf16, #tpu.memory_space<vmem>>, vector<16x1x128xbf16>
    %c1_92 = arith.constant 1 : index
    %c0_93 = arith.constant 0 : index
    %c0_94 = arith.constant 0 : index
    %83 = vector.load %arg5[%c1_92, %c0_93, %c0_94] : memref<18x32x128xbf16, #tpu.memory_space<vmem>>, vector<16x1x128xbf16>
    tpu.vector_store %arg5[%c1_92, %c0_93, %c0_94], %82 {strides = array<i32>} : memref<18x32x128xbf16, #tpu.memory_space<vmem>>, vector<16x1x128xbf16>,
    %c1_95 = arith.constant 1 : index
    %c15_96 = arith.constant 15 : index
    %c0_97 = arith.constant 0 : index
    %84 = vector.load %arg5[%c1_95, %c15_96, %c0_97] : memref<18x32x128xbf16, #tpu.memory_space<vmem>>, vector<16x1x128xbf16>
    %c1_98 = arith.constant 1 : index
    %c17_99 = arith.constant 17 : index
    %c0_100 = arith.constant 0 : index
    %85 = vector.load %arg5[%c1_98, %c17_99, %c0_100] : memref<18x32x128xbf16, #tpu.memory_space<vmem>>, vector<16x1x128xbf16>
    tpu.vector_store %arg5[%c1_98, %c17_99, %c0_100], %84 {strides = array<i32>} : memref<18x32x128xbf16, #tpu.memory_space<vmem>>, vector<16x1x128xbf16>,
    %c2_101 = arith.constant 2 : index
    %c0_102 = arith.constant 0 : index
    %c0_103 = arith.constant 0 : index
    %86 = vector.load %arg5[%c2_101, %c0_102, %c0_103] : memref<18x32x128xbf16, #tpu.memory_space<vmem>>, vector<1x18x128xbf16>
    %c0_104 = arith.constant 0 : index
    %c0_105 = arith.constant 0 : index
    %c0_106 = arith.constant 0 : index
    %87 = vector.load %arg5[%c0_104, %c0_105, %c0_106] : memref<18x32x128xbf16, #tpu.memory_space<vmem>>, vector<1x18x128xbf16>
    tpu.vector_store %arg5[%c0_104, %c0_105, %c0_106], %86 {strides = array<i32>} : memref<18x32x128xbf16, #tpu.memory_space<vmem>>, vector<1x18x128xbf16>,
    %c15_107 = arith.constant 15 : index
    %c0_108 = arith.constant 0 : index
    %c0_109 = arith.constant 0 : index
    %88 = vector.load %arg5[%c15_107, %c0_108, %c0_109] : memref<18x32x128xbf16, #tpu.memory_space<vmem>>, vector<1x18x128xbf16>
    %c17_110 = arith.constant 17 : index
    %c0_111 = arith.constant 0 : index
    %c0_112 = arith.constant 0 : index
    %89 = vector.load %arg5[%c17_110, %c0_111, %c0_112] : memref<18x32x128xbf16, #tpu.memory_space<vmem>>, vector<1x18x128xbf16>
    tpu.vector_store %arg5[%c17_110, %c0_111, %c0_112], %88 {strides = array<i32>} : memref<18x32x128xbf16, #tpu.memory_space<vmem>>, vector<1x18x128xbf16>,
    %c0_113 = arith.constant 0 : index
    %c0_114 = arith.constant 0 : index
    %c0_115 = arith.constant 0 : index
    %90 = vector.load %arg5[%c0_113, %c0_114, %c0_115] : memref<18x32x128xbf16, #tpu.memory_space<vmem>>, vector<18x16x128xbf16>
    %91 = vector.extract_strided_slice %90 {offsets = [0, 0, 0], sizes = [16, 16, 128], strides = [1, 1, 1]} : vector<18x16x128xbf16> to vector<16x16x128xbf16>
    %c0_116 = arith.constant 0 : index
    %c0_117 = arith.constant 0 : index
    %c0_118 = arith.constant 0 : index
    %c0_119 = arith.constant 0 : index
    %92 = vector.load %arg3[%c0_116, %c0_117, %c0_118, %c0_119] : memref<3x3x128x128xbf16, #tpu.memory_space<vmem>>, vector<1x1x128x128xbf16>
    %93 = vector.shape_cast %92 : vector<1x1x128x128xbf16> to vector<128x128xbf16>
    %cst_120 = arith.constant dense<0.000000e+00> : vector<16x16x128xf32>
    %94 = tpu.matmul %91, %93, %cst_120 {dimension_numbers = #tpu.dot_dimension_numbers<[2], [0], [0, 1], [1], [0, 0, 0, 1, 1, 1], [], []>} : vector<16x16x128xbf16>, vector<128x128xbf16>, vector<16x16x128xf32> -> vector<16x16x128xf32>
    %95 = vector.extract_strided_slice %90 {offsets = [1, 0, 0], sizes = [16, 16, 128], strides = [1, 1, 1]} : vector<18x16x128xbf16> to vector<16x16x128xbf16>
    %c1_121 = arith.constant 1 : index
    %c0_122 = arith.constant 0 : index
    %c0_123 = arith.constant 0 : index
    %c0_124 = arith.constant 0 : index
    %96 = vector.load %arg3[%c1_121, %c0_122, %c0_123, %c0_124] : memref<3x3x128x128xbf16, #tpu.memory_space<vmem>>, vector<1x1x128x128xbf16>
    %97 = vector.shape_cast %96 : vector<1x1x128x128xbf16> to vector<128x128xbf16>
    %cst_125 = arith.constant dense<0.000000e+00> : vector<16x16x128xf32>
    %98 = tpu.matmul %95, %97, %cst_125 {dimension_numbers = #tpu.dot_dimension_numbers<[2], [0], [0, 1], [1], [0, 0, 0, 1, 1, 1], [], []>} : vector<16x16x128xbf16>, vector<128x128xbf16>, vector<16x16x128xf32> -> vector<16x16x128xf32>
    %99 = arith.addf %94, %98 : vector<16x16x128xf32>
    %100 = vector.extract_strided_slice %90 {offsets = [2, 0, 0], sizes = [16, 16, 128], strides = [1, 1, 1]} : vector<18x16x128xbf16> to vector<16x16x128xbf16>
    %c2_126 = arith.constant 2 : index
    %c0_127 = arith.constant 0 : index
    %c0_128 = arith.constant 0 : index
    %c0_129 = arith.constant 0 : index
    %101 = vector.load %arg3[%c2_126, %c0_127, %c0_128, %c0_129] : memref<3x3x128x128xbf16, #tpu.memory_space<vmem>>, vector<1x1x128x128xbf16>
    %102 = vector.shape_cast %101 : vector<1x1x128x128xbf16> to vector<128x128xbf16>
    %cst_130 = arith.constant dense<0.000000e+00> : vector<16x16x128xf32>
    %103 = tpu.matmul %100, %102, %cst_130 {dimension_numbers = #tpu.dot_dimension_numbers<[2], [0], [0, 1], [1], [0, 0, 0, 1, 1, 1], [], []>} : vector<16x16x128xbf16>, vector<128x128xbf16>, vector<16x16x128xf32> -> vector<16x16x128xf32>
    %104 = arith.addf %99, %103 : vector<16x16x128xf32>
    %c0_131 = arith.constant 0 : index
    %c1_132 = arith.constant 1 : index
    %c0_133 = arith.constant 0 : index
    %105 = vector.load %arg5[%c0_131, %c1_132, %c0_133] : memref<18x32x128xbf16, #tpu.memory_space<vmem>>, vector<18x16x128xbf16>
    %106 = vector.extract_strided_slice %105 {offsets = [0, 0, 0], sizes = [16, 16, 128], strides = [1, 1, 1]} : vector<18x16x128xbf16> to vector<16x16x128xbf16>
    %c0_134 = arith.constant 0 : index
    %c1_135 = arith.constant 1 : index
    %c0_136 = arith.constant 0 : index
    %c0_137 = arith.constant 0 : index
    %107 = vector.load %arg3[%c0_134, %c1_135, %c0_136, %c0_137] : memref<3x3x128x128xbf16, #tpu.memory_space<vmem>>, vector<1x1x128x128xbf16>
    %108 = vector.shape_cast %107 : vector<1x1x128x128xbf16> to vector<128x128xbf16>
    %cst_138 = arith.constant dense<0.000000e+00> : vector<16x16x128xf32>
    %109 = tpu.matmul %106, %108, %cst_138 {dimension_numbers = #tpu.dot_dimension_numbers<[2], [0], [0, 1], [1], [0, 0, 0, 1, 1, 1], [], []>} : vector<16x16x128xbf16>, vector<128x128xbf16>, vector<16x16x128xf32> -> vector<16x16x128xf32>
    %110 = arith.addf %104, %109 : vector<16x16x128xf32>
    %111 = vector.extract_strided_slice %105 {offsets = [1, 0, 0], sizes = [16, 16, 128], strides = [1, 1, 1]} : vector<18x16x128xbf16> to vector<16x16x128xbf16>
    %c1_139 = arith.constant 1 : index
    %c1_140 = arith.constant 1 : index
    %c0_141 = arith.constant 0 : index
    %c0_142 = arith.constant 0 : index
    %112 = vector.load %arg3[%c1_139, %c1_140, %c0_141, %c0_142] : memref<3x3x128x128xbf16, #tpu.memory_space<vmem>>, vector<1x1x128x128xbf16>
    %113 = vector.shape_cast %112 : vector<1x1x128x128xbf16> to vector<128x128xbf16>
    %cst_143 = arith.constant dense<0.000000e+00> : vector<16x16x128xf32>
    %114 = tpu.matmul %111, %113, %cst_143 {dimension_numbers = #tpu.dot_dimension_numbers<[2], [0], [0, 1], [1], [0, 0, 0, 1, 1, 1], [], []>} : vector<16x16x128xbf16>, vector<128x128xbf16>, vector<16x16x128xf32> -> vector<16x16x128xf32>
    %115 = arith.addf %110, %114 : vector<16x16x128xf32>
    %116 = vector.extract_strided_slice %105 {offsets = [2, 0, 0], sizes = [16, 16, 128], strides = [1, 1, 1]} : vector<18x16x128xbf16> to vector<16x16x128xbf16>
    %c2_144 = arith.constant 2 : index
    %c1_145 = arith.constant 1 : index
    %c0_146 = arith.constant 0 : index
    %c0_147 = arith.constant 0 : index
    %117 = vector.load %arg3[%c2_144, %c1_145, %c0_146, %c0_147] : memref<3x3x128x128xbf16, #tpu.memory_space<vmem>>, vector<1x1x128x128xbf16>
    %118 = vector.shape_cast %117 : vector<1x1x128x128xbf16> to vector<128x128xbf16>
    %cst_148 = arith.constant dense<0.000000e+00> : vector<16x16x128xf32>
    %119 = tpu.matmul %116, %118, %cst_148 {dimension_numbers = #tpu.dot_dimension_numbers<[2], [0], [0, 1], [1], [0, 0, 0, 1, 1, 1], [], []>} : vector<16x16x128xbf16>, vector<128x128xbf16>, vector<16x16x128xf32> -> vector<16x16x128xf32>
    %120 = arith.addf %115, %119 : vector<16x16x128xf32>
    %c0_149 = arith.constant 0 : index
    %c2_150 = arith.constant 2 : index
    %c0_151 = arith.constant 0 : index
    %121 = vector.load %arg5[%c0_149, %c2_150, %c0_151] : memref<18x32x128xbf16, #tpu.memory_space<vmem>>, vector<18x16x128xbf16>
    %122 = vector.extract_strided_slice %121 {offsets = [0, 0, 0], sizes = [16, 16, 128], strides = [1, 1, 1]} : vector<18x16x128xbf16> to vector<16x16x128xbf16>
    %c0_152 = arith.constant 0 : index
    %c2_153 = arith.constant 2 : index
    %c0_154 = arith.constant 0 : index
    %c0_155 = arith.constant 0 : index
    %123 = vector.load %arg3[%c0_152, %c2_153, %c0_154, %c0_155] : memref<3x3x128x128xbf16, #tpu.memory_space<vmem>>, vector<1x1x128x128xbf16>
    %124 = vector.shape_cast %123 : vector<1x1x128x128xbf16> to vector<128x128xbf16>
    %cst_156 = arith.constant dense<0.000000e+00> : vector<16x16x128xf32>
    %125 = tpu.matmul %122, %124, %cst_156 {dimension_numbers = #tpu.dot_dimension_numbers<[2], [0], [0, 1], [1], [0, 0, 0, 1, 1, 1], [], []>} : vector<16x16x128xbf16>, vector<128x128xbf16>, vector<16x16x128xf32> -> vector<16x16x128xf32>
    %126 = arith.addf %120, %125 : vector<16x16x128xf32>
    %127 = vector.extract_strided_slice %121 {offsets = [1, 0, 0], sizes = [16, 16, 128], strides = [1, 1, 1]} : vector<18x16x128xbf16> to vector<16x16x128xbf16>
    %c1_157 = arith.constant 1 : index
    %c2_158 = arith.constant 2 : index
    %c0_159 = arith.constant 0 : index
    %c0_160 = arith.constant 0 : index
    %128 = vector.load %arg3[%c1_157, %c2_158, %c0_159, %c0_160] : memref<3x3x128x128xbf16, #tpu.memory_space<vmem>>, vector<1x1x128x128xbf16>
    %129 = vector.shape_cast %128 : vector<1x1x128x128xbf16> to vector<128x128xbf16>
    %cst_161 = arith.constant dense<0.000000e+00> : vector<16x16x128xf32>
    %130 = tpu.matmul %127, %129, %cst_161 {dimension_numbers = #tpu.dot_dimension_numbers<[2], [0], [0, 1], [1], [0, 0, 0, 1, 1, 1], [], []>} : vector<16x16x128xbf16>, vector<128x128xbf16>, vector<16x16x128xf32> -> vector<16x16x128xf32>
    %131 = arith.addf %126, %130 : vector<16x16x128xf32>
    %132 = vector.extract_strided_slice %121 {offsets = [2, 0, 0], sizes = [16, 16, 128], strides = [1, 1, 1]} : vector<18x16x128xbf16> to vector<16x16x128xbf16>
    %c2_162 = arith.constant 2 : index
    %c2_163 = arith.constant 2 : index
    %c0_164 = arith.constant 0 : index
    %c0_165 = arith.constant 0 : index
    %133 = vector.load %arg3[%c2_162, %c2_163, %c0_164, %c0_165] : memref<3x3x128x128xbf16, #tpu.memory_space<vmem>>, vector<1x1x128x128xbf16>
    %134 = vector.shape_cast %133 : vector<1x1x128x128xbf16> to vector<128x128xbf16>
    %cst_166 = arith.constant dense<0.000000e+00> : vector<16x16x128xf32>
    %135 = tpu.matmul %132, %134, %cst_166 {dimension_numbers = #tpu.dot_dimension_numbers<[2], [0], [0, 1], [1], [0, 0, 0, 1, 1, 1], [], []>} : vector<16x16x128xbf16>, vector<128x128xbf16>, vector<16x16x128xf32> -> vector<16x16x128xf32>
    %136 = arith.addf %131, %135 : vector<16x16x128xf32>
    %cst_167 = arith.constant dense<0.000000e+00> : vector<128xf32>
    %137 = vector.multi_reduction <add>, %136, %cst_167 [0, 1] : vector<16x16x128xf32> to vector<128xf32>
    %138 = vector.shape_cast %137 : vector<128xf32> to vector<1x1x128xf32>
    %139 = arith.mulf %136, %136 : vector<16x16x128xf32>
    %cst_168 = arith.constant dense<0.000000e+00> : vector<128xf32>
    %140 = vector.multi_reduction <add>, %139, %cst_168 [0, 1] : vector<16x16x128xf32> to vector<128xf32>
    %141 = vector.shape_cast %140 : vector<128xf32> to vector<1x1x128xf32>
    %cst_169 = arith.constant 3.906250e-03 : f32
    %142 = vector.broadcast %cst_169 : f32 to vector<1x1x128xf32>
    %143 = arith.mulf %138, %142 : vector<1x1x128xf32>
    %cst_170 = arith.constant 3.906250e-03 : f32
    %144 = vector.broadcast %cst_170 : f32 to vector<1x1x128xf32>
    %145 = arith.mulf %141, %144 : vector<1x1x128xf32>
    %146 = arith.mulf %143, %143 : vector<1x1x128xf32>
    %147 = arith.subf %145, %146 : vector<1x1x128xf32>
    %cst_171 = arith.constant 0.000000e+00 : f32
    %148 = vector.broadcast %cst_171 : f32 to vector<1x1x128xf32>
    %149 = arith.maximumf %147, %148 : vector<1x1x128xf32>
    %cst_172 = arith.constant 9.99999974E-6 : f32
    %150 = vector.broadcast %cst_172 : f32 to vector<1x1x128xf32>
    %151 = arith.addf %149, %150 : vector<1x1x128xf32>
    %152 = math.rsqrt %151 : vector<1x1x128xf32>
    %153 = vector.broadcast %143 : vector<1x1x128xf32> to vector<16x16x128xf32>
    %154 = arith.subf %136, %153 : vector<16x16x128xf32>
    %155 = vector.broadcast %152 : vector<1x1x128xf32> to vector<16x16x128xf32>
    %156 = arith.mulf %154, %155 : vector<16x16x128xf32>
    %157 = arith.truncf %156 : vector<16x16x128xf32> to vector<16x16x128xbf16>
    %c0_173 = arith.constant 0 : index
    %c0_174 = arith.constant 0 : index
    %c0_175 = arith.constant 0 : index
    %c0_176 = arith.constant 0 : index
    %158 = vector.load %arg4[%c0_173, %c0_174, %c0_175, %c0_176] : memref<1x16x16x128xbf16, #tpu.memory_space<vmem>>, vector<1x16x16x128xbf16>
    %159 = vector.shape_cast %158 : vector<1x16x16x128xbf16> to vector<16x16x128xbf16>
    %160 = vector.shape_cast %157 : vector<16x16x128xbf16> to vector<1x16x16x128xbf16>
    tpu.vector_store %arg4[%c0_173, %c0_174, %c0_175, %c0_176], %160 {strides = array<i32>} : memref<1x16x16x128xbf16, #tpu.memory_space<vmem>>, vector<1x16x16x128xbf16>,
    return
  }
  func.func @transform_0(%arg0: i32) -> (i32, i32, i32, i32) {
    %c0_i32 = arith.constant 0 : i32
    %c0_i32_0 = arith.constant 0 : i32
    %c0_i32_1 = arith.constant 0 : i32
    %c0_i32_2 = arith.constant 0 : i32
    return %arg0, %c0_i32, %c0_i32_0, %c0_i32_1 : i32, i32, i32, i32
  }
  func.func @transform_1(%arg0: i32) -> (i32, i32, i32, i32) {
    %c0_i32 = arith.constant 0 : i32
    %c0_i32_0 = arith.constant 0 : i32
    %c0_i32_1 = arith.constant 0 : i32
    %c0_i32_2 = arith.constant 0 : i32
    %c0_i32_3 = arith.constant 0 : i32
    return %c0_i32, %c0_i32_0, %c0_i32_1, %c0_i32_2 : i32, i32, i32, i32
  }
  func.func @transform_2(%arg0: i32) -> (i32, i32, i32, i32) {
    %c0_i32 = arith.constant 0 : i32
    %c0_i32_0 = arith.constant 0 : i32
    %c0_i32_1 = arith.constant 0 : i32
    %c0_i32_2 = arith.constant 0 : i32
    %c0_i32_3 = arith.constant 0 : i32
    return %c0_i32, %c0_i32_0, %c0_i32_1, %c0_i32_2 : i32, i32, i32, i32
  }
  func.func @transform_3(%arg0: i32) -> (i32, i32, i32, i32) {
    %c0_i32 = arith.constant 0 : i32
    %c0_i32_0 = arith.constant 0 : i32
    %c0_i32_1 = arith.constant 0 : i32
    %c0_i32_2 = arith.constant 0 : i32
    return %arg0, %c0_i32, %c0_i32_0, %c0_i32_1 : i32, i32, i32, i32
  }
}

</mosaic_0001>

<llo_original>
// kernel: tpu_custom_call.1
$region0: #{tpu_custom_call.1}
  #allocation0 [shape = 'u32[]', space=smem, size = 0x4, offset = 0x4, fixed_abs, tag = 'smem constant byte address 0x4 - core index']
  #allocation1 [shape = 'u32[144,128]{1,0:T(1,128)}', space=vmem, size = 0x12000, scoped, tag = 'internal scratch']
  #allocation2 [shape = 'bf16[18,32,128]{2,1,0:T(16,128)(2,1)}', space=vmem, size = 0x24000, scoped, tag = 'scratch operand']
  %s0 = inlined_call_operand.hbm [shape: bf16[2,16,16,128], index: 0, kind: input, shape index: {}]
  %s1 = inlined_call_operand.hbm [shape: bf16[3,3,128,128], index: 1, kind: input, shape index: {}]
  %s2 = inlined_call_operand.hbm [shape: bf16[3,3,128,128], index: 2, kind: input, shape index: {}]
  %s3 = inlined_call_operand.hbm [shape: bf16[2,16,16,128], index: 3, kind: output, shape index: {}]
  %s4 = sld [smem:[#allocation0]]
  $region57: #{tpu_custom_call.1} parent=0
    _
  %s6 = ssub.s32 1, %s4
  %s7 = scalar_select 0, %s6, %s4
  $region1: #{tpu_custom_call.1} parent=0
    #allocation3 [shape = 'u8[131072]{0}', space=vmem, size = 0x20000, scoped, tag = 'input window, operand 0']
    #allocation4 [shape = 's32[2]{0}', space=sflag, size = 0x8, scoped, tag = 'scoped memory for tpu_custom_call.1']
    #allocation5 [shape = 's32[2]{0}', space=sflag, size = 0x8, scoped, tag = 'scoped memory for tpu_custom_call.1']
    #allocation6 [shape = 'u8[294912]{0}', space=vmem, size = 0x48000, scoped, tag = 'input window, operand 1, single buffered']
    #allocation7 [shape = 's32[1]{0}', space=sflag, size = 0x4, scoped, tag = 'scoped memory for tpu_custom_call.1']
    #allocation8 [shape = 'u8[294912]{0}', space=vmem, size = 0x48000, scoped, tag = 'input window, operand 2, single buffered']
    #allocation9 [shape = 'u8[131072]{0}', space=vmem, size = 0x20000, scoped, tag = 'output window, operand 0']
    %8 = vsyncpa [#allocation4], 0
    %s9 = scalar_lea.sflag [#allocation4], 1
    %10 = vsyncpa %s9, 0
    %11 = vsyncpa [#allocation7], 0
    %12 = vsyncpa [#allocation5], 0
    %s13 = scalar_lea.sflag [#allocation5], 1
    %14 = vsyncpa %s13, 0
    loop: start=0, step=1, limit=4
    $region2: #{tpu_custom_call.1} parent=1 // loop_pre_header
      _
    $region3: #{tpu_custom_call.1} parent=1 // loop_header
      %s16 = sphi 0, %s20
      %p17 = scmp.ge.s32.totalorder %s16, 4
      %s26 = sphi 0, %s28
      %s29 = sphi 0, %s26
      %s30 = sphi 0, %s29
      %s46 = sphi 0, %s30
      %s50 = sphi 0, %s50
      %s52 = sphi 0, %s50
      %s53 = sphi 0, %s52
      %s67 = sphi 0, %s53
      %s71 = sphi 0, %s71
      %s73 = sphi 0, %s71
      %s74 = sphi 0, %s73
      %s88 = sphi 0, %s74
      %s94 = sphi 0, %s96
      %s97 = sphi 0, %s94
      %s98 = sphi 0, %s97
      %s114 = sphi 0, %s98
    $region4: #{tpu_custom_call.1} parent=1 // loop_header_branch
      %19 = sbr.rel (%p17) target = $region8
    $region5: #{tpu_custom_call.1} parent=1 // loop_body
      %s21 = ssub.s32 %s16, 1
      %s22 = ssub.s32 %s16, 2
      %s23 = sadd.s32 %s16, 1
      %s24 = ssub.s32 %s16, %s23
      %p25 = scmp.eq.s32.totalorder %s24, 0
      %s27 = sadd.s32 %s26, 1
      %s28 = scalar_select %p25, %s26, %s27
      %p31 = pneg %p25
      %p32 = scmp.eq.s32.totalorder %s16, 1
      %p33 = por %p31, %p32
      %p34 = scmp.ne.s32.totalorder %s26, %s29
      %p35 = scmp.eq.s32.totalorder %s16, 0
      %p36 = por %p34, %p35
      %p37 = scmp.ne.s32.totalorder %s26, %s29
      %p38 = scmp.eq.s32.totalorder %s21, 1
      %p39 = por %p37, %p38
      %p40 = scmp.ne.s32.totalorder %s29, %s30
      %p41 = scmp.eq.s32.totalorder %s21, 0
      %p42 = por %p40, %p41
      %p43 = scmp.ne.s32.totalorder %s29, %s30
      %p44 = scmp.eq.s32.totalorder %s22, 1
      %p45 = por %p43, %p44
      %p47 = scmp.ne.s32.totalorder %s30, %s46
      %p48 = scmp.eq.s32.totalorder %s22, 0
      %p49 = por %p47, %p48
      %s51 = sadd.s32 %s50, 1
      %p54 = scmp.eq.s32.totalorder %s16, 1
      %p55 = scmp.ne.s32.totalorder %s50, %s52
      %p56 = scmp.eq.s32.totalorder %s16, 0
      %p57 = por %p55, %p56
      %p58 = scmp.ne.s32.totalorder %s50, %s52
      %p59 = scmp.eq.s32.totalorder %s21, 1
      %p60 = por %p58, %p59
      %p61 = scmp.ne.s32.totalorder %s52, %s53
      %p62 = scmp.eq.s32.totalorder %s21, 0
      %p63 = por %p61, %p62
      %p64 = scmp.ne.s32.totalorder %s52, %s53
      %p65 = scmp.eq.s32.totalorder %s22, 1
      %p66 = por %p64, %p65
      %p68 = scmp.ne.s32.totalorder %s53, %s67
      %p69 = scmp.eq.s32.totalorder %s22, 0
      %p70 = por %p68, %p69
      %s72 = sadd.s32 %s71, 1
      %p75 = scmp.eq.s32.totalorder %s16, 1
      %p76 = scmp.ne.s32.totalorder %s71, %s73
      %p77 = scmp.eq.s32.totalorder %s16, 0
      %p78 = por %p76, %p77
      %p79 = scmp.ne.s32.totalorder %s71, %s73
      %p80 = scmp.eq.s32.totalorder %s21, 1
      %p81 = por %p79, %p80
      %p82 = scmp.ne.s32.totalorder %s73, %s74
      %p83 = scmp.eq.s32.totalorder %s21, 0
      %p84 = por %p82, %p83
      %p85 = scmp.ne.s32.totalorder %s73, %s74
      %p86 = scmp.eq.s32.totalorder %s22, 1
      %p87 = por %p85, %p86
      %p89 = scmp.ne.s32.totalorder %s74, %s88
      %p90 = scmp.eq.s32.totalorder %s22, 0
      %p91 = por %p89, %p90
      %s92 = ssub.s32 %s16, %s23
      %p93 = scmp.eq.s32.totalorder %s92, 0
      %s95 = sadd.s32 %s94, 1
      %s96 = scalar_select %p93, %s94, %s95
      %p99 = pneg %p93
      %p100 = scmp.eq.s32.totalorder %s16, 1
      %p101 = por %p99, %p100
      %p102 = scmp.ne.s32.totalorder %s94, %s97
      %p103 = scmp.eq.s32.totalorder %s16, 0
      %p104 = por %p102, %p103
      %p105 = scmp.ne.s32.totalorder %s94, %s97
      %p106 = scmp.eq.s32.totalorder %s21, 1
      %p107 = por %p105, %p106
      %p108 = scmp.ne.s32.totalorder %s97, %s98
      %p109 = scmp.eq.s32.totalorder %s21, 0
      %p110 = por %p108, %p109
      %p111 = scmp.ne.s32.totalorder %s97, %s98
      %p112 = scmp.eq.s32.totalorder %s22, 1
      %p113 = por %p111, %p112
      %p115 = scmp.ne.s32.totalorder %s98, %s114
      %p116 = scmp.eq.s32.totalorder %s22, 0
      %p117 = por %p115, %p116
      %p118 = scmp.le.s32.totalorder 1, %s16
      %p119 = scmp.lt.s32.totalorder %s16, 3
      %p120 = pnand %p118, %p119
      %p121 = pneg %p120
      // Predicated region
      $region9: #{tpu_custom_call.1} parent=5 // pred_check
        _
      $region10: #{tpu_custom_call.1} parent=5 // pred_check_branch
        %123 = sbr.rel (%p120) target = $region12
      $region11: #{tpu_custom_call.1} parent=5 // pred_region
        %s124 = ssub.s32 %s16, 1
        // Predicated region
        $region13: #{tpu_custom_call.1} parent=11 // pred_check
          %p125 = pneg %p63
        $region14: #{tpu_custom_call.1} parent=11 // pred_check_branch
          %127 = sbr.rel (%p125) target = $region16
        $region15: #{tpu_custom_call.1} parent=11 // pred_region
          %s129 = ssub.s32 9216, 9216
          %130 = vsyncadd [#allocation7], %s129
          %s131 = sshll.u32 [#allocation6], 4
          %s132 = int_to_ptr.vmem [resolvable:$true] %s131
          %137 = dma.hbm_to_vmem [thread:$0]  %s1, 9216, %s132, [#allocation7], 64, 64, 4
        $region16: #{tpu_custom_call.1} parent=11 // pred_fallthru
          _
        // Predicated region
        $region17: #{tpu_custom_call.1} parent=11 // pred_check
          %p138 = pneg %p84
        $region18: #{tpu_custom_call.1} parent=11 // pred_check_branch
          %140 = sbr.rel (%p138) target = $region20
        $region19: #{tpu_custom_call.1} parent=11 // pred_region
          %s142 = ssub.s32 9216, 9216
          %143 = vsyncadd [#allocation7], %s142
          %s144 = sshll.u32 [#allocation8], 4
          %s145 = int_to_ptr.vmem [resolvable:$true] %s144
          %150 = dma.hbm_to_vmem [thread:$0]  %s2, 9216, %s145, [#allocation7], 64, 64, 4
        $region20: #{tpu_custom_call.1} parent=11 // pred_fallthru
          _
      $region12: #{tpu_custom_call.1} parent=5 // pred_fallthru
        _
      %p151 = scmp.lt.s32.totalorder %s16, 2
      // Predicated region
      $region21: #{tpu_custom_call.1} parent=5 // pred_check
        %p152 = pneg %p151
      $region22: #{tpu_custom_call.1} parent=5 // pred_check_branch
        %154 = sbr.rel (%p152) target = $region24
      $region23: #{tpu_custom_call.1} parent=5 // pred_region
        // Predicated region
        $region25: #{tpu_custom_call.1} parent=23 // pred_check
          %p155 = pneg %p36
        $region26: #{tpu_custom_call.1} parent=23 // pred_check_branch
          %157 = sbr.rel (%p155) target = $region28
        $region27: #{tpu_custom_call.1} parent=23 // pred_region
          %s158 = sand.u32 %s26, 1
          %s159 = scalar_lea.sflag [#allocation4], %s158
          %s160 = sand.u32 %s26, 1
          %s161 = smul.addr %s160, 128
          %s162 = scalar_lea.vmem [#allocation3], %s161
          %s164 = ssub.s32 2048, 2048
          %165 = vsyncadd %s159, %s164
          %s166 = smul.addr %s16, 32
          %s167 = smul.addr %s166, 64
          %s168 = scalar_lea.hbm %s0, %s167
          %s169 = sshll.u32 %s162, 4
          %s170 = int_to_ptr.vmem [resolvable:$true] %s169
          %175 = dma.hbm_to_vmem [thread:$0]  %s168, 2048, %s170, %s159, 64, 64, 4
        $region28: #{tpu_custom_call.1} parent=23 // pred_fallthru
          _
      $region24: #{tpu_custom_call.1} parent=5 // pred_fallthru
        _
      %p176 = scmp.le.s32.totalorder 1, %s16
      %p177 = scmp.lt.s32.totalorder %s16, 3
      %p178 = pnand %p176, %p177
      %p179 = pneg %p178
      // Predicated region
      $region29: #{tpu_custom_call.1} parent=5 // pred_check
        _
      $region30: #{tpu_custom_call.1} parent=5 // pred_check_branch
        %181 = sbr.rel (%p178) target = $region32
      $region31: #{tpu_custom_call.1} parent=5 // pred_region
        %s182 = ssub.s32 %s16, 1
        %s183 = sand.u32 %s29, 1
        %s184 = scalar_lea.sflag [#allocation4], %s183
        %s185 = sand.u32 %s29, 1
        %s186 = smul.addr %s185, 128
        %s187 = scalar_lea.vmem [#allocation3], %s186
        // Predicated region
        $region33: #{tpu_custom_call.1} parent=31 // pred_check
          %p188 = pneg %p42
        $region34: #{tpu_custom_call.1} parent=31 // pred_check_branch
          %190 = sbr.rel (%p188) target = $region36
        $region35: #{tpu_custom_call.1} parent=31 // pred_region
          %191 = dma.done %s184, 2048
        $region36: #{tpu_custom_call.1} parent=31 // pred_fallthru
          _
        // Predicated region
        $region37: #{tpu_custom_call.1} parent=31 // pred_check
          %p192 = pneg %p63
        $region38: #{tpu_custom_call.1} parent=31 // pred_check_branch
          %194 = sbr.rel (%p192) target = $region40
        $region39: #{tpu_custom_call.1} parent=31 // pred_region
          %195 = dma.done [#allocation7], 9216
        $region40: #{tpu_custom_call.1} parent=31 // pred_fallthru
          _
        // Predicated region
        $region41: #{tpu_custom_call.1} parent=31 // pred_check
          %p196 = pneg %p84
        $region42: #{tpu_custom_call.1} parent=31 // pred_check_branch
          %198 = sbr.rel (%p196) target = $region44
        $region43: #{tpu_custom_call.1} parent=31 // pred_region
          %199 = dma.done [#allocation7], 9216
        $region44: #{tpu_custom_call.1} parent=31 // pred_fallthru
          _
        %s200 = sand.u32 %s29, 1
        %s201 = scalar_lea.sflag [#allocation4], %s200
        %s202 = sand.u32 %s29, 1
        %s203 = smul.addr %s202, 128
        %s204 = scalar_lea.vmem [#allocation3], %s203
        %p205 = pneg %p42
        %p206 = pneg %p39
        %p207 = pneg %p63
        %p208 = pneg %p60
        %p209 = pneg %p84
        %p210 = pneg %p81
        %p211 = pneg %p110
        %p212 = pneg %p107
        %s213 = sand.u32 %s97, 1
        %s214 = scalar_lea.sflag [#allocation5], %s213
        %s215 = sand.u32 %s97, 1
        %s216 = smul.addr %s215, 128
        %s217 = scalar_lea.vmem [#allocation9], %s216
        %v219 = vld [vmem:[%s187] sm:$0xf]
        %v220 = vld [vmem:[%s187 + $0x4] sm:$0xf]
        %v221 = vld [vmem:[%s187 + $0x8] sm:$0xf]
        %v222 = vld [vmem:[%s187 + $0xc] sm:$0xf]
        %v223 = vld [vmem:[%s187 + $0x10] sm:$0xf]
        %v224 = vld [vmem:[%s187 + $0x14] sm:$0xf]
        %v225 = vld [vmem:[%s187 + $0x18] sm:$0xf]
        %v226 = vld [vmem:[%s187 + $0x1c] sm:$0xf]
        %v227 = vld [vmem:[%s187 + $0x20] sm:$0xf]
        %v228 = vld [vmem:[%s187 + $0x24] sm:$0xf]
        %v229 = vld [vmem:[%s187 + $0x28] sm:$0xf]
        %v230 = vld [vmem:[%s187 + $0x2c] sm:$0xf]
        %v231 = vld [vmem:[%s187 + $0x30] sm:$0xf]
        %v232 = vld [vmem:[%s187 + $0x34] sm:$0xf]
        %v233 = vld [vmem:[%s187 + $0x38] sm:$0xf]
        %v234 = vld [vmem:[%s187 + $0x3c] sm:$0xf]
        %v235 = vld [vmem:[%s187 + $0x40] sm:$0xf]
        %v236 = vld [vmem:[%s187 + $0x44] sm:$0xf]
        %v237 = vld [vmem:[%s187 + $0x48] sm:$0xf]
        %v238 = vld [vmem:[%s187 + $0x4c] sm:$0xf]
        %v239 = vld [vmem:[%s187 + $0x50] sm:$0xf]
        %v240 = vld [vmem:[%s187 + $0x54] sm:$0xf]
        %v241 = vld [vmem:[%s187 + $0x58] sm:$0xf]
        %v242 = vld [vmem:[%s187 + $0x5c] sm:$0xf]
        %v243 = vld [vmem:[%s187 + $0x60] sm:$0xf]
        %v244 = vld [vmem:[%s187 + $0x64] sm:$0xf]
        %v245 = vld [vmem:[%s187 + $0x68] sm:$0xf]
        %v246 = vld [vmem:[%s187 + $0x6c] sm:$0xf]
        %v247 = vld [vmem:[%s187 + $0x70] sm:$0xf]
        %v248 = vld [vmem:[%s187 + $0x74] sm:$0xf]
        %v249 = vld [vmem:[%s187 + $0x78] sm:$0xf]
        %v250 = vld [vmem:[%s187 + $0x7c] sm:$0xf]
        %v283 = vunpack.c.l.b16 %v219
        %v284 = vunpack.c.l.b16 %v220
        %v285 = vunpack.c.l.b16 %v221
        %v286 = vunpack.c.l.b16 %v222
        %v287 = vunpack.c.l.b16 %v223
        %v288 = vunpack.c.l.b16 %v224
        %v289 = vunpack.c.l.b16 %v225
        %v290 = vunpack.c.l.b16 %v226
        %v291 = vunpack.c.l.b16 %v227
        %v292 = vunpack.c.l.b16 %v228
        %v293 = vunpack.c.l.b16 %v229
        %v294 = vunpack.c.l.b16 %v230
        %v295 = vunpack.c.l.b16 %v231
        %v296 = vunpack.c.l.b16 %v232
        %v297 = vunpack.c.l.b16 %v233
        %v298 = vunpack.c.l.b16 %v234
        %v299 = vunpack.c.l.b16 %v235
        %v300 = vunpack.c.l.b16 %v236
        %v301 = vunpack.c.l.b16 %v237
        %v302 = vunpack.c.l.b16 %v238
        %v303 = vunpack.c.l.b16 %v239
        %v304 = vunpack.c.l.b16 %v240
        %v305 = vunpack.c.l.b16 %v241
        %v306 = vunpack.c.l.b16 %v242
        %v307 = vunpack.c.l.b16 %v243
        %v308 = vunpack.c.l.b16 %v244
        %v309 = vunpack.c.l.b16 %v245
        %v310 = vunpack.c.l.b16 %v246
        %v311 = vunpack.c.l.b16 %v247
        %v312 = vunpack.c.l.b16 %v248
        %v313 = vunpack.c.l.b16 %v249
        %v314 = vunpack.c.l.b16 %v250
        %v315 = vpack.c.b16 %v284, %v283
        %v316 = vpack.c.b16 %v286, %v285
        %v317 = vpack.c.b16 %v288, %v287
        %v318 = vpack.c.b16 %v290, %v289
        %v319 = vpack.c.b16 %v292, %v291
        %v320 = vpack.c.b16 %v294, %v293
        %v321 = vpack.c.b16 %v296, %v295
        %v322 = vpack.c.b16 %v298, %v297
        %v323 = vpack.c.b16 %v300, %v299
        %v324 = vpack.c.b16 %v302, %v301
        %v325 = vpack.c.b16 %v304, %v303
        %v326 = vpack.c.b16 %v306, %v305
        %v327 = vpack.c.b16 %v308, %v307
        %v328 = vpack.c.b16 %v310, %v309
        %v329 = vpack.c.b16 %v312, %v311
        %v330 = vpack.c.b16 %v314, %v313
        %v332 = vshrl.u32 %v315, 16
        %v334 = vrot.slane %v332, 7
        %v335 = vshll.u32 %v315, 16
        %v337 = vor.u32 %v334, %v335
        %v339 = vshrl.u32 %v316, 16
        %v341 = vrot.slane %v339, 7
        %v342 = vshll.u32 %v316, 16
        %v344 = vor.u32 %v341, %v342
        %v346 = vshrl.u32 %v317, 16
        %v348 = vrot.slane %v346, 7
        %v349 = vshll.u32 %v317, 16
        %v351 = vor.u32 %v348, %v349
        %v353 = vshrl.u32 %v318, 16
        %v355 = vrot.slane %v353, 7
        %v356 = vshll.u32 %v318, 16
        %v358 = vor.u32 %v355, %v356
        %v360 = vshrl.u32 %v319, 16
        %v362 = vrot.slane %v360, 7
        %v363 = vshll.u32 %v319, 16
        %v365 = vor.u32 %v362, %v363
        %v367 = vshrl.u32 %v320, 16
        %v369 = vrot.slane %v367, 7
        %v370 = vshll.u32 %v320, 16
        %v372 = vor.u32 %v369, %v370
        %v374 = vshrl.u32 %v321, 16
        %v376 = vrot.slane %v374, 7
        %v377 = vshll.u32 %v321, 16
        %v379 = vor.u32 %v376, %v377
        %v381 = vshrl.u32 %v322, 16
        %v383 = vrot.slane %v381, 7
        %v384 = vshll.u32 %v322, 16
        %v386 = vor.u32 %v383, %v384
        %v388 = vshrl.u32 %v323, 16
        %v390 = vrot.slane %v388, 7
        %v391 = vshll.u32 %v323, 16
        %v393 = vor.u32 %v390, %v391
        %v395 = vshrl.u32 %v324, 16
        %v397 = vrot.slane %v395, 7
        %v398 = vshll.u32 %v324, 16
        %v400 = vor.u32 %v397, %v398
        %v402 = vshrl.u32 %v325, 16
        %v404 = vrot.slane %v402, 7
        %v405 = vshll.u32 %v325, 16
        %v407 = vor.u32 %v404, %v405
        %v409 = vshrl.u32 %v326, 16
        %v411 = vrot.slane %v409, 7
        %v412 = vshll.u32 %v326, 16
        %v414 = vor.u32 %v411, %v412
        %v416 = vshrl.u32 %v327, 16
        %v418 = vrot.slane %v416, 7
        %v419 = vshll.u32 %v327, 16
        %v421 = vor.u32 %v418, %v419
        %v423 = vshrl.u32 %v328, 16
        %v425 = vrot.slane %v423, 7
        %v426 = vshll.u32 %v328, 16
        %v428 = vor.u32 %v425, %v426
        %v430 = vshrl.u32 %v329, 16
        %v432 = vrot.slane %v430, 7
        %v433 = vshll.u32 %v329, 16
        %v435 = vor.u32 %v432, %v433
        %v437 = vshrl.u32 %v330, 16
        %v439 = vrot.slane %v437, 7
        %v440 = vshll.u32 %v330, 16
        %v442 = vor.u32 %v439, %v440
        %s475 = scalar_lea.vmem [#allocation2], 16
        %vm476 = vcmask 1047552
        %vm477 = vsmask.f32 7938
        %vm478 = vmand %vm476, %vm477
        %v479 = vld [vmem:[%s475] sm:$0xff]
        %v480 = vsel %vm478, %v337, %v479
        %481 = vst [vmem:[%s475] sm:$0xff] %v480
        %vm482 = vcmask 1040384
        %vm483 = vsmask.f32 256
        %vm484 = vmand %vm482, %vm483
        %v485 = vld [vmem:[%s475 + $0x8] sm:$0x1]
        %v486 = vsel %vm484, %v334, %v485
        %487 = vst [vmem:[%s475 + $0x8] sm:$0x1] %v486
        %v488 = vld [vmem:[%s475 + $0x10] sm:$0xff]
        %v489 = vsel %vm478, %v344, %v488
        %490 = vst [vmem:[%s475 + $0x10] sm:$0xff] %v489
        %v491 = vld [vmem:[%s475 + $0x18] sm:$0x1]
        %v492 = vsel %vm484, %v341, %v491
        %493 = vst [vmem:[%s475 + $0x18] sm:$0x1] %v492
        %v494 = vld [vmem:[%s475 + $0x20] sm:$0xff]
        %v495 = vsel %vm478, %v351, %v494
        %496 = vst [vmem:[%s475 + $0x20] sm:$0xff] %v495
        %v497 = vld [vmem:[%s475 + $0x28] sm:$0x1]
        %v498 = vsel %vm484, %v348, %v497
        %499 = vst [vmem:[%s475 + $0x28] sm:$0x1] %v498
        %v500 = vld [vmem:[%s475 + $0x30] sm:$0xff]
        %v501 = vsel %vm478, %v358, %v500
        %502 = vst [vmem:[%s475 + $0x30] sm:$0xff] %v501
        %v503 = vld [vmem:[%s475 + $0x38] sm:$0x1]
        %v504 = vsel %vm484, %v355, %v503
        %505 = vst [vmem:[%s475 + $0x38] sm:$0x1] %v504
        %v506 = vld [vmem:[%s475 + $0x40] sm:$0xff]
        %v507 = vsel %vm478, %v365, %v506
        %508 = vst [vmem:[%s475 + $0x40] sm:$0xff] %v507
        %v509 = vld [vmem:[%s475 + $0x48] sm:$0x1]
        %v510 = vsel %vm484, %v362, %v509
        %511 = vst [vmem:[%s475 + $0x48] sm:$0x1] %v510
        %v512 = vld [vmem:[%s475 + $0x50] sm:$0xff]
        %v513 = vsel %vm478, %v372, %v512
        %514 = vst [vmem:[%s475 + $0x50] sm:$0xff] %v513
        %v515 = vld [vmem:[%s475 + $0x58] sm:$0x1]
        %v516 = vsel %vm484, %v369, %v515
        %517 = vst [vmem:[%s475 + $0x58] sm:$0x1] %v516
        %v518 = vld [vmem:[%s475 + $0x60] sm:$0xff]
        %v519 = vsel %vm478, %v379, %v518
        %520 = vst [vmem:[%s475 + $0x60] sm:$0xff] %v519
        %v521 = vld [vmem:[%s475 + $0x68] sm:$0x1]
        %v522 = vsel %vm484, %v376, %v521
        %523 = vst [vmem:[%s475 + $0x68] sm:$0x1] %v522
        %v524 = vld [vmem:[%s475 + $0x70] sm:$0xff]
        %v525 = vsel %vm478, %v386, %v524
        %526 = vst [vmem:[%s475 + $0x70] sm:$0xff] %v525
        %v527 = vld [vmem:[%s475 + $0x78] sm:$0x1]
        %v528 = vsel %vm484, %v383, %v527
        %529 = vst [vmem:[%s475 + $0x78] sm:$0x1] %v528
        %v530 = vld [vmem:[%s475 + $0x80] sm:$0xff]
        %v531 = vsel %vm478, %v393, %v530
        %532 = vst [vmem:[%s475 + $0x80] sm:$0xff] %v531
        %v533 = vld [vmem:[%s475 + $0x88] sm:$0x1]
        %v534 = vsel %vm484, %v390, %v533
        %535 = vst [vmem:[%s475 + $0x88] sm:$0x1] %v534
        %v536 = vld [vmem:[%s475 + $0x90] sm:$0xff]
        %v537 = vsel %vm478, %v400, %v536
        %538 = vst [vmem:[%s475 + $0x90] sm:$0xff] %v537
        %v539 = vld [vmem:[%s475 + $0x98] sm:$0x1]
        %v540 = vsel %vm484, %v397, %v539
        %541 = vst [vmem:[%s475 + $0x98] sm:$0x1] %v540
        %v542 = vld [vmem:[%s475 + $0xa0] sm:$0xff]
        %v543 = vsel %vm478, %v407, %v542
        %544 = vst [vmem:[%s475 + $0xa0] sm:$0xff] %v543
        %v545 = vld [vmem:[%s475 + $0xa8] sm:$0x1]
        %v546 = vsel %vm484, %v404, %v545
        %547 = vst [vmem:[%s475 + $0xa8] sm:$0x1] %v546
        %v548 = vld [vmem:[%s475 + $0xb0] sm:$0xff]
        %v549 = vsel %vm478, %v414, %v548
        %550 = vst [vmem:[%s475 + $0xb0] sm:$0xff] %v549
        %v551 = vld [vmem:[%s475 + $0xb8] sm:$0x1]
        %v552 = vsel %vm484, %v411, %v551
        %553 = vst [vmem:[%s475 + $0xb8] sm:$0x1] %v552
        %v554 = vld [vmem:[%s475 + $0xc0] sm:$0xff]
        %v555 = vsel %vm478, %v421, %v554
        %556 = vst [vmem:[%s475 + $0xc0] sm:$0xff] %v555
        %v557 = vld [vmem:[%s475 + $0xc8] sm:$0x1]
        %v558 = vsel %vm484, %v418, %v557
        %559 = vst [vmem:[%s475 + $0xc8] sm:$0x1] %v558
        %v560 = vld [vmem:[%s475 + $0xd0] sm:$0xff]
        %v561 = vsel %vm478, %v428, %v560
        %562 = vst [vmem:[%s475 + $0xd0] sm:$0xff] %v561
        %v563 = vld [vmem:[%s475 + $0xd8] sm:$0x1]
        %v564 = vsel %vm484, %v425, %v563
        %565 = vst [vmem:[%s475 + $0xd8] sm:$0x1] %v564
        %v566 = vld [vmem:[%s475 + $0xe0] sm:$0xff]
        %v567 = vsel %vm478, %v435, %v566
        %568 = vst [vmem:[%s475 + $0xe0] sm:$0xff] %v567
        %v569 = vld [vmem:[%s475 + $0xe8] sm:$0x1]
        %v570 = vsel %vm484, %v432, %v569
        %571 = vst [vmem:[%s475 + $0xe8] sm:$0x1] %v570
        %v572 = vld [vmem:[%s475 + $0xf0] sm:$0xff]
        %v573 = vsel %vm478, %v442, %v572
        %574 = vst [vmem:[%s475 + $0xf0] sm:$0xff] %v573
        %v575 = vld [vmem:[%s475 + $0xf8] sm:$0x1]
        %v576 = vsel %vm484, %v439, %v575
        %577 = vst [vmem:[%s475 + $0xf8] sm:$0x1] %v576
        %v578 = vld [vmem:[%s475] sm:$0x2]
        %v579 = vld [vmem:[%s475 + $0x10] sm:$0x2]
        %v580 = vld [vmem:[%s475 + $0x20] sm:$0x2]
        %v581 = vld [vmem:[%s475 + $0x30] sm:$0x2]
        %v582 = vld [vmem:[%s475 + $0x40] sm:$0x2]
        %v583 = vld [vmem:[%s475 + $0x50] sm:$0x2]
        %v584 = vld [vmem:[%s475 + $0x60] sm:$0x2]
        %v585 = vld [vmem:[%s475 + $0x70] sm:$0x2]
        %v586 = vld [vmem:[%s475 + $0x80] sm:$0x2]
        %v587 = vld [vmem:[%s475 + $0x90] sm:$0x2]
        %v588 = vld [vmem:[%s475 + $0xa0] sm:$0x2]
        %v589 = vld [vmem:[%s475 + $0xb0] sm:$0x2]
        %v590 = vld [vmem:[%s475 + $0xc0] sm:$0x2]
        %v591 = vld [vmem:[%s475 + $0xd0] sm:$0x2]
        %v592 = vld [vmem:[%s475 + $0xe0] sm:$0x2]
        %v593 = vld [vmem:[%s475 + $0xf0] sm:$0x2]
        %v610 = vrot.slane %v578, 1
        %v611 = vrot.slane %v579, 1
        %v612 = vrot.slane %v580, 1
        %v613 = vrot.slane %v581, 1
        %v614 = vrot.slane %v582, 1
        %v615 = vrot.slane %v583, 1
        %v616 = vrot.slane %v584, 1
        %v617 = vrot.slane %v585, 1
        %v618 = vrot.slane %v586, 1
        %v619 = vrot.slane %v587, 1
        %v620 = vrot.slane %v588, 1
        %v621 = vrot.slane %v589, 1
        %v622 = vrot.slane %v590, 1
        %v623 = vrot.slane %v591, 1
        %v624 = vrot.slane %v592, 1
        %v625 = vrot.slane %v593, 1
        %v642 = vld [vmem:[%s475] sm:$0x1]
        %v643 = vsel %vm484, %v610, %v642
        %644 = vst [vmem:[%s475] sm:$0x1] %v643
        %v645 = vld [vmem:[%s475 + $0x10] sm:$0x1]
        %v646 = vsel %vm484, %v611, %v645
        %647 = vst [vmem:[%s475 + $0x10] sm:$0x1] %v646
        %v648 = vld [vmem:[%s475 + $0x20] sm:$0x1]
        %v649 = vsel %vm484, %v612, %v648
        %650 = vst [vmem:[%s475 + $0x20] sm:$0x1] %v649
        %v651 = vld [vmem:[%s475 + $0x30] sm:$0x1]
        %v652 = vsel %vm484, %v613, %v651
        %653 = vst [vmem:[%s475 + $0x30] sm:$0x1] %v652
        %v654 = vld [vmem:[%s475 + $0x40] sm:$0x1]
        %v655 = vsel %vm484, %v614, %v654
        %656 = vst [vmem:[%s475 + $0x40] sm:$0x1] %v655
        %v657 = vld [vmem:[%s475 + $0x50] sm:$0x1]
        %v658 = vsel %vm484, %v615, %v657
        %659 = vst [vmem:[%s475 + $0x50] sm:$0x1] %v658
        %v660 = vld [vmem:[%s475 + $0x60] sm:$0x1]
        %v661 = vsel %vm484, %v616, %v660
        %662 = vst [vmem:[%s475 + $0x60] sm:$0x1] %v661
        %v663 = vld [vmem:[%s475 + $0x70] sm:$0x1]
        %v664 = vsel %vm484, %v617, %v663
        %665 = vst [vmem:[%s475 + $0x70] sm:$0x1] %v664
        %v666 = vld [vmem:[%s475 + $0x80] sm:$0x1]
        %v667 = vsel %vm484, %v618, %v666
        %668 = vst [vmem:[%s475 + $0x80] sm:$0x1] %v667
        %v669 = vld [vmem:[%s475 + $0x90] sm:$0x1]
        %v670 = vsel %vm484, %v619, %v669
        %671 = vst [vmem:[%s475 + $0x90] sm:$0x1] %v670
        %v672 = vld [vmem:[%s475 + $0xa0] sm:$0x1]
        %v673 = vsel %vm484, %v620, %v672
        %674 = vst [vmem:[%s475 + $0xa0] sm:$0x1] %v673
        %v675 = vld [vmem:[%s475 + $0xb0] sm:$0x1]
        %v676 = vsel %vm484, %v621, %v675
        %677 = vst [vmem:[%s475 + $0xb0] sm:$0x1] %v676
        %v678 = vld [vmem:[%s475 + $0xc0] sm:$0x1]
        %v679 = vsel %vm484, %v622, %v678
        %680 = vst [vmem:[%s475 + $0xc0] sm:$0x1] %v679
        %v681 = vld [vmem:[%s475 + $0xd0] sm:$0x1]
        %v682 = vsel %vm484, %v623, %v681
        %683 = vst [vmem:[%s475 + $0xd0] sm:$0x1] %v682
        %v684 = vld [vmem:[%s475 + $0xe0] sm:$0x1]
        %v685 = vsel %vm484, %v624, %v684
        %686 = vst [vmem:[%s475 + $0xe0] sm:$0x1] %v685
        %v687 = vld [vmem:[%s475 + $0xf0] sm:$0x1]
        %v688 = vsel %vm484, %v625, %v687
        %689 = vst [vmem:[%s475 + $0xf0] sm:$0x1] %v688
        %v690 = vld [vmem:[%s475] sm:$0x80]
        %v691 = vld [vmem:[%s475 + $0x10] sm:$0x80]
        %v692 = vld [vmem:[%s475 + $0x20] sm:$0x80]
        %v693 = vld [vmem:[%s475 + $0x30] sm:$0x80]
        %v694 = vld [vmem:[%s475 + $0x40] sm:$0x80]
        %v695 = vld [vmem:[%s475 + $0x50] sm:$0x80]
        %v696 = vld [vmem:[%s475 + $0x60] sm:$0x80]
        %v697 = vld [vmem:[%s475 + $0x70] sm:$0x80]
        %v698 = vld [vmem:[%s475 + $0x80] sm:$0x80]
        %v699 = vld [vmem:[%s475 + $0x90] sm:$0x80]
        %v700 = vld [vmem:[%s475 + $0xa0] sm:$0x80]
        %v701 = vld [vmem:[%s475 + $0xb0] sm:$0x80]
        %v702 = vld [vmem:[%s475 + $0xc0] sm:$0x80]
        %v703 = vld [vmem:[%s475 + $0xd0] sm:$0x80]
        %v704 = vld [vmem:[%s475 + $0xe0] sm:$0x80]
        %v705 = vld [vmem:[%s475 + $0xf0] sm:$0x80]
        %v722 = vrot.slane %v690, 7
        %v723 = vrot.slane %v691, 7
        %v724 = vrot.slane %v692, 7
        %v725 = vrot.slane %v693, 7
        %v726 = vrot.slane %v694, 7
        %v727 = vrot.slane %v695, 7
        %v728 = vrot.slane %v696, 7
        %v729 = vrot.slane %v697, 7
        %v730 = vrot.slane %v698, 7
        %v731 = vrot.slane %v699, 7
        %v732 = vrot.slane %v700, 7
        %v733 = vrot.slane %v701, 7
        %v734 = vrot.slane %v702, 7
        %v735 = vrot.slane %v703, 7
        %v736 = vrot.slane %v704, 7
        %v737 = vrot.slane %v705, 7
        %vm754 = vmand %vm482, %vm477
        %v755 = vld [vmem:[%s475 + $0x8] sm:$0x1]
        %v756 = vsel %vm754, %v722, %v755
        %757 = vst [vmem:[%s475 + $0x8] sm:$0x1] %v756
        %v758 = vld [vmem:[%s475 + $0x18] sm:$0x1]
        %v759 = vsel %vm754, %v723, %v758
        %760 = vst [vmem:[%s475 + $0x18] sm:$0x1] %v759
        %v761 = vld [vmem:[%s475 + $0x28] sm:$0x1]
        %v762 = vsel %vm754, %v724, %v761
        %763 = vst [vmem:[%s475 + $0x28] sm:$0x1] %v762
        %v764 = vld [vmem:[%s475 + $0x38] sm:$0x1]
        %v765 = vsel %vm754, %v725, %v764
        %766 = vst [vmem:[%s475 + $0x38] sm:$0x1] %v765
        %v767 = vld [vmem:[%s475 + $0x48] sm:$0x1]
        %v768 = vsel %vm754, %v726, %v767
        %769 = vst [vmem:[%s475 + $0x48] sm:$0x1] %v768
        %v770 = vld [vmem:[%s475 + $0x58] sm:$0x1]
        %v771 = vsel %vm754, %v727, %v770
        %772 = vst [vmem:[%s475 + $0x58] sm:$0x1] %v771
        %v773 = vld [vmem:[%s475 + $0x68] sm:$0x1]
        %v774 = vsel %vm754, %v728, %v773
        %775 = vst [vmem:[%s475 + $0x68] sm:$0x1] %v774
        %v776 = vld [vmem:[%s475 + $0x78] sm:$0x1]
        %v777 = vsel %vm754, %v729, %v776
        %778 = vst [vmem:[%s475 + $0x78] sm:$0x1] %v777
        %v779 = vld [vmem:[%s475 + $0x88] sm:$0x1]
        %v780 = vsel %vm754, %v730, %v779
        %781 = vst [vmem:[%s475 + $0x88] sm:$0x1] %v780
        %v782 = vld [vmem:[%s475 + $0x98] sm:$0x1]
        %v783 = vsel %vm754, %v731, %v782
        %784 = vst [vmem:[%s475 + $0x98] sm:$0x1] %v783
        %v785 = vld [vmem:[%s475 + $0xa8] sm:$0x1]
        %v786 = vsel %vm754, %v732, %v785
        %787 = vst [vmem:[%s475 + $0xa8] sm:$0x1] %v786
        %v788 = vld [vmem:[%s475 + $0xb8] sm:$0x1]
        %v789 = vsel %vm754, %v733, %v788
        %790 = vst [vmem:[%s475 + $0xb8] sm:$0x1] %v789
        %v791 = vld [vmem:[%s475 + $0xc8] sm:$0x1]
        %v792 = vsel %vm754, %v734, %v791
        %793 = vst [vmem:[%s475 + $0xc8] sm:$0x1] %v792
        %v794 = vld [vmem:[%s475 + $0xd8] sm:$0x1]
        %v795 = vsel %vm754, %v735, %v794
        %796 = vst [vmem:[%s475 + $0xd8] sm:$0x1] %v795
        %v797 = vld [vmem:[%s475 + $0xe8] sm:$0x1]
        %v798 = vsel %vm754, %v736, %v797
        %799 = vst [vmem:[%s475 + $0xe8] sm:$0x1] %v798
        %v800 = vld [vmem:[%s475 + $0xf8] sm:$0x1]
        %v801 = vsel %vm754, %v737, %v800
        %802 = vst [vmem:[%s475 + $0xf8] sm:$0x1] %v801
        %s803 = scalar_lea.vmem [#allocation2], 32
        %v804 = vld [vmem:[%s803] sm:$0xff]
        %v805 = vld [vmem:[%s803 + $0x8] sm:$0x1]
        %806 = vst [vmem:[#allocation2] sm:$0xff] %v804
        %807 = vst [vmem:[#allocation2 + $0x8] sm:$0x1] %v805
        %s808 = scalar_lea.vmem [#allocation2], 240
        %v809 = vld [vmem:[%s808] sm:$0xff]
        %v810 = vld [vmem:[%s808 + $0x8] sm:$0x1]
        %s811 = scalar_lea.vmem [#allocation2], 272
        %812 = vst [vmem:[%s811] sm:$0xff] %v809
        %813 = vst [vmem:[%s811 + $0x8] sm:$0x1] %v810
        %v814 = vld [vmem:[#allocation2] sm:$0xff]
        %v815 = vld [vmem:[#allocation2 + $0x10] sm:$0xff]
        %v816 = vld [vmem:[#allocation2 + $0x20] sm:$0xff]
        %v817 = vld [vmem:[#allocation2 + $0x30] sm:$0xff]
        %v818 = vld [vmem:[#allocation2 + $0x40] sm:$0xff]
        %v819 = vld [vmem:[#allocation2 + $0x50] sm:$0xff]
        %v820 = vld [vmem:[#allocation2 + $0x60] sm:$0xff]
        %v821 = vld [vmem:[#allocation2 + $0x70] sm:$0xff]
        %v822 = vld [vmem:[#allocation2 + $0x80] sm:$0xff]
        %v823 = vld [vmem:[#allocation2 + $0x90] sm:$0xff]
        %v824 = vld [vmem:[#allocation2 + $0xa0] sm:$0xff]
        %v825 = vld [vmem:[#allocation2 + $0xb0] sm:$0xff]
        %v826 = vld [vmem:[#allocation2 + $0xc0] sm:$0xff]
        %v827 = vld [vmem:[#allocation2 + $0xd0] sm:$0xff]
        %v828 = vld [vmem:[#allocation2 + $0xe0] sm:$0xff]
        %v829 = vld [vmem:[#allocation2 + $0xf0] sm:$0xff]
        %v830 = vld [vmem:[#allocation2 + $0x100] sm:$0xff]
        %v831 = vld [vmem:[#allocation2 + $0x110] sm:$0xff]
        %v832 = vld [vmem:[#allocation6] sm:$0xf]
        %v833 = vld [vmem:[#allocation6 + $0x4] sm:$0xf]
        %v834 = vld [vmem:[#allocation6 + $0x8] sm:$0xf]
        %v835 = vld [vmem:[#allocation6 + $0xc] sm:$0xf]
        %v836 = vld [vmem:[#allocation6 + $0x10] sm:$0xf]
        %v837 = vld [vmem:[#allocation6 + $0x14] sm:$0xf]
        %v838 = vld [vmem:[#allocation6 + $0x18] sm:$0xf]
        %v839 = vld [vmem:[#allocation6 + $0x1c] sm:$0xf]
        %v840 = vld [vmem:[#allocation6 + $0x20] sm:$0xf]
        %v841 = vld [vmem:[#allocation6 + $0x24] sm:$0xf]
        %v842 = vld [vmem:[#allocation6 + $0x28] sm:$0xf]
        %v843 = vld [vmem:[#allocation6 + $0x2c] sm:$0xf]
        %v844 = vld [vmem:[#allocation6 + $0x30] sm:$0xf]
        %v845 = vld [vmem:[#allocation6 + $0x34] sm:$0xf]
        %v846 = vld [vmem:[#allocation6 + $0x38] sm:$0xf]
        %v847 = vld [vmem:[#allocation6 + $0x3c] sm:$0xf]
        %s848 = scalar_lea.vmem [#allocation6], 192
        %v849 = vld [vmem:[%s848] sm:$0xf]
        %v850 = vld [vmem:[%s848 + $0x4] sm:$0xf]
        %v851 = vld [vmem:[%s848 + $0x8] sm:$0xf]
        %v852 = vld [vmem:[%s848 + $0xc] sm:$0xf]
        %v853 = vld [vmem:[%s848 + $0x10] sm:$0xf]
        %v854 = vld [vmem:[%s848 + $0x14] sm:$0xf]
        %v855 = vld [vmem:[%s848 + $0x18] sm:$0xf]
        %v856 = vld [vmem:[%s848 + $0x1c] sm:$0xf]
        %v857 = vld [vmem:[%s848 + $0x20] sm:$0xf]
        %v858 = vld [vmem:[%s848 + $0x24] sm:$0xf]
        %v859 = vld [vmem:[%s848 + $0x28] sm:$0xf]
        %v860 = vld [vmem:[%s848 + $0x2c] sm:$0xf]
        %v861 = vld [vmem:[%s848 + $0x30] sm:$0xf]
        %v862 = vld [vmem:[%s848 + $0x34] sm:$0xf]
        %v863 = vld [vmem:[%s848 + $0x38] sm:$0xf]
        %v864 = vld [vmem:[%s848 + $0x3c] sm:$0xf]
        %v881 = vunpack.c.l.b16 %v849
        %v882 = vunpack.c.l.b16 %v850
        %v883 = vunpack.c.l.b16 %v851
        %v884 = vunpack.c.l.b16 %v852
        %v885 = vunpack.c.l.b16 %v853
        %v886 = vunpack.c.l.b16 %v854
        %v887 = vunpack.c.l.b16 %v855
        %v888 = vunpack.c.l.b16 %v856
        %v889 = vunpack.c.l.b16 %v857
        %v890 = vunpack.c.l.b16 %v858
        %v891 = vunpack.c.l.b16 %v859
        %v892 = vunpack.c.l.b16 %v860
        %v893 = vunpack.c.l.b16 %v861
        %v894 = vunpack.c.l.b16 %v862
        %v895 = vunpack.c.l.b16 %v863
        %v896 = vunpack.c.l.b16 %v864
        %v897 = vpack.c.b16 %v882, %v881
        %v898 = vpack.c.b16 %v884, %v883
        %v899 = vpack.c.b16 %v886, %v885
        %v900 = vpack.c.b16 %v888, %v887
        %v901 = vpack.c.b16 %v890, %v889
        %v902 = vpack.c.b16 %v892, %v891
        %v903 = vpack.c.b16 %v894, %v893
        %v904 = vpack.c.b16 %v896, %v895
        %913 = vmatprep.subr.bf16.mxu0 0
        %914 = vmatpush1.bf16.msra.mxu0 %v897
        %915 = vmatprep.subr.bf16.mxu0 0
        %916 = vmatpush1.bf16.msra.mxu0 %v898
        %917 = vmatprep.subr.bf16.mxu0 0
        %918 = vmatpush1.bf16.msra.mxu0 %v899
        %919 = vmatprep.subr.bf16.mxu0 0
        %920 = vmatpush1.bf16.msra.mxu0 %v900
        %921 = vmatprep.subr.bf16.mxu0 0
        %922 = vmatpush1.bf16.msra.mxu0 %v901
        %923 = vmatprep.subr.bf16.mxu0 0
        %924 = vmatpush1.bf16.msra.mxu0 %v902
        %925 = vmatprep.subr.bf16.mxu0 0
        %926 = vmatpush1.bf16.msra.mxu0 %v903
        %927 = vmatprep.subr.bf16.mxu0 0
        %928 = vmatpush1.bf16.msra.mxu0 %v904
        %929 = vmatprep.subr.bf16.mxu0 0
        %930 = vmatpush1.bf16.msra.mxu0 0
        %931 = vmatprep.subr.bf16.mxu0 0
        %932 = vmatpush1.bf16.msra.mxu0 0
        %933 = vmatprep.subr.bf16.mxu0 0
        %934 = vmatpush1.bf16.msra.mxu0 0
        %935 = vmatprep.subr.bf16.mxu0 0
        %936 = vmatpush1.bf16.msra.mxu0 0
        %937 = vmatprep.subr.bf16.mxu0 0
        %938 = vmatpush1.bf16.msra.mxu0 0
        %939 = vmatprep.subr.bf16.mxu0 0
        %940 = vmatpush1.bf16.msra.mxu0 0
        %941 = vmatprep.subr.bf16.mxu0 0
        %942 = vmatpush1.bf16.msra.mxu0 0
        %943 = vmatprep.subr.bf16.mxu0 0
        %944 = vmatpush1.bf16.msra.mxu0 0
        %945 = vmatprep.mubr.bf16.mxu0 0
        %946 = vmatmul.mubr.bf16.gmra.mrb[0].mxu0 %v815
        %v947 = vpop.f32.mrb[0].mxu0
        %v948 = vadd.f32 0.0, %v947
        %v949 = vpop.f32.mrb[0].mxu0
        %v950 = vpop.f32.mrb[0].mxu0
        %v951 = vadd.f32 0.0, %v950
        %v952 = vpop.f32.mrb[0].mxu0
        %953 = vmatprep.mubr.bf16.mxu0 0
        %954 = vmatmul.mubr.bf16.gmra.mrb[0].mxu0 %v816
        %v955 = vpop.f32.mrb[0].mxu0
        %v956 = vadd.f32 0.0, %v955
        %v957 = vpop.f32.mrb[0].mxu0
        %v958 = vpop.f32.mrb[0].mxu0
        %v959 = vadd.f32 0.0, %v958
        %v960 = vpop.f32.mrb[0].mxu0
        %961 = vmatprep.mubr.bf16.mxu0 0
        %962 = vmatmul.mubr.bf16.gmra.mrb[0].mxu0 %v817
        %v963 = vpop.f32.mrb[0].mxu0
        %v964 = vadd.f32 0.0, %v963
        %v965 = vpop.f32.mrb[0].mxu0
        %v966 = vpop.f32.mrb[0].mxu0
        %v967 = vadd.f32 0.0, %v966
        %v968 = vpop.f32.mrb[0].mxu0
        %969 = vmatprep.mubr.bf16.mxu0 0
        %970 = vmatmul.mubr.bf16.gmra.mrb[0].mxu0 %v818
        %v971 = vpop.f32.mrb[0].mxu0
        %v972 = vadd.f32 0.0, %v971
        %v973 = vpop.f32.mrb[0].mxu0
        %v974 = vpop.f32.mrb[0].mxu0
        %v975 = vadd.f32 0.0, %v974
        %v976 = vpop.f32.mrb[0].mxu0
        %977 = vmatprep.mubr.bf16.mxu0 0
        %978 = vmatmul.mubr.bf16.gmra.mrb[0].mxu0 %v819
        %v979 = vpop.f32.mrb[0].mxu0
        %v980 = vadd.f32 0.0, %v979
        %v981 = vpop.f32.mrb[0].mxu0
        %v982 = vpop.f32.mrb[0].mxu0
        %v983 = vadd.f32 0.0, %v982
        %v984 = vpop.f32.mrb[0].mxu0
        %985 = vmatprep.mubr.bf16.mxu0 0
        %986 = vmatmul.mubr.bf16.gmra.mrb[0].mxu0 %v820
        %v987 = vpop.f32.mrb[0].mxu0
        %v988 = vadd.f32 0.0, %v987
        %v989 = vpop.f32.mrb[0].mxu0
        %v990 = vpop.f32.mrb[0].mxu0
        %v991 = vadd.f32 0.0, %v990
        %v992 = vpop.f32.mrb[0].mxu0
        %993 = vmatprep.mubr.bf16.mxu0 0
        %994 = vmatmul.mubr.bf16.gmra.mrb[0].mxu0 %v821
        %v995 = vpop.f32.mrb[0].mxu0
        %v996 = vadd.f32 0.0, %v995
        %v997 = vpop.f32.mrb[0].mxu0
        %v998 = vpop.f32.mrb[0].mxu0
        %v999 = vadd.f32 0.0, %v998
        %v1000 = vpop.f32.mrb[0].mxu0
        %1001 = vmatprep.mubr.bf16.mxu0 0
        %1002 = vmatmul.mubr.bf16.gmra.mrb[0].mxu0 %v822
        %v1003 = vpop.f32.mrb[0].mxu0
        %v1004 = vadd.f32 0.0, %v1003
        %v1005 = vpop.f32.mrb[0].mxu0
        %v1006 = vpop.f32.mrb[0].mxu0
        %v1007 = vadd.f32 0.0, %v1006
        %v1008 = vpop.f32.mrb[0].mxu0
        %1009 = vmatprep.mubr.bf16.mxu0 0
        %1010 = vmatmul.mubr.bf16.gmra.mrb[0].mxu0 %v823
        %v1011 = vpop.f32.mrb[0].mxu0
        %v1012 = vadd.f32 0.0, %v1011
        %v1013 = vpop.f32.mrb[0].mxu0
        %v1014 = vpop.f32.mrb[0].mxu0
        %v1015 = vadd.f32 0.0, %v1014
        %v1016 = vpop.f32.mrb[0].mxu0
        %1017 = vmatprep.mubr.bf16.mxu0 0
        %1018 = vmatmul.mubr.bf16.gmra.mrb[0].mxu0 %v824
        %v1019 = vpop.f32.mrb[0].mxu0
        %v1020 = vadd.f32 0.0, %v1019
        %v1021 = vpop.f32.mrb[0].mxu0
        %v1022 = vpop.f32.mrb[0].mxu0
        %v1023 = vadd.f32 0.0, %v1022
        %v1024 = vpop.f32.mrb[0].mxu0
        %1025 = vmatprep.mubr.bf16.mxu0 0
        %1026 = vmatmul.mubr.bf16.gmra.mrb[0].mxu0 %v825
        %v1027 = vpop.f32.mrb[0].mxu0
        %v1028 = vadd.f32 0.0, %v1027
        %v1029 = vpop.f32.mrb[0].mxu0
        %v1030 = vpop.f32.mrb[0].mxu0
        %v1031 = vadd.f32 0.0, %v1030
        %v1032 = vpop.f32.mrb[0].mxu0
        %1033 = vmatprep.mubr.bf16.mxu0 0
        %1034 = vmatmul.mubr.bf16.gmra.mrb[0].mxu0 %v826
        %v1035 = vpop.f32.mrb[0].mxu0
        %v1036 = vadd.f32 0.0, %v1035
        %v1037 = vpop.f32.mrb[0].mxu0
        %v1038 = vpop.f32.mrb[0].mxu0
        %v1039 = vadd.f32 0.0, %v1038
        %v1040 = vpop.f32.mrb[0].mxu0
        %1041 = vmatprep.mubr.bf16.mxu0 0
        %1042 = vmatmul.mubr.bf16.gmra.mrb[0].mxu0 %v827
        %v1043 = vpop.f32.mrb[0].mxu0
        %v1044 = vadd.f32 0.0, %v1043
        %v1045 = vpop.f32.mrb[0].mxu0
        %v1046 = vpop.f32.mrb[0].mxu0
        %v1047 = vadd.f32 0.0, %v1046
        %v1048 = vpop.f32.mrb[0].mxu0
        %1049 = vmatprep.mubr.bf16.mxu0 0
        %1050 = vmatmul.mubr.bf16.gmra.mrb[0].mxu0 %v828
        %v1051 = vpop.f32.mrb[0].mxu0
        %v1052 = vadd.f32 0.0, %v1051
        %v1053 = vpop.f32.mrb[0].mxu0
        %v1054 = vpop.f32.mrb[0].mxu0
        %v1055 = vadd.f32 0.0, %v1054
        %v1056 = vpop.f32.mrb[0].mxu0
        %1057 = vmatprep.mubr.bf16.mxu0 0
        %1058 = vmatmul.mubr.bf16.gmra.mrb[0].mxu0 %v829
        %v1059 = vpop.f32.mrb[0].mxu0
        %v1060 = vadd.f32 0.0, %v1059
        %v1061 = vpop.f32.mrb[0].mxu0
        %v1062 = vpop.f32.mrb[0].mxu0
        %v1063 = vadd.f32 0.0, %v1062
        %v1064 = vpop.f32.mrb[0].mxu0
        %1065 = vmatprep.mubr.bf16.mxu0 0
        %1066 = vmatmul.mubr.bf16.gmra.mrb[0].mxu0 %v830
        %v1067 = vpop.f32.mrb[0].mxu0
        %v1068 = vadd.f32 0.0, %v1067
        %v1069 = vpop.f32.mrb[0].mxu0
        %v1070 = vpop.f32.mrb[0].mxu0
        %v1071 = vadd.f32 0.0, %v1070
        %v1072 = vpop.f32.mrb[0].mxu0
        %1073 = vdwg.mxu0
        %v1090 = vunpack.c.l.b16 %v832
        %v1091 = vunpack.c.l.b16 %v833
        %v1092 = vunpack.c.l.b16 %v834
        %v1093 = vunpack.c.l.b16 %v835
        %v1094 = vunpack.c.l.b16 %v836
        %v1095 = vunpack.c.l.b16 %v837
        %v1096 = vunpack.c.l.b16 %v838
        %v1097 = vunpack.c.l.b16 %v839
        %v1098 = vunpack.c.l.b16 %v840
        %v1099 = vunpack.c.l.b16 %v841
        %v1100 = vunpack.c.l.b16 %v842
        %v1101 = vunpack.c.l.b16 %v843
        %v1102 = vunpack.c.l.b16 %v844
        %v1103 = vunpack.c.l.b16 %v845
        %v1104 = vunpack.c.l.b16 %v846
        %v1105 = vunpack.c.l.b16 %v847
        %v1106 = vpack.c.b16 %v1091, %v1090
        %v1107 = vpack.c.b16 %v1093, %v1092
        %v1108 = vpack.c.b16 %v1095, %v1094
        %v1109 = vpack.c.b16 %v1097, %v1096
        %v1110 = vpack.c.b16 %v1099, %v1098
        %v1111 = vpack.c.b16 %v1101, %v1100
        %v1112 = vpack.c.b16 %v1103, %v1102
        %v1113 = vpack.c.b16 %v1105, %v1104
        %1122 = vmatprep.subr.bf16.mxu0 0
        %1123 = vmatpush1.bf16.msra.mxu0 %v1106
        %1124 = vmatprep.subr.bf16.mxu0 0
        %1125 = vmatpush1.bf16.msra.mxu0 %v1107
        %1126 = vmatprep.subr.bf16.mxu0 0
        %1127 = vmatpush1.bf16.msra.mxu0 %v1108
        %1128 = vmatprep.subr.bf16.mxu0 0
        %1129 = vmatpush1.bf16.msra.mxu0 %v1109
        %1130 = vmatprep.subr.bf16.mxu0 0
        %1131 = vmatpush1.bf16.msra.mxu0 %v1110
        %1132 = vmatprep.subr.bf16.mxu0 0
        %1133 = vmatpush1.bf16.msra.mxu0 %v1111
        %1134 = vmatprep.subr.bf16.mxu0 0
        %1135 = vmatpush1.bf16.msra.mxu0 %v1112
        %1136 = vmatprep.subr.bf16.mxu0 0
        %1137 = vmatpush1.bf16.msra.mxu0 %v1113
        %1138 = vmatprep.subr.bf16.mxu0 0
        %1139 = vmatpush1.bf16.msra.mxu0 0
        %1140 = vmatprep.subr.bf16.mxu0 0
        %1141 = vmatpush1.bf16.msra.mxu0 0
        %1142 = vmatprep.subr.bf16.mxu0 0
        %1143 = vmatpush1.bf16.msra.mxu0 0
        %1144 = vmatprep.subr.bf16.mxu0 0
        %1145 = vmatpush1.bf16.msra.mxu0 0
        %1146 = vmatprep.subr.bf16.mxu0 0
        %1147 = vmatpush1.bf16.msra.mxu0 0
        %1148 = vmatprep.subr.bf16.mxu0 0
        %1149 = vmatpush1.bf16.msra.mxu0 0
        %1150 = vmatprep.subr.bf16.mxu0 0
        %1151 = vmatpush1.bf16.msra.mxu0 0
        %1152 = vmatprep.subr.bf16.mxu0 0
        %1153 = vmatpush1.bf16.msra.mxu0 0
        %1154 = vmatprep.mubr.bf16.mxu0 0
        %1155 = vmatmul.mubr.bf16.gmra.mrb[0].mxu0 %v814
        %v1156 = vpop.f32.mrb[0].mxu0
        %v1157 = vadd.f32 %v948, %v1156
        %v1158 = vpop.f32.mrb[0].mxu0
        %v1159 = vpop.f32.mrb[0].mxu0
        %v1160 = vadd.f32 %v951, %v1159
        %v1161 = vpop.f32.mrb[0].mxu0
        %1162 = vmatprep.mubr.bf16.mxu0 0
        %1163 = vmatmul.mubr.bf16.gmra.mrb[0].mxu0 %v815
        %v1164 = vpop.f32.mrb[0].mxu0
        %v1165 = vadd.f32 %v956, %v1164
        %v1166 = vpop.f32.mrb[0].mxu0
        %v1167 = vpop.f32.mrb[0].mxu0
        %v1168 = vadd.f32 %v959, %v1167
        %v1169 = vpop.f32.mrb[0].mxu0
        %1170 = vmatprep.mubr.bf16.mxu0 0
        %1171 = vmatmul.mubr.bf16.gmra.mrb[0].mxu0 %v816
        %v1172 = vpop.f32.mrb[0].mxu0
        %v1173 = vadd.f32 %v964, %v1172
        %v1174 = vpop.f32.mrb[0].mxu0
        %v1175 = vpop.f32.mrb[0].mxu0
        %v1176 = vadd.f32 %v967, %v1175
        %v1177 = vpop.f32.mrb[0].mxu0
        %1178 = vmatprep.mubr.bf16.mxu0 0
        %1179 = vmatmul.mubr.bf16.gmra.mrb[0].mxu0 %v817
        %v1180 = vpop.f32.mrb[0].mxu0
        %v1181 = vadd.f32 %v972, %v1180
        %v1182 = vpop.f32.mrb[0].mxu0
        %v1183 = vpop.f32.mrb[0].mxu0
        %v1184 = vadd.f32 %v975, %v1183
        %v1185 = vpop.f32.mrb[0].mxu0
        %1186 = vmatprep.mubr.bf16.mxu0 0
        %1187 = vmatmul.mubr.bf16.gmra.mrb[0].mxu0 %v818
        %v1188 = vpop.f32.mrb[0].mxu0
        %v1189 = vadd.f32 %v980, %v1188
        %v1190 = vpop.f32.mrb[0].mxu0
        %v1191 = vpop.f32.mrb[0].mxu0
        %v1192 = vadd.f32 %v983, %v1191
        %v1193 = vpop.f32.mrb[0].mxu0
        %1194 = vmatprep.mubr.bf16.mxu0 0
        %1195 = vmatmul.mubr.bf16.gmra.mrb[0].mxu0 %v819
        %v1196 = vpop.f32.mrb[0].mxu0
        %v1197 = vadd.f32 %v988, %v1196
        %v1198 = vpop.f32.mrb[0].mxu0
        %v1199 = vpop.f32.mrb[0].mxu0
        %v1200 = vadd.f32 %v991, %v1199
        %v1201 = vpop.f32.mrb[0].mxu0
        %1202 = vmatprep.mubr.bf16.mxu0 0
        %1203 = vmatmul.mubr.bf16.gmra.mrb[0].mxu0 %v820
        %v1204 = vpop.f32.mrb[0].mxu0
        %v1205 = vadd.f32 %v996, %v1204
        %v1206 = vpop.f32.mrb[0].mxu0
        %v1207 = vpop.f32.mrb[0].mxu0
        %v1208 = vadd.f32 %v999, %v1207
        %v1209 = vpop.f32.mrb[0].mxu0
        %1210 = vmatprep.mubr.bf16.mxu0 0
        %1211 = vmatmul.mubr.bf16.gmra.mrb[0].mxu0 %v821
        %v1212 = vpop.f32.mrb[0].mxu0
        %v1213 = vadd.f32 %v1004, %v1212
        %v1214 = vpop.f32.mrb[0].mxu0
        %v1215 = vpop.f32.mrb[0].mxu0
        %v1216 = vadd.f32 %v1007, %v1215
        %v1217 = vpop.f32.mrb[0].mxu0
        %1218 = vmatprep.mubr.bf16.mxu0 0
        %1219 = vmatmul.mubr.bf16.gmra.mrb[0].mxu0 %v822
        %v1220 = vpop.f32.mrb[0].mxu0
        %v1221 = vadd.f32 %v1012, %v1220
        %v1222 = vpop.f32.mrb[0].mxu0
        %v1223 = vpop.f32.mrb[0].mxu0
        %v1224 = vadd.f32 %v1015, %v1223
        %v1225 = vpop.f32.mrb[0].mxu0
        %1226 = vmatprep.mubr.bf16.mxu0 0
        %1227 = vmatmul.mubr.bf16.gmra.mrb[0].mxu0 %v823
        %v1228 = vpop.f32.mrb[0].mxu0
        %v1229 = vadd.f32 %v1020, %v1228
        %v1230 = vpop.f32.mrb[0].mxu0
        %v1231 = vpop.f32.mrb[0].mxu0
        %v1232 = vadd.f32 %v1023, %v1231
        %v1233 = vpop.f32.mrb[0].mxu0
        %1234 = vmatprep.mubr.bf16.mxu0 0
        %1235 = vmatmul.mubr.bf16.gmra.mrb[0].mxu0 %v824
        %v1236 = vpop.f32.mrb[0].mxu0
        %v1237 = vadd.f32 %v1028, %v1236
        %v1238 = vpop.f32.mrb[0].mxu0
        %v1239 = vpop.f32.mrb[0].mxu0
        %v1240 = vadd.f32 %v1031, %v1239
        %v1241 = vpop.f32.mrb[0].mxu0
        %1242 = vmatprep.mubr.bf16.mxu0 0
        %1243 = vmatmul.mubr.bf16.gmra.mrb[0].mxu0 %v825
        %v1244 = vpop.f32.mrb[0].mxu0
        %v1245 = vadd.f32 %v1036, %v1244
        %v1246 = vpop.f32.mrb[0].mxu0
        %v1247 = vpop.f32.mrb[0].mxu0
        %v1248 = vadd.f32 %v1039, %v1247
        %v1249 = vpop.f32.mrb[0].mxu0
        %1250 = vmatprep.mubr.bf16.mxu0 0
        %1251 = vmatmul.mubr.bf16.gmra.mrb[0].mxu0 %v826
        %v1252 = vpop.f32.mrb[0].mxu0
        %v1253 = vadd.f32 %v1044, %v1252
        %v1254 = vpop.f32.mrb[0].mxu0
        %v1255 = vpop.f32.mrb[0].mxu0
        %v1256 = vadd.f32 %v1047, %v1255
        %v1257 = vpop.f32.mrb[0].mxu0
        %1258 = vmatprep.mubr.bf16.mxu0 0
        %1259 = vmatmul.mubr.bf16.gmra.mrb[0].mxu0 %v827
        %v1260 = vpop.f32.mrb[0].mxu0
        %v1261 = vadd.f32 %v1052, %v1260
        %v1262 = vpop.f32.mrb[0].mxu0
        %v1263 = vpop.f32.mrb[0].mxu0
        %v1264 = vadd.f32 %v1055, %v1263
        %v1265 = vpop.f32.mrb[0].mxu0
        %1266 = vmatprep.mubr.bf16.mxu0 0
        %1267 = vmatmul.mubr.bf16.gmra.mrb[0].mxu0 %v828
        %v1268 = vpop.f32.mrb[0].mxu0
        %v1269 = vadd.f32 %v1060, %v1268
        %v1270 = vpop.f32.mrb[0].mxu0
        %v1271 = vpop.f32.mrb[0].mxu0
        %v1272 = vadd.f32 %v1063, %v1271
        %v1273 = vpop.f32.mrb[0].mxu0
        %1274 = vmatprep.mubr.bf16.mxu0 0
        %1275 = vmatmul.mubr.bf16.gmra.mrb[0].mxu0 %v829
        %v1276 = vpop.f32.mrb[0].mxu0
        %v1277 = vadd.f32 %v1068, %v1276
        %v1278 = vpop.f32.mrb[0].mxu0
        %v1279 = vpop.f32.mrb[0].mxu0
        %v1280 = vadd.f32 %v1071, %v1279
        %v1281 = vpop.f32.mrb[0].mxu0
        %1282 = vdwg.mxu0
        %s1283 = scalar_lea.vmem [#allocation6], 384
        %v1284 = vld [vmem:[%s1283] sm:$0xf]
        %v1285 = vld [vmem:[%s1283 + $0x4] sm:$0xf]
        %v1286 = vld [vmem:[%s1283 + $0x8] sm:$0xf]
        %v1287 = vld [vmem:[%s1283 + $0xc] sm:$0xf]
        %v1288 = vld [vmem:[%s1283 + $0x10] sm:$0xf]
        %v1289 = vld [vmem:[%s1283 + $0x14] sm:$0xf]
        %v1290 = vld [vmem:[%s1283 + $0x18] sm:$0xf]
        %v1291 = vld [vmem:[%s1283 + $0x1c] sm:$0xf]
        %v1292 = vld [vmem:[%s1283 + $0x20] sm:$0xf]
        %v1293 = vld [vmem:[%s1283 + $0x24] sm:$0xf]
        %v1294 = vld [vmem:[%s1283 + $0x28] sm:$0xf]
        %v1295 = vld [vmem:[%s1283 + $0x2c] sm:$0xf]
        %v1296 = vld [vmem:[%s1283 + $0x30] sm:$0xf]
        %v1297 = vld [vmem:[%s1283 + $0x34] sm:$0xf]
        %v1298 = vld [vmem:[%s1283 + $0x38] sm:$0xf]
        %v1299 = vld [vmem:[%s1283 + $0x3c] sm:$0xf]
        %v1316 = vunpack.c.l.b16 %v1284
        %v1317 = vunpack.c.l.b16 %v1285
        %v1318 = vunpack.c.l.b16 %v1286
        %v1319 = vunpack.c.l.b16 %v1287
        %v1320 = vunpack.c.l.b16 %v1288
        %v1321 = vunpack.c.l.b16 %v1289
        %v1322 = vunpack.c.l.b16 %v1290
        %v1323 = vunpack.c.l.b16 %v1291
        %v1324 = vunpack.c.l.b16 %v1292
        %v1325 = vunpack.c.l.b16 %v1293
        %v1326 = vunpack.c.l.b16 %v1294
        %v1327 = vunpack.c.l.b16 %v1295
        %v1328 = vunpack.c.l.b16 %v1296
        %v1329 = vunpack.c.l.b16 %v1297
        %v1330 = vunpack.c.l.b16 %v1298
        %v1331 = vunpack.c.l.b16 %v1299
        %v1332 = vpack.c.b16 %v1317, %v1316
        %v1333 = vpack.c.b16 %v1319, %v1318
        %v1334 = vpack.c.b16 %v1321, %v1320
        %v1335 = vpack.c.b16 %v1323, %v1322
        %v1336 = vpack.c.b16 %v1325, %v1324
        %v1337 = vpack.c.b16 %v1327, %v1326
        %v1338 = vpack.c.b16 %v1329, %v1328
        %v1339 = vpack.c.b16 %v1331, %v1330
        %1348 = vmatprep.subr.bf16.mxu0 0
        %1349 = vmatpush1.bf16.msra.mxu0 %v1332
        %1350 = vmatprep.subr.bf16.mxu0 0
        %1351 = vmatpush1.bf16.msra.mxu0 %v1333
        %1352 = vmatprep.subr.bf16.mxu0 0
        %1353 = vmatpush1.bf16.msra.mxu0 %v1334
        %1354 = vmatprep.subr.bf16.mxu0 0
        %1355 = vmatpush1.bf16.msra.mxu0 %v1335
        %1356 = vmatprep.subr.bf16.mxu0 0
        %1357 = vmatpush1.bf16.msra.mxu0 %v1336
        %1358 = vmatprep.subr.bf16.mxu0 0
        %1359 = vmatpush1.bf16.msra.mxu0 %v1337
        %1360 = vmatprep.subr.bf16.mxu0 0
        %1361 = vmatpush1.bf16.msra.mxu0 %v1338
        %1362 = vmatprep.subr.bf16.mxu0 0
        %1363 = vmatpush1.bf16.msra.mxu0 %v1339
        %1364 = vmatprep.subr.bf16.mxu0 0
        %1365 = vmatpush1.bf16.msra.mxu0 0
        %1366 = vmatprep.subr.bf16.mxu0 0
        %1367 = vmatpush1.bf16.msra.mxu0 0
        %1368 = vmatprep.subr.bf16.mxu0 0
        %1369 = vmatpush1.bf16.msra.mxu0 0
        %1370 = vmatprep.subr.bf16.mxu0 0
        %1371 = vmatpush1.bf16.msra.mxu0 0
        %1372 = vmatprep.subr.bf16.mxu0 0
        %1373 = vmatpush1.bf16.msra.mxu0 0
        %1374 = vmatprep.subr.bf16.mxu0 0
        %1375 = vmatpush1.bf16.msra.mxu0 0
        %1376 = vmatprep.subr.bf16.mxu0 0
        %1377 = vmatpush1.bf16.msra.mxu0 0
        %1378 = vmatprep.subr.bf16.mxu0 0
        %1379 = vmatpush1.bf16.msra.mxu0 0
        %1380 = vmatprep.mubr.bf16.mxu0 0
        %1381 = vmatmul.mubr.bf16.gmra.mrb[0].mxu0 %v816
        %v1382 = vpop.f32.mrb[0].mxu0
        %v1383 = vadd.f32 0.0, %v1382
        %v1384 = vpop.f32.mrb[0].mxu0
        %v1385 = vpop.f32.mrb[0].mxu0
        %v1386 = vadd.f32 0.0, %v1385
        %v1387 = vpop.f32.mrb[0].mxu0
        %1388 = vmatprep.mubr.bf16.mxu0 0
        %1389 = vmatmul.mubr.bf16.gmra.mrb[0].mxu0 %v817
        %v1390 = vpop.f32.mrb[0].mxu0
        %v1391 = vadd.f32 0.0, %v1390
        %v1392 = vpop.f32.mrb[0].mxu0
        %v1393 = vpop.f32.mrb[0].mxu0
        %v1394 = vadd.f32 0.0, %v1393
        %v1395 = vpop.f32.mrb[0].mxu0
        %1396 = vmatprep.mubr.bf16.mxu0 0
        %1397 = vmatmul.mubr.bf16.gmra.mrb[0].mxu0 %v818
        %v1398 = vpop.f32.mrb[0].mxu0
        %v1399 = vadd.f32 0.0, %v1398
        %v1400 = vpop.f32.mrb[0].mxu0
        %v1401 = vpop.f32.mrb[0].mxu0
        %v1402 = vadd.f32 0.0, %v1401
        %v1403 = vpop.f32.mrb[0].mxu0
        %1404 = vmatprep.mubr.bf16.mxu0 0
        %1405 = vmatmul.mubr.bf16.gmra.mrb[0].mxu0 %v819
        %v1406 = vpop.f32.mrb[0].mxu0
        %v1407 = vadd.f32 0.0, %v1406
        %v1408 = vpop.f32.mrb[0].mxu0
        %v1409 = vpop.f32.mrb[0].mxu0
        %v1410 = vadd.f32 0.0, %v1409
        %v1411 = vpop.f32.mrb[0].mxu0
        %1412 = vmatprep.mubr.bf16.mxu0 0
        %1413 = vmatmul.mubr.bf16.gmra.mrb[0].mxu0 %v820
        %v1414 = vpop.f32.mrb[0].mxu0
        %v1415 = vadd.f32 0.0, %v1414
        %v1416 = vpop.f32.mrb[0].mxu0
        %v1417 = vpop.f32.mrb[0].mxu0
        %v1418 = vadd.f32 0.0, %v1417
        %v1419 = vpop.f32.mrb[0].mxu0
        %1420 = vmatprep.mubr.bf16.mxu0 0
        %1421 = vmatmul.mubr.bf16.gmra.mrb[0].mxu0 %v821
        %v1422 = vpop.f32.mrb[0].mxu0
        %v1423 = vadd.f32 0.0, %v1422
        %v1424 = vpop.f32.mrb[0].mxu0
        %v1425 = vpop.f32.mrb[0].mxu0
        %v1426 = vadd.f32 0.0, %v1425
        %v1427 = vpop.f32.mrb[0].mxu0
        %1428 = vmatprep.mubr.bf16.mxu0 0
        %1429 = vmatmul.mubr.bf16.gmra.mrb[0].mxu0 %v822
        %v1430 = vpop.f32.mrb[0].mxu0
        %v1431 = vadd.f32 0.0, %v1430
        %v1432 = vpop.f32.mrb[0].mxu0
        %v1433 = vpop.f32.mrb[0].mxu0
        %v1434 = vadd.f32 0.0, %v1433
        %v1435 = vpop.f32.mrb[0].mxu0
        %1436 = vmatprep.mubr.bf16.mxu0 0
        %1437 = vmatmul.mubr.bf16.gmra.mrb[0].mxu0 %v823
        %v1438 = vpop.f32.mrb[0].mxu0
        %v1439 = vadd.f32 0.0, %v1438
        %v1440 = vpop.f32.mrb[0].mxu0
        %v1441 = vpop.f32.mrb[0].mxu0
        %v1442 = vadd.f32 0.0, %v1441
        %v1443 = vpop.f32.mrb[0].mxu0
        %1444 = vmatprep.mubr.bf16.mxu0 0
        %1445 = vmatmul.mubr.bf16.gmra.mrb[0].mxu0 %v824
        %v1446 = vpop.f32.mrb[0].mxu0
        %v1447 = vadd.f32 0.0, %v1446
        %v1448 = vpop.f32.mrb[0].mxu0
        %v1449 = vpop.f32.mrb[0].mxu0
        %v1450 = vadd.f32 0.0, %v1449
        %v1451 = vpop.f32.mrb[0].mxu0
        %1452 = vmatprep.mubr.bf16.mxu0 0
        %1453 = vmatmul.mubr.bf16.gmra.mrb[0].mxu0 %v825
        %v1454 = vpop.f32.mrb[0].mxu0
        %v1455 = vadd.f32 0.0, %v1454
        %v1456 = vpop.f32.mrb[0].mxu0
        %v1457 = vpop.f32.mrb[0].mxu0
        %v1458 = vadd.f32 0.0, %v1457
        %v1459 = vpop.f32.mrb[0].mxu0
        %1460 = vmatprep.mubr.bf16.mxu0 0
        %1461 = vmatmul.mubr.bf16.gmra.mrb[0].mxu0 %v826
        %v1462 = vpop.f32.mrb[0].mxu0
        %v1463 = vadd.f32 0.0, %v1462
        %v1464 = vpop.f32.mrb[0].mxu0
        %v1465 = vpop.f32.mrb[0].mxu0
        %v1466 = vadd.f32 0.0, %v1465
        %v1467 = vpop.f32.mrb[0].mxu0
        %1468 = vmatprep.mubr.bf16.mxu0 0
        %1469 = vmatmul.mubr.bf16.gmra.mrb[0].mxu0 %v827
        %v1470 = vpop.f32.mrb[0].mxu0
        %v1471 = vadd.f32 0.0, %v1470
        %v1472 = vpop.f32.mrb[0].mxu0
        %v1473 = vpop.f32.mrb[0].mxu0
        %v1474 = vadd.f32 0.0, %v1473
        %v1475 = vpop.f32.mrb[0].mxu0
        %1476 = vmatprep.mubr.bf16.mxu0 0
        %1477 = vmatmul.mubr.bf16.gmra.mrb[0].mxu0 %v828
        %v1478 = vpop.f32.mrb[0].mxu0
        %v1479 = vadd.f32 0.0, %v1478
        %v1480 = vpop.f32.mrb[0].mxu0
        %v1481 = vpop.f32.mrb[0].mxu0
        %v1482 = vadd.f32 0.0, %v1481
        %v1483 = vpop.f32.mrb[0].mxu0
        %1484 = vmatprep.mubr.bf16.mxu0 0
        %1485 = vmatmul.mubr.bf16.gmra.mrb[0].mxu0 %v829
        %v1486 = vpop.f32.mrb[0].mxu0
        %v1487 = vadd.f32 0.0, %v1486
        %v1488 = vpop.f32.mrb[0].mxu0
        %v1489 = vpop.f32.mrb[0].mxu0
        %v1490 = vadd.f32 0.0, %v1489
        %v1491 = vpop.f32.mrb[0].mxu0
        %1492 = vmatprep.mubr.bf16.mxu0 0
        %1493 = vmatmul.mubr.bf16.gmra.mrb[0].mxu0 %v830
        %v1494 = vpop.f32.mrb[0].mxu0
        %v1495 = vadd.f32 0.0, %v1494
        %v1496 = vpop.f32.mrb[0].mxu0
        %v1497 = vpop.f32.mrb[0].mxu0
        %v1498 = vadd.f32 0.0, %v1497
        %v1499 = vpop.f32.mrb[0].mxu0
        %1500 = vmatprep.mubr.bf16.mxu0 0
        %1501 = vmatmul.mubr.bf16.gmra.mrb[0].mxu0 %v831
        %v1502 = vpop.f32.mrb[0].mxu0
        %v1503 = vadd.f32 0.0, %v1502
        %v1504 = vpop.f32.mrb[0].mxu0
        %v1505 = vpop.f32.mrb[0].mxu0
        %v1506 = vadd.f32 0.0, %v1505
        %v1507 = vpop.f32.mrb[0].mxu0
        %1508 = vdwg.mxu0
        %v1509 = vadd.f32 %v1157, %v1383
        %v1510 = vadd.f32 %v1160, %v1386
        %v1511 = vadd.f32 %v1165, %v1391
        %v1512 = vadd.f32 %v1168, %v1394
        %v1513 = vadd.f32 %v1173, %v1399
        %v1514 = vadd.f32 %v1176, %v1402
        %v1515 = vadd.f32 %v1181, %v1407
        %v1516 = vadd.f32 %v1184, %v1410
        %v1517 = vadd.f32 %v1189, %v1415
        %v1518 = vadd.f32 %v1192, %v1418
        %v1519 = vadd.f32 %v1197, %v1423
        %v1520 = vadd.f32 %v1200, %v1426
        %v1521 = vadd.f32 %v1205, %v1431
        %v1522 = vadd.f32 %v1208, %v1434
        %v1523 = vadd.f32 %v1213, %v1439
        %v1524 = vadd.f32 %v1216, %v1442
        %v1525 = vadd.f32 %v1221, %v1447
        %v1526 = vadd.f32 %v1224, %v1450
        %v1527 = vadd.f32 %v1229, %v1455
        %v1528 = vadd.f32 %v1232, %v1458
        %v1529 = vadd.f32 %v1237, %v1463
        %v1530 = vadd.f32 %v1240, %v1466
        %v1531 = vadd.f32 %v1245, %v1471
        %v1532 = vadd.f32 %v1248, %v1474
        %v1533 = vadd.f32 %v1253, %v1479
        %v1534 = vadd.f32 %v1256, %v1482
        %v1535 = vadd.f32 %v1261, %v1487
        %v1536 = vadd.f32 %v1264, %v1490
        %v1537 = vadd.f32 %v1269, %v1495
        %v1538 = vadd.f32 %v1272, %v1498
        %v1539 = vadd.f32 %v1277, %v1503
        %v1540 = vadd.f32 %v1280, %v1506
        %v1541 = vld [vmem:[#allocation2] sm:$0xff]
        %v1542 = vld [vmem:[#allocation2 + $0x8] sm:$0x1]
        %v1543 = vld [vmem:[#allocation2 + $0x10] sm:$0xff]
        %v1544 = vld [vmem:[#allocation2 + $0x18] sm:$0x1]
        %v1545 = vld [vmem:[#allocation2 + $0x20] sm:$0xff]
        %v1546 = vld [vmem:[#allocation2 + $0x28] sm:$0x1]
        %v1547 = vld [vmem:[#allocation2 + $0x30] sm:$0xff]
        %v1548 = vld [vmem:[#allocation2 + $0x38] sm:$0x1]
        %v1549 = vld [vmem:[#allocation2 + $0x40] sm:$0xff]
        %v1550 = vld [vmem:[#allocation2 + $0x48] sm:$0x1]
        %v1551 = vld [vmem:[#allocation2 + $0x50] sm:$0xff]
        %v1552 = vld [vmem:[#allocation2 + $0x58] sm:$0x1]
        %v1553 = vld [vmem:[#allocation2 + $0x60] sm:$0xff]
        %v1554 = vld [vmem:[#allocation2 + $0x68] sm:$0x1]
        %v1555 = vld [vmem:[#allocation2 + $0x70] sm:$0xff]
        %v1556 = vld [vmem:[#allocation2 + $0x78] sm:$0x1]
        %v1557 = vld [vmem:[#allocation2 + $0x80] sm:$0xff]
        %v1558 = vld [vmem:[#allocation2 + $0x88] sm:$0x1]
        %v1559 = vld [vmem:[#allocation2 + $0x90] sm:$0xff]
        %v1560 = vld [vmem:[#allocation2 + $0x98] sm:$0x1]
        %v1561 = vld [vmem:[#allocation2 + $0xa0] sm:$0xff]
        %v1562 = vld [vmem:[#allocation2 + $0xa8] sm:$0x1]
        %v1563 = vld [vmem:[#allocation2 + $0xb0] sm:$0xff]
        %v1564 = vld [vmem:[#allocation2 + $0xb8] sm:$0x1]
        %v1565 = vld [vmem:[#allocation2 + $0xc0] sm:$0xff]
        %v1566 = vld [vmem:[#allocation2 + $0xc8] sm:$0x1]
        %v1567 = vld [vmem:[#allocation2 + $0xd0] sm:$0xff]
        %v1568 = vld [vmem:[#allocation2 + $0xd8] sm:$0x1]
        %v1569 = vld [vmem:[#allocation2 + $0xe0] sm:$0xff]
        %v1570 = vld [vmem:[#allocation2 + $0xe8] sm:$0x1]
        %v1571 = vld [vmem:[#allocation2 + $0xf0] sm:$0xff]
        %v1572 = vld [vmem:[#allocation2 + $0xf8] sm:$0x1]
        %v1573 = vld [vmem:[#allocation2 + $0x100] sm:$0xff]
        %v1574 = vld [vmem:[#allocation2 + $0x108] sm:$0x1]
        %v1575 = vld [vmem:[#allocation2 + $0x110] sm:$0xff]
        %v1576 = vld [vmem:[#allocation2 + $0x118] sm:$0x1]
        %s1577 = scalar_lea.vmem [#allocation6], 64
        %v1578 = vld [vmem:[%s1577] sm:$0xf]
        %v1579 = vld [vmem:[%s1577 + $0x4] sm:$0xf]
        %v1580 = vld [vmem:[%s1577 + $0x8] sm:$0xf]
        %v1581 = vld [vmem:[%s1577 + $0xc] sm:$0xf]
        %v1582 = vld [vmem:[%s1577 + $0x10] sm:$0xf]
        %v1583 = vld [vmem:[%s1577 + $0x14] sm:$0xf]
        %v1584 = vld [vmem:[%s1577 + $0x18] sm:$0xf]
        %v1585 = vld [vmem:[%s1577 + $0x1c] sm:$0xf]
        %v1586 = vld [vmem:[%s1577 + $0x20] sm:$0xf]
        %v1587 = vld [vmem:[%s1577 + $0x24] sm:$0xf]
        %v1588 = vld [vmem:[%s1577 + $0x28] sm:$0xf]
        %v1589 = vld [vmem:[%s1577 + $0x2c] sm:$0xf]
        %v1590 = vld [vmem:[%s1577 + $0x30] sm:$0xf]
        %v1591 = vld [vmem:[%s1577 + $0x34] sm:$0xf]
        %v1592 = vld [vmem:[%s1577 + $0x38] sm:$0xf]
        %v1593 = vld [vmem:[%s1577 + $0x3c] sm:$0xf]
        %vm1594 = vsmask.f32 7424
        %v1596 = vshrl.u32 %v1541, 16
        %v1598 = vshll.u32 %v1541, 16
        %v1600 = vrot.slane %v1598, 1
        %v1601 = vor.u32 %v1596, %v1600
        %v1603 = vshll.u32 %v1542, 16
        %v1605 = vrot.slane %v1603, 1
        %v1606 = vsel %vm1594, %v1601, %v1605
        %v1608 = vshrl.u32 %v1543, 16
        %v1610 = vshll.u32 %v1543, 16
        %v1612 = vrot.slane %v1610, 1
        %v1613 = vor.u32 %v1608, %v1612
        %v1615 = vshll.u32 %v1544, 16
        %v1617 = vrot.slane %v1615, 1
        %v1618 = vsel %vm1594, %v1613, %v1617
        %v1620 = vshrl.u32 %v1545, 16
        %v1622 = vshll.u32 %v1545, 16
        %v1624 = vrot.slane %v1622, 1
        %v1625 = vor.u32 %v1620, %v1624
        %v1627 = vshll.u32 %v1546, 16
        %v1629 = vrot.slane %v1627, 1
        %v1630 = vsel %vm1594, %v1625, %v1629
        %v1632 = vshrl.u32 %v1547, 16
        %v1634 = vshll.u32 %v1547, 16
        %v1636 = vrot.slane %v1634, 1
        %v1637 = vor.u32 %v1632, %v1636
        %v1639 = vshll.u32 %v1548, 16
        %v1641 = vrot.slane %v1639, 1
        %v1642 = vsel %vm1594, %v1637, %v1641
        %v1644 = vshrl.u32 %v1549, 16
        %v1646 = vshll.u32 %v1549, 16
        %v1648 = vrot.slane %v1646, 1
        %v1649 = vor.u32 %v1644, %v1648
        %v1651 = vshll.u32 %v1550, 16
        %v1653 = vrot.slane %v1651, 1
        %v1654 = vsel %vm1594, %v1649, %v1653
        %v1656 = vshrl.u32 %v1551, 16
        %v1658 = vshll.u32 %v1551, 16
        %v1660 = vrot.slane %v1658, 1
        %v1661 = vor.u32 %v1656, %v1660
        %v1663 = vshll.u32 %v1552, 16
        %v1665 = vrot.slane %v1663, 1
        %v1666 = vsel %vm1594, %v1661, %v1665
        %v1668 = vshrl.u32 %v1553, 16
        %v1670 = vshll.u32 %v1553, 16
        %v1672 = vrot.slane %v1670, 1
        %v1673 = vor.u32 %v1668, %v1672
        %v1675 = vshll.u32 %v1554, 16
        %v1677 = vrot.slane %v1675, 1
        %v1678 = vsel %vm1594, %v1673, %v1677
        %v1680 = vshrl.u32 %v1555, 16
        %v1682 = vshll.u32 %v1555, 16
        %v1684 = vrot.slane %v1682, 1
        %v1685 = vor.u32 %v1680, %v1684
        %v1687 = vshll.u32 %v1556, 16
        %v1689 = vrot.slane %v1687, 1
        %v1690 = vsel %vm1594, %v1685, %v1689
        %v1692 = vshrl.u32 %v1557, 16
        %v1694 = vshll.u32 %v1557, 16
        %v1696 = vrot.slane %v1694, 1
        %v1697 = vor.u32 %v1692, %v1696
        %v1699 = vshll.u32 %v1558, 16
        %v1701 = vrot.slane %v1699, 1
        %v1702 = vsel %vm1594, %v1697, %v1701
        %v1704 = vshrl.u32 %v1559, 16
        %v1706 = vshll.u32 %v1559, 16
        %v1708 = vrot.slane %v1706, 1
        %v1709 = vor.u32 %v1704, %v1708
        %v1711 = vshll.u32 %v1560, 16
        %v1713 = vrot.slane %v1711, 1
        %v1714 = vsel %vm1594, %v1709, %v1713
        %v1716 = vshrl.u32 %v1561, 16
        %v1718 = vshll.u32 %v1561, 16
        %v1720 = vrot.slane %v1718, 1
        %v1721 = vor.u32 %v1716, %v1720
        %v1723 = vshll.u32 %v1562, 16
        %v1725 = vrot.slane %v1723, 1
        %v1726 = vsel %vm1594, %v1721, %v1725
        %v1728 = vshrl.u32 %v1563, 16
        %v1730 = vshll.u32 %v1563, 16
        %v1732 = vrot.slane %v1730, 1
        %v1733 = vor.u32 %v1728, %v1732
        %v1735 = vshll.u32 %v1564, 16
        %v1737 = vrot.slane %v1735, 1
        %v1738 = vsel %vm1594, %v1733, %v1737
        %v1740 = vshrl.u32 %v1565, 16
        %v1742 = vshll.u32 %v1565, 16
        %v1744 = vrot.slane %v1742, 1
        %v1745 = vor.u32 %v1740, %v1744
        %v1747 = vshll.u32 %v1566, 16
        %v1749 = vrot.slane %v1747, 1
        %v1750 = vsel %vm1594, %v1745, %v1749
        %v1752 = vshrl.u32 %v1567, 16
        %v1754 = vshll.u32 %v1567, 16
        %v1756 = vrot.slane %v1754, 1
        %v1757 = vor.u32 %v1752, %v1756
        %v1759 = vshll.u32 %v1568, 16
        %v1761 = vrot.slane %v1759, 1
        %v1762 = vsel %vm1594, %v1757, %v1761
        %v1764 = vshrl.u32 %v1569, 16
        %v1766 = vshll.u32 %v1569, 16
        %v1768 = vrot.slane %v1766, 1
        %v1769 = vor.u32 %v1764, %v1768
        %v1771 = vshll.u32 %v1570, 16
        %v1773 = vrot.slane %v1771, 1
        %v1774 = vsel %vm1594, %v1769, %v1773
        %v1776 = vshrl.u32 %v1571, 16
        %v1778 = vshll.u32 %v1571, 16
        %v1780 = vrot.slane %v1778, 1
        %v1781 = vor.u32 %v1776, %v1780
        %v1783 = vshll.u32 %v1572, 16
        %v1785 = vrot.slane %v1783, 1
        %v1786 = vsel %vm1594, %v1781, %v1785
        %v1819 = vunpack.c.l.b16 %v1578
        %v1820 = vunpack.c.l.b16 %v1579
        %v1821 = vunpack.c.l.b16 %v1580
        %v1822 = vunpack.c.l.b16 %v1581
        %v1823 = vunpack.c.l.b16 %v1582
        %v1824 = vunpack.c.l.b16 %v1583
        %v1825 = vunpack.c.l.b16 %v1584
        %v1826 = vunpack.c.l.b16 %v1585
        %v1827 = vunpack.c.l.b16 %v1586
        %v1828 = vunpack.c.l.b16 %v1587
        %v1829 = vunpack.c.l.b16 %v1588
        %v1830 = vunpack.c.l.b16 %v1589
        %v1831 = vunpack.c.l.b16 %v1590
        %v1832 = vunpack.c.l.b16 %v1591
        %v1833 = vunpack.c.l.b16 %v1592
        %v1834 = vunpack.c.l.b16 %v1593
        %v1835 = vpack.c.b16 %v1820, %v1819
        %v1836 = vpack.c.b16 %v1822, %v1821
        %v1837 = vpack.c.b16 %v1824, %v1823
        %v1838 = vpack.c.b16 %v1826, %v1825
        %v1839 = vpack.c.b16 %v1828, %v1827
        %v1840 = vpack.c.b16 %v1830, %v1829
        %v1841 = vpack.c.b16 %v1832, %v1831
        %v1842 = vpack.c.b16 %v1834, %v1833
        %1851 = vmatprep.subr.bf16.mxu0 0
        %1852 = vmatpush1.bf16.msra.mxu0 %v1835
        %1853 = vmatprep.subr.bf16.mxu0 0
        %1854 = vmatpush1.bf16.msra.mxu0 %v1836
        %1855 = vmatprep.subr.bf16.mxu0 0
        %1856 = vmatpush1.bf16.msra.mxu0 %v1837
        %1857 = vmatprep.subr.bf16.mxu0 0
        %1858 = vmatpush1.bf16.msra.mxu0 %v1838
        %1859 = vmatprep.subr.bf16.mxu0 0
        %1860 = vmatpush1.bf16.msra.mxu0 %v1839
        %1861 = vmatprep.subr.bf16.mxu0 0
        %1862 = vmatpush1.bf16.msra.mxu0 %v1840
        %1863 = vmatprep.subr.bf16.mxu0 0
        %1864 = vmatpush1.bf16.msra.mxu0 %v1841
        %1865 = vmatprep.subr.bf16.mxu0 0
        %1866 = vmatpush1.bf16.msra.mxu0 %v1842
        %1867 = vmatprep.subr.bf16.mxu0 0
        %1868 = vmatpush1.bf16.msra.mxu0 0
        %1869 = vmatprep.subr.bf16.mxu0 0
        %1870 = vmatpush1.bf16.msra.mxu0 0
        %1871 = vmatprep.subr.bf16.mxu0 0
        %1872 = vmatpush1.bf16.msra.mxu0 0
        %1873 = vmatprep.subr.bf16.mxu0 0
        %1874 = vmatpush1.bf16.msra.mxu0 0
        %1875 = vmatprep.subr.bf16.mxu0 0
        %1876 = vmatpush1.bf16.msra.mxu0 0
        %1877 = vmatprep.subr.bf16.mxu0 0
        %1878 = vmatpush1.bf16.msra.mxu0 0
        %1879 = vmatprep.subr.bf16.mxu0 0
        %1880 = vmatpush1.bf16.msra.mxu0 0
        %1881 = vmatprep.subr.bf16.mxu0 0
        %1882 = vmatpush1.bf16.msra.mxu0 0
        %1883 = vmatprep.mubr.bf16.mxu0 0
        %1884 = vmatmul.mubr.bf16.gmra.mrb[0].mxu0 %v1606
        %v1885 = vpop.f32.mrb[0].mxu0
        %v1886 = vadd.f32 0.0, %v1885
        %v1887 = vpop.f32.mrb[0].mxu0
        %v1888 = vpop.f32.mrb[0].mxu0
        %v1889 = vadd.f32 0.0, %v1888
        %v1890 = vpop.f32.mrb[0].mxu0
        %1891 = vmatprep.mubr.bf16.mxu0 0
        %1892 = vmatmul.mubr.bf16.gmra.mrb[0].mxu0 %v1618
        %v1893 = vpop.f32.mrb[0].mxu0
        %v1894 = vadd.f32 0.0, %v1893
        %v1895 = vpop.f32.mrb[0].mxu0
        %v1896 = vpop.f32.mrb[0].mxu0
        %v1897 = vadd.f32 0.0, %v1896
        %v1898 = vpop.f32.mrb[0].mxu0
        %1899 = vmatprep.mubr.bf16.mxu0 0
        %1900 = vmatmul.mubr.bf16.gmra.mrb[0].mxu0 %v1630
        %v1901 = vpop.f32.mrb[0].mxu0
        %v1902 = vadd.f32 0.0, %v1901
        %v1903 = vpop.f32.mrb[0].mxu0
        %v1904 = vpop.f32.mrb[0].mxu0
        %v1905 = vadd.f32 0.0, %v1904
        %v1906 = vpop.f32.mrb[0].mxu0
        %1907 = vmatprep.mubr.bf16.mxu0 0
        %1908 = vmatmul.mubr.bf16.gmra.mrb[0].mxu0 %v1642
        %v1909 = vpop.f32.mrb[0].mxu0
        %v1910 = vadd.f32 0.0, %v1909
        %v1911 = vpop.f32.mrb[0].mxu0
        %v1912 = vpop.f32.mrb[0].mxu0
        %v1913 = vadd.f32 0.0, %v1912
        %v1914 = vpop.f32.mrb[0].mxu0
        %1915 = vmatprep.mubr.bf16.mxu0 0
        %1916 = vmatmul.mubr.bf16.gmra.mrb[0].mxu0 %v1654
        %v1917 = vpop.f32.mrb[0].mxu0
        %v1918 = vadd.f32 0.0, %v1917
        %v1919 = vpop.f32.mrb[0].mxu0
        %v1920 = vpop.f32.mrb[0].mxu0
        %v1921 = vadd.f32 0.0, %v1920
        %v1922 = vpop.f32.mrb[0].mxu0
        %1923 = vmatprep.mubr.bf16.mxu0 0
        %1924 = vmatmul.mubr.bf16.gmra.mrb[0].mxu0 %v1666
        %v1925 = vpop.f32.mrb[0].mxu0
        %v1926 = vadd.f32 0.0, %v1925
        %v1927 = vpop.f32.mrb[0].mxu0
        %v1928 = vpop.f32.mrb[0].mxu0
        %v1929 = vadd.f32 0.0, %v1928
        %v1930 = vpop.f32.mrb[0].mxu0
        %1931 = vmatprep.mubr.bf16.mxu0 0
        %1932 = vmatmul.mubr.bf16.gmra.mrb[0].mxu0 %v1678
        %v1933 = vpop.f32.mrb[0].mxu0
        %v1934 = vadd.f32 0.0, %v1933
        %v1935 = vpop.f32.mrb[0].mxu0
        %v1936 = vpop.f32.mrb[0].mxu0
        %v1937 = vadd.f32 0.0, %v1936
        %v1938 = vpop.f32.mrb[0].mxu0
        %1939 = vmatprep.mubr.bf16.mxu0 0
        %1940 = vmatmul.mubr.bf16.gmra.mrb[0].mxu0 %v1690
        %v1941 = vpop.f32.mrb[0].mxu0
        %v1942 = vadd.f32 0.0, %v1941
        %v1943 = vpop.f32.mrb[0].mxu0
        %v1944 = vpop.f32.mrb[0].mxu0
        %v1945 = vadd.f32 0.0, %v1944
        %v1946 = vpop.f32.mrb[0].mxu0
        %1947 = vmatprep.mubr.bf16.mxu0 0
        %1948 = vmatmul.mubr.bf16.gmra.mrb[0].mxu0 %v1702
        %v1949 = vpop.f32.mrb[0].mxu0
        %v1950 = vadd.f32 0.0, %v1949
        %v1951 = vpop.f32.mrb[0].mxu0
        %v1952 = vpop.f32.mrb[0].mxu0
        %v1953 = vadd.f32 0.0, %v1952
        %v1954 = vpop.f32.mrb[0].mxu0
        %1955 = vmatprep.mubr.bf16.mxu0 0
        %1956 = vmatmul.mubr.bf16.gmra.mrb[0].mxu0 %v1714
        %v1957 = vpop.f32.mrb[0].mxu0
        %v1958 = vadd.f32 0.0, %v1957
        %v1959 = vpop.f32.mrb[0].mxu0
        %v1960 = vpop.f32.mrb[0].mxu0
        %v1961 = vadd.f32 0.0, %v1960
        %v1962 = vpop.f32.mrb[0].mxu0
        %1963 = vmatprep.mubr.bf16.mxu0 0
        %1964 = vmatmul.mubr.bf16.gmra.mrb[0].mxu0 %v1726
        %v1965 = vpop.f32.mrb[0].mxu0
        %v1966 = vadd.f32 0.0, %v1965
        %v1967 = vpop.f32.mrb[0].mxu0
        %v1968 = vpop.f32.mrb[0].mxu0
        %v1969 = vadd.f32 0.0, %v1968
        %v1970 = vpop.f32.mrb[0].mxu0
        %1971 = vmatprep.mubr.bf16.mxu0 0
        %1972 = vmatmul.mubr.bf16.gmra.mrb[0].mxu0 %v1738
        %v1973 = vpop.f32.mrb[0].mxu0
        %v1974 = vadd.f32 0.0, %v1973
        %v1975 = vpop.f32.mrb[0].mxu0
        %v1976 = vpop.f32.mrb[0].mxu0
        %v1977 = vadd.f32 0.0, %v1976
        %v1978 = vpop.f32.mrb[0].mxu0
        %1979 = vmatprep.mubr.bf16.mxu0 0
        %1980 = vmatmul.mubr.bf16.gmra.mrb[0].mxu0 %v1750
        %v1981 = vpop.f32.mrb[0].mxu0
        %v1982 = vadd.f32 0.0, %v1981
        %v1983 = vpop.f32.mrb[0].mxu0
        %v1984 = vpop.f32.mrb[0].mxu0
        %v1985 = vadd.f32 0.0, %v1984
        %v1986 = vpop.f32.mrb[0].mxu0
        %1987 = vmatprep.mubr.bf16.mxu0 0
        %1988 = vmatmul.mubr.bf16.gmra.mrb[0].mxu0 %v1762
        %v1989 = vpop.f32.mrb[0].mxu0
        %v1990 = vadd.f32 0.0, %v1989
        %v1991 = vpop.f32.mrb[0].mxu0
        %v1992 = vpop.f32.mrb[0].mxu0
        %v1993 = vadd.f32 0.0, %v1992
        %v1994 = vpop.f32.mrb[0].mxu0
        %1995 = vmatprep.mubr.bf16.mxu0 0
        %1996 = vmatmul.mubr.bf16.gmra.mrb[0].mxu0 %v1774
        %v1997 = vpop.f32.mrb[0].mxu0
        %v1998 = vadd.f32 0.0, %v1997
        %v1999 = vpop.f32.mrb[0].mxu0
        %v2000 = vpop.f32.mrb[0].mxu0
        %v2001 = vadd.f32 0.0, %v2000
        %v2002 = vpop.f32.mrb[0].mxu0
        %2003 = vmatprep.mubr.bf16.mxu0 0
        %2004 = vmatmul.mubr.bf16.gmra.mrb[0].mxu0 %v1786
        %v2005 = vpop.f32.mrb[0].mxu0
        %v2006 = vadd.f32 0.0, %v2005
        %v2007 = vpop.f32.mrb[0].mxu0
        %v2008 = vpop.f32.mrb[0].mxu0
        %v2009 = vadd.f32 0.0, %v2008
        %v2010 = vpop.f32.mrb[0].mxu0
        %2011 = vdwg.mxu0
        %v2012 = vadd.f32 %v1509, %v1886
        %v2013 = vadd.f32 %v1510, %v1889
        %v2014 = vadd.f32 %v1511, %v1894
        %v2015 = vadd.f32 %v1512, %v1897
        %v2016 = vadd.f32 %v1513, %v1902
        %v2017 = vadd.f32 %v1514, %v1905
        %v2018 = vadd.f32 %v1515, %v1910
        %v2019 = vadd.f32 %v1516, %v1913
        %v2020 = vadd.f32 %v1517, %v1918
        %v2021 = vadd.f32 %v1518, %v1921
        %v2022 = vadd.f32 %v1519, %v1926
        %v2023 = vadd.f32 %v1520, %v1929
        %v2024 = vadd.f32 %v1521, %v1934
        %v2025 = vadd.f32 %v1522, %v1937
        %v2026 = vadd.f32 %v1523, %v1942
        %v2027 = vadd.f32 %v1524, %v1945
        %v2028 = vadd.f32 %v1525, %v1950
        %v2029 = vadd.f32 %v1526, %v1953
        %v2030 = vadd.f32 %v1527, %v1958
        %v2031 = vadd.f32 %v1528, %v1961
        %v2032 = vadd.f32 %v1529, %v1966
        %v2033 = vadd.f32 %v1530, %v1969
        %v2034 = vadd.f32 %v1531, %v1974
        %v2035 = vadd.f32 %v1532, %v1977
        %v2036 = vadd.f32 %v1533, %v1982
        %v2037 = vadd.f32 %v1534, %v1985
        %v2038 = vadd.f32 %v1535, %v1990
        %v2039 = vadd.f32 %v1536, %v1993
        %v2040 = vadd.f32 %v1537, %v1998
        %v2041 = vadd.f32 %v1538, %v2001
        %v2042 = vadd.f32 %v1539, %v2006
        %v2043 = vadd.f32 %v1540, %v2009
        %s2044 = scalar_lea.vmem [#allocation6], 256
        %v2045 = vld [vmem:[%s2044] sm:$0xf]
        %v2046 = vld [vmem:[%s2044 + $0x4] sm:$0xf]
        %v2047 = vld [vmem:[%s2044 + $0x8] sm:$0xf]
        %v2048 = vld [vmem:[%s2044 + $0xc] sm:$0xf]
        %v2049 = vld [vmem:[%s2044 + $0x10] sm:$0xf]
        %v2050 = vld [vmem:[%s2044 + $0x14] sm:$0xf]
        %v2051 = vld [vmem:[%s2044 + $0x18] sm:$0xf]
        %v2052 = vld [vmem:[%s2044 + $0x1c] sm:$0xf]
        %v2053 = vld [vmem:[%s2044 + $0x20] sm:$0xf]
        %v2054 = vld [vmem:[%s2044 + $0x24] sm:$0xf]
        %v2055 = vld [vmem:[%s2044 + $0x28] sm:$0xf]
        %v2056 = vld [vmem:[%s2044 + $0x2c] sm:$0xf]
        %v2057 = vld [vmem:[%s2044 + $0x30] sm:$0xf]
        %v2058 = vld [vmem:[%s2044 + $0x34] sm:$0xf]
        %v2059 = vld [vmem:[%s2044 + $0x38] sm:$0xf]
        %v2060 = vld [vmem:[%s2044 + $0x3c] sm:$0xf]
        %v2062 = vshrl.u32 %v1573, 16
        %v2064 = vshll.u32 %v1573, 16
        %v2066 = vrot.slane %v2064, 1
        %v2067 = vor.u32 %v2062, %v2066
        %v2069 = vshll.u32 %v1574, 16
        %v2071 = vrot.slane %v2069, 1
        %v2072 = vsel %vm1594, %v2067, %v2071
        %v2090 = vunpack.c.l.b16 %v2045
        %v2091 = vunpack.c.l.b16 %v2046
        %v2092 = vunpack.c.l.b16 %v2047
        %v2093 = vunpack.c.l.b16 %v2048
        %v2094 = vunpack.c.l.b16 %v2049
        %v2095 = vunpack.c.l.b16 %v2050
        %v2096 = vunpack.c.l.b16 %v2051
        %v2097 = vunpack.c.l.b16 %v2052
        %v2098 = vunpack.c.l.b16 %v2053
        %v2099 = vunpack.c.l.b16 %v2054
        %v2100 = vunpack.c.l.b16 %v2055
        %v2101 = vunpack.c.l.b16 %v2056
        %v2102 = vunpack.c.l.b16 %v2057
        %v2103 = vunpack.c.l.b16 %v2058
        %v2104 = vunpack.c.l.b16 %v2059
        %v2105 = vunpack.c.l.b16 %v2060
        %v2106 = vpack.c.b16 %v2091, %v2090
        %v2107 = vpack.c.b16 %v2093, %v2092
        %v2108 = vpack.c.b16 %v2095, %v2094
        %v2109 = vpack.c.b16 %v2097, %v2096
        %v2110 = vpack.c.b16 %v2099, %v2098
        %v2111 = vpack.c.b16 %v2101, %v2100
        %v2112 = vpack.c.b16 %v2103, %v2102
        %v2113 = vpack.c.b16 %v2105, %v2104
        %2122 = vmatprep.subr.bf16.mxu0 0
        %2123 = vmatpush1.bf16.msra.mxu0 %v2106
        %2124 = vmatprep.subr.bf16.mxu0 0
        %2125 = vmatpush1.bf16.msra.mxu0 %v2107
        %2126 = vmatprep.subr.bf16.mxu0 0
        %2127 = vmatpush1.bf16.msra.mxu0 %v2108
        %2128 = vmatprep.subr.bf16.mxu0 0
        %2129 = vmatpush1.bf16.msra.mxu0 %v2109
        %2130 = vmatprep.subr.bf16.mxu0 0
        %2131 = vmatpush1.bf16.msra.mxu0 %v2110
        %2132 = vmatprep.subr.bf16.mxu0 0
        %2133 = vmatpush1.bf16.msra.mxu0 %v2111
        %2134 = vmatprep.subr.bf16.mxu0 0
        %2135 = vmatpush1.bf16.msra.mxu0 %v2112
        %2136 = vmatprep.subr.bf16.mxu0 0
        %2137 = vmatpush1.bf16.msra.mxu0 %v2113
        %2138 = vmatprep.subr.bf16.mxu0 0
        %2139 = vmatpush1.bf16.msra.mxu0 0
        %2140 = vmatprep.subr.bf16.mxu0 0
        %2141 = vmatpush1.bf16.msra.mxu0 0
        %2142 = vmatprep.subr.bf16.mxu0 0
        %2143 = vmatpush1.bf16.msra.mxu0 0
        %2144 = vmatprep.subr.bf16.mxu0 0
        %2145 = vmatpush1.bf16.msra.mxu0 0
        %2146 = vmatprep.subr.bf16.mxu0 0
        %2147 = vmatpush1.bf16.msra.mxu0 0
        %2148 = vmatprep.subr.bf16.mxu0 0
        %2149 = vmatpush1.bf16.msra.mxu0 0
        %2150 = vmatprep.subr.bf16.mxu0 0
        %2151 = vmatpush1.bf16.msra.mxu0 0
        %2152 = vmatprep.subr.bf16.mxu0 0
        %2153 = vmatpush1.bf16.msra.mxu0 0
        %2154 = vmatprep.mubr.bf16.mxu0 0
        %2155 = vmatmul.mubr.bf16.gmra.mrb[0].mxu0 %v1618
        %v2156 = vpop.f32.mrb[0].mxu0
        %v2157 = vadd.f32 0.0, %v2156
        %v2158 = vpop.f32.mrb[0].mxu0
        %v2159 = vpop.f32.mrb[0].mxu0
        %v2160 = vadd.f32 0.0, %v2159
        %v2161 = vpop.f32.mrb[0].mxu0
        %2162 = vmatprep.mubr.bf16.mxu0 0
        %2163 = vmatmul.mubr.bf16.gmra.mrb[0].mxu0 %v1630
        %v2164 = vpop.f32.mrb[0].mxu0
        %v2165 = vadd.f32 0.0, %v2164
        %v2166 = vpop.f32.mrb[0].mxu0
        %v2167 = vpop.f32.mrb[0].mxu0
        %v2168 = vadd.f32 0.0, %v2167
        %v2169 = vpop.f32.mrb[0].mxu0
        %2170 = vmatprep.mubr.bf16.mxu0 0
        %2171 = vmatmul.mubr.bf16.gmra.mrb[0].mxu0 %v1642
        %v2172 = vpop.f32.mrb[0].mxu0
        %v2173 = vadd.f32 0.0, %v2172
        %v2174 = vpop.f32.mrb[0].mxu0
        %v2175 = vpop.f32.mrb[0].mxu0
        %v2176 = vadd.f32 0.0, %v2175
        %v2177 = vpop.f32.mrb[0].mxu0
        %2178 = vmatprep.mubr.bf16.mxu0 0
        %2179 = vmatmul.mubr.bf16.gmra.mrb[0].mxu0 %v1654
        %v2180 = vpop.f32.mrb[0].mxu0
        %v2181 = vadd.f32 0.0, %v2180
        %v2182 = vpop.f32.mrb[0].mxu0
        %v2183 = vpop.f32.mrb[0].mxu0
        %v2184 = vadd.f32 0.0, %v2183
        %v2185 = vpop.f32.mrb[0].mxu0
        %2186 = vmatprep.mubr.bf16.mxu0 0
        %2187 = vmatmul.mubr.bf16.gmra.mrb[0].mxu0 %v1666
        %v2188 = vpop.f32.mrb[0].mxu0
        %v2189 = vadd.f32 0.0, %v2188
        %v2190 = vpop.f32.mrb[0].mxu0
        %v2191 = vpop.f32.mrb[0].mxu0
        %v2192 = vadd.f32 0.0, %v2191
        %v2193 = vpop.f32.mrb[0].mxu0
        %2194 = vmatprep.mubr.bf16.mxu0 0
        %2195 = vmatmul.mubr.bf16.gmra.mrb[0].mxu0 %v1678
        %v2196 = vpop.f32.mrb[0].mxu0
        %v2197 = vadd.f32 0.0, %v2196
        %v2198 = vpop.f32.mrb[0].mxu0
        %v2199 = vpop.f32.mrb[0].mxu0
        %v2200 = vadd.f32 0.0, %v2199
        %v2201 = vpop.f32.mrb[0].mxu0
        %2202 = vmatprep.mubr.bf16.mxu0 0
        %2203 = vmatmul.mubr.bf16.gmra.mrb[0].mxu0 %v1690
        %v2204 = vpop.f32.mrb[0].mxu0
        %v2205 = vadd.f32 0.0, %v2204
        %v2206 = vpop.f32.mrb[0].mxu0
        %v2207 = vpop.f32.mrb[0].mxu0
        %v2208 = vadd.f32 0.0, %v2207
        %v2209 = vpop.f32.mrb[0].mxu0
        %2210 = vmatprep.mubr.bf16.mxu0 0
        %2211 = vmatmul.mubr.bf16.gmra.mrb[0].mxu0 %v1702
        %v2212 = vpop.f32.mrb[0].mxu0
        %v2213 = vadd.f32 0.0, %v2212
        %v2214 = vpop.f32.mrb[0].mxu0
        %v2215 = vpop.f32.mrb[0].mxu0
        %v2216 = vadd.f32 0.0, %v2215
        %v2217 = vpop.f32.mrb[0].mxu0
        %2218 = vmatprep.mubr.bf16.mxu0 0
        %2219 = vmatmul.mubr.bf16.gmra.mrb[0].mxu0 %v1714
        %v2220 = vpop.f32.mrb[0].mxu0
        %v2221 = vadd.f32 0.0, %v2220
        %v2222 = vpop.f32.mrb[0].mxu0
        %v2223 = vpop.f32.mrb[0].mxu0
        %v2224 = vadd.f32 0.0, %v2223
        %v2225 = vpop.f32.mrb[0].mxu0
        %2226 = vmatprep.mubr.bf16.mxu0 0
        %2227 = vmatmul.mubr.bf16.gmra.mrb[0].mxu0 %v1726
        %v2228 = vpop.f32.mrb[0].mxu0
        %v2229 = vadd.f32 0.0, %v2228
        %v2230 = vpop.f32.mrb[0].mxu0
        %v2231 = vpop.f32.mrb[0].mxu0
        %v2232 = vadd.f32 0.0, %v2231
        %v2233 = vpop.f32.mrb[0].mxu0
        %2234 = vmatprep.mubr.bf16.mxu0 0
        %2235 = vmatmul.mubr.bf16.gmra.mrb[0].mxu0 %v1738
        %v2236 = vpop.f32.mrb[0].mxu0
        %v2237 = vadd.f32 0.0, %v2236
        %v2238 = vpop.f32.mrb[0].mxu0
        %v2239 = vpop.f32.mrb[0].mxu0
        %v2240 = vadd.f32 0.0, %v2239
        %v2241 = vpop.f32.mrb[0].mxu0
        %2242 = vmatprep.mubr.bf16.mxu0 0
        %2243 = vmatmul.mubr.bf16.gmra.mrb[0].mxu0 %v1750
        %v2244 = vpop.f32.mrb[0].mxu0
        %v2245 = vadd.f32 0.0, %v2244
        %v2246 = vpop.f32.mrb[0].mxu0
        %v2247 = vpop.f32.mrb[0].mxu0
        %v2248 = vadd.f32 0.0, %v2247
        %v2249 = vpop.f32.mrb[0].mxu0
        %2250 = vmatprep.mubr.bf16.mxu0 0
        %2251 = vmatmul.mubr.bf16.gmra.mrb[0].mxu0 %v1762
        %v2252 = vpop.f32.mrb[0].mxu0
        %v2253 = vadd.f32 0.0, %v2252
        %v2254 = vpop.f32.mrb[0].mxu0
        %v2255 = vpop.f32.mrb[0].mxu0
        %v2256 = vadd.f32 0.0, %v2255
        %v2257 = vpop.f32.mrb[0].mxu0
        %2258 = vmatprep.mubr.bf16.mxu0 0
        %2259 = vmatmul.mubr.bf16.gmra.mrb[0].mxu0 %v1774
        %v2260 = vpop.f32.mrb[0].mxu0
        %v2261 = vadd.f32 0.0, %v2260
        %v2262 = vpop.f32.mrb[0].mxu0
        %v2263 = vpop.f32.mrb[0].mxu0
        %v2264 = vadd.f32 0.0, %v2263
        %v2265 = vpop.f32.mrb[0].mxu0
        %2266 = vmatprep.mubr.bf16.mxu0 0
        %2267 = vmatmul.mubr.bf16.gmra.mrb[0].mxu0 %v1786
        %v2268 = vpop.f32.mrb[0].mxu0
        %v2269 = vadd.f32 0.0, %v2268
        %v2270 = vpop.f32.mrb[0].mxu0
        %v2271 = vpop.f32.mrb[0].mxu0
        %v2272 = vadd.f32 0.0, %v2271
        %v2273 = vpop.f32.mrb[0].mxu0
        %2274 = vmatprep.mubr.bf16.mxu0 0
        %2275 = vmatmul.mubr.bf16.gmra.mrb[0].mxu0 %v2072
        %v2276 = vpop.f32.mrb[0].mxu0
        %v2277 = vadd.f32 0.0, %v2276
        %v2278 = vpop.f32.mrb[0].mxu0
        %v2279 = vpop.f32.mrb[0].mxu0
        %v2280 = vadd.f32 0.0, %v2279
        %v2281 = vpop.f32.mrb[0].mxu0
        %2282 = vdwg.mxu0
        %v2283 = vadd.f32 %v2012, %v2157
        %v2284 = vadd.f32 %v2013, %v2160
        %v2285 = vadd.f32 %v2014, %v2165
        %v2286 = vadd.f32 %v2015, %v2168
        %v2287 = vadd.f32 %v2016, %v2173
        %v2288 = vadd.f32 %v2017, %v2176
        %v2289 = vadd.f32 %v2018, %v2181
        %v2290 = vadd.f32 %v2019, %v2184
        %v2291 = vadd.f32 %v2020, %v2189
        %v2292 = vadd.f32 %v2021, %v2192
        %v2293 = vadd.f32 %v2022, %v2197
        %v2294 = vadd.f32 %v2023, %v2200
        %v2295 = vadd.f32 %v2024, %v2205
        %v2296 = vadd.f32 %v2025, %v2208
        %v2297 = vadd.f32 %v2026, %v2213
        %v2298 = vadd.f32 %v2027, %v2216
        %v2299 = vadd.f32 %v2028, %v2221
        %v2300 = vadd.f32 %v2029, %v2224
        %v2301 = vadd.f32 %v2030, %v2229
        %v2302 = vadd.f32 %v2031, %v2232
        %v2303 = vadd.f32 %v2032, %v2237
        %v2304 = vadd.f32 %v2033, %v2240
        %v2305 = vadd.f32 %v2034, %v2245
        %v2306 = vadd.f32 %v2035, %v2248
        %v2307 = vadd.f32 %v2036, %v2253
        %v2308 = vadd.f32 %v2037, %v2256
        %v2309 = vadd.f32 %v2038, %v2261
        %v2310 = vadd.f32 %v2039, %v2264
        %v2311 = vadd.f32 %v2040, %v2269
        %v2312 = vadd.f32 %v2041, %v2272
        %v2313 = vadd.f32 %v2042, %v2277
        %v2314 = vadd.f32 %v2043, %v2280
        %s2315 = scalar_lea.vmem [#allocation6], 448
        %v2316 = vld [vmem:[%s2315] sm:$0xf]
        %v2317 = vld [vmem:[%s2315 + $0x4] sm:$0xf]
        %v2318 = vld [vmem:[%s2315 + $0x8] sm:$0xf]
        %v2319 = vld [vmem:[%s2315 + $0xc] sm:$0xf]
        %v2320 = vld [vmem:[%s2315 + $0x10] sm:$0xf]
        %v2321 = vld [vmem:[%s2315 + $0x14] sm:$0xf]
        %v2322 = vld [vmem:[%s2315 + $0x18] sm:$0xf]
        %v2323 = vld [vmem:[%s2315 + $0x1c] sm:$0xf]
        %v2324 = vld [vmem:[%s2315 + $0x20] sm:$0xf]
        %v2325 = vld [vmem:[%s2315 + $0x24] sm:$0xf]
        %v2326 = vld [vmem:[%s2315 + $0x28] sm:$0xf]
        %v2327 = vld [vmem:[%s2315 + $0x2c] sm:$0xf]
        %v2328 = vld [vmem:[%s2315 + $0x30] sm:$0xf]
        %v2329 = vld [vmem:[%s2315 + $0x34] sm:$0xf]
        %v2330 = vld [vmem:[%s2315 + $0x38] sm:$0xf]
        %v2331 = vld [vmem:[%s2315 + $0x3c] sm:$0xf]
        %v2333 = vshrl.u32 %v1575, 16
        %v2335 = vshll.u32 %v1575, 16
        %v2337 = vrot.slane %v2335, 1
        %v2338 = vor.u32 %v2333, %v2337
        %v2340 = vshll.u32 %v1576, 16
        %v2342 = vrot.slane %v2340, 1
        %v2343 = vsel %vm1594, %v2338, %v2342
        %v2361 = vunpack.c.l.b16 %v2316
        %v2362 = vunpack.c.l.b16 %v2317
        %v2363 = vunpack.c.l.b16 %v2318
        %v2364 = vunpack.c.l.b16 %v2319
        %v2365 = vunpack.c.l.b16 %v2320
        %v2366 = vunpack.c.l.b16 %v2321
        %v2367 = vunpack.c.l.b16 %v2322
        %v2368 = vunpack.c.l.b16 %v2323
        %v2369 = vunpack.c.l.b16 %v2324
        %v2370 = vunpack.c.l.b16 %v2325
        %v2371 = vunpack.c.l.b16 %v2326
        %v2372 = vunpack.c.l.b16 %v2327
        %v2373 = vunpack.c.l.b16 %v2328
        %v2374 = vunpack.c.l.b16 %v2329
        %v2375 = vunpack.c.l.b16 %v2330
        %v2376 = vunpack.c.l.b16 %v2331
        %v2377 = vpack.c.b16 %v2362, %v2361
        %v2378 = vpack.c.b16 %v2364, %v2363
        %v2379 = vpack.c.b16 %v2366, %v2365
        %v2380 = vpack.c.b16 %v2368, %v2367
        %v2381 = vpack.c.b16 %v2370, %v2369
        %v2382 = vpack.c.b16 %v2372, %v2371
        %v2383 = vpack.c.b16 %v2374, %v2373
        %v2384 = vpack.c.b16 %v2376, %v2375
        %2393 = vmatprep.subr.bf16.mxu0 0
        %2394 = vmatpush1.bf16.msra.mxu0 %v2377
        %2395 = vmatprep.subr.bf16.mxu0 0
        %2396 = vmatpush1.bf16.msra.mxu0 %v2378
        %2397 = vmatprep.subr.bf16.mxu0 0
        %2398 = vmatpush1.bf16.msra.mxu0 %v2379
        %2399 = vmatprep.subr.bf16.mxu0 0
        %2400 = vmatpush1.bf16.msra.mxu0 %v2380
        %2401 = vmatprep.subr.bf16.mxu0 0
        %2402 = vmatpush1.bf16.msra.mxu0 %v2381
        %2403 = vmatprep.subr.bf16.mxu0 0
        %2404 = vmatpush1.bf16.msra.mxu0 %v2382
        %2405 = vmatprep.subr.bf16.mxu0 0
        %2406 = vmatpush1.bf16.msra.mxu0 %v2383
        %2407 = vmatprep.subr.bf16.mxu0 0
        %2408 = vmatpush1.bf16.msra.mxu0 %v2384
        %2409 = vmatprep.subr.bf16.mxu0 0
        %2410 = vmatpush1.bf16.msra.mxu0 0
        %2411 = vmatprep.subr.bf16.mxu0 0
        %2412 = vmatpush1.bf16.msra.mxu0 0
        %2413 = vmatprep.subr.bf16.mxu0 0
        %2414 = vmatpush1.bf16.msra.mxu0 0
        %2415 = vmatprep.subr.bf16.mxu0 0
        %2416 = vmatpush1.bf16.msra.mxu0 0
        %2417 = vmatprep.subr.bf16.mxu0 0
        %2418 = vmatpush1.bf16.msra.mxu0 0
        %2419 = vmatprep.subr.bf16.mxu0 0
        %2420 = vmatpush1.bf16.msra.mxu0 0
        %2421 = vmatprep.subr.bf16.mxu0 0
        %2422 = vmatpush1.bf16.msra.mxu0 0
        %2423 = vmatprep.subr.bf16.mxu0 0
        %2424 = vmatpush1.bf16.msra.mxu0 0
        %2425 = vmatprep.mubr.bf16.mxu0 0
        %2426 = vmatmul.mubr.bf16.gmra.mrb[0].mxu0 %v1630
        %v2427 = vpop.f32.mrb[0].mxu0
        %v2428 = vadd.f32 0.0, %v2427
        %v2429 = vpop.f32.mrb[0].mxu0
        %v2430 = vpop.f32.mrb[0].mxu0
        %v2431 = vadd.f32 0.0, %v2430
        %v2432 = vpop.f32.mrb[0].mxu0
        %2433 = vmatprep.mubr.bf16.mxu0 0
        %2434 = vmatmul.mubr.bf16.gmra.mrb[0].mxu0 %v1642
        %v2435 = vpop.f32.mrb[0].mxu0
        %v2436 = vadd.f32 0.0, %v2435
        %v2437 = vpop.f32.mrb[0].mxu0
        %v2438 = vpop.f32.mrb[0].mxu0
        %v2439 = vadd.f32 0.0, %v2438
        %v2440 = vpop.f32.mrb[0].mxu0
        %2441 = vmatprep.mubr.bf16.mxu0 0
        %2442 = vmatmul.mubr.bf16.gmra.mrb[0].mxu0 %v1654
        %v2443 = vpop.f32.mrb[0].mxu0
        %v2444 = vadd.f32 0.0, %v2443
        %v2445 = vpop.f32.mrb[0].mxu0
        %v2446 = vpop.f32.mrb[0].mxu0
        %v2447 = vadd.f32 0.0, %v2446
        %v2448 = vpop.f32.mrb[0].mxu0
        %2449 = vmatprep.mubr.bf16.mxu0 0
        %2450 = vmatmul.mubr.bf16.gmra.mrb[0].mxu0 %v1666
        %v2451 = vpop.f32.mrb[0].mxu0
        %v2452 = vadd.f32 0.0, %v2451
        %v2453 = vpop.f32.mrb[0].mxu0
        %v2454 = vpop.f32.mrb[0].mxu0
        %v2455 = vadd.f32 0.0, %v2454
        %v2456 = vpop.f32.mrb[0].mxu0
        %2457 = vmatprep.mubr.bf16.mxu0 0
        %2458 = vmatmul.mubr.bf16.gmra.mrb[0].mxu0 %v1678
        %v2459 = vpop.f32.mrb[0].mxu0
        %v2460 = vadd.f32 0.0, %v2459
        %v2461 = vpop.f32.mrb[0].mxu0
        %v2462 = vpop.f32.mrb[0].mxu0
        %v2463 = vadd.f32 0.0, %v2462
        %v2464 = vpop.f32.mrb[0].mxu0
        %2465 = vmatprep.mubr.bf16.mxu0 0
        %2466 = vmatmul.mubr.bf16.gmra.mrb[0].mxu0 %v1690
        %v2467 = vpop.f32.mrb[0].mxu0
        %v2468 = vadd.f32 0.0, %v2467
        %v2469 = vpop.f32.mrb[0].mxu0
        %v2470 = vpop.f32.mrb[0].mxu0
        %v2471 = vadd.f32 0.0, %v2470
        %v2472 = vpop.f32.mrb[0].mxu0
        %2473 = vmatprep.mubr.bf16.mxu0 0
        %2474 = vmatmul.mubr.bf16.gmra.mrb[0].mxu0 %v1702
        %v2475 = vpop.f32.mrb[0].mxu0
        %v2476 = vadd.f32 0.0, %v2475
        %v2477 = vpop.f32.mrb[0].mxu0
        %v2478 = vpop.f32.mrb[0].mxu0
        %v2479 = vadd.f32 0.0, %v2478
        %v2480 = vpop.f32.mrb[0].mxu0
        %2481 = vmatprep.mubr.bf16.mxu0 0
        %2482 = vmatmul.mubr.bf16.gmra.mrb[0].mxu0 %v1714
        %v2483 = vpop.f32.mrb[0].mxu0
        %v2484 = vadd.f32 0.0, %v2483
        %v2485 = vpop.f32.mrb[0].mxu0
        %v2486 = vpop.f32.mrb[0].mxu0
        %v2487 = vadd.f32 0.0, %v2486
        %v2488 = vpop.f32.mrb[0].mxu0
        %2489 = vmatprep.mubr.bf16.mxu0 0
        %2490 = vmatmul.mubr.bf16.gmra.mrb[0].mxu0 %v1726
        %v2491 = vpop.f32.mrb[0].mxu0
        %v2492 = vadd.f32 0.0, %v2491
        %v2493 = vpop.f32.mrb[0].mxu0
        %v2494 = vpop.f32.mrb[0].mxu0
        %v2495 = vadd.f32 0.0, %v2494
        %v2496 = vpop.f32.mrb[0].mxu0
        %2497 = vmatprep.mubr.bf16.mxu0 0
        %2498 = vmatmul.mubr.bf16.gmra.mrb[0].mxu0 %v1738
        %v2499 = vpop.f32.mrb[0].mxu0
        %v2500 = vadd.f32 0.0, %v2499
        %v2501 = vpop.f32.mrb[0].mxu0
        %v2502 = vpop.f32.mrb[0].mxu0
        %v2503 = vadd.f32 0.0, %v2502
        %v2504 = vpop.f32.mrb[0].mxu0
        %2505 = vmatprep.mubr.bf16.mxu0 0
        %2506 = vmatmul.mubr.bf16.gmra.mrb[0].mxu0 %v1750
        %v2507 = vpop.f32.mrb[0].mxu0
        %v2508 = vadd.f32 0.0, %v2507
        %v2509 = vpop.f32.mrb[0].mxu0
        %v2510 = vpop.f32.mrb[0].mxu0
        %v2511 = vadd.f32 0.0, %v2510
        %v2512 = vpop.f32.mrb[0].mxu0
        %2513 = vmatprep.mubr.bf16.mxu0 0
        %2514 = vmatmul.mubr.bf16.gmra.mrb[0].mxu0 %v1762
        %v2515 = vpop.f32.mrb[0].mxu0
        %v2516 = vadd.f32 0.0, %v2515
        %v2517 = vpop.f32.mrb[0].mxu0
        %v2518 = vpop.f32.mrb[0].mxu0
        %v2519 = vadd.f32 0.0, %v2518
        %v2520 = vpop.f32.mrb[0].mxu0
        %2521 = vmatprep.mubr.bf16.mxu0 0
        %2522 = vmatmul.mubr.bf16.gmra.mrb[0].mxu0 %v1774
        %v2523 = vpop.f32.mrb[0].mxu0
        %v2524 = vadd.f32 0.0, %v2523
        %v2525 = vpop.f32.mrb[0].mxu0
        %v2526 = vpop.f32.mrb[0].mxu0
        %v2527 = vadd.f32 0.0, %v2526
        %v2528 = vpop.f32.mrb[0].mxu0
        %2529 = vmatprep.mubr.bf16.mxu0 0
        %2530 = vmatmul.mubr.bf16.gmra.mrb[0].mxu0 %v1786
        %v2531 = vpop.f32.mrb[0].mxu0
        %v2532 = vadd.f32 0.0, %v2531
        %v2533 = vpop.f32.mrb[0].mxu0
        %v2534 = vpop.f32.mrb[0].mxu0
        %v2535 = vadd.f32 0.0, %v2534
        %v2536 = vpop.f32.mrb[0].mxu0
        %2537 = vmatprep.mubr.bf16.mxu0 0
        %2538 = vmatmul.mubr.bf16.gmra.mrb[0].mxu0 %v2072
        %v2539 = vpop.f32.mrb[0].mxu0
        %v2540 = vadd.f32 0.0, %v2539
        %v2541 = vpop.f32.mrb[0].mxu0
        %v2542 = vpop.f32.mrb[0].mxu0
        %v2543 = vadd.f32 0.0, %v2542
        %v2544 = vpop.f32.mrb[0].mxu0
        %2545 = vmatprep.mubr.bf16.mxu0 0
        %2546 = vmatmul.mubr.bf16.gmra.mrb[0].mxu0 %v2343
        %v2547 = vpop.f32.mrb[0].mxu0
        %v2548 = vadd.f32 0.0, %v2547
        %v2549 = vpop.f32.mrb[0].mxu0
        %v2550 = vpop.f32.mrb[0].mxu0
        %v2551 = vadd.f32 0.0, %v2550
        %v2552 = vpop.f32.mrb[0].mxu0
        %2553 = vdwg.mxu0
        %v2554 = vadd.f32 %v2283, %v2428
        %v2555 = vadd.f32 %v2284, %v2431
        %v2556 = vadd.f32 %v2285, %v2436
        %v2557 = vadd.f32 %v2286, %v2439
        %v2558 = vadd.f32 %v2287, %v2444
        %v2559 = vadd.f32 %v2288, %v2447
        %v2560 = vadd.f32 %v2289, %v2452
        %v2561 = vadd.f32 %v2290, %v2455
        %v2562 = vadd.f32 %v2291, %v2460
        %v2563 = vadd.f32 %v2292, %v2463
        %v2564 = vadd.f32 %v2293, %v2468
        %v2565 = vadd.f32 %v2294, %v2471
        %v2566 = vadd.f32 %v2295, %v2476
        %v2567 = vadd.f32 %v2296, %v2479
        %v2568 = vadd.f32 %v2297, %v2484
        %v2569 = vadd.f32 %v2298, %v2487
        %v2570 = vadd.f32 %v2299, %v2492
        %v2571 = vadd.f32 %v2300, %v2495
        %v2572 = vadd.f32 %v2301, %v2500
        %v2573 = vadd.f32 %v2302, %v2503
        %v2574 = vadd.f32 %v2303, %v2508
        %v2575 = vadd.f32 %v2304, %v2511
        %v2576 = vadd.f32 %v2305, %v2516
        %v2577 = vadd.f32 %v2306, %v2519
        %v2578 = vadd.f32 %v2307, %v2524
        %v2579 = vadd.f32 %v2308, %v2527
        %v2580 = vadd.f32 %v2309, %v2532
        %v2581 = vadd.f32 %v2310, %v2535
        %v2582 = vadd.f32 %v2311, %v2540
        %v2583 = vadd.f32 %v2312, %v2543
        %v2584 = vadd.f32 %v2313, %v2548
        %v2585 = vadd.f32 %v2314, %v2551
        %v2586 = vld [vmem:[#allocation2] sm:$0xfe]
        %v2587 = vld [vmem:[#allocation2 + $0x10] sm:$0xfe]
        %v2588 = vld [vmem:[#allocation2 + $0x20] sm:$0xfe]
        %v2589 = vld [vmem:[#allocation2 + $0x30] sm:$0xfe]
        %v2590 = vld [vmem:[#allocation2 + $0x40] sm:$0xfe]
        %v2591 = vld [vmem:[#allocation2 + $0x50] sm:$0xfe]
        %v2592 = vld [vmem:[#allocation2 + $0x60] sm:$0xfe]
        %v2593 = vld [vmem:[#allocation2 + $0x70] sm:$0xfe]
        %v2594 = vld [vmem:[#allocation2 + $0x80] sm:$0xfe]
        %v2595 = vld [vmem:[#allocation2 + $0x90] sm:$0xfe]
        %v2596 = vld [vmem:[#allocation2 + $0xa0] sm:$0xfe]
        %v2597 = vld [vmem:[#allocation2 + $0xb0] sm:$0xfe]
        %v2598 = vld [vmem:[#allocation2 + $0xc0] sm:$0xfe]
        %v2599 = vld [vmem:[#allocation2 + $0xd0] sm:$0xfe]
        %v2600 = vld [vmem:[#allocation2 + $0xe0] sm:$0xfe]
        %v2601 = vld [vmem:[#allocation2 + $0xf0] sm:$0xfe]
        %v2602 = vld [vmem:[#allocation2 + $0x100] sm:$0xfe]
        %v2603 = vld [vmem:[#allocation2 + $0x110] sm:$0xfe]
        %s2604 = scalar_lea.vmem [#allocation6], 128
        %v2605 = vld [vmem:[%s2604] sm:$0xf]
        %v2606 = vld [vmem:[%s2604 + $0x4] sm:$0xf]
        %v2607 = vld [vmem:[%s2604 + $0x8] sm:$0xf]
        %v2608 = vld [vmem:[%s2604 + $0xc] sm:$0xf]
        %v2609 = vld [vmem:[%s2604 + $0x10] sm:$0xf]
        %v2610 = vld [vmem:[%s2604 + $0x14] sm:$0xf]
        %v2611 = vld [vmem:[%s2604 + $0x18] sm:$0xf]
        %v2612 = vld [vmem:[%s2604 + $0x1c] sm:$0xf]
        %v2613 = vld [vmem:[%s2604 + $0x20] sm:$0xf]
        %v2614 = vld [vmem:[%s2604 + $0x24] sm:$0xf]
        %v2615 = vld [vmem:[%s2604 + $0x28] sm:$0xf]
        %v2616 = vld [vmem:[%s2604 + $0x2c] sm:$0xf]
        %v2617 = vld [vmem:[%s2604 + $0x30] sm:$0xf]
        %v2618 = vld [vmem:[%s2604 + $0x34] sm:$0xf]
        %v2619 = vld [vmem:[%s2604 + $0x38] sm:$0xf]
        %v2620 = vld [vmem:[%s2604 + $0x3c] sm:$0xf]
        %vm2653 = vcmask 1046528
        %v2654 = vrot.slane %v2586, 1
        %v2655 = vrot.slane %v1542, 1
        %v2656 = vsel %vm2653, %v2654, %v2655
        %v2657 = vrot.slane %v2587, 1
        %v2658 = vrot.slane %v1544, 1
        %v2659 = vsel %vm2653, %v2657, %v2658
        %v2660 = vrot.slane %v2588, 1
        %v2661 = vrot.slane %v1546, 1
        %v2662 = vsel %vm2653, %v2660, %v2661
        %v2663 = vrot.slane %v2589, 1
        %v2664 = vrot.slane %v1548, 1
        %v2665 = vsel %vm2653, %v2663, %v2664
        %v2666 = vrot.slane %v2590, 1
        %v2667 = vrot.slane %v1550, 1
        %v2668 = vsel %vm2653, %v2666, %v2667
        %v2669 = vrot.slane %v2591, 1
        %v2670 = vrot.slane %v1552, 1
        %v2671 = vsel %vm2653, %v2669, %v2670
        %v2672 = vrot.slane %v2592, 1
        %v2673 = vrot.slane %v1554, 1
        %v2674 = vsel %vm2653, %v2672, %v2673
        %v2675 = vrot.slane %v2593, 1
        %v2676 = vrot.slane %v1556, 1
        %v2677 = vsel %vm2653, %v2675, %v2676
        %v2678 = vrot.slane %v2594, 1
        %v2679 = vrot.slane %v1558, 1
        %v2680 = vsel %vm2653, %v2678, %v2679
        %v2681 = vrot.slane %v2595, 1
        %v2682 = vrot.slane %v1560, 1
        %v2683 = vsel %vm2653, %v2681, %v2682
        %v2684 = vrot.slane %v2596, 1
        %v2685 = vrot.slane %v1562, 1
        %v2686 = vsel %vm2653, %v2684, %v2685
        %v2687 = vrot.slane %v2597, 1
        %v2688 = vrot.slane %v1564, 1
        %v2689 = vsel %vm2653, %v2687, %v2688
        %v2690 = vrot.slane %v2598, 1
        %v2691 = vrot.slane %v1566, 1
        %v2692 = vsel %vm2653, %v2690, %v2691
        %v2693 = vrot.slane %v2599, 1
        %v2694 = vrot.slane %v1568, 1
        %v2695 = vsel %vm2653, %v2693, %v2694
        %v2696 = vrot.slane %v2600, 1
        %v2697 = vrot.slane %v1570, 1
        %v2698 = vsel %vm2653, %v2696, %v2697
        %v2699 = vrot.slane %v2601, 1
        %v2700 = vrot.slane %v1572, 1
        %v2701 = vsel %vm2653, %v2699, %v2700
        %v2734 = vunpack.c.l.b16 %v2605
        %v2735 = vunpack.c.l.b16 %v2606
        %v2736 = vunpack.c.l.b16 %v2607
        %v2737 = vunpack.c.l.b16 %v2608
        %v2738 = vunpack.c.l.b16 %v2609
        %v2739 = vunpack.c.l.b16 %v2610
        %v2740 = vunpack.c.l.b16 %v2611
        %v2741 = vunpack.c.l.b16 %v2612
        %v2742 = vunpack.c.l.b16 %v2613
        %v2743 = vunpack.c.l.b16 %v2614
        %v2744 = vunpack.c.l.b16 %v2615
        %v2745 = vunpack.c.l.b16 %v2616
        %v2746 = vunpack.c.l.b16 %v2617
        %v2747 = vunpack.c.l.b16 %v2618
        %v2748 = vunpack.c.l.b16 %v2619
        %v2749 = vunpack.c.l.b16 %v2620
        %v2750 = vpack.c.b16 %v2735, %v2734
        %v2751 = vpack.c.b16 %v2737, %v2736
        %v2752 = vpack.c.b16 %v2739, %v2738
        %v2753 = vpack.c.b16 %v2741, %v2740
        %v2754 = vpack.c.b16 %v2743, %v2742
        %v2755 = vpack.c.b16 %v2745, %v2744
        %v2756 = vpack.c.b16 %v2747, %v2746
        %v2757 = vpack.c.b16 %v2749, %v2748
        %2766 = vmatprep.subr.bf16.mxu0 0
        %2767 = vmatpush1.bf16.msra.mxu0 %v2750
        %2768 = vmatprep.subr.bf16.mxu0 0
        %2769 = vmatpush1.bf16.msra.mxu0 %v2751
        %2770 = vmatprep.subr.bf16.mxu0 0
        %2771 = vmatpush1.bf16.msra.mxu0 %v2752
        %2772 = vmatprep.subr.bf16.mxu0 0
        %2773 = vmatpush1.bf16.msra.mxu0 %v2753
        %2774 = vmatprep.subr.bf16.mxu0 0
        %2775 = vmatpush1.bf16.msra.mxu0 %v2754
        %2776 = vmatprep.subr.bf16.mxu0 0
        %2777 = vmatpush1.bf16.msra.mxu0 %v2755
        %2778 = vmatprep.subr.bf16.mxu0 0
        %2779 = vmatpush1.bf16.msra.mxu0 %v2756
        %2780 = vmatprep.subr.bf16.mxu0 0
        %2781 = vmatpush1.bf16.msra.mxu0 %v2757
        %2782 = vmatprep.subr.bf16.mxu0 0
        %2783 = vmatpush1.bf16.msra.mxu0 0
        %2784 = vmatprep.subr.bf16.mxu0 0
        %2785 = vmatpush1.bf16.msra.mxu0 0
        %2786 = vmatprep.subr.bf16.mxu0 0
        %2787 = vmatpush1.bf16.msra.mxu0 0
        %2788 = vmatprep.subr.bf16.mxu0 0
        %2789 = vmatpush1.bf16.msra.mxu0 0
        %2790 = vmatprep.subr.bf16.mxu0 0
        %2791 = vmatpush1.bf16.msra.mxu0 0
        %2792 = vmatprep.subr.bf16.mxu0 0
        %2793 = vmatpush1.bf16.msra.mxu0 0
        %2794 = vmatprep.subr.bf16.mxu0 0
        %2795 = vmatpush1.bf16.msra.mxu0 0
        %2796 = vmatprep.subr.bf16.mxu0 0
        %2797 = vmatpush1.bf16.msra.mxu0 0
        %2798 = vmatprep.mubr.bf16.mxu0 0
        %2799 = vmatmul.mubr.bf16.gmra.mrb[0].mxu0 %v2656
        %v2800 = vpop.f32.mrb[0].mxu0
        %v2801 = vadd.f32 0.0, %v2800
        %v2802 = vpop.f32.mrb[0].mxu0
        %v2803 = vpop.f32.mrb[0].mxu0
        %v2804 = vadd.f32 0.0, %v2803
        %v2805 = vpop.f32.mrb[0].mxu0
        %2806 = vmatprep.mubr.bf16.mxu0 0
        %2807 = vmatmul.mubr.bf16.gmra.mrb[0].mxu0 %v2659
        %v2808 = vpop.f32.mrb[0].mxu0
        %v2809 = vadd.f32 0.0, %v2808
        %v2810 = vpop.f32.mrb[0].mxu0
        %v2811 = vpop.f32.mrb[0].mxu0
        %v2812 = vadd.f32 0.0, %v2811
        %v2813 = vpop.f32.mrb[0].mxu0
        %2814 = vmatprep.mubr.bf16.mxu0 0
        %2815 = vmatmul.mubr.bf16.gmra.mrb[0].mxu0 %v2662
        %v2816 = vpop.f32.mrb[0].mxu0
        %v2817 = vadd.f32 0.0, %v2816
        %v2818 = vpop.f32.mrb[0].mxu0
        %v2819 = vpop.f32.mrb[0].mxu0
        %v2820 = vadd.f32 0.0, %v2819
        %v2821 = vpop.f32.mrb[0].mxu0
        %2822 = vmatprep.mubr.bf16.mxu0 0
        %2823 = vmatmul.mubr.bf16.gmra.mrb[0].mxu0 %v2665
        %v2824 = vpop.f32.mrb[0].mxu0
        %v2825 = vadd.f32 0.0, %v2824
        %v2826 = vpop.f32.mrb[0].mxu0
        %v2827 = vpop.f32.mrb[0].mxu0
        %v2828 = vadd.f32 0.0, %v2827
        %v2829 = vpop.f32.mrb[0].mxu0
        %2830 = vmatprep.mubr.bf16.mxu0 0
        %2831 = vmatmul.mubr.bf16.gmra.mrb[0].mxu0 %v2668
        %v2832 = vpop.f32.mrb[0].mxu0
        %v2833 = vadd.f32 0.0, %v2832
        %v2834 = vpop.f32.mrb[0].mxu0
        %v2835 = vpop.f32.mrb[0].mxu0
        %v2836 = vadd.f32 0.0, %v2835
        %v2837 = vpop.f32.mrb[0].mxu0
        %2838 = vmatprep.mubr.bf16.mxu0 0
        %2839 = vmatmul.mubr.bf16.gmra.mrb[0].mxu0 %v2671
        %v2840 = vpop.f32.mrb[0].mxu0
        %v2841 = vadd.f32 0.0, %v2840
        %v2842 = vpop.f32.mrb[0].mxu0
        %v2843 = vpop.f32.mrb[0].mxu0
        %v2844 = vadd.f32 0.0, %v2843
        %v2845 = vpop.f32.mrb[0].mxu0
        %2846 = vmatprep.mubr.bf16.mxu0 0
        %2847 = vmatmul.mubr.bf16.gmra.mrb[0].mxu0 %v2674
        %v2848 = vpop.f32.mrb[0].mxu0
        %v2849 = vadd.f32 0.0, %v2848
        %v2850 = vpop.f32.mrb[0].mxu0
        %v2851 = vpop.f32.mrb[0].mxu0
        %v2852 = vadd.f32 0.0, %v2851
        %v2853 = vpop.f32.mrb[0].mxu0
        %2854 = vmatprep.mubr.bf16.mxu0 0
        %2855 = vmatmul.mubr.bf16.gmra.mrb[0].mxu0 %v2677
        %v2856 = vpop.f32.mrb[0].mxu0
        %v2857 = vadd.f32 0.0, %v2856
        %v2858 = vpop.f32.mrb[0].mxu0
        %v2859 = vpop.f32.mrb[0].mxu0
        %v2860 = vadd.f32 0.0, %v2859
        %v2861 = vpop.f32.mrb[0].mxu0
        %2862 = vmatprep.mubr.bf16.mxu0 0
        %2863 = vmatmul.mubr.bf16.gmra.mrb[0].mxu0 %v2680
        %v2864 = vpop.f32.mrb[0].mxu0
        %v2865 = vadd.f32 0.0, %v2864
        %v2866 = vpop.f32.mrb[0].mxu0
        %v2867 = vpop.f32.mrb[0].mxu0
        %v2868 = vadd.f32 0.0, %v2867
        %v2869 = vpop.f32.mrb[0].mxu0
        %2870 = vmatprep.mubr.bf16.mxu0 0
        %2871 = vmatmul.mubr.bf16.gmra.mrb[0].mxu0 %v2683
        %v2872 = vpop.f32.mrb[0].mxu0
        %v2873 = vadd.f32 0.0, %v2872
        %v2874 = vpop.f32.mrb[0].mxu0
        %v2875 = vpop.f32.mrb[0].mxu0
        %v2876 = vadd.f32 0.0, %v2875
        %v2877 = vpop.f32.mrb[0].mxu0
        %2878 = vmatprep.mubr.bf16.mxu0 0
        %2879 = vmatmul.mubr.bf16.gmra.mrb[0].mxu0 %v2686
        %v2880 = vpop.f32.mrb[0].mxu0
        %v2881 = vadd.f32 0.0, %v2880
        %v2882 = vpop.f32.mrb[0].mxu0
        %v2883 = vpop.f32.mrb[0].mxu0
        %v2884 = vadd.f32 0.0, %v2883
        %v2885 = vpop.f32.mrb[0].mxu0
        %2886 = vmatprep.mubr.bf16.mxu0 0
        %2887 = vmatmul.mubr.bf16.gmra.mrb[0].mxu0 %v2689
        %v2888 = vpop.f32.mrb[0].mxu0
        %v2889 = vadd.f32 0.0, %v2888
        %v2890 = vpop.f32.mrb[0].mxu0
        %v2891 = vpop.f32.mrb[0].mxu0
        %v2892 = vadd.f32 0.0, %v2891
        %v2893 = vpop.f32.mrb[0].mxu0
        %2894 = vmatprep.mubr.bf16.mxu0 0
        %2895 = vmatmul.mubr.bf16.gmra.mrb[0].mxu0 %v2692
        %v2896 = vpop.f32.mrb[0].mxu0
        %v2897 = vadd.f32 0.0, %v2896
        %v2898 = vpop.f32.mrb[0].mxu0
        %v2899 = vpop.f32.mrb[0].mxu0
        %v2900 = vadd.f32 0.0, %v2899
        %v2901 = vpop.f32.mrb[0].mxu0
        %2902 = vmatprep.mubr.bf16.mxu0 0
        %2903 = vmatmul.mubr.bf16.gmra.mrb[0].mxu0 %v2695
        %v2904 = vpop.f32.mrb[0].mxu0
        %v2905 = vadd.f32 0.0, %v2904
        %v2906 = vpop.f32.mrb[0].mxu0
        %v2907 = vpop.f32.mrb[0].mxu0
        %v2908 = vadd.f32 0.0, %v2907
        %v2909 = vpop.f32.mrb[0].mxu0
        %2910 = vmatprep.mubr.bf16.mxu0 0
        %2911 = vmatmul.mubr.bf16.gmra.mrb[0].mxu0 %v2698
        %v2912 = vpop.f32.mrb[0].mxu0
        %v2913 = vadd.f32 0.0, %v2912
        %v2914 = vpop.f32.mrb[0].mxu0
        %v2915 = vpop.f32.mrb[0].mxu0
        %v2916 = vadd.f32 0.0, %v2915
        %v2917 = vpop.f32.mrb[0].mxu0
        %2918 = vmatprep.mubr.bf16.mxu0 0
        %2919 = vmatmul.mubr.bf16.gmra.mrb[0].mxu0 %v2701
        %v2920 = vpop.f32.mrb[0].mxu0
        %v2921 = vadd.f32 0.0, %v2920
        %v2922 = vpop.f32.mrb[0].mxu0
        %v2923 = vpop.f32.mrb[0].mxu0
        %v2924 = vadd.f32 0.0, %v2923
        %v2925 = vpop.f32.mrb[0].mxu0
        %2926 = vdwg.mxu0
        %v2927 = vadd.f32 %v2554, %v2801
        %v2928 = vadd.f32 %v2555, %v2804
        %v2929 = vadd.f32 %v2556, %v2809
        %v2930 = vadd.f32 %v2557, %v2812
        %v2931 = vadd.f32 %v2558, %v2817
        %v2932 = vadd.f32 %v2559, %v2820
        %v2933 = vadd.f32 %v2560, %v2825
        %v2934 = vadd.f32 %v2561, %v2828
        %v2935 = vadd.f32 %v2562, %v2833
        %v2936 = vadd.f32 %v2563, %v2836
        %v2937 = vadd.f32 %v2564, %v2841
        %v2938 = vadd.f32 %v2565, %v2844
        %v2939 = vadd.f32 %v2566, %v2849
        %v2940 = vadd.f32 %v2567, %v2852
        %v2941 = vadd.f32 %v2568, %v2857
        %v2942 = vadd.f32 %v2569, %v2860
        %v2943 = vadd.f32 %v2570, %v2865
        %v2944 = vadd.f32 %v2571, %v2868
        %v2945 = vadd.f32 %v2572, %v2873
        %v2946 = vadd.f32 %v2573, %v2876
        %v2947 = vadd.f32 %v2574, %v2881
        %v2948 = vadd.f32 %v2575, %v2884
        %v2949 = vadd.f32 %v2576, %v2889
        %v2950 = vadd.f32 %v2577, %v2892
        %v2951 = vadd.f32 %v2578, %v2897
        %v2952 = vadd.f32 %v2579, %v2900
        %v2953 = vadd.f32 %v2580, %v2905
        %v2954 = vadd.f32 %v2581, %v2908
        %v2955 = vadd.f32 %v2582, %v2913
        %v2956 = vadd.f32 %v2583, %v2916
        %v2957 = vadd.f32 %v2584, %v2921
        %v2958 = vadd.f32 %v2585, %v2924
        %s2959 = scalar_lea.vmem [#allocation6], 320
        %v2960 = vld [vmem:[%s2959] sm:$0xf]
        %v2961 = vld [vmem:[%s2959 + $0x4] sm:$0xf]
        %v2962 = vld [vmem:[%s2959 + $0x8] sm:$0xf]
        %v2963 = vld [vmem:[%s2959 + $0xc] sm:$0xf]
        %v2964 = vld [vmem:[%s2959 + $0x10] sm:$0xf]
        %v2965 = vld [vmem:[%s2959 + $0x14] sm:$0xf]
        %v2966 = vld [vmem:[%s2959 + $0x18] sm:$0xf]
        %v2967 = vld [vmem:[%s2959 + $0x1c] sm:$0xf]
        %v2968 = vld [vmem:[%s2959 + $0x20] sm:$0xf]
        %v2969 = vld [vmem:[%s2959 + $0x24] sm:$0xf]
        %v2970 = vld [vmem:[%s2959 + $0x28] sm:$0xf]
        %v2971 = vld [vmem:[%s2959 + $0x2c] sm:$0xf]
        %v2972 = vld [vmem:[%s2959 + $0x30] sm:$0xf]
        %v2973 = vld [vmem:[%s2959 + $0x34] sm:$0xf]
        %v2974 = vld [vmem:[%s2959 + $0x38] sm:$0xf]
        %v2975 = vld [vmem:[%s2959 + $0x3c] sm:$0xf]
        %v2978 = vrot.slane %v2602, 1
        %v2979 = vrot.slane %v1574, 1
        %v2980 = vsel %vm2653, %v2978, %v2979
        %v2998 = vunpack.c.l.b16 %v2960
        %v2999 = vunpack.c.l.b16 %v2961
        %v3000 = vunpack.c.l.b16 %v2962
        %v3001 = vunpack.c.l.b16 %v2963
        %v3002 = vunpack.c.l.b16 %v2964
        %v3003 = vunpack.c.l.b16 %v2965
        %v3004 = vunpack.c.l.b16 %v2966
        %v3005 = vunpack.c.l.b16 %v2967
        %v3006 = vunpack.c.l.b16 %v2968
        %v3007 = vunpack.c.l.b16 %v2969
        %v3008 = vunpack.c.l.b16 %v2970
        %v3009 = vunpack.c.l.b16 %v2971
        %v3010 = vunpack.c.l.b16 %v2972
        %v3011 = vunpack.c.l.b16 %v2973
        %v3012 = vunpack.c.l.b16 %v2974
        %v3013 = vunpack.c.l.b16 %v2975
        %v3014 = vpack.c.b16 %v2999, %v2998
        %v3015 = vpack.c.b16 %v3001, %v3000
        %v3016 = vpack.c.b16 %v3003, %v3002
        %v3017 = vpack.c.b16 %v3005, %v3004
        %v3018 = vpack.c.b16 %v3007, %v3006
        %v3019 = vpack.c.b16 %v3009, %v3008
        %v3020 = vpack.c.b16 %v3011, %v3010
        %v3021 = vpack.c.b16 %v3013, %v3012
        %3030 = vmatprep.subr.bf16.mxu0 0
        %3031 = vmatpush1.bf16.msra.mxu0 %v3014
        %3032 = vmatprep.subr.bf16.mxu0 0
        %3033 = vmatpush1.bf16.msra.mxu0 %v3015
        %3034 = vmatprep.subr.bf16.mxu0 0
        %3035 = vmatpush1.bf16.msra.mxu0 %v3016
        %3036 = vmatprep.subr.bf16.mxu0 0
        %3037 = vmatpush1.bf16.msra.mxu0 %v3017
        %3038 = vmatprep.subr.bf16.mxu0 0
        %3039 = vmatpush1.bf16.msra.mxu0 %v3018
        %3040 = vmatprep.subr.bf16.mxu0 0
        %3041 = vmatpush1.bf16.msra.mxu0 %v3019
        %3042 = vmatprep.subr.bf16.mxu0 0
        %3043 = vmatpush1.bf16.msra.mxu0 %v3020
        %3044 = vmatprep.subr.bf16.mxu0 0
        %3045 = vmatpush1.bf16.msra.mxu0 %v3021
        %3046 = vmatprep.subr.bf16.mxu0 0
        %3047 = vmatpush1.bf16.msra.mxu0 0
        %3048 = vmatprep.subr.bf16.mxu0 0
        %3049 = vmatpush1.bf16.msra.mxu0 0
        %3050 = vmatprep.subr.bf16.mxu0 0
        %3051 = vmatpush1.bf16.msra.mxu0 0
        %3052 = vmatprep.subr.bf16.mxu0 0
        %3053 = vmatpush1.bf16.msra.mxu0 0
        %3054 = vmatprep.subr.bf16.mxu0 0
        %3055 = vmatpush1.bf16.msra.mxu0 0
        %3056 = vmatprep.subr.bf16.mxu0 0
        %3057 = vmatpush1.bf16.msra.mxu0 0
        %3058 = vmatprep.subr.bf16.mxu0 0
        %3059 = vmatpush1.bf16.msra.mxu0 0
        %3060 = vmatprep.subr.bf16.mxu0 0
        %3061 = vmatpush1.bf16.msra.mxu0 0
        %3062 = vmatprep.mubr.bf16.mxu0 0
        %3063 = vmatmul.mubr.bf16.gmra.mrb[0].mxu0 %v2659
        %v3064 = vpop.f32.mrb[0].mxu0
        %v3065 = vadd.f32 0.0, %v3064
        %v3066 = vpop.f32.mrb[0].mxu0
        %v3067 = vpop.f32.mrb[0].mxu0
        %v3068 = vadd.f32 0.0, %v3067
        %v3069 = vpop.f32.mrb[0].mxu0
        %3070 = vmatprep.mubr.bf16.mxu0 0
        %3071 = vmatmul.mubr.bf16.gmra.mrb[0].mxu0 %v2662
        %v3072 = vpop.f32.mrb[0].mxu0
        %v3073 = vadd.f32 0.0, %v3072
        %v3074 = vpop.f32.mrb[0].mxu0
        %v3075 = vpop.f32.mrb[0].mxu0
        %v3076 = vadd.f32 0.0, %v3075
        %v3077 = vpop.f32.mrb[0].mxu0
        %3078 = vmatprep.mubr.bf16.mxu0 0
        %3079 = vmatmul.mubr.bf16.gmra.mrb[0].mxu0 %v2665
        %v3080 = vpop.f32.mrb[0].mxu0
        %v3081 = vadd.f32 0.0, %v3080
        %v3082 = vpop.f32.mrb[0].mxu0
        %v3083 = vpop.f32.mrb[0].mxu0
        %v3084 = vadd.f32 0.0, %v3083
        %v3085 = vpop.f32.mrb[0].mxu0
        %3086 = vmatprep.mubr.bf16.mxu0 0
        %3087 = vmatmul.mubr.bf16.gmra.mrb[0].mxu0 %v2668
        %v3088 = vpop.f32.mrb[0].mxu0
        %v3089 = vadd.f32 0.0, %v3088
        %v3090 = vpop.f32.mrb[0].mxu0
        %v3091 = vpop.f32.mrb[0].mxu0
        %v3092 = vadd.f32 0.0, %v3091
        %v3093 = vpop.f32.mrb[0].mxu0
        %3094 = vmatprep.mubr.bf16.mxu0 0
        %3095 = vmatmul.mubr.bf16.gmra.mrb[0].mxu0 %v2671
        %v3096 = vpop.f32.mrb[0].mxu0
        %v3097 = vadd.f32 0.0, %v3096
        %v3098 = vpop.f32.mrb[0].mxu0
        %v3099 = vpop.f32.mrb[0].mxu0
        %v3100 = vadd.f32 0.0, %v3099
        %v3101 = vpop.f32.mrb[0].mxu0
        %3102 = vmatprep.mubr.bf16.mxu0 0
        %3103 = vmatmul.mubr.bf16.gmra.mrb[0].mxu0 %v2674
        %v3104 = vpop.f32.mrb[0].mxu0
        %v3105 = vadd.f32 0.0, %v3104
        %v3106 = vpop.f32.mrb[0].mxu0
        %v3107 = vpop.f32.mrb[0].mxu0
        %v3108 = vadd.f32 0.0, %v3107
        %v3109 = vpop.f32.mrb[0].mxu0
        %3110 = vmatprep.mubr.bf16.mxu0 0
        %3111 = vmatmul.mubr.bf16.gmra.mrb[0].mxu0 %v2677
        %v3112 = vpop.f32.mrb[0].mxu0
        %v3113 = vadd.f32 0.0, %v3112
        %v3114 = vpop.f32.mrb[0].mxu0
        %v3115 = vpop.f32.mrb[0].mxu0
        %v3116 = vadd.f32 0.0, %v3115
        %v3117 = vpop.f32.mrb[0].mxu0
        %3118 = vmatprep.mubr.bf16.mxu0 0
        %3119 = vmatmul.mubr.bf16.gmra.mrb[0].mxu0 %v2680
        %v3120 = vpop.f32.mrb[0].mxu0
        %v3121 = vadd.f32 0.0, %v3120
        %v3122 = vpop.f32.mrb[0].mxu0
        %v3123 = vpop.f32.mrb[0].mxu0
        %v3124 = vadd.f32 0.0, %v3123
        %v3125 = vpop.f32.mrb[0].mxu0
        %3126 = vmatprep.mubr.bf16.mxu0 0
        %3127 = vmatmul.mubr.bf16.gmra.mrb[0].mxu0 %v2683
        %v3128 = vpop.f32.mrb[0].mxu0
        %v3129 = vadd.f32 0.0, %v3128
        %v3130 = vpop.f32.mrb[0].mxu0
        %v3131 = vpop.f32.mrb[0].mxu0
        %v3132 = vadd.f32 0.0, %v3131
        %v3133 = vpop.f32.mrb[0].mxu0
        %3134 = vmatprep.mubr.bf16.mxu0 0
        %3135 = vmatmul.mubr.bf16.gmra.mrb[0].mxu0 %v2686
        %v3136 = vpop.f32.mrb[0].mxu0
        %v3137 = vadd.f32 0.0, %v3136
        %v3138 = vpop.f32.mrb[0].mxu0
        %v3139 = vpop.f32.mrb[0].mxu0
        %v3140 = vadd.f32 0.0, %v3139
        %v3141 = vpop.f32.mrb[0].mxu0
        %3142 = vmatprep.mubr.bf16.mxu0 0
        %3143 = vmatmul.mubr.bf16.gmra.mrb[0].mxu0 %v2689
        %v3144 = vpop.f32.mrb[0].mxu0
        %v3145 = vadd.f32 0.0, %v3144
        %v3146 = vpop.f32.mrb[0].mxu0
        %v3147 = vpop.f32.mrb[0].mxu0
        %v3148 = vadd.f32 0.0, %v3147
        %v3149 = vpop.f32.mrb[0].mxu0
        %3150 = vmatprep.mubr.bf16.mxu0 0
        %3151 = vmatmul.mubr.bf16.gmra.mrb[0].mxu0 %v2692
        %v3152 = vpop.f32.mrb[0].mxu0
        %v3153 = vadd.f32 0.0, %v3152
        %v3154 = vpop.f32.mrb[0].mxu0
        %v3155 = vpop.f32.mrb[0].mxu0
        %v3156 = vadd.f32 0.0, %v3155
        %v3157 = vpop.f32.mrb[0].mxu0
        %3158 = vmatprep.mubr.bf16.mxu0 0
        %3159 = vmatmul.mubr.bf16.gmra.mrb[0].mxu0 %v2695
        %v3160 = vpop.f32.mrb[0].mxu0
        %v3161 = vadd.f32 0.0, %v3160
        %v3162 = vpop.f32.mrb[0].mxu0
        %v3163 = vpop.f32.mrb[0].mxu0
        %v3164 = vadd.f32 0.0, %v3163
        %v3165 = vpop.f32.mrb[0].mxu0
        %3166 = vmatprep.mubr.bf16.mxu0 0
        %3167 = vmatmul.mubr.bf16.gmra.mrb[0].mxu0 %v2698
        %v3168 = vpop.f32.mrb[0].mxu0
        %v3169 = vadd.f32 0.0, %v3168
        %v3170 = vpop.f32.mrb[0].mxu0
        %v3171 = vpop.f32.mrb[0].mxu0
        %v3172 = vadd.f32 0.0, %v3171
        %v3173 = vpop.f32.mrb[0].mxu0
        %3174 = vmatprep.mubr.bf16.mxu0 0
        %3175 = vmatmul.mubr.bf16.gmra.mrb[0].mxu0 %v2701
        %v3176 = vpop.f32.mrb[0].mxu0
        %v3177 = vadd.f32 0.0, %v3176
        %v3178 = vpop.f32.mrb[0].mxu0
        %v3179 = vpop.f32.mrb[0].mxu0
        %v3180 = vadd.f32 0.0, %v3179
        %v3181 = vpop.f32.mrb[0].mxu0
        %3182 = vmatprep.mubr.bf16.mxu0 0
        %3183 = vmatmul.mubr.bf16.gmra.mrb[0].mxu0 %v2980
        %v3184 = vpop.f32.mrb[0].mxu0
        %v3185 = vadd.f32 0.0, %v3184
        %v3186 = vpop.f32.mrb[0].mxu0
        %v3187 = vpop.f32.mrb[0].mxu0
        %v3188 = vadd.f32 0.0, %v3187
        %v3189 = vpop.f32.mrb[0].mxu0
        %3190 = vdwg.mxu0
        %v3191 = vadd.f32 %v2927, %v3065
        %v3192 = vadd.f32 %v2928, %v3068
        %v3193 = vadd.f32 %v2929, %v3073
        %v3194 = vadd.f32 %v2930, %v3076
        %v3195 = vadd.f32 %v2931, %v3081
        %v3196 = vadd.f32 %v2932, %v3084
        %v3197 = vadd.f32 %v2933, %v3089
        %v3198 = vadd.f32 %v2934, %v3092
        %v3199 = vadd.f32 %v2935, %v3097
        %v3200 = vadd.f32 %v2936, %v3100
        %v3201 = vadd.f32 %v2937, %v3105
        %v3202 = vadd.f32 %v2938, %v3108
        %v3203 = vadd.f32 %v2939, %v3113
        %v3204 = vadd.f32 %v2940, %v3116
        %v3205 = vadd.f32 %v2941, %v3121
        %v3206 = vadd.f32 %v2942, %v3124
        %v3207 = vadd.f32 %v2943, %v3129
        %v3208 = vadd.f32 %v2944, %v3132
        %v3209 = vadd.f32 %v2945, %v3137
        %v3210 = vadd.f32 %v2946, %v3140
        %v3211 = vadd.f32 %v2947, %v3145
        %v3212 = vadd.f32 %v2948, %v3148
        %v3213 = vadd.f32 %v2949, %v3153
        %v3214 = vadd.f32 %v2950, %v3156
        %v3215 = vadd.f32 %v2951, %v3161
        %v3216 = vadd.f32 %v2952, %v3164
        %v3217 = vadd.f32 %v2953, %v3169
        %v3218 = vadd.f32 %v2954, %v3172
        %v3219 = vadd.f32 %v2955, %v3177
        %v3220 = vadd.f32 %v2956, %v3180
        %v3221 = vadd.f32 %v2957, %v3185
        %v3222 = vadd.f32 %v2958, %v3188
        %s3223 = scalar_lea.vmem [#allocation6], 512
        %v3224 = vld [vmem:[%s3223] sm:$0xf]
        %v3225 = vld [vmem:[%s3223 + $0x4] sm:$0xf]
        %v3226 = vld [vmem:[%s3223 + $0x8] sm:$0xf]
        %v3227 = vld [vmem:[%s3223 + $0xc] sm:$0xf]
        %v3228 = vld [vmem:[%s3223 + $0x10] sm:$0xf]
        %v3229 = vld [vmem:[%s3223 + $0x14] sm:$0xf]
        %v3230 = vld [vmem:[%s3223 + $0x18] sm:$0xf]
        %v3231 = vld [vmem:[%s3223 + $0x1c] sm:$0xf]
        %v3232 = vld [vmem:[%s3223 + $0x20] sm:$0xf]
        %v3233 = vld [vmem:[%s3223 + $0x24] sm:$0xf]
        %v3234 = vld [vmem:[%s3223 + $0x28] sm:$0xf]
        %v3235 = vld [vmem:[%s3223 + $0x2c] sm:$0xf]
        %v3236 = vld [vmem:[%s3223 + $0x30] sm:$0xf]
        %v3237 = vld [vmem:[%s3223 + $0x34] sm:$0xf]
        %v3238 = vld [vmem:[%s3223 + $0x38] sm:$0xf]
        %v3239 = vld [vmem:[%s3223 + $0x3c] sm:$0xf]
        %v3242 = vrot.slane %v2603, 1
        %v3243 = vrot.slane %v1576, 1
        %v3244 = vsel %vm2653, %v3242, %v3243
        %v3262 = vunpack.c.l.b16 %v3224
        %v3263 = vunpack.c.l.b16 %v3225
        %v3264 = vunpack.c.l.b16 %v3226
        %v3265 = vunpack.c.l.b16 %v3227
        %v3266 = vunpack.c.l.b16 %v3228
        %v3267 = vunpack.c.l.b16 %v3229
        %v3268 = vunpack.c.l.b16 %v3230
        %v3269 = vunpack.c.l.b16 %v3231
        %v3270 = vunpack.c.l.b16 %v3232
        %v3271 = vunpack.c.l.b16 %v3233
        %v3272 = vunpack.c.l.b16 %v3234
        %v3273 = vunpack.c.l.b16 %v3235
        %v3274 = vunpack.c.l.b16 %v3236
        %v3275 = vunpack.c.l.b16 %v3237
        %v3276 = vunpack.c.l.b16 %v3238
        %v3277 = vunpack.c.l.b16 %v3239
        %v3278 = vpack.c.b16 %v3263, %v3262
        %v3279 = vpack.c.b16 %v3265, %v3264
        %v3280 = vpack.c.b16 %v3267, %v3266
        %v3281 = vpack.c.b16 %v3269, %v3268
        %v3282 = vpack.c.b16 %v3271, %v3270
        %v3283 = vpack.c.b16 %v3273, %v3272
        %v3284 = vpack.c.b16 %v3275, %v3274
        %v3285 = vpack.c.b16 %v3277, %v3276
        %3294 = vmatprep.subr.bf16.mxu0 0
        %3295 = vmatpush1.bf16.msra.mxu0 %v3278
        %3296 = vmatprep.subr.bf16.mxu0 0
        %3297 = vmatpush1.bf16.msra.mxu0 %v3279
        %3298 = vmatprep.subr.bf16.mxu0 0
        %3299 = vmatpush1.bf16.msra.mxu0 %v3280
        %3300 = vmatprep.subr.bf16.mxu0 0
        %3301 = vmatpush1.bf16.msra.mxu0 %v3281
        %3302 = vmatprep.subr.bf16.mxu0 0
        %3303 = vmatpush1.bf16.msra.mxu0 %v3282
        %3304 = vmatprep.subr.bf16.mxu0 0
        %3305 = vmatpush1.bf16.msra.mxu0 %v3283
        %3306 = vmatprep.subr.bf16.mxu0 0
        %3307 = vmatpush1.bf16.msra.mxu0 %v3284
        %3308 = vmatprep.subr.bf16.mxu0 0
        %3309 = vmatpush1.bf16.msra.mxu0 %v3285
        %3310 = vmatprep.subr.bf16.mxu0 0
        %3311 = vmatpush1.bf16.msra.mxu0 0
        %3312 = vmatprep.subr.bf16.mxu0 0
        %3313 = vmatpush1.bf16.msra.mxu0 0
        %3314 = vmatprep.subr.bf16.mxu0 0
        %3315 = vmatpush1.bf16.msra.mxu0 0
        %3316 = vmatprep.subr.bf16.mxu0 0
        %3317 = vmatpush1.bf16.msra.mxu0 0
        %3318 = vmatprep.subr.bf16.mxu0 0
        %3319 = vmatpush1.bf16.msra.mxu0 0
        %3320 = vmatprep.subr.bf16.mxu0 0
        %3321 = vmatpush1.bf16.msra.mxu0 0
        %3322 = vmatprep.subr.bf16.mxu0 0
        %3323 = vmatpush1.bf16.msra.mxu0 0
        %3324 = vmatprep.subr.bf16.mxu0 0
        %3325 = vmatpush1.bf16.msra.mxu0 0
        %3326 = vmatprep.mubr.bf16.mxu0 0
        %3327 = vmatmul.mubr.bf16.gmra.mrb[0].mxu0 %v2662
        %v3328 = vpop.f32.mrb[0].mxu0
        %v3329 = vadd.f32 0.0, %v3328
        %v3330 = vpop.f32.mrb[0].mxu0
        %v3331 = vpop.f32.mrb[0].mxu0
        %v3332 = vadd.f32 0.0, %v3331
        %v3333 = vpop.f32.mrb[0].mxu0
        %3334 = vmatprep.mubr.bf16.mxu0 0
        %3335 = vmatmul.mubr.bf16.gmra.mrb[0].mxu0 %v2665
        %v3336 = vpop.f32.mrb[0].mxu0
        %v3337 = vadd.f32 0.0, %v3336
        %v3338 = vpop.f32.mrb[0].mxu0
        %v3339 = vpop.f32.mrb[0].mxu0
        %v3340 = vadd.f32 0.0, %v3339
        %v3341 = vpop.f32.mrb[0].mxu0
        %3342 = vmatprep.mubr.bf16.mxu0 0
        %3343 = vmatmul.mubr.bf16.gmra.mrb[0].mxu0 %v2668
        %v3344 = vpop.f32.mrb[0].mxu0
        %v3345 = vadd.f32 0.0, %v3344
        %v3346 = vpop.f32.mrb[0].mxu0
        %v3347 = vpop.f32.mrb[0].mxu0
        %v3348 = vadd.f32 0.0, %v3347
        %v3349 = vpop.f32.mrb[0].mxu0
        %3350 = vmatprep.mubr.bf16.mxu0 0
        %3351 = vmatmul.mubr.bf16.gmra.mrb[0].mxu0 %v2671
        %v3352 = vpop.f32.mrb[0].mxu0
        %v3353 = vadd.f32 0.0, %v3352
        %v3354 = vpop.f32.mrb[0].mxu0
        %v3355 = vpop.f32.mrb[0].mxu0
        %v3356 = vadd.f32 0.0, %v3355
        %v3357 = vpop.f32.mrb[0].mxu0
        %3358 = vmatprep.mubr.bf16.mxu0 0
        %3359 = vmatmul.mubr.bf16.gmra.mrb[0].mxu0 %v2674
        %v3360 = vpop.f32.mrb[0].mxu0
        %v3361 = vadd.f32 0.0, %v3360
        %v3362 = vpop.f32.mrb[0].mxu0
        %v3363 = vpop.f32.mrb[0].mxu0
        %v3364 = vadd.f32 0.0, %v3363
        %v3365 = vpop.f32.mrb[0].mxu0
        %3366 = vmatprep.mubr.bf16.mxu0 0
        %3367 = vmatmul.mubr.bf16.gmra.mrb[0].mxu0 %v2677
        %v3368 = vpop.f32.mrb[0].mxu0
        %v3369 = vadd.f32 0.0, %v3368
        %v3370 = vpop.f32.mrb[0].mxu0
        %v3371 = vpop.f32.mrb[0].mxu0
        %v3372 = vadd.f32 0.0, %v3371
        %v3373 = vpop.f32.mrb[0].mxu0
        %3374 = vmatprep.mubr.bf16.mxu0 0
        %3375 = vmatmul.mubr.bf16.gmra.mrb[0].mxu0 %v2680
        %v3376 = vpop.f32.mrb[0].mxu0
        %v3377 = vadd.f32 0.0, %v3376
        %v3378 = vpop.f32.mrb[0].mxu0
        %v3379 = vpop.f32.mrb[0].mxu0
        %v3380 = vadd.f32 0.0, %v3379
        %v3381 = vpop.f32.mrb[0].mxu0
        %3382 = vmatprep.mubr.bf16.mxu0 0
        %3383 = vmatmul.mubr.bf16.gmra.mrb[0].mxu0 %v2683
        %v3384 = vpop.f32.mrb[0].mxu0
        %v3385 = vadd.f32 0.0, %v3384
        %v3386 = vpop.f32.mrb[0].mxu0
        %v3387 = vpop.f32.mrb[0].mxu0
        %v3388 = vadd.f32 0.0, %v3387
        %v3389 = vpop.f32.mrb[0].mxu0
        %3390 = vmatprep.mubr.bf16.mxu0 0
        %3391 = vmatmul.mubr.bf16.gmra.mrb[0].mxu0 %v2686
        %v3392 = vpop.f32.mrb[0].mxu0
        %v3393 = vadd.f32 0.0, %v3392
        %v3394 = vpop.f32.mrb[0].mxu0
        %v3395 = vpop.f32.mrb[0].mxu0
        %v3396 = vadd.f32 0.0, %v3395
        %v3397 = vpop.f32.mrb[0].mxu0
        %3398 = vmatprep.mubr.bf16.mxu0 0
        %3399 = vmatmul.mubr.bf16.gmra.mrb[0].mxu0 %v2689
        %v3400 = vpop.f32.mrb[0].mxu0
        %v3401 = vadd.f32 0.0, %v3400
        %v3402 = vpop.f32.mrb[0].mxu0
        %v3403 = vpop.f32.mrb[0].mxu0
        %v3404 = vadd.f32 0.0, %v3403
        %v3405 = vpop.f32.mrb[0].mxu0
        %3406 = vmatprep.mubr.bf16.mxu0 0
        %3407 = vmatmul.mubr.bf16.gmra.mrb[0].mxu0 %v2692
        %v3408 = vpop.f32.mrb[0].mxu0
        %v3409 = vadd.f32 0.0, %v3408
        %v3410 = vpop.f32.mrb[0].mxu0
        %v3411 = vpop.f32.mrb[0].mxu0
        %v3412 = vadd.f32 0.0, %v3411
        %v3413 = vpop.f32.mrb[0].mxu0
        %3414 = vmatprep.mubr.bf16.mxu0 0
        %3415 = vmatmul.mubr.bf16.gmra.mrb[0].mxu0 %v2695
        %v3416 = vpop.f32.mrb[0].mxu0
        %v3417 = vadd.f32 0.0, %v3416
        %v3418 = vpop.f32.mrb[0].mxu0
        %v3419 = vpop.f32.mrb[0].mxu0
        %v3420 = vadd.f32 0.0, %v3419
        %v3421 = vpop.f32.mrb[0].mxu0
        %3422 = vmatprep.mubr.bf16.mxu0 0
        %3423 = vmatmul.mubr.bf16.gmra.mrb[0].mxu0 %v2698
        %v3424 = vpop.f32.mrb[0].mxu0
        %v3425 = vadd.f32 0.0, %v3424
        %v3426 = vpop.f32.mrb[0].mxu0
        %v3427 = vpop.f32.mrb[0].mxu0
        %v3428 = vadd.f32 0.0, %v3427
        %v3429 = vpop.f32.mrb[0].mxu0
        %3430 = vmatprep.mubr.bf16.mxu0 0
        %3431 = vmatmul.mubr.bf16.gmra.mrb[0].mxu0 %v2701
        %v3432 = vpop.f32.mrb[0].mxu0
        %v3433 = vadd.f32 0.0, %v3432
        %v3434 = vpop.f32.mrb[0].mxu0
        %v3435 = vpop.f32.mrb[0].mxu0
        %v3436 = vadd.f32 0.0, %v3435
        %v3437 = vpop.f32.mrb[0].mxu0
        %3438 = vmatprep.mubr.bf16.mxu0 0
        %3439 = vmatmul.mubr.bf16.gmra.mrb[0].mxu0 %v2980
        %v3440 = vpop.f32.mrb[0].mxu0
        %v3441 = vadd.f32 0.0, %v3440
        %v3442 = vpop.f32.mrb[0].mxu0
        %v3443 = vpop.f32.mrb[0].mxu0
        %v3444 = vadd.f32 0.0, %v3443
        %v3445 = vpop.f32.mrb[0].mxu0
        %3446 = vmatprep.mubr.bf16.mxu0 0
        %3447 = vmatmul.mubr.bf16.gmra.mrb[0].mxu0 %v3244
        %v3448 = vpop.f32.mrb[0].mxu0
        %v3449 = vadd.f32 0.0, %v3448
        %v3450 = vpop.f32.mrb[0].mxu0
        %v3451 = vpop.f32.mrb[0].mxu0
        %v3452 = vadd.f32 0.0, %v3451
        %v3453 = vpop.f32.mrb[0].mxu0
        %3454 = vdwg.mxu0
        %v3455 = vadd.f32 %v3191, %v3329
        %v3456 = vadd.f32 %v3192, %v3332
        %v3457 = vadd.f32 %v3193, %v3337
        %v3458 = vadd.f32 %v3194, %v3340
        %v3459 = vadd.f32 %v3195, %v3345
        %v3460 = vadd.f32 %v3196, %v3348
        %v3461 = vadd.f32 %v3197, %v3353
        %v3462 = vadd.f32 %v3198, %v3356
        %v3463 = vadd.f32 %v3199, %v3361
        %v3464 = vadd.f32 %v3200, %v3364
        %v3465 = vadd.f32 %v3201, %v3369
        %v3466 = vadd.f32 %v3202, %v3372
        %v3467 = vadd.f32 %v3203, %v3377
        %v3468 = vadd.f32 %v3204, %v3380
        %v3469 = vadd.f32 %v3205, %v3385
        %v3470 = vadd.f32 %v3206, %v3388
        %v3471 = vadd.f32 %v3207, %v3393
        %v3472 = vadd.f32 %v3208, %v3396
        %v3473 = vadd.f32 %v3209, %v3401
        %v3474 = vadd.f32 %v3210, %v3404
        %v3475 = vadd.f32 %v3211, %v3409
        %v3476 = vadd.f32 %v3212, %v3412
        %v3477 = vadd.f32 %v3213, %v3417
        %v3478 = vadd.f32 %v3214, %v3420
        %v3479 = vadd.f32 %v3215, %v3425
        %v3480 = vadd.f32 %v3216, %v3428
        %v3481 = vadd.f32 %v3217, %v3433
        %v3482 = vadd.f32 %v3218, %v3436
        %v3483 = vadd.f32 %v3219, %v3441
        %v3484 = vadd.f32 %v3220, %v3444
        %v3485 = vadd.f32 %v3221, %v3449
        %v3486 = vadd.f32 %v3222, %v3452
        %v3487 = vadd.f32 %v3455, %v3456
        %v3488 = vadd.f32 %v3487, %v3457
        %v3489 = vadd.f32 %v3488, %v3458
        %v3490 = vadd.f32 %v3489, %v3459
        %v3491 = vadd.f32 %v3490, %v3460
        %v3492 = vadd.f32 %v3491, %v3461
        %v3493 = vadd.f32 %v3492, %v3462
        %v3494 = vadd.f32 %v3493, %v3463
        %v3495 = vadd.f32 %v3494, %v3464
        %v3496 = vadd.f32 %v3495, %v3465
        %v3497 = vadd.f32 %v3496, %v3466
        %v3498 = vadd.f32 %v3497, %v3467
        %v3499 = vadd.f32 %v3498, %v3468
        %v3500 = vadd.f32 %v3499, %v3469
        %v3501 = vadd.f32 %v3500, %v3470
        %v3502 = vadd.f32 %v3501, %v3471
        %v3503 = vadd.f32 %v3502, %v3472
        %v3504 = vadd.f32 %v3503, %v3473
        %v3505 = vadd.f32 %v3504, %v3474
        %v3506 = vadd.f32 %v3505, %v3475
        %v3507 = vadd.f32 %v3506, %v3476
        %v3508 = vadd.f32 %v3507, %v3477
        %v3509 = vadd.f32 %v3508, %v3478
        %v3510 = vadd.f32 %v3509, %v3479
        %v3511 = vadd.f32 %v3510, %v3480
        %v3512 = vadd.f32 %v3511, %v3481
        %v3513 = vadd.f32 %v3512, %v3482
        %v3514 = vadd.f32 %v3513, %v3483
        %v3515 = vadd.f32 %v3514, %v3484
        %v3516 = vadd.f32 %v3515, %v3485
        %v3517 = vadd.f32 %v3516, %v3486
        %v3518 = vrot.slane %v3517, 4
        %v3519 = vadd.f32 %v3517, %v3518
        %v3520 = vrot.slane %v3519, 2
        %v3521 = vadd.f32 %v3519, %v3520
        %v3522 = vrot.slane %v3521, 1
        %v3523 = vadd.f32 %v3521, %v3522
        %v3524 = vmul.f32 %v3455, %v3455
        %v3525 = vmul.f32 %v3456, %v3456
        %v3526 = vmul.f32 %v3457, %v3457
        %v3527 = vmul.f32 %v3458, %v3458
        %v3528 = vmul.f32 %v3459, %v3459
        %v3529 = vmul.f32 %v3460, %v3460
        %v3530 = vmul.f32 %v3461, %v3461
        %v3531 = vmul.f32 %v3462, %v3462
        %v3532 = vmul.f32 %v3463, %v3463
        %v3533 = vmul.f32 %v3464, %v3464
        %v3534 = vmul.f32 %v3465, %v3465
        %v3535 = vmul.f32 %v3466, %v3466
        %v3536 = vmul.f32 %v3467, %v3467
        %v3537 = vmul.f32 %v3468, %v3468
        %v3538 = vmul.f32 %v3469, %v3469
        %v3539 = vmul.f32 %v3470, %v3470
        %v3540 = vmul.f32 %v3471, %v3471
        %v3541 = vmul.f32 %v3472, %v3472
        %v3542 = vmul.f32 %v3473, %v3473
        %v3543 = vmul.f32 %v3474, %v3474
        %v3544 = vmul.f32 %v3475, %v3475
        %v3545 = vmul.f32 %v3476, %v3476
        %v3546 = vmul.f32 %v3477, %v3477
        %v3547 = vmul.f32 %v3478, %v3478
        %v3548 = vmul.f32 %v3479, %v3479
        %v3549 = vmul.f32 %v3480, %v3480
        %v3550 = vmul.f32 %v3481, %v3481
        %v3551 = vmul.f32 %v3482, %v3482
        %v3552 = vmul.f32 %v3483, %v3483
        %v3553 = vmul.f32 %v3484, %v3484
        %v3554 = vmul.f32 %v3485, %v3485
        %v3555 = vmul.f32 %v3486, %v3486
        %v3556 = vadd.f32 %v3524, %v3525
        %v3557 = vadd.f32 %v3556, %v3526
        %v3558 = vadd.f32 %v3557, %v3527
        %v3559 = vadd.f32 %v3558, %v3528
        %v3560 = vadd.f32 %v3559, %v3529
        %v3561 = vadd.f32 %v3560, %v3530
        %v3562 = vadd.f32 %v3561, %v3531
        %v3563 = vadd.f32 %v3562, %v3532
        %v3564 = vadd.f32 %v3563, %v3533
        %v3565 = vadd.f32 %v3564, %v3534
        %v3566 = vadd.f32 %v3565, %v3535
        %v3567 = vadd.f32 %v3566, %v3536
        %v3568 = vadd.f32 %v3567, %v3537
        %v3569 = vadd.f32 %v3568, %v3538
        %v3570 = vadd.f32 %v3569, %v3539
        %v3571 = vadd.f32 %v3570, %v3540
        %v3572 = vadd.f32 %v3571, %v3541
        %v3573 = vadd.f32 %v3572, %v3542
        %v3574 = vadd.f32 %v3573, %v3543
        %v3575 = vadd.f32 %v3574, %v3544
        %v3576 = vadd.f32 %v3575, %v3545
        %v3577 = vadd.f32 %v3576, %v3546
        %v3578 = vadd.f32 %v3577, %v3547
        %v3579 = vadd.f32 %v3578, %v3548
        %v3580 = vadd.f32 %v3579, %v3549
        %v3581 = vadd.f32 %v3580, %v3550
        %v3582 = vadd.f32 %v3581, %v3551
        %v3583 = vadd.f32 %v3582, %v3552
        %v3584 = vadd.f32 %v3583, %v3553
        %v3585 = vadd.f32 %v3584, %v3554
        %v3586 = vadd.f32 %v3585, %v3555
        %v3587 = vrot.slane %v3586, 4
        %v3588 = vadd.f32 %v3586, %v3587
        %v3589 = vrot.slane %v3588, 2
        %v3590 = vadd.f32 %v3588, %v3589
        %v3591 = vrot.slane %v3590, 1
        %v3592 = vadd.f32 %v3590, %v3591
        %v3593 = vmul.f32 %v3523, 0.00390625
        %v3594 = vmul.f32 %v3592, 0.00390625
        %v3595 = vmul.f32 %v3593, %v3593
        %v3596 = vsub.f32 %v3594, %v3595
        %v3597 = vmax.f32 %v3596, 0.0
        %v3598 = vadd.f32 %v3597, 1e-05
        %v3599 = vrsqrt.pop %v3598
        %v3600 = vsub.f32 %v3455, %v3593
        %v3601 = vsub.f32 %v3456, %v3593
        %v3602 = vsub.f32 %v3457, %v3593
        %v3603 = vsub.f32 %v3458, %v3593
        %v3604 = vsub.f32 %v3459, %v3593
        %v3605 = vsub.f32 %v3460, %v3593
        %v3606 = vsub.f32 %v3461, %v3593
        %v3607 = vsub.f32 %v3462, %v3593
        %v3608 = vsub.f32 %v3463, %v3593
        %v3609 = vsub.f32 %v3464, %v3593
        %v3610 = vsub.f32 %v3465, %v3593
        %v3611 = vsub.f32 %v3466, %v3593
        %v3612 = vsub.f32 %v3467, %v3593
        %v3613 = vsub.f32 %v3468, %v3593
        %v3614 = vsub.f32 %v3469, %v3593
        %v3615 = vsub.f32 %v3470, %v3593
        %v3616 = vsub.f32 %v3471, %v3593
        %v3617 = vsub.f32 %v3472, %v3593
        %v3618 = vsub.f32 %v3473, %v3593
        %v3619 = vsub.f32 %v3474, %v3593
        %v3620 = vsub.f32 %v3475, %v3593
        %v3621 = vsub.f32 %v3476, %v3593
        %v3622 = vsub.f32 %v3477, %v3593
        %v3623 = vsub.f32 %v3478, %v3593
        %v3624 = vsub.f32 %v3479, %v3593
        %v3625 = vsub.f32 %v3480, %v3593
        %v3626 = vsub.f32 %v3481, %v3593
        %v3627 = vsub.f32 %v3482, %v3593
        %v3628 = vsub.f32 %v3483, %v3593
        %v3629 = vsub.f32 %v3484, %v3593
        %v3630 = vsub.f32 %v3485, %v3593
        %v3631 = vsub.f32 %v3486, %v3593
        %v3632 = vmul.f32 %v3600, %v3599
        %v3633 = vmul.f32 %v3601, %v3599
        %v3634 = vmul.f32 %v3602, %v3599
        %v3635 = vmul.f32 %v3603, %v3599
        %v3636 = vmul.f32 %v3604, %v3599
        %v3637 = vmul.f32 %v3605, %v3599
        %v3638 = vmul.f32 %v3606, %v3599
        %v3639 = vmul.f32 %v3607, %v3599
        %v3640 = vmul.f32 %v3608, %v3599
        %v3641 = vmul.f32 %v3609, %v3599
        %v3642 = vmul.f32 %v3610, %v3599
        %v3643 = vmul.f32 %v3611, %v3599
        %v3644 = vmul.f32 %v3612, %v3599
        %v3645 = vmul.f32 %v3613, %v3599
        %v3646 = vmul.f32 %v3614, %v3599
        %v3647 = vmul.f32 %v3615, %v3599
        %v3648 = vmul.f32 %v3616, %v3599
        %v3649 = vmul.f32 %v3617, %v3599
        %v3650 = vmul.f32 %v3618, %v3599
        %v3651 = vmul.f32 %v3619, %v3599
        %v3652 = vmul.f32 %v3620, %v3599
        %v3653 = vmul.f32 %v3621, %v3599
        %v3654 = vmul.f32 %v3622, %v3599
        %v3655 = vmul.f32 %v3623, %v3599
        %v3656 = vmul.f32 %v3624, %v3599
        %v3657 = vmul.f32 %v3625, %v3599
        %v3658 = vmul.f32 %v3626, %v3599
        %v3659 = vmul.f32 %v3627, %v3599
        %v3660 = vmul.f32 %v3628, %v3599
        %v3661 = vmul.f32 %v3629, %v3599
        %v3662 = vmul.f32 %v3630, %v3599
        %v3663 = vmul.f32 %v3631, %v3599
        %v3664 = vmax.f32 %v3632, 0.0
        %v3665 = vmax.f32 %v3633, 0.0
        %v3666 = vmax.f32 %v3634, 0.0
        %v3667 = vmax.f32 %v3635, 0.0
        %v3668 = vmax.f32 %v3636, 0.0
        %v3669 = vmax.f32 %v3637, 0.0
        %v3670 = vmax.f32 %v3638, 0.0
        %v3671 = vmax.f32 %v3639, 0.0
        %v3672 = vmax.f32 %v3640, 0.0
        %v3673 = vmax.f32 %v3641, 0.0
        %v3674 = vmax.f32 %v3642, 0.0
        %v3675 = vmax.f32 %v3643, 0.0
        %v3676 = vmax.f32 %v3644, 0.0
        %v3677 = vmax.f32 %v3645, 0.0
        %v3678 = vmax.f32 %v3646, 0.0
        %v3679 = vmax.f32 %v3647, 0.0
        %v3680 = vmax.f32 %v3648, 0.0
        %v3681 = vmax.f32 %v3649, 0.0
        %v3682 = vmax.f32 %v3650, 0.0
        %v3683 = vmax.f32 %v3651, 0.0
        %v3684 = vmax.f32 %v3652, 0.0
        %v3685 = vmax.f32 %v3653, 0.0
        %v3686 = vmax.f32 %v3654, 0.0
        %v3687 = vmax.f32 %v3655, 0.0
        %v3688 = vmax.f32 %v3656, 0.0
        %v3689 = vmax.f32 %v3657, 0.0
        %v3690 = vmax.f32 %v3658, 0.0
        %v3691 = vmax.f32 %v3659, 0.0
        %v3692 = vmax.f32 %v3660, 0.0
        %v3693 = vmax.f32 %v3661, 0.0
        %v3694 = vmax.f32 %v3662, 0.0
        %v3695 = vmax.f32 %v3663, 0.0
        %v3696 = vpack.c.bf16 %v3665, %v3664
        %v3697 = vpack.c.bf16 %v3667, %v3666
        %v3698 = vpack.c.bf16 %v3669, %v3668
        %v3699 = vpack.c.bf16 %v3671, %v3670
        %v3700 = vpack.c.bf16 %v3673, %v3672
        %v3701 = vpack.c.bf16 %v3675, %v3674
        %v3702 = vpack.c.bf16 %v3677, %v3676
        %v3703 = vpack.c.bf16 %v3679, %v3678
        %v3704 = vpack.c.bf16 %v3681, %v3680
        %v3705 = vpack.c.bf16 %v3683, %v3682
        %v3706 = vpack.c.bf16 %v3685, %v3684
        %v3707 = vpack.c.bf16 %v3687, %v3686
        %v3708 = vpack.c.bf16 %v3689, %v3688
        %v3709 = vpack.c.bf16 %v3691, %v3690
        %v3710 = vpack.c.bf16 %v3693, %v3692
        %v3711 = vpack.c.bf16 %v3695, %v3694
        %v3713 = vshrl.u32 %v3696, 16
        %v3715 = vrot.slane %v3713, 7
        %v3716 = vshll.u32 %v3696, 16
        %v3718 = vor.u32 %v3715, %v3716
        %v3720 = vshrl.u32 %v3697, 16
        %v3722 = vrot.slane %v3720, 7
        %v3723 = vshll.u32 %v3697, 16
        %v3725 = vor.u32 %v3722, %v3723
        %v3727 = vshrl.u32 %v3698, 16
        %v3729 = vrot.slane %v3727, 7
        %v3730 = vshll.u32 %v3698, 16
        %v3732 = vor.u32 %v3729, %v3730
        %v3734 = vshrl.u32 %v3699, 16
        %v3736 = vrot.slane %v3734, 7
        %v3737 = vshll.u32 %v3699, 16
        %v3739 = vor.u32 %v3736, %v3737
        %v3741 = vshrl.u32 %v3700, 16
        %v3743 = vrot.slane %v3741, 7
        %v3744 = vshll.u32 %v3700, 16
        %v3746 = vor.u32 %v3743, %v3744
        %v3748 = vshrl.u32 %v3701, 16
        %v3750 = vrot.slane %v3748, 7
        %v3751 = vshll.u32 %v3701, 16
        %v3753 = vor.u32 %v3750, %v3751
        %v3755 = vshrl.u32 %v3702, 16
        %v3757 = vrot.slane %v3755, 7
        %v3758 = vshll.u32 %v3702, 16
        %v3760 = vor.u32 %v3757, %v3758
        %v3762 = vshrl.u32 %v3703, 16
        %v3764 = vrot.slane %v3762, 7
        %v3765 = vshll.u32 %v3703, 16
        %v3767 = vor.u32 %v3764, %v3765
        %v3769 = vshrl.u32 %v3704, 16
        %v3771 = vrot.slane %v3769, 7
        %v3772 = vshll.u32 %v3704, 16
        %v3774 = vor.u32 %v3771, %v3772
        %v3776 = vshrl.u32 %v3705, 16
        %v3778 = vrot.slane %v3776, 7
        %v3779 = vshll.u32 %v3705, 16
        %v3781 = vor.u32 %v3778, %v3779
        %v3783 = vshrl.u32 %v3706, 16
        %v3785 = vrot.slane %v3783, 7
        %v3786 = vshll.u32 %v3706, 16
        %v3788 = vor.u32 %v3785, %v3786
        %v3790 = vshrl.u32 %v3707, 16
        %v3792 = vrot.slane %v3790, 7
        %v3793 = vshll.u32 %v3707, 16
        %v3795 = vor.u32 %v3792, %v3793
        %v3797 = vshrl.u32 %v3708, 16
        %v3799 = vrot.slane %v3797, 7
        %v3800 = vshll.u32 %v3708, 16
        %v3802 = vor.u32 %v3799, %v3800
        %v3804 = vshrl.u32 %v3709, 16
        %v3806 = vrot.slane %v3804, 7
        %v3807 = vshll.u32 %v3709, 16
        %v3809 = vor.u32 %v3806, %v3807
        %v3811 = vshrl.u32 %v3710, 16
        %v3813 = vrot.slane %v3811, 7
        %v3814 = vshll.u32 %v3710, 16
        %v3816 = vor.u32 %v3813, %v3814
        %v3818 = vshrl.u32 %v3711, 16
        %v3820 = vrot.slane %v3818, 7
        %v3821 = vshll.u32 %v3711, 16
        %v3823 = vor.u32 %v3820, %v3821
        %v3856 = vld [vmem:[%s475] sm:$0xff]
        %v3857 = vsel %vm478, %v3718, %v3856
        %3858 = vst [vmem:[%s475] sm:$0xff] %v3857
        %v3859 = vld [vmem:[%s475 + $0x8] sm:$0x1]
        %v3860 = vsel %vm484, %v3715, %v3859
        %3861 = vst [vmem:[%s475 + $0x8] sm:$0x1] %v3860
        %v3862 = vld [vmem:[%s475 + $0x10] sm:$0xff]
        %v3863 = vsel %vm478, %v3725, %v3862
        %3864 = vst [vmem:[%s475 + $0x10] sm:$0xff] %v3863
        %v3865 = vld [vmem:[%s475 + $0x18] sm:$0x1]
        %v3866 = vsel %vm484, %v3722, %v3865
        %3867 = vst [vmem:[%s475 + $0x18] sm:$0x1] %v3866
        %v3868 = vld [vmem:[%s475 + $0x20] sm:$0xff]
        %v3869 = vsel %vm478, %v3732, %v3868
        %3870 = vst [vmem:[%s475 + $0x20] sm:$0xff] %v3869
        %v3871 = vld [vmem:[%s475 + $0x28] sm:$0x1]
        %v3872 = vsel %vm484, %v3729, %v3871
        %3873 = vst [vmem:[%s475 + $0x28] sm:$0x1] %v3872
        %v3874 = vld [vmem:[%s475 + $0x30] sm:$0xff]
        %v3875 = vsel %vm478, %v3739, %v3874
        %3876 = vst [vmem:[%s475 + $0x30] sm:$0xff] %v3875
        %v3877 = vld [vmem:[%s475 + $0x38] sm:$0x1]
        %v3878 = vsel %vm484, %v3736, %v3877
        %3879 = vst [vmem:[%s475 + $0x38] sm:$0x1] %v3878
        %v3880 = vld [vmem:[%s475 + $0x40] sm:$0xff]
        %v3881 = vsel %vm478, %v3746, %v3880
        %3882 = vst [vmem:[%s475 + $0x40] sm:$0xff] %v3881
        %v3883 = vld [vmem:[%s475 + $0x48] sm:$0x1]
        %v3884 = vsel %vm484, %v3743, %v3883
        %3885 = vst [vmem:[%s475 + $0x48] sm:$0x1] %v3884
        %v3886 = vld [vmem:[%s475 + $0x50] sm:$0xff]
        %v3887 = vsel %vm478, %v3753, %v3886
        %3888 = vst [vmem:[%s475 + $0x50] sm:$0xff] %v3887
        %v3889 = vld [vmem:[%s475 + $0x58] sm:$0x1]
        %v3890 = vsel %vm484, %v3750, %v3889
        %3891 = vst [vmem:[%s475 + $0x58] sm:$0x1] %v3890
        %v3892 = vld [vmem:[%s475 + $0x60] sm:$0xff]
        %v3893 = vsel %vm478, %v3760, %v3892
        %3894 = vst [vmem:[%s475 + $0x60] sm:$0xff] %v3893
        %v3895 = vld [vmem:[%s475 + $0x68] sm:$0x1]
        %v3896 = vsel %vm484, %v3757, %v3895
        %3897 = vst [vmem:[%s475 + $0x68] sm:$0x1] %v3896
        %v3898 = vld [vmem:[%s475 + $0x70] sm:$0xff]
        %v3899 = vsel %vm478, %v3767, %v3898
        %3900 = vst [vmem:[%s475 + $0x70] sm:$0xff] %v3899
        %v3901 = vld [vmem:[%s475 + $0x78] sm:$0x1]
        %v3902 = vsel %vm484, %v3764, %v3901
        %3903 = vst [vmem:[%s475 + $0x78] sm:$0x1] %v3902
        %v3904 = vld [vmem:[%s475 + $0x80] sm:$0xff]
        %v3905 = vsel %vm478, %v3774, %v3904
        %3906 = vst [vmem:[%s475 + $0x80] sm:$0xff] %v3905
        %v3907 = vld [vmem:[%s475 + $0x88] sm:$0x1]
        %v3908 = vsel %vm484, %v3771, %v3907
        %3909 = vst [vmem:[%s475 + $0x88] sm:$0x1] %v3908
        %v3910 = vld [vmem:[%s475 + $0x90] sm:$0xff]
        %v3911 = vsel %vm478, %v3781, %v3910
        %3912 = vst [vmem:[%s475 + $0x90] sm:$0xff] %v3911
        %v3913 = vld [vmem:[%s475 + $0x98] sm:$0x1]
        %v3914 = vsel %vm484, %v3778, %v3913
        %3915 = vst [vmem:[%s475 + $0x98] sm:$0x1] %v3914
        %v3916 = vld [vmem:[%s475 + $0xa0] sm:$0xff]
        %v3917 = vsel %vm478, %v3788, %v3916
        %3918 = vst [vmem:[%s475 + $0xa0] sm:$0xff] %v3917
        %v3919 = vld [vmem:[%s475 + $0xa8] sm:$0x1]
        %v3920 = vsel %vm484, %v3785, %v3919
        %3921 = vst [vmem:[%s475 + $0xa8] sm:$0x1] %v3920
        %v3922 = vld [vmem:[%s475 + $0xb0] sm:$0xff]
        %v3923 = vsel %vm478, %v3795, %v3922
        %3924 = vst [vmem:[%s475 + $0xb0] sm:$0xff] %v3923
        %v3925 = vld [vmem:[%s475 + $0xb8] sm:$0x1]
        %v3926 = vsel %vm484, %v3792, %v3925
        %3927 = vst [vmem:[%s475 + $0xb8] sm:$0x1] %v3926
        %v3928 = vld [vmem:[%s475 + $0xc0] sm:$0xff]
        %v3929 = vsel %vm478, %v3802, %v3928
        %3930 = vst [vmem:[%s475 + $0xc0] sm:$0xff] %v3929
        %v3931 = vld [vmem:[%s475 + $0xc8] sm:$0x1]
        %v3932 = vsel %vm484, %v3799, %v3931
        %3933 = vst [vmem:[%s475 + $0xc8] sm:$0x1] %v3932
        %v3934 = vld [vmem:[%s475 + $0xd0] sm:$0xff]
        %v3935 = vsel %vm478, %v3809, %v3934
        %3936 = vst [vmem:[%s475 + $0xd0] sm:$0xff] %v3935
        %v3937 = vld [vmem:[%s475 + $0xd8] sm:$0x1]
        %v3938 = vsel %vm484, %v3806, %v3937
        %3939 = vst [vmem:[%s475 + $0xd8] sm:$0x1] %v3938
        %v3940 = vld [vmem:[%s475 + $0xe0] sm:$0xff]
        %v3941 = vsel %vm478, %v3816, %v3940
        %3942 = vst [vmem:[%s475 + $0xe0] sm:$0xff] %v3941
        %v3943 = vld [vmem:[%s475 + $0xe8] sm:$0x1]
        %v3944 = vsel %vm484, %v3813, %v3943
        %3945 = vst [vmem:[%s475 + $0xe8] sm:$0x1] %v3944
        %v3946 = vld [vmem:[%s475 + $0xf0] sm:$0xff]
        %v3947 = vsel %vm478, %v3823, %v3946
        %3948 = vst [vmem:[%s475 + $0xf0] sm:$0xff] %v3947
        %v3949 = vld [vmem:[%s475 + $0xf8] sm:$0x1]
        %v3950 = vsel %vm484, %v3820, %v3949
        %3951 = vst [vmem:[%s475 + $0xf8] sm:$0x1] %v3950
        %v3952 = vld [vmem:[%s475] sm:$0x2]
        %v3953 = vld [vmem:[%s475 + $0x10] sm:$0x2]
        %v3954 = vld [vmem:[%s475 + $0x20] sm:$0x2]
        %v3955 = vld [vmem:[%s475 + $0x30] sm:$0x2]
        %v3956 = vld [vmem:[%s475 + $0x40] sm:$0x2]
        %v3957 = vld [vmem:[%s475 + $0x50] sm:$0x2]
        %v3958 = vld [vmem:[%s475 + $0x60] sm:$0x2]
        %v3959 = vld [vmem:[%s475 + $0x70] sm:$0x2]
        %v3960 = vld [vmem:[%s475 + $0x80] sm:$0x2]
        %v3961 = vld [vmem:[%s475 + $0x90] sm:$0x2]
        %v3962 = vld [vmem:[%s475 + $0xa0] sm:$0x2]
        %v3963 = vld [vmem:[%s475 + $0xb0] sm:$0x2]
        %v3964 = vld [vmem:[%s475 + $0xc0] sm:$0x2]
        %v3965 = vld [vmem:[%s475 + $0xd0] sm:$0x2]
        %v3966 = vld [vmem:[%s475 + $0xe0] sm:$0x2]
        %v3967 = vld [vmem:[%s475 + $0xf0] sm:$0x2]
        %v3984 = vrot.slane %v3952, 1
        %v3985 = vrot.slane %v3953, 1
        %v3986 = vrot.slane %v3954, 1
        %v3987 = vrot.slane %v3955, 1
        %v3988 = vrot.slane %v3956, 1
        %v3989 = vrot.slane %v3957, 1
        %v3990 = vrot.slane %v3958, 1
        %v3991 = vrot.slane %v3959, 1
        %v3992 = vrot.slane %v3960, 1
        %v3993 = vrot.slane %v3961, 1
        %v3994 = vrot.slane %v3962, 1
        %v3995 = vrot.slane %v3963, 1
        %v3996 = vrot.slane %v3964, 1
        %v3997 = vrot.slane %v3965, 1
        %v3998 = vrot.slane %v3966, 1
        %v3999 = vrot.slane %v3967, 1
        %v4016 = vld [vmem:[%s475] sm:$0x1]
        %v4017 = vsel %vm484, %v3984, %v4016
        %4018 = vst [vmem:[%s475] sm:$0x1] %v4017
        %v4019 = vld [vmem:[%s475 + $0x10] sm:$0x1]
        %v4020 = vsel %vm484, %v3985, %v4019
        %4021 = vst [vmem:[%s475 + $0x10] sm:$0x1] %v4020
        %v4022 = vld [vmem:[%s475 + $0x20] sm:$0x1]
        %v4023 = vsel %vm484, %v3986, %v4022
        %4024 = vst [vmem:[%s475 + $0x20] sm:$0x1] %v4023
        %v4025 = vld [vmem:[%s475 + $0x30] sm:$0x1]
        %v4026 = vsel %vm484, %v3987, %v4025
        %4027 = vst [vmem:[%s475 + $0x30] sm:$0x1] %v4026
        %v4028 = vld [vmem:[%s475 + $0x40] sm:$0x1]
        %v4029 = vsel %vm484, %v3988, %v4028
        %4030 = vst [vmem:[%s475 + $0x40] sm:$0x1] %v4029
        %v4031 = vld [vmem:[%s475 + $0x50] sm:$0x1]
        %v4032 = vsel %vm484, %v3989, %v4031
        %4033 = vst [vmem:[%s475 + $0x50] sm:$0x1] %v4032
        %v4034 = vld [vmem:[%s475 + $0x60] sm:$0x1]
        %v4035 = vsel %vm484, %v3990, %v4034
        %4036 = vst [vmem:[%s475 + $0x60] sm:$0x1] %v4035
        %v4037 = vld [vmem:[%s475 + $0x70] sm:$0x1]
        %v4038 = vsel %vm484, %v3991, %v4037
        %4039 = vst [vmem:[%s475 + $0x70] sm:$0x1] %v4038
        %v4040 = vld [vmem:[%s475 + $0x80] sm:$0x1]
        %v4041 = vsel %vm484, %v3992, %v4040
        %4042 = vst [vmem:[%s475 + $0x80] sm:$0x1] %v4041
        %v4043 = vld [vmem:[%s475 + $0x90] sm:$0x1]
        %v4044 = vsel %vm484, %v3993, %v4043
        %4045 = vst [vmem:[%s475 + $0x90] sm:$0x1] %v4044
        %v4046 = vld [vmem:[%s475 + $0xa0] sm:$0x1]
        %v4047 = vsel %vm484, %v3994, %v4046
        %4048 = vst [vmem:[%s475 + $0xa0] sm:$0x1] %v4047
        %v4049 = vld [vmem:[%s475 + $0xb0] sm:$0x1]
        %v4050 = vsel %vm484, %v3995, %v4049
        %4051 = vst [vmem:[%s475 + $0xb0] sm:$0x1] %v4050
        %v4052 = vld [vmem:[%s475 + $0xc0] sm:$0x1]
        %v4053 = vsel %vm484, %v3996, %v4052
        %4054 = vst [vmem:[%s475 + $0xc0] sm:$0x1] %v4053
        %v4055 = vld [vmem:[%s475 + $0xd0] sm:$0x1]
        %v4056 = vsel %vm484, %v3997, %v4055
        %4057 = vst [vmem:[%s475 + $0xd0] sm:$0x1] %v4056
        %v4058 = vld [vmem:[%s475 + $0xe0] sm:$0x1]
        %v4059 = vsel %vm484, %v3998, %v4058
        %4060 = vst [vmem:[%s475 + $0xe0] sm:$0x1] %v4059
        %v4061 = vld [vmem:[%s475 + $0xf0] sm:$0x1]
        %v4062 = vsel %vm484, %v3999, %v4061
        %4063 = vst [vmem:[%s475 + $0xf0] sm:$0x1] %v4062
        %v4064 = vld [vmem:[%s475] sm:$0x80]
        %v4065 = vld [vmem:[%s475 + $0x10] sm:$0x80]
        %v4066 = vld [vmem:[%s475 + $0x20] sm:$0x80]
        %v4067 = vld [vmem:[%s475 + $0x30] sm:$0x80]
        %v4068 = vld [vmem:[%s475 + $0x40] sm:$0x80]
        %v4069 = vld [vmem:[%s475 + $0x50] sm:$0x80]
        %v4070 = vld [vmem:[%s475 + $0x60] sm:$0x80]
        %v4071 = vld [vmem:[%s475 + $0x70] sm:$0x80]
        %v4072 = vld [vmem:[%s475 + $0x80] sm:$0x80]
        %v4073 = vld [vmem:[%s475 + $0x90] sm:$0x80]
        %v4074 = vld [vmem:[%s475 + $0xa0] sm:$0x80]
        %v4075 = vld [vmem:[%s475 + $0xb0] sm:$0x80]
        %v4076 = vld [vmem:[%s475 + $0xc0] sm:$0x80]
        %v4077 = vld [vmem:[%s475 + $0xd0] sm:$0x80]
        %v4078 = vld [vmem:[%s475 + $0xe0] sm:$0x80]
        %v4079 = vld [vmem:[%s475 + $0xf0] sm:$0x80]
        %v4096 = vrot.slane %v4064, 7
        %v4097 = vrot.slane %v4065, 7
        %v4098 = vrot.slane %v4066, 7
        %v4099 = vrot.slane %v4067, 7
        %v4100 = vrot.slane %v4068, 7
        %v4101 = vrot.slane %v4069, 7
        %v4102 = vrot.slane %v4070, 7
        %v4103 = vrot.slane %v4071, 7
        %v4104 = vrot.slane %v4072, 7
        %v4105 = vrot.slane %v4073, 7
        %v4106 = vrot.slane %v4074, 7
        %v4107 = vrot.slane %v4075, 7
        %v4108 = vrot.slane %v4076, 7
        %v4109 = vrot.slane %v4077, 7
        %v4110 = vrot.slane %v4078, 7
        %v4111 = vrot.slane %v4079, 7
        %v4128 = vld [vmem:[%s475 + $0x8] sm:$0x1]
        %v4129 = vsel %vm754, %v4096, %v4128
        %4130 = vst [vmem:[%s475 + $0x8] sm:$0x1] %v4129
        %v4131 = vld [vmem:[%s475 + $0x18] sm:$0x1]
        %v4132 = vsel %vm754, %v4097, %v4131
        %4133 = vst [vmem:[%s475 + $0x18] sm:$0x1] %v4132
        %v4134 = vld [vmem:[%s475 + $0x28] sm:$0x1]
        %v4135 = vsel %vm754, %v4098, %v4134
        %4136 = vst [vmem:[%s475 + $0x28] sm:$0x1] %v4135
        %v4137 = vld [vmem:[%s475 + $0x38] sm:$0x1]
        %v4138 = vsel %vm754, %v4099, %v4137
        %4139 = vst [vmem:[%s475 + $0x38] sm:$0x1] %v4138
        %v4140 = vld [vmem:[%s475 + $0x48] sm:$0x1]
        %v4141 = vsel %vm754, %v4100, %v4140
        %4142 = vst [vmem:[%s475 + $0x48] sm:$0x1] %v4141
        %v4143 = vld [vmem:[%s475 + $0x58] sm:$0x1]
        %v4144 = vsel %vm754, %v4101, %v4143
        %4145 = vst [vmem:[%s475 + $0x58] sm:$0x1] %v4144
        %v4146 = vld [vmem:[%s475 + $0x68] sm:$0x1]
        %v4147 = vsel %vm754, %v4102, %v4146
        %4148 = vst [vmem:[%s475 + $0x68] sm:$0x1] %v4147
        %v4149 = vld [vmem:[%s475 + $0x78] sm:$0x1]
        %v4150 = vsel %vm754, %v4103, %v4149
        %4151 = vst [vmem:[%s475 + $0x78] sm:$0x1] %v4150
        %v4152 = vld [vmem:[%s475 + $0x88] sm:$0x1]
        %v4153 = vsel %vm754, %v4104, %v4152
        %4154 = vst [vmem:[%s475 + $0x88] sm:$0x1] %v4153
        %v4155 = vld [vmem:[%s475 + $0x98] sm:$0x1]
        %v4156 = vsel %vm754, %v4105, %v4155
        %4157 = vst [vmem:[%s475 + $0x98] sm:$0x1] %v4156
        %v4158 = vld [vmem:[%s475 + $0xa8] sm:$0x1]
        %v4159 = vsel %vm754, %v4106, %v4158
        %4160 = vst [vmem:[%s475 + $0xa8] sm:$0x1] %v4159
        %v4161 = vld [vmem:[%s475 + $0xb8] sm:$0x1]
        %v4162 = vsel %vm754, %v4107, %v4161
        %4163 = vst [vmem:[%s475 + $0xb8] sm:$0x1] %v4162
        %v4164 = vld [vmem:[%s475 + $0xc8] sm:$0x1]
        %v4165 = vsel %vm754, %v4108, %v4164
        %4166 = vst [vmem:[%s475 + $0xc8] sm:$0x1] %v4165
        %v4167 = vld [vmem:[%s475 + $0xd8] sm:$0x1]
        %v4168 = vsel %vm754, %v4109, %v4167
        %4169 = vst [vmem:[%s475 + $0xd8] sm:$0x1] %v4168
        %v4170 = vld [vmem:[%s475 + $0xe8] sm:$0x1]
        %v4171 = vsel %vm754, %v4110, %v4170
        %4172 = vst [vmem:[%s475 + $0xe8] sm:$0x1] %v4171
        %v4173 = vld [vmem:[%s475 + $0xf8] sm:$0x1]
        %v4174 = vsel %vm754, %v4111, %v4173
        %4175 = vst [vmem:[%s475 + $0xf8] sm:$0x1] %v4174
        %v4176 = vld [vmem:[%s803] sm:$0xff]
        %v4177 = vld [vmem:[%s803 + $0x8] sm:$0x1]
        %4178 = vst [vmem:[#allocation2] sm:$0xff] %v4176
        %4179 = vst [vmem:[#allocation2 + $0x8] sm:$0x1] %v4177
        %v4180 = vld [vmem:[%s808] sm:$0xff]
        %v4181 = vld [vmem:[%s808 + $0x8] sm:$0x1]
        %4182 = vst [vmem:[%s811] sm:$0xff] %v4180
        %4183 = vst [vmem:[%s811 + $0x8] sm:$0x1] %v4181
        %v4184 = vld [vmem:[#allocation2] sm:$0xff]
        %v4185 = vld [vmem:[#allocation2 + $0x10] sm:$0xff]
        %v4186 = vld [vmem:[#allocation2 + $0x20] sm:$0xff]
        %v4187 = vld [vmem:[#allocation2 + $0x30] sm:$0xff]
        %v4188 = vld [vmem:[#allocation2 + $0x40] sm:$0xff]
        %v4189 = vld [vmem:[#allocation2 + $0x50] sm:$0xff]
        %v4190 = vld [vmem:[#allocation2 + $0x60] sm:$0xff]
        %v4191 = vld [vmem:[#allocation2 + $0x70] sm:$0xff]
        %v4192 = vld [vmem:[#allocation2 + $0x80] sm:$0xff]
        %v4193 = vld [vmem:[#allocation2 + $0x90] sm:$0xff]
        %v4194 = vld [vmem:[#allocation2 + $0xa0] sm:$0xff]
        %v4195 = vld [vmem:[#allocation2 + $0xb0] sm:$0xff]
        %v4196 = vld [vmem:[#allocation2 + $0xc0] sm:$0xff]
        %v4197 = vld [vmem:[#allocation2 + $0xd0] sm:$0xff]
        %v4198 = vld [vmem:[#allocation2 + $0xe0] sm:$0xff]
        %v4199 = vld [vmem:[#allocation2 + $0xf0] sm:$0xff]
        %v4200 = vld [vmem:[#allocation2 + $0x100] sm:$0xff]
        %v4201 = vld [vmem:[#allocation2 + $0x110] sm:$0xff]
        %v4202 = vld [vmem:[#allocation8] sm:$0xf]
        %v4203 = vld [vmem:[#allocation8 + $0x4] sm:$0xf]
        %v4204 = vld [vmem:[#allocation8 + $0x8] sm:$0xf]
        %v4205 = vld [vmem:[#allocation8 + $0xc] sm:$0xf]
        %v4206 = vld [vmem:[#allocation8 + $0x10] sm:$0xf]
        %v4207 = vld [vmem:[#allocation8 + $0x14] sm:$0xf]
        %v4208 = vld [vmem:[#allocation8 + $0x18] sm:$0xf]
        %v4209 = vld [vmem:[#allocation8 + $0x1c] sm:$0xf]
        %v4210 = vld [vmem:[#allocation8 + $0x20] sm:$0xf]
        %v4211 = vld [vmem:[#allocation8 + $0x24] sm:$0xf]
        %v4212 = vld [vmem:[#allocation8 + $0x28] sm:$0xf]
        %v4213 = vld [vmem:[#allocation8 + $0x2c] sm:$0xf]
        %v4214 = vld [vmem:[#allocation8 + $0x30] sm:$0xf]
        %v4215 = vld [vmem:[#allocation8 + $0x34] sm:$0xf]
        %v4216 = vld [vmem:[#allocation8 + $0x38] sm:$0xf]
        %v4217 = vld [vmem:[#allocation8 + $0x3c] sm:$0xf]
        %s4218 = scalar_lea.vmem [#allocation8], 192
        %v4219 = vld [vmem:[%s4218] sm:$0xf]
        %v4220 = vld [vmem:[%s4218 + $0x4] sm:$0xf]
        %v4221 = vld [vmem:[%s4218 + $0x8] sm:$0xf]
        %v4222 = vld [vmem:[%s4218 + $0xc] sm:$0xf]
        %v4223 = vld [vmem:[%s4218 + $0x10] sm:$0xf]
        %v4224 = vld [vmem:[%s4218 + $0x14] sm:$0xf]
        %v4225 = vld [vmem:[%s4218 + $0x18] sm:$0xf]
        %v4226 = vld [vmem:[%s4218 + $0x1c] sm:$0xf]
        %v4227 = vld [vmem:[%s4218 + $0x20] sm:$0xf]
        %v4228 = vld [vmem:[%s4218 + $0x24] sm:$0xf]
        %v4229 = vld [vmem:[%s4218 + $0x28] sm:$0xf]
        %v4230 = vld [vmem:[%s4218 + $0x2c] sm:$0xf]
        %v4231 = vld [vmem:[%s4218 + $0x30] sm:$0xf]
        %v4232 = vld [vmem:[%s4218 + $0x34] sm:$0xf]
        %v4233 = vld [vmem:[%s4218 + $0x38] sm:$0xf]
        %v4234 = vld [vmem:[%s4218 + $0x3c] sm:$0xf]
        %v4251 = vunpack.c.l.b16 %v4219
        %v4252 = vunpack.c.l.b16 %v4220
        %v4253 = vunpack.c.l.b16 %v4221
        %v4254 = vunpack.c.l.b16 %v4222
        %v4255 = vunpack.c.l.b16 %v4223
        %v4256 = vunpack.c.l.b16 %v4224
        %v4257 = vunpack.c.l.b16 %v4225
        %v4258 = vunpack.c.l.b16 %v4226
        %v4259 = vunpack.c.l.b16 %v4227
        %v4260 = vunpack.c.l.b16 %v4228
        %v4261 = vunpack.c.l.b16 %v4229
        %v4262 = vunpack.c.l.b16 %v4230
        %v4263 = vunpack.c.l.b16 %v4231
        %v4264 = vunpack.c.l.b16 %v4232
        %v4265 = vunpack.c.l.b16 %v4233
        %v4266 = vunpack.c.l.b16 %v4234
        %v4267 = vpack.c.b16 %v4252, %v4251
        %v4268 = vpack.c.b16 %v4254, %v4253
        %v4269 = vpack.c.b16 %v4256, %v4255
        %v4270 = vpack.c.b16 %v4258, %v4257
        %v4271 = vpack.c.b16 %v4260, %v4259
        %v4272 = vpack.c.b16 %v4262, %v4261
        %v4273 = vpack.c.b16 %v4264, %v4263
        %v4274 = vpack.c.b16 %v4266, %v4265
        %4283 = vmatprep.subr.bf16.mxu0 0
        %4284 = vmatpush1.bf16.msra.mxu0 %v4267
        %4285 = vmatprep.subr.bf16.mxu0 0
        %4286 = vmatpush1.bf16.msra.mxu0 %v4268
        %4287 = vmatprep.subr.bf16.mxu0 0
        %4288 = vmatpush1.bf16.msra.mxu0 %v4269
        %4289 = vmatprep.subr.bf16.mxu0 0
        %4290 = vmatpush1.bf16.msra.mxu0 %v4270
        %4291 = vmatprep.subr.bf16.mxu0 0
        %4292 = vmatpush1.bf16.msra.mxu0 %v4271
        %4293 = vmatprep.subr.bf16.mxu0 0
        %4294 = vmatpush1.bf16.msra.mxu0 %v4272
        %4295 = vmatprep.subr.bf16.mxu0 0
        %4296 = vmatpush1.bf16.msra.mxu0 %v4273
        %4297 = vmatprep.subr.bf16.mxu0 0
        %4298 = vmatpush1.bf16.msra.mxu0 %v4274
        %4299 = vmatprep.subr.bf16.mxu0 0
        %4300 = vmatpush1.bf16.msra.mxu0 0
        %4301 = vmatprep.subr.bf16.mxu0 0
        %4302 = vmatpush1.bf16.msra.mxu0 0
        %4303 = vmatprep.subr.bf16.mxu0 0
        %4304 = vmatpush1.bf16.msra.mxu0 0
        %4305 = vmatprep.subr.bf16.mxu0 0
        %4306 = vmatpush1.bf16.msra.mxu0 0
        %4307 = vmatprep.subr.bf16.mxu0 0
        %4308 = vmatpush1.bf16.msra.mxu0 0
        %4309 = vmatprep.subr.bf16.mxu0 0
        %4310 = vmatpush1.bf16.msra.mxu0 0
        %4311 = vmatprep.subr.bf16.mxu0 0
        %4312 = vmatpush1.bf16.msra.mxu0 0
        %4313 = vmatprep.subr.bf16.mxu0 0
        %4314 = vmatpush1.bf16.msra.mxu0 0
        %4315 = vmatprep.mubr.bf16.mxu0 0
        %4316 = vmatmul.mubr.bf16.gmra.mrb[0].mxu0 %v4185
        %v4317 = vpop.f32.mrb[0].mxu0
        %v4318 = vadd.f32 0.0, %v4317
        %v4319 = vpop.f32.mrb[0].mxu0
        %v4320 = vpop.f32.mrb[0].mxu0
        %v4321 = vadd.f32 0.0, %v4320
        %v4322 = vpop.f32.mrb[0].mxu0
        %4323 = vmatprep.mubr.bf16.mxu0 0
        %4324 = vmatmul.mubr.bf16.gmra.mrb[0].mxu0 %v4186
        %v4325 = vpop.f32.mrb[0].mxu0
        %v4326 = vadd.f32 0.0, %v4325
        %v4327 = vpop.f32.mrb[0].mxu0
        %v4328 = vpop.f32.mrb[0].mxu0
        %v4329 = vadd.f32 0.0, %v4328
        %v4330 = vpop.f32.mrb[0].mxu0
        %4331 = vmatprep.mubr.bf16.mxu0 0
        %4332 = vmatmul.mubr.bf16.gmra.mrb[0].mxu0 %v4187
        %v4333 = vpop.f32.mrb[0].mxu0
        %v4334 = vadd.f32 0.0, %v4333
        %v4335 = vpop.f32.mrb[0].mxu0
        %v4336 = vpop.f32.mrb[0].mxu0
        %v4337 = vadd.f32 0.0, %v4336
        %v4338 = vpop.f32.mrb[0].mxu0
        %4339 = vmatprep.mubr.bf16.mxu0 0
        %4340 = vmatmul.mubr.bf16.gmra.mrb[0].mxu0 %v4188
        %v4341 = vpop.f32.mrb[0].mxu0
        %v4342 = vadd.f32 0.0, %v4341
        %v4343 = vpop.f32.mrb[0].mxu0
        %v4344 = vpop.f32.mrb[0].mxu0
        %v4345 = vadd.f32 0.0, %v4344
        %v4346 = vpop.f32.mrb[0].mxu0
        %4347 = vmatprep.mubr.bf16.mxu0 0
        %4348 = vmatmul.mubr.bf16.gmra.mrb[0].mxu0 %v4189
        %v4349 = vpop.f32.mrb[0].mxu0
        %v4350 = vadd.f32 0.0, %v4349
        %v4351 = vpop.f32.mrb[0].mxu0
        %v4352 = vpop.f32.mrb[0].mxu0
        %v4353 = vadd.f32 0.0, %v4352
        %v4354 = vpop.f32.mrb[0].mxu0
        %4355 = vmatprep.mubr.bf16.mxu0 0
        %4356 = vmatmul.mubr.bf16.gmra.mrb[0].mxu0 %v4190
        %v4357 = vpop.f32.mrb[0].mxu0
        %v4358 = vadd.f32 0.0, %v4357
        %v4359 = vpop.f32.mrb[0].mxu0
        %v4360 = vpop.f32.mrb[0].mxu0
        %v4361 = vadd.f32 0.0, %v4360
        %v4362 = vpop.f32.mrb[0].mxu0
        %4363 = vmatprep.mubr.bf16.mxu0 0
        %4364 = vmatmul.mubr.bf16.gmra.mrb[0].mxu0 %v4191
        %v4365 = vpop.f32.mrb[0].mxu0
        %v4366 = vadd.f32 0.0, %v4365
        %v4367 = vpop.f32.mrb[0].mxu0
        %v4368 = vpop.f32.mrb[0].mxu0
        %v4369 = vadd.f32 0.0, %v4368
        %v4370 = vpop.f32.mrb[0].mxu0
        %4371 = vmatprep.mubr.bf16.mxu0 0
        %4372 = vmatmul.mubr.bf16.gmra.mrb[0].mxu0 %v4192
        %v4373 = vpop.f32.mrb[0].mxu0
        %v4374 = vadd.f32 0.0, %v4373
        %v4375 = vpop.f32.mrb[0].mxu0
        %v4376 = vpop.f32.mrb[0].mxu0
        %v4377 = vadd.f32 0.0, %v4376
        %v4378 = vpop.f32.mrb[0].mxu0
        %4379 = vmatprep.mubr.bf16.mxu0 0
        %4380 = vmatmul.mubr.bf16.gmra.mrb[0].mxu0 %v4193
        %v4381 = vpop.f32.mrb[0].mxu0
        %v4382 = vadd.f32 0.0, %v4381
        %v4383 = vpop.f32.mrb[0].mxu0
        %v4384 = vpop.f32.mrb[0].mxu0
        %v4385 = vadd.f32 0.0, %v4384
        %v4386 = vpop.f32.mrb[0].mxu0
        %4387 = vmatprep.mubr.bf16.mxu0 0
        %4388 = vmatmul.mubr.bf16.gmra.mrb[0].mxu0 %v4194
        %v4389 = vpop.f32.mrb[0].mxu0
        %v4390 = vadd.f32 0.0, %v4389
        %v4391 = vpop.f32.mrb[0].mxu0
        %v4392 = vpop.f32.mrb[0].mxu0
        %v4393 = vadd.f32 0.0, %v4392
        %v4394 = vpop.f32.mrb[0].mxu0
        %4395 = vmatprep.mubr.bf16.mxu0 0
        %4396 = vmatmul.mubr.bf16.gmra.mrb[0].mxu0 %v4195
        %v4397 = vpop.f32.mrb[0].mxu0
        %v4398 = vadd.f32 0.0, %v4397
        %v4399 = vpop.f32.mrb[0].mxu0
        %v4400 = vpop.f32.mrb[0].mxu0
        %v4401 = vadd.f32 0.0, %v4400
        %v4402 = vpop.f32.mrb[0].mxu0
        %4403 = vmatprep.mubr.bf16.mxu0 0
        %4404 = vmatmul.mubr.bf16.gmra.mrb[0].mxu0 %v4196
        %v4405 = vpop.f32.mrb[0].mxu0
        %v4406 = vadd.f32 0.0, %v4405
        %v4407 = vpop.f32.mrb[0].mxu0
        %v4408 = vpop.f32.mrb[0].mxu0
        %v4409 = vadd.f32 0.0, %v4408
        %v4410 = vpop.f32.mrb[0].mxu0
        %4411 = vmatprep.mubr.bf16.mxu0 0
        %4412 = vmatmul.mubr.bf16.gmra.mrb[0].mxu0 %v4197
        %v4413 = vpop.f32.mrb[0].mxu0
        %v4414 = vadd.f32 0.0, %v4413
        %v4415 = vpop.f32.mrb[0].mxu0
        %v4416 = vpop.f32.mrb[0].mxu0
        %v4417 = vadd.f32 0.0, %v4416
        %v4418 = vpop.f32.mrb[0].mxu0
        %4419 = vmatprep.mubr.bf16.mxu0 0
        %4420 = vmatmul.mubr.bf16.gmra.mrb[0].mxu0 %v4198
        %v4421 = vpop.f32.mrb[0].mxu0
        %v4422 = vadd.f32 0.0, %v4421
        %v4423 = vpop.f32.mrb[0].mxu0
        %v4424 = vpop.f32.mrb[0].mxu0
        %v4425 = vadd.f32 0.0, %v4424
        %v4426 = vpop.f32.mrb[0].mxu0
        %4427 = vmatprep.mubr.bf16.mxu0 0
        %4428 = vmatmul.mubr.bf16.gmra.mrb[0].mxu0 %v4199
        %v4429 = vpop.f32.mrb[0].mxu0
        %v4430 = vadd.f32 0.0, %v4429
        %v4431 = vpop.f32.mrb[0].mxu0
        %v4432 = vpop.f32.mrb[0].mxu0
        %v4433 = vadd.f32 0.0, %v4432
        %v4434 = vpop.f32.mrb[0].mxu0
        %4435 = vmatprep.mubr.bf16.mxu0 0
        %4436 = vmatmul.mubr.bf16.gmra.mrb[0].mxu0 %v4200
        %v4437 = vpop.f32.mrb[0].mxu0
        %v4438 = vadd.f32 0.0, %v4437
        %v4439 = vpop.f32.mrb[0].mxu0
        %v4440 = vpop.f32.mrb[0].mxu0
        %v4441 = vadd.f32 0.0, %v4440
        %v4442 = vpop.f32.mrb[0].mxu0
        %4443 = vdwg.mxu0
        %v4460 = vunpack.c.l.b16 %v4202
        %v4461 = vunpack.c.l.b16 %v4203
        %v4462 = vunpack.c.l.b16 %v4204
        %v4463 = vunpack.c.l.b16 %v4205
        %v4464 = vunpack.c.l.b16 %v4206
        %v4465 = vunpack.c.l.b16 %v4207
        %v4466 = vunpack.c.l.b16 %v4208
        %v4467 = vunpack.c.l.b16 %v4209
        %v4468 = vunpack.c.l.b16 %v4210
        %v4469 = vunpack.c.l.b16 %v4211
        %v4470 = vunpack.c.l.b16 %v4212
        %v4471 = vunpack.c.l.b16 %v4213
        %v4472 = vunpack.c.l.b16 %v4214
        %v4473 = vunpack.c.l.b16 %v4215
        %v4474 = vunpack.c.l.b16 %v4216
        %v4475 = vunpack.c.l.b16 %v4217
        %v4476 = vpack.c.b16 %v4461, %v4460
        %v4477 = vpack.c.b16 %v4463, %v4462
        %v4478 = vpack.c.b16 %v4465, %v4464
        %v4479 = vpack.c.b16 %v4467, %v4466
        %v4480 = vpack.c.b16 %v4469, %v4468
        %v4481 = vpack.c.b16 %v4471, %v4470
        %v4482 = vpack.c.b16 %v4473, %v4472
        %v4483 = vpack.c.b16 %v4475, %v4474
        %4492 = vmatprep.subr.bf16.mxu0 0
        %4493 = vmatpush1.bf16.msra.mxu0 %v4476
        %4494 = vmatprep.subr.bf16.mxu0 0
        %4495 = vmatpush1.bf16.msra.mxu0 %v4477
        %4496 = vmatprep.subr.bf16.mxu0 0
        %4497 = vmatpush1.bf16.msra.mxu0 %v4478
        %4498 = vmatprep.subr.bf16.mxu0 0
        %4499 = vmatpush1.bf16.msra.mxu0 %v4479
        %4500 = vmatprep.subr.bf16.mxu0 0
        %4501 = vmatpush1.bf16.msra.mxu0 %v4480
        %4502 = vmatprep.subr.bf16.mxu0 0
        %4503 = vmatpush1.bf16.msra.mxu0 %v4481
        %4504 = vmatprep.subr.bf16.mxu0 0
        %4505 = vmatpush1.bf16.msra.mxu0 %v4482
        %4506 = vmatprep.subr.bf16.mxu0 0
        %4507 = vmatpush1.bf16.msra.mxu0 %v4483
        %4508 = vmatprep.subr.bf16.mxu0 0
        %4509 = vmatpush1.bf16.msra.mxu0 0
        %4510 = vmatprep.subr.bf16.mxu0 0
        %4511 = vmatpush1.bf16.msra.mxu0 0
        %4512 = vmatprep.subr.bf16.mxu0 0
        %4513 = vmatpush1.bf16.msra.mxu0 0
        %4514 = vmatprep.subr.bf16.mxu0 0
        %4515 = vmatpush1.bf16.msra.mxu0 0
        %4516 = vmatprep.subr.bf16.mxu0 0
        %4517 = vmatpush1.bf16.msra.mxu0 0
        %4518 = vmatprep.subr.bf16.mxu0 0
        %4519 = vmatpush1.bf16.msra.mxu0 0
        %4520 = vmatprep.subr.bf16.mxu0 0
        %4521 = vmatpush1.bf16.msra.mxu0 0
        %4522 = vmatprep.subr.bf16.mxu0 0
        %4523 = vmatpush1.bf16.msra.mxu0 0
        %4524 = vmatprep.mubr.bf16.mxu0 0
        %4525 = vmatmul.mubr.bf16.gmra.mrb[0].mxu0 %v4184
        %v4526 = vpop.f32.mrb[0].mxu0
        %v4527 = vadd.f32 %v4318, %v4526
        %v4528 = vpop.f32.mrb[0].mxu0
        %v4529 = vpop.f32.mrb[0].mxu0
        %v4530 = vadd.f32 %v4321, %v4529
        %v4531 = vpop.f32.mrb[0].mxu0
        %4532 = vmatprep.mubr.bf16.mxu0 0
        %4533 = vmatmul.mubr.bf16.gmra.mrb[0].mxu0 %v4185
        %v4534 = vpop.f32.mrb[0].mxu0
        %v4535 = vadd.f32 %v4326, %v4534
        %v4536 = vpop.f32.mrb[0].mxu0
        %v4537 = vpop.f32.mrb[0].mxu0
        %v4538 = vadd.f32 %v4329, %v4537
        %v4539 = vpop.f32.mrb[0].mxu0
        %4540 = vmatprep.mubr.bf16.mxu0 0
        %4541 = vmatmul.mubr.bf16.gmra.mrb[0].mxu0 %v4186
        %v4542 = vpop.f32.mrb[0].mxu0
        %v4543 = vadd.f32 %v4334, %v4542
        %v4544 = vpop.f32.mrb[0].mxu0
        %v4545 = vpop.f32.mrb[0].mxu0
        %v4546 = vadd.f32 %v4337, %v4545
        %v4547 = vpop.f32.mrb[0].mxu0
        %4548 = vmatprep.mubr.bf16.mxu0 0
        %4549 = vmatmul.mubr.bf16.gmra.mrb[0].mxu0 %v4187
        %v4550 = vpop.f32.mrb[0].mxu0
        %v4551 = vadd.f32 %v4342, %v4550
        %v4552 = vpop.f32.mrb[0].mxu0
        %v4553 = vpop.f32.mrb[0].mxu0
        %v4554 = vadd.f32 %v4345, %v4553
        %v4555 = vpop.f32.mrb[0].mxu0
        %4556 = vmatprep.mubr.bf16.mxu0 0
        %4557 = vmatmul.mubr.bf16.gmra.mrb[0].mxu0 %v4188
        %v4558 = vpop.f32.mrb[0].mxu0
        %v4559 = vadd.f32 %v4350, %v4558
        %v4560 = vpop.f32.mrb[0].mxu0
        %v4561 = vpop.f32.mrb[0].mxu0
        %v4562 = vadd.f32 %v4353, %v4561
        %v4563 = vpop.f32.mrb[0].mxu0
        %4564 = vmatprep.mubr.bf16.mxu0 0
        %4565 = vmatmul.mubr.bf16.gmra.mrb[0].mxu0 %v4189
        %v4566 = vpop.f32.mrb[0].mxu0
        %v4567 = vadd.f32 %v4358, %v4566
        %v4568 = vpop.f32.mrb[0].mxu0
        %v4569 = vpop.f32.mrb[0].mxu0
        %v4570 = vadd.f32 %v4361, %v4569
        %v4571 = vpop.f32.mrb[0].mxu0
        %4572 = vmatprep.mubr.bf16.mxu0 0
        %4573 = vmatmul.mubr.bf16.gmra.mrb[0].mxu0 %v4190
        %v4574 = vpop.f32.mrb[0].mxu0
        %v4575 = vadd.f32 %v4366, %v4574
        %v4576 = vpop.f32.mrb[0].mxu0
        %v4577 = vpop.f32.mrb[0].mxu0
        %v4578 = vadd.f32 %v4369, %v4577
        %v4579 = vpop.f32.mrb[0].mxu0
        %4580 = vmatprep.mubr.bf16.mxu0 0
        %4581 = vmatmul.mubr.bf16.gmra.mrb[0].mxu0 %v4191
        %v4582 = vpop.f32.mrb[0].mxu0
        %v4583 = vadd.f32 %v4374, %v4582
        %v4584 = vpop.f32.mrb[0].mxu0
        %v4585 = vpop.f32.mrb[0].mxu0
        %v4586 = vadd.f32 %v4377, %v4585
        %v4587 = vpop.f32.mrb[0].mxu0
        %4588 = vmatprep.mubr.bf16.mxu0 0
        %4589 = vmatmul.mubr.bf16.gmra.mrb[0].mxu0 %v4192
        %v4590 = vpop.f32.mrb[0].mxu0
        %v4591 = vadd.f32 %v4382, %v4590
        %v4592 = vpop.f32.mrb[0].mxu0
        %v4593 = vpop.f32.mrb[0].mxu0
        %v4594 = vadd.f32 %v4385, %v4593
        %v4595 = vpop.f32.mrb[0].mxu0
        %4596 = vmatprep.mubr.bf16.mxu0 0
        %4597 = vmatmul.mubr.bf16.gmra.mrb[0].mxu0 %v4193
        %v4598 = vpop.f32.mrb[0].mxu0
        %v4599 = vadd.f32 %v4390, %v4598
        %v4600 = vpop.f32.mrb[0].mxu0
        %v4601 = vpop.f32.mrb[0].mxu0
        %v4602 = vadd.f32 %v4393, %v4601
        %v4603 = vpop.f32.mrb[0].mxu0
        %4604 = vmatprep.mubr.bf16.mxu0 0
        %4605 = vmatmul.mubr.bf16.gmra.mrb[0].mxu0 %v4194
        %v4606 = vpop.f32.mrb[0].mxu0
        %v4607 = vadd.f32 %v4398, %v4606
        %v4608 = vpop.f32.mrb[0].mxu0
        %v4609 = vpop.f32.mrb[0].mxu0
        %v4610 = vadd.f32 %v4401, %v4609
        %v4611 = vpop.f32.mrb[0].mxu0
        %4612 = vmatprep.mubr.bf16.mxu0 0
        %4613 = vmatmul.mubr.bf16.gmra.mrb[0].mxu0 %v4195
        %v4614 = vpop.f32.mrb[0].mxu0
        %v4615 = vadd.f32 %v4406, %v4614
        %v4616 = vpop.f32.mrb[0].mxu0
        %v4617 = vpop.f32.mrb[0].mxu0
        %v4618 = vadd.f32 %v4409, %v4617
        %v4619 = vpop.f32.mrb[0].mxu0
        %4620 = vmatprep.mubr.bf16.mxu0 0
        %4621 = vmatmul.mubr.bf16.gmra.mrb[0].mxu0 %v4196
        %v4622 = vpop.f32.mrb[0].mxu0
        %v4623 = vadd.f32 %v4414, %v4622
        %v4624 = vpop.f32.mrb[0].mxu0
        %v4625 = vpop.f32.mrb[0].mxu0
        %v4626 = vadd.f32 %v4417, %v4625
        %v4627 = vpop.f32.mrb[0].mxu0
        %4628 = vmatprep.mubr.bf16.mxu0 0
        %4629 = vmatmul.mubr.bf16.gmra.mrb[0].mxu0 %v4197
        %v4630 = vpop.f32.mrb[0].mxu0
        %v4631 = vadd.f32 %v4422, %v4630
        %v4632 = vpop.f32.mrb[0].mxu0
        %v4633 = vpop.f32.mrb[0].mxu0
        %v4634 = vadd.f32 %v4425, %v4633
        %v4635 = vpop.f32.mrb[0].mxu0
        %4636 = vmatprep.mubr.bf16.mxu0 0
        %4637 = vmatmul.mubr.bf16.gmra.mrb[0].mxu0 %v4198
        %v4638 = vpop.f32.mrb[0].mxu0
        %v4639 = vadd.f32 %v4430, %v4638
        %v4640 = vpop.f32.mrb[0].mxu0
        %v4641 = vpop.f32.mrb[0].mxu0
        %v4642 = vadd.f32 %v4433, %v4641
        %v4643 = vpop.f32.mrb[0].mxu0
        %4644 = vmatprep.mubr.bf16.mxu0 0
        %4645 = vmatmul.mubr.bf16.gmra.mrb[0].mxu0 %v4199
        %v4646 = vpop.f32.mrb[0].mxu0
        %v4647 = vadd.f32 %v4438, %v4646
        %v4648 = vpop.f32.mrb[0].mxu0
        %v4649 = vpop.f32.mrb[0].mxu0
        %v4650 = vadd.f32 %v4441, %v4649
        %v4651 = vpop.f32.mrb[0].mxu0
        %4652 = vdwg.mxu0
        %s4653 = scalar_lea.vmem [#allocation8], 384
        %v4654 = vld [vmem:[%s4653] sm:$0xf]
        %v4655 = vld [vmem:[%s4653 + $0x4] sm:$0xf]
        %v4656 = vld [vmem:[%s4653 + $0x8] sm:$0xf]
        %v4657 = vld [vmem:[%s4653 + $0xc] sm:$0xf]
        %v4658 = vld [vmem:[%s4653 + $0x10] sm:$0xf]
        %v4659 = vld [vmem:[%s4653 + $0x14] sm:$0xf]
        %v4660 = vld [vmem:[%s4653 + $0x18] sm:$0xf]
        %v4661 = vld [vmem:[%s4653 + $0x1c] sm:$0xf]
        %v4662 = vld [vmem:[%s4653 + $0x20] sm:$0xf]
        %v4663 = vld [vmem:[%s4653 + $0x24] sm:$0xf]
        %v4664 = vld [vmem:[%s4653 + $0x28] sm:$0xf]
        %v4665 = vld [vmem:[%s4653 + $0x2c] sm:$0xf]
        %v4666 = vld [vmem:[%s4653 + $0x30] sm:$0xf]
        %v4667 = vld [vmem:[%s4653 + $0x34] sm:$0xf]
        %v4668 = vld [vmem:[%s4653 + $0x38] sm:$0xf]
        %v4669 = vld [vmem:[%s4653 + $0x3c] sm:$0xf]
        %v4686 = vunpack.c.l.b16 %v4654
        %v4687 = vunpack.c.l.b16 %v4655
        %v4688 = vunpack.c.l.b16 %v4656
        %v4689 = vunpack.c.l.b16 %v4657
        %v4690 = vunpack.c.l.b16 %v4658
        %v4691 = vunpack.c.l.b16 %v4659
        %v4692 = vunpack.c.l.b16 %v4660
        %v4693 = vunpack.c.l.b16 %v4661
        %v4694 = vunpack.c.l.b16 %v4662
        %v4695 = vunpack.c.l.b16 %v4663
        %v4696 = vunpack.c.l.b16 %v4664
        %v4697 = vunpack.c.l.b16 %v4665
        %v4698 = vunpack.c.l.b16 %v4666
        %v4699 = vunpack.c.l.b16 %v4667
        %v4700 = vunpack.c.l.b16 %v4668
        %v4701 = vunpack.c.l.b16 %v4669
        %v4702 = vpack.c.b16 %v4687, %v4686
        %v4703 = vpack.c.b16 %v4689, %v4688
        %v4704 = vpack.c.b16 %v4691, %v4690
        %v4705 = vpack.c.b16 %v4693, %v4692
        %v4706 = vpack.c.b16 %v4695, %v4694
        %v4707 = vpack.c.b16 %v4697, %v4696
        %v4708 = vpack.c.b16 %v4699, %v4698
        %v4709 = vpack.c.b16 %v4701, %v4700
        %4718 = vmatprep.subr.bf16.mxu0 0
        %4719 = vmatpush1.bf16.msra.mxu0 %v4702
        %4720 = vmatprep.subr.bf16.mxu0 0
        %4721 = vmatpush1.bf16.msra.mxu0 %v4703
        %4722 = vmatprep.subr.bf16.mxu0 0
        %4723 = vmatpush1.bf16.msra.mxu0 %v4704
        %4724 = vmatprep.subr.bf16.mxu0 0
        %4725 = vmatpush1.bf16.msra.mxu0 %v4705
        %4726 = vmatprep.subr.bf16.mxu0 0
        %4727 = vmatpush1.bf16.msra.mxu0 %v4706
        %4728 = vmatprep.subr.bf16.mxu0 0
        %4729 = vmatpush1.bf16.msra.mxu0 %v4707
        %4730 = vmatprep.subr.bf16.mxu0 0
        %4731 = vmatpush1.bf16.msra.mxu0 %v4708
        %4732 = vmatprep.subr.bf16.mxu0 0
        %4733 = vmatpush1.bf16.msra.mxu0 %v4709
        %4734 = vmatprep.subr.bf16.mxu0 0
        %4735 = vmatpush1.bf16.msra.mxu0 0
        %4736 = vmatprep.subr.bf16.mxu0 0
        %4737 = vmatpush1.bf16.msra.mxu0 0
        %4738 = vmatprep.subr.bf16.mxu0 0
        %4739 = vmatpush1.bf16.msra.mxu0 0
        %4740 = vmatprep.subr.bf16.mxu0 0
        %4741 = vmatpush1.bf16.msra.mxu0 0
        %4742 = vmatprep.subr.bf16.mxu0 0
        %4743 = vmatpush1.bf16.msra.mxu0 0
        %4744 = vmatprep.subr.bf16.mxu0 0
        %4745 = vmatpush1.bf16.msra.mxu0 0
        %4746 = vmatprep.subr.bf16.mxu0 0
        %4747 = vmatpush1.bf16.msra.mxu0 0
        %4748 = vmatprep.subr.bf16.mxu0 0
        %4749 = vmatpush1.bf16.msra.mxu0 0
        %4750 = vmatprep.mubr.bf16.mxu0 0
        %4751 = vmatmul.mubr.bf16.gmra.mrb[0].mxu0 %v4186
        %v4752 = vpop.f32.mrb[0].mxu0
        %v4753 = vadd.f32 0.0, %v4752
        %v4754 = vpop.f32.mrb[0].mxu0
        %v4755 = vpop.f32.mrb[0].mxu0
        %v4756 = vadd.f32 0.0, %v4755
        %v4757 = vpop.f32.mrb[0].mxu0
        %4758 = vmatprep.mubr.bf16.mxu0 0
        %4759 = vmatmul.mubr.bf16.gmra.mrb[0].mxu0 %v4187
        %v4760 = vpop.f32.mrb[0].mxu0
        %v4761 = vadd.f32 0.0, %v4760
        %v4762 = vpop.f32.mrb[0].mxu0
        %v4763 = vpop.f32.mrb[0].mxu0
        %v4764 = vadd.f32 0.0, %v4763
        %v4765 = vpop.f32.mrb[0].mxu0
        %4766 = vmatprep.mubr.bf16.mxu0 0
        %4767 = vmatmul.mubr.bf16.gmra.mrb[0].mxu0 %v4188
        %v4768 = vpop.f32.mrb[0].mxu0
        %v4769 = vadd.f32 0.0, %v4768
        %v4770 = vpop.f32.mrb[0].mxu0
        %v4771 = vpop.f32.mrb[0].mxu0
        %v4772 = vadd.f32 0.0, %v4771
        %v4773 = vpop.f32.mrb[0].mxu0
        %4774 = vmatprep.mubr.bf16.mxu0 0
        %4775 = vmatmul.mubr.bf16.gmra.mrb[0].mxu0 %v4189
        %v4776 = vpop.f32.mrb[0].mxu0
        %v4777 = vadd.f32 0.0, %v4776
        %v4778 = vpop.f32.mrb[0].mxu0
        %v4779 = vpop.f32.mrb[0].mxu0
        %v4780 = vadd.f32 0.0, %v4779
        %v4781 = vpop.f32.mrb[0].mxu0
        %4782 = vmatprep.mubr.bf16.mxu0 0
        %4783 = vmatmul.mubr.bf16.gmra.mrb[0].mxu0 %v4190
        %v4784 = vpop.f32.mrb[0].mxu0
        %v4785 = vadd.f32 0.0, %v4784
        %v4786 = vpop.f32.mrb[0].mxu0
        %v4787 = vpop.f32.mrb[0].mxu0
        %v4788 = vadd.f32 0.0, %v4787
        %v4789 = vpop.f32.mrb[0].mxu0
        %4790 = vmatprep.mubr.bf16.mxu0 0
        %4791 = vmatmul.mubr.bf16.gmra.mrb[0].mxu0 %v4191
        %v4792 = vpop.f32.mrb[0].mxu0
        %v4793 = vadd.f32 0.0, %v4792
        %v4794 = vpop.f32.mrb[0].mxu0
        %v4795 = vpop.f32.mrb[0].mxu0
        %v4796 = vadd.f32 0.0, %v4795
        %v4797 = vpop.f32.mrb[0].mxu0
        %4798 = vmatprep.mubr.bf16.mxu0 0
        %4799 = vmatmul.mubr.bf16.gmra.mrb[0].mxu0 %v4192
        %v4800 = vpop.f32.mrb[0].mxu0
        %v4801 = vadd.f32 0.0, %v4800
        %v4802 = vpop.f32.mrb[0].mxu0
        %v4803 = vpop.f32.mrb[0].mxu0
        %v4804 = vadd.f32 0.0, %v4803
        %v4805 = vpop.f32.mrb[0].mxu0
        %4806 = vmatprep.mubr.bf16.mxu0 0
        %4807 = vmatmul.mubr.bf16.gmra.mrb[0].mxu0 %v4193
        %v4808 = vpop.f32.mrb[0].mxu0
        %v4809 = vadd.f32 0.0, %v4808
        %v4810 = vpop.f32.mrb[0].mxu0
        %v4811 = vpop.f32.mrb[0].mxu0
        %v4812 = vadd.f32 0.0, %v4811
        %v4813 = vpop.f32.mrb[0].mxu0
        %4814 = vmatprep.mubr.bf16.mxu0 0
        %4815 = vmatmul.mubr.bf16.gmra.mrb[0].mxu0 %v4194
        %v4816 = vpop.f32.mrb[0].mxu0
        %v4817 = vadd.f32 0.0, %v4816
        %v4818 = vpop.f32.mrb[0].mxu0
        %v4819 = vpop.f32.mrb[0].mxu0
        %v4820 = vadd.f32 0.0, %v4819
        %v4821 = vpop.f32.mrb[0].mxu0
        %4822 = vmatprep.mubr.bf16.mxu0 0
        %4823 = vmatmul.mubr.bf16.gmra.mrb[0].mxu0 %v4195
        %v4824 = vpop.f32.mrb[0].mxu0
        %v4825 = vadd.f32 0.0, %v4824
        %v4826 = vpop.f32.mrb[0].mxu0
        %v4827 = vpop.f32.mrb[0].mxu0
        %v4828 = vadd.f32 0.0, %v4827
        %v4829 = vpop.f32.mrb[0].mxu0
        %4830 = vmatprep.mubr.bf16.mxu0 0
        %4831 = vmatmul.mubr.bf16.gmra.mrb[0].mxu0 %v4196
        %v4832 = vpop.f32.mrb[0].mxu0
        %v4833 = vadd.f32 0.0, %v4832
        %v4834 = vpop.f32.mrb[0].mxu0
        %v4835 = vpop.f32.mrb[0].mxu0
        %v4836 = vadd.f32 0.0, %v4835
        %v4837 = vpop.f32.mrb[0].mxu0
        %4838 = vmatprep.mubr.bf16.mxu0 0
        %4839 = vmatmul.mubr.bf16.gmra.mrb[0].mxu0 %v4197
        %v4840 = vpop.f32.mrb[0].mxu0
        %v4841 = vadd.f32 0.0, %v4840
        %v4842 = vpop.f32.mrb[0].mxu0
        %v4843 = vpop.f32.mrb[0].mxu0
        %v4844 = vadd.f32 0.0, %v4843
        %v4845 = vpop.f32.mrb[0].mxu0
        %4846 = vmatprep.mubr.bf16.mxu0 0
        %4847 = vmatmul.mubr.bf16.gmra.mrb[0].mxu0 %v4198
        %v4848 = vpop.f32.mrb[0].mxu0
        %v4849 = vadd.f32 0.0, %v4848
        %v4850 = vpop.f32.mrb[0].mxu0
        %v4851 = vpop.f32.mrb[0].mxu0
        %v4852 = vadd.f32 0.0, %v4851
        %v4853 = vpop.f32.mrb[0].mxu0
        %4854 = vmatprep.mubr.bf16.mxu0 0
        %4855 = vmatmul.mubr.bf16.gmra.mrb[0].mxu0 %v4199
        %v4856 = vpop.f32.mrb[0].mxu0
        %v4857 = vadd.f32 0.0, %v4856
        %v4858 = vpop.f32.mrb[0].mxu0
        %v4859 = vpop.f32.mrb[0].mxu0
        %v4860 = vadd.f32 0.0, %v4859
        %v4861 = vpop.f32.mrb[0].mxu0
        %4862 = vmatprep.mubr.bf16.mxu0 0
        %4863 = vmatmul.mubr.bf16.gmra.mrb[0].mxu0 %v4200
        %v4864 = vpop.f32.mrb[0].mxu0
        %v4865 = vadd.f32 0.0, %v4864
        %v4866 = vpop.f32.mrb[0].mxu0
        %v4867 = vpop.f32.mrb[0].mxu0
        %v4868 = vadd.f32 0.0, %v4867
        %v4869 = vpop.f32.mrb[0].mxu0
        %4870 = vmatprep.mubr.bf16.mxu0 0
        %4871 = vmatmul.mubr.bf16.gmra.mrb[0].mxu0 %v4201
        %v4872 = vpop.f32.mrb[0].mxu0
        %v4873 = vadd.f32 0.0, %v4872
        %v4874 = vpop.f32.mrb[0].mxu0
        %v4875 = vpop.f32.mrb[0].mxu0
        %v4876 = vadd.f32 0.0, %v4875
        %v4877 = vpop.f32.mrb[0].mxu0
        %4878 = vdwg.mxu0
        %v4879 = vadd.f32 %v4527, %v4753
        %v4880 = vadd.f32 %v4530, %v4756
        %v4881 = vadd.f32 %v4535, %v4761
        %v4882 = vadd.f32 %v4538, %v4764
        %v4883 = vadd.f32 %v4543, %v4769
        %v4884 = vadd.f32 %v4546, %v4772
        %v4885 = vadd.f32 %v4551, %v4777
        %v4886 = vadd.f32 %v4554, %v4780
        %v4887 = vadd.f32 %v4559, %v4785
        %v4888 = vadd.f32 %v4562, %v4788
        %v4889 = vadd.f32 %v4567, %v4793
        %v4890 = vadd.f32 %v4570, %v4796
        %v4891 = vadd.f32 %v4575, %v4801
        %v4892 = vadd.f32 %v4578, %v4804
        %v4893 = vadd.f32 %v4583, %v4809
        %v4894 = vadd.f32 %v4586, %v4812
        %v4895 = vadd.f32 %v4591, %v4817
        %v4896 = vadd.f32 %v4594, %v4820
        %v4897 = vadd.f32 %v4599, %v4825
        %v4898 = vadd.f32 %v4602, %v4828
        %v4899 = vadd.f32 %v4607, %v4833
        %v4900 = vadd.f32 %v4610, %v4836
        %v4901 = vadd.f32 %v4615, %v4841
        %v4902 = vadd.f32 %v4618, %v4844
        %v4903 = vadd.f32 %v4623, %v4849
        %v4904 = vadd.f32 %v4626, %v4852
        %v4905 = vadd.f32 %v4631, %v4857
        %v4906 = vadd.f32 %v4634, %v4860
        %v4907 = vadd.f32 %v4639, %v4865
        %v4908 = vadd.f32 %v4642, %v4868
        %v4909 = vadd.f32 %v4647, %v4873
        %v4910 = vadd.f32 %v4650, %v4876
        %v4911 = vld [vmem:[#allocation2] sm:$0xff]
        %v4912 = vld [vmem:[#allocation2 + $0x8] sm:$0x1]
        %v4913 = vld [vmem:[#allocation2 + $0x10] sm:$0xff]
        %v4914 = vld [vmem:[#allocation2 + $0x18] sm:$0x1]
        %v4915 = vld [vmem:[#allocation2 + $0x20] sm:$0xff]
        %v4916 = vld [vmem:[#allocation2 + $0x28] sm:$0x1]
        %v4917 = vld [vmem:[#allocation2 + $0x30] sm:$0xff]
        %v4918 = vld [vmem:[#allocation2 + $0x38] sm:$0x1]
        %v4919 = vld [vmem:[#allocation2 + $0x40] sm:$0xff]
        %v4920 = vld [vmem:[#allocation2 + $0x48] sm:$0x1]
        %v4921 = vld [vmem:[#allocation2 + $0x50] sm:$0xff]
        %v4922 = vld [vmem:[#allocation2 + $0x58] sm:$0x1]
        %v4923 = vld [vmem:[#allocation2 + $0x60] sm:$0xff]
        %v4924 = vld [vmem:[#allocation2 + $0x68] sm:$0x1]
        %v4925 = vld [vmem:[#allocation2 + $0x70] sm:$0xff]
        %v4926 = vld [vmem:[#allocation2 + $0x78] sm:$0x1]
        %v4927 = vld [vmem:[#allocation2 + $0x80] sm:$0xff]
        %v4928 = vld [vmem:[#allocation2 + $0x88] sm:$0x1]
        %v4929 = vld [vmem:[#allocation2 + $0x90] sm:$0xff]
        %v4930 = vld [vmem:[#allocation2 + $0x98] sm:$0x1]
        %v4931 = vld [vmem:[#allocation2 + $0xa0] sm:$0xff]
        %v4932 = vld [vmem:[#allocation2 + $0xa8] sm:$0x1]
        %v4933 = vld [vmem:[#allocation2 + $0xb0] sm:$0xff]
        %v4934 = vld [vmem:[#allocation2 + $0xb8] sm:$0x1]
        %v4935 = vld [vmem:[#allocation2 + $0xc0] sm:$0xff]
        %v4936 = vld [vmem:[#allocation2 + $0xc8] sm:$0x1]
        %v4937 = vld [vmem:[#allocation2 + $0xd0] sm:$0xff]
        %v4938 = vld [vmem:[#allocation2 + $0xd8] sm:$0x1]
        %v4939 = vld [vmem:[#allocation2 + $0xe0] sm:$0xff]
        %v4940 = vld [vmem:[#allocation2 + $0xe8] sm:$0x1]
        %v4941 = vld [vmem:[#allocation2 + $0xf0] sm:$0xff]
        %v4942 = vld [vmem:[#allocation2 + $0xf8] sm:$0x1]
        %v4943 = vld [vmem:[#allocation2 + $0x100] sm:$0xff]
        %v4944 = vld [vmem:[#allocation2 + $0x108] sm:$0x1]
        %v4945 = vld [vmem:[#allocation2 + $0x110] sm:$0xff]
        %v4946 = vld [vmem:[#allocation2 + $0x118] sm:$0x1]
        %s4947 = scalar_lea.vmem [#allocation8], 64
        %v4948 = vld [vmem:[%s4947] sm:$0xf]
        %v4949 = vld [vmem:[%s4947 + $0x4] sm:$0xf]
        %v4950 = vld [vmem:[%s4947 + $0x8] sm:$0xf]
        %v4951 = vld [vmem:[%s4947 + $0xc] sm:$0xf]
        %v4952 = vld [vmem:[%s4947 + $0x10] sm:$0xf]
        %v4953 = vld [vmem:[%s4947 + $0x14] sm:$0xf]
        %v4954 = vld [vmem:[%s4947 + $0x18] sm:$0xf]
        %v4955 = vld [vmem:[%s4947 + $0x1c] sm:$0xf]
        %v4956 = vld [vmem:[%s4947 + $0x20] sm:$0xf]
        %v4957 = vld [vmem:[%s4947 + $0x24] sm:$0xf]
        %v4958 = vld [vmem:[%s4947 + $0x28] sm:$0xf]
        %v4959 = vld [vmem:[%s4947 + $0x2c] sm:$0xf]
        %v4960 = vld [vmem:[%s4947 + $0x30] sm:$0xf]
        %v4961 = vld [vmem:[%s4947 + $0x34] sm:$0xf]
        %v4962 = vld [vmem:[%s4947 + $0x38] sm:$0xf]
        %v4963 = vld [vmem:[%s4947 + $0x3c] sm:$0xf]
        %v4965 = vshrl.u32 %v4911, 16
        %v4967 = vshll.u32 %v4911, 16
        %v4969 = vrot.slane %v4967, 1
        %v4970 = vor.u32 %v4965, %v4969
        %v4972 = vshll.u32 %v4912, 16
        %v4974 = vrot.slane %v4972, 1
        %v4975 = vsel %vm1594, %v4970, %v4974
        %v4977 = vshrl.u32 %v4913, 16
        %v4979 = vshll.u32 %v4913, 16
        %v4981 = vrot.slane %v4979, 1
        %v4982 = vor.u32 %v4977, %v4981
        %v4984 = vshll.u32 %v4914, 16
        %v4986 = vrot.slane %v4984, 1
        %v4987 = vsel %vm1594, %v4982, %v4986
        %v4989 = vshrl.u32 %v4915, 16
        %v4991 = vshll.u32 %v4915, 16
        %v4993 = vrot.slane %v4991, 1
        %v4994 = vor.u32 %v4989, %v4993
        %v4996 = vshll.u32 %v4916, 16
        %v4998 = vrot.slane %v4996, 1
        %v4999 = vsel %vm1594, %v4994, %v4998
        %v5001 = vshrl.u32 %v4917, 16
        %v5003 = vshll.u32 %v4917, 16
        %v5005 = vrot.slane %v5003, 1
        %v5006 = vor.u32 %v5001, %v5005
        %v5008 = vshll.u32 %v4918, 16
        %v5010 = vrot.slane %v5008, 1
        %v5011 = vsel %vm1594, %v5006, %v5010
        %v5013 = vshrl.u32 %v4919, 16
        %v5015 = vshll.u32 %v4919, 16
        %v5017 = vrot.slane %v5015, 1
        %v5018 = vor.u32 %v5013, %v5017
        %v5020 = vshll.u32 %v4920, 16
        %v5022 = vrot.slane %v5020, 1
        %v5023 = vsel %vm1594, %v5018, %v5022
        %v5025 = vshrl.u32 %v4921, 16
        %v5027 = vshll.u32 %v4921, 16
        %v5029 = vrot.slane %v5027, 1
        %v5030 = vor.u32 %v5025, %v5029
        %v5032 = vshll.u32 %v4922, 16
        %v5034 = vrot.slane %v5032, 1
        %v5035 = vsel %vm1594, %v5030, %v5034
        %v5037 = vshrl.u32 %v4923, 16
        %v5039 = vshll.u32 %v4923, 16
        %v5041 = vrot.slane %v5039, 1
        %v5042 = vor.u32 %v5037, %v5041
        %v5044 = vshll.u32 %v4924, 16
        %v5046 = vrot.slane %v5044, 1
        %v5047 = vsel %vm1594, %v5042, %v5046
        %v5049 = vshrl.u32 %v4925, 16
        %v5051 = vshll.u32 %v4925, 16
        %v5053 = vrot.slane %v5051, 1
        %v5054 = vor.u32 %v5049, %v5053
        %v5056 = vshll.u32 %v4926, 16
        %v5058 = vrot.slane %v5056, 1
        %v5059 = vsel %vm1594, %v5054, %v5058
        %v5061 = vshrl.u32 %v4927, 16
        %v5063 = vshll.u32 %v4927, 16
        %v5065 = vrot.slane %v5063, 1
        %v5066 = vor.u32 %v5061, %v5065
        %v5068 = vshll.u32 %v4928, 16
        %v5070 = vrot.slane %v5068, 1
        %v5071 = vsel %vm1594, %v5066, %v5070
        %v5073 = vshrl.u32 %v4929, 16
        %v5075 = vshll.u32 %v4929, 16
        %v5077 = vrot.slane %v5075, 1
        %v5078 = vor.u32 %v5073, %v5077
        %v5080 = vshll.u32 %v4930, 16
        %v5082 = vrot.slane %v5080, 1
        %v5083 = vsel %vm1594, %v5078, %v5082
        %v5085 = vshrl.u32 %v4931, 16
        %v5087 = vshll.u32 %v4931, 16
        %v5089 = vrot.slane %v5087, 1
        %v5090 = vor.u32 %v5085, %v5089
        %v5092 = vshll.u32 %v4932, 16
        %v5094 = vrot.slane %v5092, 1
        %v5095 = vsel %vm1594, %v5090, %v5094
        %v5097 = vshrl.u32 %v4933, 16
        %v5099 = vshll.u32 %v4933, 16
        %v5101 = vrot.slane %v5099, 1
        %v5102 = vor.u32 %v5097, %v5101
        %v5104 = vshll.u32 %v4934, 16
        %v5106 = vrot.slane %v5104, 1
        %v5107 = vsel %vm1594, %v5102, %v5106
        %v5109 = vshrl.u32 %v4935, 16
        %v5111 = vshll.u32 %v4935, 16
        %v5113 = vrot.slane %v5111, 1
        %v5114 = vor.u32 %v5109, %v5113
        %v5116 = vshll.u32 %v4936, 16
        %v5118 = vrot.slane %v5116, 1
        %v5119 = vsel %vm1594, %v5114, %v5118
        %v5121 = vshrl.u32 %v4937, 16
        %v5123 = vshll.u32 %v4937, 16
        %v5125 = vrot.slane %v5123, 1
        %v5126 = vor.u32 %v5121, %v5125
        %v5128 = vshll.u32 %v4938, 16
        %v5130 = vrot.slane %v5128, 1
        %v5131 = vsel %vm1594, %v5126, %v5130
        %v5133 = vshrl.u32 %v4939, 16
        %v5135 = vshll.u32 %v4939, 16
        %v5137 = vrot.slane %v5135, 1
        %v5138 = vor.u32 %v5133, %v5137
        %v5140 = vshll.u32 %v4940, 16
        %v5142 = vrot.slane %v5140, 1
        %v5143 = vsel %vm1594, %v5138, %v5142
        %v5145 = vshrl.u32 %v4941, 16
        %v5147 = vshll.u32 %v4941, 16
        %v5149 = vrot.slane %v5147, 1
        %v5150 = vor.u32 %v5145, %v5149
        %v5152 = vshll.u32 %v4942, 16
        %v5154 = vrot.slane %v5152, 1
        %v5155 = vsel %vm1594, %v5150, %v5154
        %v5188 = vunpack.c.l.b16 %v4948
        %v5189 = vunpack.c.l.b16 %v4949
        %v5190 = vunpack.c.l.b16 %v4950
        %v5191 = vunpack.c.l.b16 %v4951
        %v5192 = vunpack.c.l.b16 %v4952
        %v5193 = vunpack.c.l.b16 %v4953
        %v5194 = vunpack.c.l.b16 %v4954
        %v5195 = vunpack.c.l.b16 %v4955
        %v5196 = vunpack.c.l.b16 %v4956
        %v5197 = vunpack.c.l.b16 %v4957
        %v5198 = vunpack.c.l.b16 %v4958
        %v5199 = vunpack.c.l.b16 %v4959
        %v5200 = vunpack.c.l.b16 %v4960
        %v5201 = vunpack.c.l.b16 %v4961
        %v5202 = vunpack.c.l.b16 %v4962
        %v5203 = vunpack.c.l.b16 %v4963
        %v5204 = vpack.c.b16 %v5189, %v5188
        %v5205 = vpack.c.b16 %v5191, %v5190
        %v5206 = vpack.c.b16 %v5193, %v5192
        %v5207 = vpack.c.b16 %v5195, %v5194
        %v5208 = vpack.c.b16 %v5197, %v5196
        %v5209 = vpack.c.b16 %v5199, %v5198
        %v5210 = vpack.c.b16 %v5201, %v5200
        %v5211 = vpack.c.b16 %v5203, %v5202
        %5220 = vmatprep.subr.bf16.mxu0 0
        %5221 = vmatpush1.bf16.msra.mxu0 %v5204
        %5222 = vmatprep.subr.bf16.mxu0 0
        %5223 = vmatpush1.bf16.msra.mxu0 %v5205
        %5224 = vmatprep.subr.bf16.mxu0 0
        %5225 = vmatpush1.bf16.msra.mxu0 %v5206
        %5226 = vmatprep.subr.bf16.mxu0 0
        %5227 = vmatpush1.bf16.msra.mxu0 %v5207
        %5228 = vmatprep.subr.bf16.mxu0 0
        %5229 = vmatpush1.bf16.msra.mxu0 %v5208
        %5230 = vmatprep.subr.bf16.mxu0 0
        %5231 = vmatpush1.bf16.msra.mxu0 %v5209
        %5232 = vmatprep.subr.bf16.mxu0 0
        %5233 = vmatpush1.bf16.msra.mxu0 %v5210
        %5234 = vmatprep.subr.bf16.mxu0 0
        %5235 = vmatpush1.bf16.msra.mxu0 %v5211
        %5236 = vmatprep.subr.bf16.mxu0 0
        %5237 = vmatpush1.bf16.msra.mxu0 0
        %5238 = vmatprep.subr.bf16.mxu0 0
        %5239 = vmatpush1.bf16.msra.mxu0 0
        %5240 = vmatprep.subr.bf16.mxu0 0
        %5241 = vmatpush1.bf16.msra.mxu0 0
        %5242 = vmatprep.subr.bf16.mxu0 0
        %5243 = vmatpush1.bf16.msra.mxu0 0
        %5244 = vmatprep.subr.bf16.mxu0 0
        %5245 = vmatpush1.bf16.msra.mxu0 0
        %5246 = vmatprep.subr.bf16.mxu0 0
        %5247 = vmatpush1.bf16.msra.mxu0 0
        %5248 = vmatprep.subr.bf16.mxu0 0
        %5249 = vmatpush1.bf16.msra.mxu0 0
        %5250 = vmatprep.subr.bf16.mxu0 0
        %5251 = vmatpush1.bf16.msra.mxu0 0
        %5252 = vmatprep.mubr.bf16.mxu0 0
        %5253 = vmatmul.mubr.bf16.gmra.mrb[0].mxu0 %v4975
        %v5254 = vpop.f32.mrb[0].mxu0
        %v5255 = vadd.f32 0.0, %v5254
        %v5256 = vpop.f32.mrb[0].mxu0
        %v5257 = vpop.f32.mrb[0].mxu0
        %v5258 = vadd.f32 0.0, %v5257
        %v5259 = vpop.f32.mrb[0].mxu0
        %5260 = vmatprep.mubr.bf16.mxu0 0
        %5261 = vmatmul.mubr.bf16.gmra.mrb[0].mxu0 %v4987
        %v5262 = vpop.f32.mrb[0].mxu0
        %v5263 = vadd.f32 0.0, %v5262
        %v5264 = vpop.f32.mrb[0].mxu0
        %v5265 = vpop.f32.mrb[0].mxu0
        %v5266 = vadd.f32 0.0, %v5265
        %v5267 = vpop.f32.mrb[0].mxu0
        %5268 = vmatprep.mubr.bf16.mxu0 0
        %5269 = vmatmul.mubr.bf16.gmra.mrb[0].mxu0 %v4999
        %v5270 = vpop.f32.mrb[0].mxu0
        %v5271 = vadd.f32 0.0, %v5270
        %v5272 = vpop.f32.mrb[0].mxu0
        %v5273 = vpop.f32.mrb[0].mxu0
        %v5274 = vadd.f32 0.0, %v5273
        %v5275 = vpop.f32.mrb[0].mxu0
        %5276 = vmatprep.mubr.bf16.mxu0 0
        %5277 = vmatmul.mubr.bf16.gmra.mrb[0].mxu0 %v5011
        %v5278 = vpop.f32.mrb[0].mxu0
        %v5279 = vadd.f32 0.0, %v5278
        %v5280 = vpop.f32.mrb[0].mxu0
        %v5281 = vpop.f32.mrb[0].mxu0
        %v5282 = vadd.f32 0.0, %v5281
        %v5283 = vpop.f32.mrb[0].mxu0
        %5284 = vmatprep.mubr.bf16.mxu0 0
        %5285 = vmatmul.mubr.bf16.gmra.mrb[0].mxu0 %v5023
        %v5286 = vpop.f32.mrb[0].mxu0
        %v5287 = vadd.f32 0.0, %v5286
        %v5288 = vpop.f32.mrb[0].mxu0
        %v5289 = vpop.f32.mrb[0].mxu0
        %v5290 = vadd.f32 0.0, %v5289
        %v5291 = vpop.f32.mrb[0].mxu0
        %5292 = vmatprep.mubr.bf16.mxu0 0
        %5293 = vmatmul.mubr.bf16.gmra.mrb[0].mxu0 %v5035
        %v5294 = vpop.f32.mrb[0].mxu0
        %v5295 = vadd.f32 0.0, %v5294
        %v5296 = vpop.f32.mrb[0].mxu0
        %v5297 = vpop.f32.mrb[0].mxu0
        %v5298 = vadd.f32 0.0, %v5297
        %v5299 = vpop.f32.mrb[0].mxu0
        %5300 = vmatprep.mubr.bf16.mxu0 0
        %5301 = vmatmul.mubr.bf16.gmra.mrb[0].mxu0 %v5047
        %v5302 = vpop.f32.mrb[0].mxu0
        %v5303 = vadd.f32 0.0, %v5302
        %v5304 = vpop.f32.mrb[0].mxu0
        %v5305 = vpop.f32.mrb[0].mxu0
        %v5306 = vadd.f32 0.0, %v5305
        %v5307 = vpop.f32.mrb[0].mxu0
        %5308 = vmatprep.mubr.bf16.mxu0 0
        %5309 = vmatmul.mubr.bf16.gmra.mrb[0].mxu0 %v5059
        %v5310 = vpop.f32.mrb[0].mxu0
        %v5311 = vadd.f32 0.0, %v5310
        %v5312 = vpop.f32.mrb[0].mxu0
        %v5313 = vpop.f32.mrb[0].mxu0
        %v5314 = vadd.f32 0.0, %v5313
        %v5315 = vpop.f32.mrb[0].mxu0
        %5316 = vmatprep.mubr.bf16.mxu0 0
        %5317 = vmatmul.mubr.bf16.gmra.mrb[0].mxu0 %v5071
        %v5318 = vpop.f32.mrb[0].mxu0
        %v5319 = vadd.f32 0.0, %v5318
        %v5320 = vpop.f32.mrb[0].mxu0
        %v5321 = vpop.f32.mrb[0].mxu0
        %v5322 = vadd.f32 0.0, %v5321
        %v5323 = vpop.f32.mrb[0].mxu0
        %5324 = vmatprep.mubr.bf16.mxu0 0
        %5325 = vmatmul.mubr.bf16.gmra.mrb[0].mxu0 %v5083
        %v5326 = vpop.f32.mrb[0].mxu0
        %v5327 = vadd.f32 0.0, %v5326
        %v5328 = vpop.f32.mrb[0].mxu0
        %v5329 = vpop.f32.mrb[0].mxu0
        %v5330 = vadd.f32 0.0, %v5329
        %v5331 = vpop.f32.mrb[0].mxu0
        %5332 = vmatprep.mubr.bf16.mxu0 0
        %5333 = vmatmul.mubr.bf16.gmra.mrb[0].mxu0 %v5095
        %v5334 = vpop.f32.mrb[0].mxu0
        %v5335 = vadd.f32 0.0, %v5334
        %v5336 = vpop.f32.mrb[0].mxu0
        %v5337 = vpop.f32.mrb[0].mxu0
        %v5338 = vadd.f32 0.0, %v5337
        %v5339 = vpop.f32.mrb[0].mxu0
        %5340 = vmatprep.mubr.bf16.mxu0 0
        %5341 = vmatmul.mubr.bf16.gmra.mrb[0].mxu0 %v5107
        %v5342 = vpop.f32.mrb[0].mxu0
        %v5343 = vadd.f32 0.0, %v5342
        %v5344 = vpop.f32.mrb[0].mxu0
        %v5345 = vpop.f32.mrb[0].mxu0
        %v5346 = vadd.f32 0.0, %v5345
        %v5347 = vpop.f32.mrb[0].mxu0
        %5348 = vmatprep.mubr.bf16.mxu0 0
        %5349 = vmatmul.mubr.bf16.gmra.mrb[0].mxu0 %v5119
        %v5350 = vpop.f32.mrb[0].mxu0
        %v5351 = vadd.f32 0.0, %v5350
        %v5352 = vpop.f32.mrb[0].mxu0
        %v5353 = vpop.f32.mrb[0].mxu0
        %v5354 = vadd.f32 0.0, %v5353
        %v5355 = vpop.f32.mrb[0].mxu0
        %5356 = vmatprep.mubr.bf16.mxu0 0
        %5357 = vmatmul.mubr.bf16.gmra.mrb[0].mxu0 %v5131
        %v5358 = vpop.f32.mrb[0].mxu0
        %v5359 = vadd.f32 0.0, %v5358
        %v5360 = vpop.f32.mrb[0].mxu0
        %v5361 = vpop.f32.mrb[0].mxu0
        %v5362 = vadd.f32 0.0, %v5361
        %v5363 = vpop.f32.mrb[0].mxu0
        %5364 = vmatprep.mubr.bf16.mxu0 0
        %5365 = vmatmul.mubr.bf16.gmra.mrb[0].mxu0 %v5143
        %v5366 = vpop.f32.mrb[0].mxu0
        %v5367 = vadd.f32 0.0, %v5366
        %v5368 = vpop.f32.mrb[0].mxu0
        %v5369 = vpop.f32.mrb[0].mxu0
        %v5370 = vadd.f32 0.0, %v5369
        %v5371 = vpop.f32.mrb[0].mxu0
        %5372 = vmatprep.mubr.bf16.mxu0 0
        %5373 = vmatmul.mubr.bf16.gmra.mrb[0].mxu0 %v5155
        %v5374 = vpop.f32.mrb[0].mxu0
        %v5375 = vadd.f32 0.0, %v5374
        %v5376 = vpop.f32.mrb[0].mxu0
        %v5377 = vpop.f32.mrb[0].mxu0
        %v5378 = vadd.f32 0.0, %v5377
        %v5379 = vpop.f32.mrb[0].mxu0
        %5380 = vdwg.mxu0
        %v5381 = vadd.f32 %v4879, %v5255
        %v5382 = vadd.f32 %v4880, %v5258
        %v5383 = vadd.f32 %v4881, %v5263
        %v5384 = vadd.f32 %v4882, %v5266
        %v5385 = vadd.f32 %v4883, %v5271
        %v5386 = vadd.f32 %v4884, %v5274
        %v5387 = vadd.f32 %v4885, %v5279
        %v5388 = vadd.f32 %v4886, %v5282
        %v5389 = vadd.f32 %v4887, %v5287
        %v5390 = vadd.f32 %v4888, %v5290
        %v5391 = vadd.f32 %v4889, %v5295
        %v5392 = vadd.f32 %v4890, %v5298
        %v5393 = vadd.f32 %v4891, %v5303
        %v5394 = vadd.f32 %v4892, %v5306
        %v5395 = vadd.f32 %v4893, %v5311
        %v5396 = vadd.f32 %v4894, %v5314
        %v5397 = vadd.f32 %v4895, %v5319
        %v5398 = vadd.f32 %v4896, %v5322
        %v5399 = vadd.f32 %v4897, %v5327
        %v5400 = vadd.f32 %v4898, %v5330
        %v5401 = vadd.f32 %v4899, %v5335
        %v5402 = vadd.f32 %v4900, %v5338
        %v5403 = vadd.f32 %v4901, %v5343
        %v5404 = vadd.f32 %v4902, %v5346
        %v5405 = vadd.f32 %v4903, %v5351
        %v5406 = vadd.f32 %v4904, %v5354
        %v5407 = vadd.f32 %v4905, %v5359
        %v5408 = vadd.f32 %v4906, %v5362
        %v5409 = vadd.f32 %v4907, %v5367
        %v5410 = vadd.f32 %v4908, %v5370
        %v5411 = vadd.f32 %v4909, %v5375
        %v5412 = vadd.f32 %v4910, %v5378
        %s5413 = scalar_lea.vmem [#allocation8], 256
        %v5414 = vld [vmem:[%s5413] sm:$0xf]
        %v5415 = vld [vmem:[%s5413 + $0x4] sm:$0xf]
        %v5416 = vld [vmem:[%s5413 + $0x8] sm:$0xf]
        %v5417 = vld [vmem:[%s5413 + $0xc] sm:$0xf]
        %v5418 = vld [vmem:[%s5413 + $0x10] sm:$0xf]
        %v5419 = vld [vmem:[%s5413 + $0x14] sm:$0xf]
        %v5420 = vld [vmem:[%s5413 + $0x18] sm:$0xf]
        %v5421 = vld [vmem:[%s5413 + $0x1c] sm:$0xf]
        %v5422 = vld [vmem:[%s5413 + $0x20] sm:$0xf]
        %v5423 = vld [vmem:[%s5413 + $0x24] sm:$0xf]
        %v5424 = vld [vmem:[%s5413 + $0x28] sm:$0xf]
        %v5425 = vld [vmem:[%s5413 + $0x2c] sm:$0xf]
        %v5426 = vld [vmem:[%s5413 + $0x30] sm:$0xf]
        %v5427 = vld [vmem:[%s5413 + $0x34] sm:$0xf]
        %v5428 = vld [vmem:[%s5413 + $0x38] sm:$0xf]
        %v5429 = vld [vmem:[%s5413 + $0x3c] sm:$0xf]
        %v5431 = vshrl.u32 %v4943, 16
        %v5433 = vshll.u32 %v4943, 16
        %v5435 = vrot.slane %v5433, 1
        %v5436 = vor.u32 %v5431, %v5435
        %v5438 = vshll.u32 %v4944, 16
        %v5440 = vrot.slane %v5438, 1
        %v5441 = vsel %vm1594, %v5436, %v5440
        %v5459 = vunpack.c.l.b16 %v5414
        %v5460 = vunpack.c.l.b16 %v5415
        %v5461 = vunpack.c.l.b16 %v5416
        %v5462 = vunpack.c.l.b16 %v5417
        %v5463 = vunpack.c.l.b16 %v5418
        %v5464 = vunpack.c.l.b16 %v5419
        %v5465 = vunpack.c.l.b16 %v5420
        %v5466 = vunpack.c.l.b16 %v5421
        %v5467 = vunpack.c.l.b16 %v5422
        %v5468 = vunpack.c.l.b16 %v5423
        %v5469 = vunpack.c.l.b16 %v5424
        %v5470 = vunpack.c.l.b16 %v5425
        %v5471 = vunpack.c.l.b16 %v5426
        %v5472 = vunpack.c.l.b16 %v5427
        %v5473 = vunpack.c.l.b16 %v5428
        %v5474 = vunpack.c.l.b16 %v5429
        %v5475 = vpack.c.b16 %v5460, %v5459
        %v5476 = vpack.c.b16 %v5462, %v5461
        %v5477 = vpack.c.b16 %v5464, %v5463
        %v5478 = vpack.c.b16 %v5466, %v5465
        %v5479 = vpack.c.b16 %v5468, %v5467
        %v5480 = vpack.c.b16 %v5470, %v5469
        %v5481 = vpack.c.b16 %v5472, %v5471
        %v5482 = vpack.c.b16 %v5474, %v5473
        %5491 = vmatprep.subr.bf16.mxu0 0
        %5492 = vmatpush1.bf16.msra.mxu0 %v5475
        %5493 = vmatprep.subr.bf16.mxu0 0
        %5494 = vmatpush1.bf16.msra.mxu0 %v5476
        %5495 = vmatprep.subr.bf16.mxu0 0
        %5496 = vmatpush1.bf16.msra.mxu0 %v5477
        %5497 = vmatprep.subr.bf16.mxu0 0
        %5498 = vmatpush1.bf16.msra.mxu0 %v5478
        %5499 = vmatprep.subr.bf16.mxu0 0
        %5500 = vmatpush1.bf16.msra.mxu0 %v5479
        %5501 = vmatprep.subr.bf16.mxu0 0
        %5502 = vmatpush1.bf16.msra.mxu0 %v5480
        %5503 = vmatprep.subr.bf16.mxu0 0
        %5504 = vmatpush1.bf16.msra.mxu0 %v5481
        %5505 = vmatprep.subr.bf16.mxu0 0
        %5506 = vmatpush1.bf16.msra.mxu0 %v5482
        %5507 = vmatprep.subr.bf16.mxu0 0
        %5508 = vmatpush1.bf16.msra.mxu0 0
        %5509 = vmatprep.subr.bf16.mxu0 0
        %5510 = vmatpush1.bf16.msra.mxu0 0
        %5511 = vmatprep.subr.bf16.mxu0 0
        %5512 = vmatpush1.bf16.msra.mxu0 0
        %5513 = vmatprep.subr.bf16.mxu0 0
        %5514 = vmatpush1.bf16.msra.mxu0 0
        %5515 = vmatprep.subr.bf16.mxu0 0
        %5516 = vmatpush1.bf16.msra.mxu0 0
        %5517 = vmatprep.subr.bf16.mxu0 0
        %5518 = vmatpush1.bf16.msra.mxu0 0
        %5519 = vmatprep.subr.bf16.mxu0 0
        %5520 = vmatpush1.bf16.msra.mxu0 0
        %5521 = vmatprep.subr.bf16.mxu0 0
        %5522 = vmatpush1.bf16.msra.mxu0 0
        %5523 = vmatprep.mubr.bf16.mxu0 0
        %5524 = vmatmul.mubr.bf16.gmra.mrb[0].mxu0 %v4987
        %v5525 = vpop.f32.mrb[0].mxu0
        %v5526 = vadd.f32 0.0, %v5525
        %v5527 = vpop.f32.mrb[0].mxu0
        %v5528 = vpop.f32.mrb[0].mxu0
        %v5529 = vadd.f32 0.0, %v5528
        %v5530 = vpop.f32.mrb[0].mxu0
        %5531 = vmatprep.mubr.bf16.mxu0 0
        %5532 = vmatmul.mubr.bf16.gmra.mrb[0].mxu0 %v4999
        %v5533 = vpop.f32.mrb[0].mxu0
        %v5534 = vadd.f32 0.0, %v5533
        %v5535 = vpop.f32.mrb[0].mxu0
        %v5536 = vpop.f32.mrb[0].mxu0
        %v5537 = vadd.f32 0.0, %v5536
        %v5538 = vpop.f32.mrb[0].mxu0
        %5539 = vmatprep.mubr.bf16.mxu0 0
        %5540 = vmatmul.mubr.bf16.gmra.mrb[0].mxu0 %v5011
        %v5541 = vpop.f32.mrb[0].mxu0
        %v5542 = vadd.f32 0.0, %v5541
        %v5543 = vpop.f32.mrb[0].mxu0
        %v5544 = vpop.f32.mrb[0].mxu0
        %v5545 = vadd.f32 0.0, %v5544
        %v5546 = vpop.f32.mrb[0].mxu0
        %5547 = vmatprep.mubr.bf16.mxu0 0
        %5548 = vmatmul.mubr.bf16.gmra.mrb[0].mxu0 %v5023
        %v5549 = vpop.f32.mrb[0].mxu0
        %v5550 = vadd.f32 0.0, %v5549
        %v5551 = vpop.f32.mrb[0].mxu0
        %v5552 = vpop.f32.mrb[0].mxu0
        %v5553 = vadd.f32 0.0, %v5552
        %v5554 = vpop.f32.mrb[0].mxu0
        %5555 = vmatprep.mubr.bf16.mxu0 0
        %5556 = vmatmul.mubr.bf16.gmra.mrb[0].mxu0 %v5035
        %v5557 = vpop.f32.mrb[0].mxu0
        %v5558 = vadd.f32 0.0, %v5557
        %v5559 = vpop.f32.mrb[0].mxu0
        %v5560 = vpop.f32.mrb[0].mxu0
        %v5561 = vadd.f32 0.0, %v5560
        %v5562 = vpop.f32.mrb[0].mxu0
        %5563 = vmatprep.mubr.bf16.mxu0 0
        %5564 = vmatmul.mubr.bf16.gmra.mrb[0].mxu0 %v5047
        %v5565 = vpop.f32.mrb[0].mxu0
        %v5566 = vadd.f32 0.0, %v5565
        %v5567 = vpop.f32.mrb[0].mxu0
        %v5568 = vpop.f32.mrb[0].mxu0
        %v5569 = vadd.f32 0.0, %v5568
        %v5570 = vpop.f32.mrb[0].mxu0
        %5571 = vmatprep.mubr.bf16.mxu0 0
        %5572 = vmatmul.mubr.bf16.gmra.mrb[0].mxu0 %v5059
        %v5573 = vpop.f32.mrb[0].mxu0
        %v5574 = vadd.f32 0.0, %v5573
        %v5575 = vpop.f32.mrb[0].mxu0
        %v5576 = vpop.f32.mrb[0].mxu0
        %v5577 = vadd.f32 0.0, %v5576
        %v5578 = vpop.f32.mrb[0].mxu0
        %5579 = vmatprep.mubr.bf16.mxu0 0
        %5580 = vmatmul.mubr.bf16.gmra.mrb[0].mxu0 %v5071
        %v5581 = vpop.f32.mrb[0].mxu0
        %v5582 = vadd.f32 0.0, %v5581
        %v5583 = vpop.f32.mrb[0].mxu0
        %v5584 = vpop.f32.mrb[0].mxu0
        %v5585 = vadd.f32 0.0, %v5584
        %v5586 = vpop.f32.mrb[0].mxu0
        %5587 = vmatprep.mubr.bf16.mxu0 0
        %5588 = vmatmul.mubr.bf16.gmra.mrb[0].mxu0 %v5083
        %v5589 = vpop.f32.mrb[0].mxu0
        %v5590 = vadd.f32 0.0, %v5589
        %v5591 = vpop.f32.mrb[0].mxu0
        %v5592 = vpop.f32.mrb[0].mxu0
        %v5593 = vadd.f32 0.0, %v5592
        %v5594 = vpop.f32.mrb[0].mxu0
        %5595 = vmatprep.mubr.bf16.mxu0 0
        %5596 = vmatmul.mubr.bf16.gmra.mrb[0].mxu0 %v5095
        %v5597 = vpop.f32.mrb[0].mxu0
        %v5598 = vadd.f32 0.0, %v5597
        %v5599 = vpop.f32.mrb[0].mxu0
        %v5600 = vpop.f32.mrb[0].mxu0
        %v5601 = vadd.f32 0.0, %v5600
        %v5602 = vpop.f32.mrb[0].mxu0
        %5603 = vmatprep.mubr.bf16.mxu0 0
        %5604 = vmatmul.mubr.bf16.gmra.mrb[0].mxu0 %v5107
        %v5605 = vpop.f32.mrb[0].mxu0
        %v5606 = vadd.f32 0.0, %v5605
        %v5607 = vpop.f32.mrb[0].mxu0
        %v5608 = vpop.f32.mrb[0].mxu0
        %v5609 = vadd.f32 0.0, %v5608
        %v5610 = vpop.f32.mrb[0].mxu0
        %5611 = vmatprep.mubr.bf16.mxu0 0
        %5612 = vmatmul.mubr.bf16.gmra.mrb[0].mxu0 %v5119
        %v5613 = vpop.f32.mrb[0].mxu0
        %v5614 = vadd.f32 0.0, %v5613
        %v5615 = vpop.f32.mrb[0].mxu0
        %v5616 = vpop.f32.mrb[0].mxu0
        %v5617 = vadd.f32 0.0, %v5616
        %v5618 = vpop.f32.mrb[0].mxu0
        %5619 = vmatprep.mubr.bf16.mxu0 0
        %5620 = vmatmul.mubr.bf16.gmra.mrb[0].mxu0 %v5131
        %v5621 = vpop.f32.mrb[0].mxu0
        %v5622 = vadd.f32 0.0, %v5621
        %v5623 = vpop.f32.mrb[0].mxu0
        %v5624 = vpop.f32.mrb[0].mxu0
        %v5625 = vadd.f32 0.0, %v5624
        %v5626 = vpop.f32.mrb[0].mxu0
        %5627 = vmatprep.mubr.bf16.mxu0 0
        %5628 = vmatmul.mubr.bf16.gmra.mrb[0].mxu0 %v5143
        %v5629 = vpop.f32.mrb[0].mxu0
        %v5630 = vadd.f32 0.0, %v5629
        %v5631 = vpop.f32.mrb[0].mxu0
        %v5632 = vpop.f32.mrb[0].mxu0
        %v5633 = vadd.f32 0.0, %v5632
        %v5634 = vpop.f32.mrb[0].mxu0
        %5635 = vmatprep.mubr.bf16.mxu0 0
        %5636 = vmatmul.mubr.bf16.gmra.mrb[0].mxu0 %v5155
        %v5637 = vpop.f32.mrb[0].mxu0
        %v5638 = vadd.f32 0.0, %v5637
        %v5639 = vpop.f32.mrb[0].mxu0
        %v5640 = vpop.f32.mrb[0].mxu0
        %v5641 = vadd.f32 0.0, %v5640
        %v5642 = vpop.f32.mrb[0].mxu0
        %5643 = vmatprep.mubr.bf16.mxu0 0
        %5644 = vmatmul.mubr.bf16.gmra.mrb[0].mxu0 %v5441
        %v5645 = vpop.f32.mrb[0].mxu0
        %v5646 = vadd.f32 0.0, %v5645
        %v5647 = vpop.f32.mrb[0].mxu0
        %v5648 = vpop.f32.mrb[0].mxu0
        %v5649 = vadd.f32 0.0, %v5648
        %v5650 = vpop.f32.mrb[0].mxu0
        %5651 = vdwg.mxu0
        %v5652 = vadd.f32 %v5381, %v5526
        %v5653 = vadd.f32 %v5382, %v5529
        %v5654 = vadd.f32 %v5383, %v5534
        %v5655 = vadd.f32 %v5384, %v5537
        %v5656 = vadd.f32 %v5385, %v5542
        %v5657 = vadd.f32 %v5386, %v5545
        %v5658 = vadd.f32 %v5387, %v5550
        %v5659 = vadd.f32 %v5388, %v5553
        %v5660 = vadd.f32 %v5389, %v5558
        %v5661 = vadd.f32 %v5390, %v5561
        %v5662 = vadd.f32 %v5391, %v5566
        %v5663 = vadd.f32 %v5392, %v5569
        %v5664 = vadd.f32 %v5393, %v5574
        %v5665 = vadd.f32 %v5394, %v5577
        %v5666 = vadd.f32 %v5395, %v5582
        %v5667 = vadd.f32 %v5396, %v5585
        %v5668 = vadd.f32 %v5397, %v5590
        %v5669 = vadd.f32 %v5398, %v5593
        %v5670 = vadd.f32 %v5399, %v5598
        %v5671 = vadd.f32 %v5400, %v5601
        %v5672 = vadd.f32 %v5401, %v5606
        %v5673 = vadd.f32 %v5402, %v5609
        %v5674 = vadd.f32 %v5403, %v5614
        %v5675 = vadd.f32 %v5404, %v5617
        %v5676 = vadd.f32 %v5405, %v5622
        %v5677 = vadd.f32 %v5406, %v5625
        %v5678 = vadd.f32 %v5407, %v5630
        %v5679 = vadd.f32 %v5408, %v5633
        %v5680 = vadd.f32 %v5409, %v5638
        %v5681 = vadd.f32 %v5410, %v5641
        %v5682 = vadd.f32 %v5411, %v5646
        %v5683 = vadd.f32 %v5412, %v5649
        %s5684 = scalar_lea.vmem [#allocation8], 448
        %v5685 = vld [vmem:[%s5684] sm:$0xf]
        %v5686 = vld [vmem:[%s5684 + $0x4] sm:$0xf]
        %v5687 = vld [vmem:[%s5684 + $0x8] sm:$0xf]
        %v5688 = vld [vmem:[%s5684 + $0xc] sm:$0xf]
        %v5689 = vld [vmem:[%s5684 + $0x10] sm:$0xf]
        %v5690 = vld [vmem:[%s5684 + $0x14] sm:$0xf]
        %v5691 = vld [vmem:[%s5684 + $0x18] sm:$0xf]
        %v5692 = vld [vmem:[%s5684 + $0x1c] sm:$0xf]
        %v5693 = vld [vmem:[%s5684 + $0x20] sm:$0xf]
        %v5694 = vld [vmem:[%s5684 + $0x24] sm:$0xf]
        %v5695 = vld [vmem:[%s5684 + $0x28] sm:$0xf]
        %v5696 = vld [vmem:[%s5684 + $0x2c] sm:$0xf]
        %v5697 = vld [vmem:[%s5684 + $0x30] sm:$0xf]
        %v5698 = vld [vmem:[%s5684 + $0x34] sm:$0xf]
        %v5699 = vld [vmem:[%s5684 + $0x38] sm:$0xf]
        %v5700 = vld [vmem:[%s5684 + $0x3c] sm:$0xf]
        %v5702 = vshrl.u32 %v4945, 16
        %v5704 = vshll.u32 %v4945, 16
        %v5706 = vrot.slane %v5704, 1
        %v5707 = vor.u32 %v5702, %v5706
        %v5709 = vshll.u32 %v4946, 16
        %v5711 = vrot.slane %v5709, 1
        %v5712 = vsel %vm1594, %v5707, %v5711
        %v5730 = vunpack.c.l.b16 %v5685
        %v5731 = vunpack.c.l.b16 %v5686
        %v5732 = vunpack.c.l.b16 %v5687
        %v5733 = vunpack.c.l.b16 %v5688
        %v5734 = vunpack.c.l.b16 %v5689
        %v5735 = vunpack.c.l.b16 %v5690
        %v5736 = vunpack.c.l.b16 %v5691
        %v5737 = vunpack.c.l.b16 %v5692
        %v5738 = vunpack.c.l.b16 %v5693
        %v5739 = vunpack.c.l.b16 %v5694
        %v5740 = vunpack.c.l.b16 %v5695
        %v5741 = vunpack.c.l.b16 %v5696
        %v5742 = vunpack.c.l.b16 %v5697
        %v5743 = vunpack.c.l.b16 %v5698
        %v5744 = vunpack.c.l.b16 %v5699
        %v5745 = vunpack.c.l.b16 %v5700
        %v5746 = vpack.c.b16 %v5731, %v5730
        %v5747 = vpack.c.b16 %v5733, %v5732
        %v5748 = vpack.c.b16 %v5735, %v5734
        %v5749 = vpack.c.b16 %v5737, %v5736
        %v5750 = vpack.c.b16 %v5739, %v5738
        %v5751 = vpack.c.b16 %v5741, %v5740
        %v5752 = vpack.c.b16 %v5743, %v5742
        %v5753 = vpack.c.b16 %v5745, %v5744
        %5762 = vmatprep.subr.bf16.mxu0 0
        %5763 = vmatpush1.bf16.msra.mxu0 %v5746
        %5764 = vmatprep.subr.bf16.mxu0 0
        %5765 = vmatpush1.bf16.msra.mxu0 %v5747
        %5766 = vmatprep.subr.bf16.mxu0 0
        %5767 = vmatpush1.bf16.msra.mxu0 %v5748
        %5768 = vmatprep.subr.bf16.mxu0 0
        %5769 = vmatpush1.bf16.msra.mxu0 %v5749
        %5770 = vmatprep.subr.bf16.mxu0 0
        %5771 = vmatpush1.bf16.msra.mxu0 %v5750
        %5772 = vmatprep.subr.bf16.mxu0 0
        %5773 = vmatpush1.bf16.msra.mxu0 %v5751
        %5774 = vmatprep.subr.bf16.mxu0 0
        %5775 = vmatpush1.bf16.msra.mxu0 %v5752
        %5776 = vmatprep.subr.bf16.mxu0 0
        %5777 = vmatpush1.bf16.msra.mxu0 %v5753
        %5778 = vmatprep.subr.bf16.mxu0 0
        %5779 = vmatpush1.bf16.msra.mxu0 0
        %5780 = vmatprep.subr.bf16.mxu0 0
        %5781 = vmatpush1.bf16.msra.mxu0 0
        %5782 = vmatprep.subr.bf16.mxu0 0
        %5783 = vmatpush1.bf16.msra.mxu0 0
        %5784 = vmatprep.subr.bf16.mxu0 0
        %5785 = vmatpush1.bf16.msra.mxu0 0
        %5786 = vmatprep.subr.bf16.mxu0 0
        %5787 = vmatpush1.bf16.msra.mxu0 0
        %5788 = vmatprep.subr.bf16.mxu0 0
        %5789 = vmatpush1.bf16.msra.mxu0 0
        %5790 = vmatprep.subr.bf16.mxu0 0
        %5791 = vmatpush1.bf16.msra.mxu0 0
        %5792 = vmatprep.subr.bf16.mxu0 0
        %5793 = vmatpush1.bf16.msra.mxu0 0
        %5794 = vmatprep.mubr.bf16.mxu0 0
        %5795 = vmatmul.mubr.bf16.gmra.mrb[0].mxu0 %v4999
        %v5796 = vpop.f32.mrb[0].mxu0
        %v5797 = vadd.f32 0.0, %v5796
        %v5798 = vpop.f32.mrb[0].mxu0
        %v5799 = vpop.f32.mrb[0].mxu0
        %v5800 = vadd.f32 0.0, %v5799
        %v5801 = vpop.f32.mrb[0].mxu0
        %5802 = vmatprep.mubr.bf16.mxu0 0
        %5803 = vmatmul.mubr.bf16.gmra.mrb[0].mxu0 %v5011
        %v5804 = vpop.f32.mrb[0].mxu0
        %v5805 = vadd.f32 0.0, %v5804
        %v5806 = vpop.f32.mrb[0].mxu0
        %v5807 = vpop.f32.mrb[0].mxu0
        %v5808 = vadd.f32 0.0, %v5807
        %v5809 = vpop.f32.mrb[0].mxu0
        %5810 = vmatprep.mubr.bf16.mxu0 0
        %5811 = vmatmul.mubr.bf16.gmra.mrb[0].mxu0 %v5023
        %v5812 = vpop.f32.mrb[0].mxu0
        %v5813 = vadd.f32 0.0, %v5812
        %v5814 = vpop.f32.mrb[0].mxu0
        %v5815 = vpop.f32.mrb[0].mxu0
        %v5816 = vadd.f32 0.0, %v5815
        %v5817 = vpop.f32.mrb[0].mxu0
        %5818 = vmatprep.mubr.bf16.mxu0 0
        %5819 = vmatmul.mubr.bf16.gmra.mrb[0].mxu0 %v5035
        %v5820 = vpop.f32.mrb[0].mxu0
        %v5821 = vadd.f32 0.0, %v5820
        %v5822 = vpop.f32.mrb[0].mxu0
        %v5823 = vpop.f32.mrb[0].mxu0
        %v5824 = vadd.f32 0.0, %v5823
        %v5825 = vpop.f32.mrb[0].mxu0
        %5826 = vmatprep.mubr.bf16.mxu0 0
        %5827 = vmatmul.mubr.bf16.gmra.mrb[0].mxu0 %v5047
        %v5828 = vpop.f32.mrb[0].mxu0
        %v5829 = vadd.f32 0.0, %v5828
        %v5830 = vpop.f32.mrb[0].mxu0
        %v5831 = vpop.f32.mrb[0].mxu0
        %v5832 = vadd.f32 0.0, %v5831
        %v5833 = vpop.f32.mrb[0].mxu0
        %5834 = vmatprep.mubr.bf16.mxu0 0
        %5835 = vmatmul.mubr.bf16.gmra.mrb[0].mxu0 %v5059
        %v5836 = vpop.f32.mrb[0].mxu0
        %v5837 = vadd.f32 0.0, %v5836
        %v5838 = vpop.f32.mrb[0].mxu0
        %v5839 = vpop.f32.mrb[0].mxu0
        %v5840 = vadd.f32 0.0, %v5839
        %v5841 = vpop.f32.mrb[0].mxu0
        %5842 = vmatprep.mubr.bf16.mxu0 0
        %5843 = vmatmul.mubr.bf16.gmra.mrb[0].mxu0 %v5071
        %v5844 = vpop.f32.mrb[0].mxu0
        %v5845 = vadd.f32 0.0, %v5844
        %v5846 = vpop.f32.mrb[0].mxu0
        %v5847 = vpop.f32.mrb[0].mxu0
        %v5848 = vadd.f32 0.0, %v5847
        %v5849 = vpop.f32.mrb[0].mxu0
        %5850 = vmatprep.mubr.bf16.mxu0 0
        %5851 = vmatmul.mubr.bf16.gmra.mrb[0].mxu0 %v5083
        %v5852 = vpop.f32.mrb[0].mxu0
        %v5853 = vadd.f32 0.0, %v5852
        %v5854 = vpop.f32.mrb[0].mxu0
        %v5855 = vpop.f32.mrb[0].mxu0
        %v5856 = vadd.f32 0.0, %v5855
        %v5857 = vpop.f32.mrb[0].mxu0
        %5858 = vmatprep.mubr.bf16.mxu0 0
        %5859 = vmatmul.mubr.bf16.gmra.mrb[0].mxu0 %v5095
        %v5860 = vpop.f32.mrb[0].mxu0
        %v5861 = vadd.f32 0.0, %v5860
        %v5862 = vpop.f32.mrb[0].mxu0
        %v5863 = vpop.f32.mrb[0].mxu0
        %v5864 = vadd.f32 0.0, %v5863
        %v5865 = vpop.f32.mrb[0].mxu0
        %5866 = vmatprep.mubr.bf16.mxu0 0
        %5867 = vmatmul.mubr.bf16.gmra.mrb[0].mxu0 %v5107
        %v5868 = vpop.f32.mrb[0].mxu0
        %v5869 = vadd.f32 0.0, %v5868
        %v5870 = vpop.f32.mrb[0].mxu0
        %v5871 = vpop.f32.mrb[0].mxu0
        %v5872 = vadd.f32 0.0, %v5871
        %v5873 = vpop.f32.mrb[0].mxu0
        %5874 = vmatprep.mubr.bf16.mxu0 0
        %5875 = vmatmul.mubr.bf16.gmra.mrb[0].mxu0 %v5119
        %v5876 = vpop.f32.mrb[0].mxu0
        %v5877 = vadd.f32 0.0, %v5876
        %v5878 = vpop.f32.mrb[0].mxu0
        %v5879 = vpop.f32.mrb[0].mxu0
        %v5880 = vadd.f32 0.0, %v5879
        %v5881 = vpop.f32.mrb[0].mxu0
        %5882 = vmatprep.mubr.bf16.mxu0 0
        %5883 = vmatmul.mubr.bf16.gmra.mrb[0].mxu0 %v5131
        %v5884 = vpop.f32.mrb[0].mxu0
        %v5885 = vadd.f32 0.0, %v5884
        %v5886 = vpop.f32.mrb[0].mxu0
        %v5887 = vpop.f32.mrb[0].mxu0
        %v5888 = vadd.f32 0.0, %v5887
        %v5889 = vpop.f32.mrb[0].mxu0
        %5890 = vmatprep.mubr.bf16.mxu0 0
        %5891 = vmatmul.mubr.bf16.gmra.mrb[0].mxu0 %v5143
        %v5892 = vpop.f32.mrb[0].mxu0
        %v5893 = vadd.f32 0.0, %v5892
        %v5894 = vpop.f32.mrb[0].mxu0
        %v5895 = vpop.f32.mrb[0].mxu0
        %v5896 = vadd.f32 0.0, %v5895
        %v5897 = vpop.f32.mrb[0].mxu0
        %5898 = vmatprep.mubr.bf16.mxu0 0
        %5899 = vmatmul.mubr.bf16.gmra.mrb[0].mxu0 %v5155
        %v5900 = vpop.f32.mrb[0].mxu0
        %v5901 = vadd.f32 0.0, %v5900
        %v5902 = vpop.f32.mrb[0].mxu0
        %v5903 = vpop.f32.mrb[0].mxu0
        %v5904 = vadd.f32 0.0, %v5903
        %v5905 = vpop.f32.mrb[0].mxu0
        %5906 = vmatprep.mubr.bf16.mxu0 0
        %5907 = vmatmul.mubr.bf16.gmra.mrb[0].mxu0 %v5441
        %v5908 = vpop.f32.mrb[0].mxu0
        %v5909 = vadd.f32 0.0, %v5908
        %v5910 = vpop.f32.mrb[0].mxu0
        %v5911 = vpop.f32.mrb[0].mxu0
        %v5912 = vadd.f32 0.0, %v5911
        %v5913 = vpop.f32.mrb[0].mxu0
        %5914 = vmatprep.mubr.bf16.mxu0 0
        %5915 = vmatmul.mubr.bf16.gmra.mrb[0].mxu0 %v5712
        %v5916 = vpop.f32.mrb[0].mxu0
        %v5917 = vadd.f32 0.0, %v5916
        %v5918 = vpop.f32.mrb[0].mxu0
        %v5919 = vpop.f32.mrb[0].mxu0
        %v5920 = vadd.f32 0.0, %v5919
        %v5921 = vpop.f32.mrb[0].mxu0
        %5922 = vdwg.mxu0
        %v5923 = vadd.f32 %v5652, %v5797
        %v5924 = vadd.f32 %v5653, %v5800
        %v5925 = vadd.f32 %v5654, %v5805
        %v5926 = vadd.f32 %v5655, %v5808
        %v5927 = vadd.f32 %v5656, %v5813
        %v5928 = vadd.f32 %v5657, %v5816
        %v5929 = vadd.f32 %v5658, %v5821
        %v5930 = vadd.f32 %v5659, %v5824
        %v5931 = vadd.f32 %v5660, %v5829
        %v5932 = vadd.f32 %v5661, %v5832
        %v5933 = vadd.f32 %v5662, %v5837
        %v5934 = vadd.f32 %v5663, %v5840
        %v5935 = vadd.f32 %v5664, %v5845
        %v5936 = vadd.f32 %v5665, %v5848
        %v5937 = vadd.f32 %v5666, %v5853
        %v5938 = vadd.f32 %v5667, %v5856
        %v5939 = vadd.f32 %v5668, %v5861
        %v5940 = vadd.f32 %v5669, %v5864
        %v5941 = vadd.f32 %v5670, %v5869
        %v5942 = vadd.f32 %v5671, %v5872
        %v5943 = vadd.f32 %v5672, %v5877
        %v5944 = vadd.f32 %v5673, %v5880
        %v5945 = vadd.f32 %v5674, %v5885
        %v5946 = vadd.f32 %v5675, %v5888
        %v5947 = vadd.f32 %v5676, %v5893
        %v5948 = vadd.f32 %v5677, %v5896
        %v5949 = vadd.f32 %v5678, %v5901
        %v5950 = vadd.f32 %v5679, %v5904
        %v5951 = vadd.f32 %v5680, %v5909
        %v5952 = vadd.f32 %v5681, %v5912
        %v5953 = vadd.f32 %v5682, %v5917
        %v5954 = vadd.f32 %v5683, %v5920
        %v5955 = vld [vmem:[#allocation2] sm:$0xfe]
        %v5956 = vld [vmem:[#allocation2 + $0x10] sm:$0xfe]
        %v5957 = vld [vmem:[#allocation2 + $0x20] sm:$0xfe]
        %v5958 = vld [vmem:[#allocation2 + $0x30] sm:$0xfe]
        %v5959 = vld [vmem:[#allocation2 + $0x40] sm:$0xfe]
        %v5960 = vld [vmem:[#allocation2 + $0x50] sm:$0xfe]
        %v5961 = vld [vmem:[#allocation2 + $0x60] sm:$0xfe]
        %v5962 = vld [vmem:[#allocation2 + $0x70] sm:$0xfe]
        %v5963 = vld [vmem:[#allocation2 + $0x80] sm:$0xfe]
        %v5964 = vld [vmem:[#allocation2 + $0x90] sm:$0xfe]
        %v5965 = vld [vmem:[#allocation2 + $0xa0] sm:$0xfe]
        %v5966 = vld [vmem:[#allocation2 + $0xb0] sm:$0xfe]
        %v5967 = vld [vmem:[#allocation2 + $0xc0] sm:$0xfe]
        %v5968 = vld [vmem:[#allocation2 + $0xd0] sm:$0xfe]
        %v5969 = vld [vmem:[#allocation2 + $0xe0] sm:$0xfe]
        %v5970 = vld [vmem:[#allocation2 + $0xf0] sm:$0xfe]
        %v5971 = vld [vmem:[#allocation2 + $0x100] sm:$0xfe]
        %v5972 = vld [vmem:[#allocation2 + $0x110] sm:$0xfe]
        %s5973 = scalar_lea.vmem [#allocation8], 128
        %v5974 = vld [vmem:[%s5973] sm:$0xf]
        %v5975 = vld [vmem:[%s5973 + $0x4] sm:$0xf]
        %v5976 = vld [vmem:[%s5973 + $0x8] sm:$0xf]
        %v5977 = vld [vmem:[%s5973 + $0xc] sm:$0xf]
        %v5978 = vld [vmem:[%s5973 + $0x10] sm:$0xf]
        %v5979 = vld [vmem:[%s5973 + $0x14] sm:$0xf]
        %v5980 = vld [vmem:[%s5973 + $0x18] sm:$0xf]
        %v5981 = vld [vmem:[%s5973 + $0x1c] sm:$0xf]
        %v5982 = vld [vmem:[%s5973 + $0x20] sm:$0xf]
        %v5983 = vld [vmem:[%s5973 + $0x24] sm:$0xf]
        %v5984 = vld [vmem:[%s5973 + $0x28] sm:$0xf]
        %v5985 = vld [vmem:[%s5973 + $0x2c] sm:$0xf]
        %v5986 = vld [vmem:[%s5973 + $0x30] sm:$0xf]
        %v5987 = vld [vmem:[%s5973 + $0x34] sm:$0xf]
        %v5988 = vld [vmem:[%s5973 + $0x38] sm:$0xf]
        %v5989 = vld [vmem:[%s5973 + $0x3c] sm:$0xf]
        %v6022 = vrot.slane %v5955, 1
        %v6023 = vrot.slane %v4912, 1
        %v6024 = vsel %vm2653, %v6022, %v6023
        %v6025 = vrot.slane %v5956, 1
        %v6026 = vrot.slane %v4914, 1
        %v6027 = vsel %vm2653, %v6025, %v6026
        %v6028 = vrot.slane %v5957, 1
        %v6029 = vrot.slane %v4916, 1
        %v6030 = vsel %vm2653, %v6028, %v6029
        %v6031 = vrot.slane %v5958, 1
        %v6032 = vrot.slane %v4918, 1
        %v6033 = vsel %vm2653, %v6031, %v6032
        %v6034 = vrot.slane %v5959, 1
        %v6035 = vrot.slane %v4920, 1
        %v6036 = vsel %vm2653, %v6034, %v6035
        %v6037 = vrot.slane %v5960, 1
        %v6038 = vrot.slane %v4922, 1
        %v6039 = vsel %vm2653, %v6037, %v6038
        %v6040 = vrot.slane %v5961, 1
        %v6041 = vrot.slane %v4924, 1
        %v6042 = vsel %vm2653, %v6040, %v6041
        %v6043 = vrot.slane %v5962, 1
        %v6044 = vrot.slane %v4926, 1
        %v6045 = vsel %vm2653, %v6043, %v6044
        %v6046 = vrot.slane %v5963, 1
        %v6047 = vrot.slane %v4928, 1
        %v6048 = vsel %vm2653, %v6046, %v6047
        %v6049 = vrot.slane %v5964, 1
        %v6050 = vrot.slane %v4930, 1
        %v6051 = vsel %vm2653, %v6049, %v6050
        %v6052 = vrot.slane %v5965, 1
        %v6053 = vrot.slane %v4932, 1
        %v6054 = vsel %vm2653, %v6052, %v6053
        %v6055 = vrot.slane %v5966, 1
        %v6056 = vrot.slane %v4934, 1
        %v6057 = vsel %vm2653, %v6055, %v6056
        %v6058 = vrot.slane %v5967, 1
        %v6059 = vrot.slane %v4936, 1
        %v6060 = vsel %vm2653, %v6058, %v6059
        %v6061 = vrot.slane %v5968, 1
        %v6062 = vrot.slane %v4938, 1
        %v6063 = vsel %vm2653, %v6061, %v6062
        %v6064 = vrot.slane %v5969, 1
        %v6065 = vrot.slane %v4940, 1
        %v6066 = vsel %vm2653, %v6064, %v6065
        %v6067 = vrot.slane %v5970, 1
        %v6068 = vrot.slane %v4942, 1
        %v6069 = vsel %vm2653, %v6067, %v6068
        %v6102 = vunpack.c.l.b16 %v5974
        %v6103 = vunpack.c.l.b16 %v5975
        %v6104 = vunpack.c.l.b16 %v5976
        %v6105 = vunpack.c.l.b16 %v5977
        %v6106 = vunpack.c.l.b16 %v5978
        %v6107 = vunpack.c.l.b16 %v5979
        %v6108 = vunpack.c.l.b16 %v5980
        %v6109 = vunpack.c.l.b16 %v5981
        %v6110 = vunpack.c.l.b16 %v5982
        %v6111 = vunpack.c.l.b16 %v5983
        %v6112 = vunpack.c.l.b16 %v5984
        %v6113 = vunpack.c.l.b16 %v5985
        %v6114 = vunpack.c.l.b16 %v5986
        %v6115 = vunpack.c.l.b16 %v5987
        %v6116 = vunpack.c.l.b16 %v5988
        %v6117 = vunpack.c.l.b16 %v5989
        %v6118 = vpack.c.b16 %v6103, %v6102
        %v6119 = vpack.c.b16 %v6105, %v6104
        %v6120 = vpack.c.b16 %v6107, %v6106
        %v6121 = vpack.c.b16 %v6109, %v6108
        %v6122 = vpack.c.b16 %v6111, %v6110
        %v6123 = vpack.c.b16 %v6113, %v6112
        %v6124 = vpack.c.b16 %v6115, %v6114
        %v6125 = vpack.c.b16 %v6117, %v6116
        %6134 = vmatprep.subr.bf16.mxu0 0
        %6135 = vmatpush1.bf16.msra.mxu0 %v6118
        %6136 = vmatprep.subr.bf16.mxu0 0
        %6137 = vmatpush1.bf16.msra.mxu0 %v6119
        %6138 = vmatprep.subr.bf16.mxu0 0
        %6139 = vmatpush1.bf16.msra.mxu0 %v6120
        %6140 = vmatprep.subr.bf16.mxu0 0
        %6141 = vmatpush1.bf16.msra.mxu0 %v6121
        %6142 = vmatprep.subr.bf16.mxu0 0
        %6143 = vmatpush1.bf16.msra.mxu0 %v6122
        %6144 = vmatprep.subr.bf16.mxu0 0
        %6145 = vmatpush1.bf16.msra.mxu0 %v6123
        %6146 = vmatprep.subr.bf16.mxu0 0
        %6147 = vmatpush1.bf16.msra.mxu0 %v6124
        %6148 = vmatprep.subr.bf16.mxu0 0
        %6149 = vmatpush1.bf16.msra.mxu0 %v6125
        %6150 = vmatprep.subr.bf16.mxu0 0
        %6151 = vmatpush1.bf16.msra.mxu0 0
        %6152 = vmatprep.subr.bf16.mxu0 0
        %6153 = vmatpush1.bf16.msra.mxu0 0
        %6154 = vmatprep.subr.bf16.mxu0 0
        %6155 = vmatpush1.bf16.msra.mxu0 0
        %6156 = vmatprep.subr.bf16.mxu0 0
        %6157 = vmatpush1.bf16.msra.mxu0 0
        %6158 = vmatprep.subr.bf16.mxu0 0
        %6159 = vmatpush1.bf16.msra.mxu0 0
        %6160 = vmatprep.subr.bf16.mxu0 0
        %6161 = vmatpush1.bf16.msra.mxu0 0
        %6162 = vmatprep.subr.bf16.mxu0 0
        %6163 = vmatpush1.bf16.msra.mxu0 0
        %6164 = vmatprep.subr.bf16.mxu0 0
        %6165 = vmatpush1.bf16.msra.mxu0 0
        %6166 = vmatprep.mubr.bf16.mxu0 0
        %6167 = vmatmul.mubr.bf16.gmra.mrb[0].mxu0 %v6024
        %v6168 = vpop.f32.mrb[0].mxu0
        %v6169 = vadd.f32 0.0, %v6168
        %v6170 = vpop.f32.mrb[0].mxu0
        %v6171 = vpop.f32.mrb[0].mxu0
        %v6172 = vadd.f32 0.0, %v6171
        %v6173 = vpop.f32.mrb[0].mxu0
        %6174 = vmatprep.mubr.bf16.mxu0 0
        %6175 = vmatmul.mubr.bf16.gmra.mrb[0].mxu0 %v6027
        %v6176 = vpop.f32.mrb[0].mxu0
        %v6177 = vadd.f32 0.0, %v6176
        %v6178 = vpop.f32.mrb[0].mxu0
        %v6179 = vpop.f32.mrb[0].mxu0
        %v6180 = vadd.f32 0.0, %v6179
        %v6181 = vpop.f32.mrb[0].mxu0
        %6182 = vmatprep.mubr.bf16.mxu0 0
        %6183 = vmatmul.mubr.bf16.gmra.mrb[0].mxu0 %v6030
        %v6184 = vpop.f32.mrb[0].mxu0
        %v6185 = vadd.f32 0.0, %v6184
        %v6186 = vpop.f32.mrb[0].mxu0
        %v6187 = vpop.f32.mrb[0].mxu0
        %v6188 = vadd.f32 0.0, %v6187
        %v6189 = vpop.f32.mrb[0].mxu0
        %6190 = vmatprep.mubr.bf16.mxu0 0
        %6191 = vmatmul.mubr.bf16.gmra.mrb[0].mxu0 %v6033
        %v6192 = vpop.f32.mrb[0].mxu0
        %v6193 = vadd.f32 0.0, %v6192
        %v6194 = vpop.f32.mrb[0].mxu0
        %v6195 = vpop.f32.mrb[0].mxu0
        %v6196 = vadd.f32 0.0, %v6195
        %v6197 = vpop.f32.mrb[0].mxu0
        %6198 = vmatprep.mubr.bf16.mxu0 0
        %6199 = vmatmul.mubr.bf16.gmra.mrb[0].mxu0 %v6036
        %v6200 = vpop.f32.mrb[0].mxu0
        %v6201 = vadd.f32 0.0, %v6200
        %v6202 = vpop.f32.mrb[0].mxu0
        %v6203 = vpop.f32.mrb[0].mxu0
        %v6204 = vadd.f32 0.0, %v6203
        %v6205 = vpop.f32.mrb[0].mxu0
        %6206 = vmatprep.mubr.bf16.mxu0 0
        %6207 = vmatmul.mubr.bf16.gmra.mrb[0].mxu0 %v6039
        %v6208 = vpop.f32.mrb[0].mxu0
        %v6209 = vadd.f32 0.0, %v6208
        %v6210 = vpop.f32.mrb[0].mxu0
        %v6211 = vpop.f32.mrb[0].mxu0
        %v6212 = vadd.f32 0.0, %v6211
        %v6213 = vpop.f32.mrb[0].mxu0
        %6214 = vmatprep.mubr.bf16.mxu0 0
        %6215 = vmatmul.mubr.bf16.gmra.mrb[0].mxu0 %v6042
        %v6216 = vpop.f32.mrb[0].mxu0
        %v6217 = vadd.f32 0.0, %v6216
        %v6218 = vpop.f32.mrb[0].mxu0
        %v6219 = vpop.f32.mrb[0].mxu0
        %v6220 = vadd.f32 0.0, %v6219
        %v6221 = vpop.f32.mrb[0].mxu0
        %6222 = vmatprep.mubr.bf16.mxu0 0
        %6223 = vmatmul.mubr.bf16.gmra.mrb[0].mxu0 %v6045
        %v6224 = vpop.f32.mrb[0].mxu0
        %v6225 = vadd.f32 0.0, %v6224
        %v6226 = vpop.f32.mrb[0].mxu0
        %v6227 = vpop.f32.mrb[0].mxu0
        %v6228 = vadd.f32 0.0, %v6227
        %v6229 = vpop.f32.mrb[0].mxu0
        %6230 = vmatprep.mubr.bf16.mxu0 0
        %6231 = vmatmul.mubr.bf16.gmra.mrb[0].mxu0 %v6048
        %v6232 = vpop.f32.mrb[0].mxu0
        %v6233 = vadd.f32 0.0, %v6232
        %v6234 = vpop.f32.mrb[0].mxu0
        %v6235 = vpop.f32.mrb[0].mxu0
        %v6236 = vadd.f32 0.0, %v6235
        %v6237 = vpop.f32.mrb[0].mxu0
        %6238 = vmatprep.mubr.bf16.mxu0 0
        %6239 = vmatmul.mubr.bf16.gmra.mrb[0].mxu0 %v6051
        %v6240 = vpop.f32.mrb[0].mxu0
        %v6241 = vadd.f32 0.0, %v6240
        %v6242 = vpop.f32.mrb[0].mxu0
        %v6243 = vpop.f32.mrb[0].mxu0
        %v6244 = vadd.f32 0.0, %v6243
        %v6245 = vpop.f32.mrb[0].mxu0
        %6246 = vmatprep.mubr.bf16.mxu0 0
        %6247 = vmatmul.mubr.bf16.gmra.mrb[0].mxu0 %v6054
        %v6248 = vpop.f32.mrb[0].mxu0
        %v6249 = vadd.f32 0.0, %v6248
        %v6250 = vpop.f32.mrb[0].mxu0
        %v6251 = vpop.f32.mrb[0].mxu0
        %v6252 = vadd.f32 0.0, %v6251
        %v6253 = vpop.f32.mrb[0].mxu0
        %6254 = vmatprep.mubr.bf16.mxu0 0
        %6255 = vmatmul.mubr.bf16.gmra.mrb[0].mxu0 %v6057
        %v6256 = vpop.f32.mrb[0].mxu0
        %v6257 = vadd.f32 0.0, %v6256
        %v6258 = vpop.f32.mrb[0].mxu0
        %v6259 = vpop.f32.mrb[0].mxu0
        %v6260 = vadd.f32 0.0, %v6259
        %v6261 = vpop.f32.mrb[0].mxu0
        %6262 = vmatprep.mubr.bf16.mxu0 0
        %6263 = vmatmul.mubr.bf16.gmra.mrb[0].mxu0 %v6060
        %v6264 = vpop.f32.mrb[0].mxu0
        %v6265 = vadd.f32 0.0, %v6264
        %v6266 = vpop.f32.mrb[0].mxu0
        %v6267 = vpop.f32.mrb[0].mxu0
        %v6268 = vadd.f32 0.0, %v6267
        %v6269 = vpop.f32.mrb[0].mxu0
        %6270 = vmatprep.mubr.bf16.mxu0 0
        %6271 = vmatmul.mubr.bf16.gmra.mrb[0].mxu0 %v6063
        %v6272 = vpop.f32.mrb[0].mxu0
        %v6273 = vadd.f32 0.0, %v6272
        %v6274 = vpop.f32.mrb[0].mxu0
        %v6275 = vpop.f32.mrb[0].mxu0
        %v6276 = vadd.f32 0.0, %v6275
        %v6277 = vpop.f32.mrb[0].mxu0
        %6278 = vmatprep.mubr.bf16.mxu0 0
        %6279 = vmatmul.mubr.bf16.gmra.mrb[0].mxu0 %v6066
        %v6280 = vpop.f32.mrb[0].mxu0
        %v6281 = vadd.f32 0.0, %v6280
        %v6282 = vpop.f32.mrb[0].mxu0
        %v6283 = vpop.f32.mrb[0].mxu0
        %v6284 = vadd.f32 0.0, %v6283
        %v6285 = vpop.f32.mrb[0].mxu0
        %6286 = vmatprep.mubr.bf16.mxu0 0
        %6287 = vmatmul.mubr.bf16.gmra.mrb[0].mxu0 %v6069
        %v6288 = vpop.f32.mrb[0].mxu0
        %v6289 = vadd.f32 0.0, %v6288
        %v6290 = vpop.f32.mrb[0].mxu0
        %v6291 = vpop.f32.mrb[0].mxu0
        %v6292 = vadd.f32 0.0, %v6291
        %v6293 = vpop.f32.mrb[0].mxu0
        %6294 = vdwg.mxu0
        %v6295 = vadd.f32 %v5923, %v6169
        %v6296 = vadd.f32 %v5924, %v6172
        %v6297 = vadd.f32 %v5925, %v6177
        %v6298 = vadd.f32 %v5926, %v6180
        %v6299 = vadd.f32 %v5927, %v6185
        %v6300 = vadd.f32 %v5928, %v6188
        %v6301 = vadd.f32 %v5929, %v6193
        %v6302 = vadd.f32 %v5930, %v6196
        %v6303 = vadd.f32 %v5931, %v6201
        %v6304 = vadd.f32 %v5932, %v6204
        %v6305 = vadd.f32 %v5933, %v6209
        %v6306 = vadd.f32 %v5934, %v6212
        %v6307 = vadd.f32 %v5935, %v6217
        %v6308 = vadd.f32 %v5936, %v6220
        %v6309 = vadd.f32 %v5937, %v6225
        %v6310 = vadd.f32 %v5938, %v6228
        %v6311 = vadd.f32 %v5939, %v6233
        %v6312 = vadd.f32 %v5940, %v6236
        %v6313 = vadd.f32 %v5941, %v6241
        %v6314 = vadd.f32 %v5942, %v6244
        %v6315 = vadd.f32 %v5943, %v6249
        %v6316 = vadd.f32 %v5944, %v6252
        %v6317 = vadd.f32 %v5945, %v6257
        %v6318 = vadd.f32 %v5946, %v6260
        %v6319 = vadd.f32 %v5947, %v6265
        %v6320 = vadd.f32 %v5948, %v6268
        %v6321 = vadd.f32 %v5949, %v6273
        %v6322 = vadd.f32 %v5950, %v6276
        %v6323 = vadd.f32 %v5951, %v6281
        %v6324 = vadd.f32 %v5952, %v6284
        %v6325 = vadd.f32 %v5953, %v6289
        %v6326 = vadd.f32 %v5954, %v6292
        %s6327 = scalar_lea.vmem [#allocation8], 320
        %v6328 = vld [vmem:[%s6327] sm:$0xf]
        %v6329 = vld [vmem:[%s6327 + $0x4] sm:$0xf]
        %v6330 = vld [vmem:[%s6327 + $0x8] sm:$0xf]
        %v6331 = vld [vmem:[%s6327 + $0xc] sm:$0xf]
        %v6332 = vld [vmem:[%s6327 + $0x10] sm:$0xf]
        %v6333 = vld [vmem:[%s6327 + $0x14] sm:$0xf]
        %v6334 = vld [vmem:[%s6327 + $0x18] sm:$0xf]
        %v6335 = vld [vmem:[%s6327 + $0x1c] sm:$0xf]
        %v6336 = vld [vmem:[%s6327 + $0x20] sm:$0xf]
        %v6337 = vld [vmem:[%s6327 + $0x24] sm:$0xf]
        %v6338 = vld [vmem:[%s6327 + $0x28] sm:$0xf]
        %v6339 = vld [vmem:[%s6327 + $0x2c] sm:$0xf]
        %v6340 = vld [vmem:[%s6327 + $0x30] sm:$0xf]
        %v6341 = vld [vmem:[%s6327 + $0x34] sm:$0xf]
        %v6342 = vld [vmem:[%s6327 + $0x38] sm:$0xf]
        %v6343 = vld [vmem:[%s6327 + $0x3c] sm:$0xf]
        %v6346 = vrot.slane %v5971, 1
        %v6347 = vrot.slane %v4944, 1
        %v6348 = vsel %vm2653, %v6346, %v6347
        %v6366 = vunpack.c.l.b16 %v6328
        %v6367 = vunpack.c.l.b16 %v6329
        %v6368 = vunpack.c.l.b16 %v6330
        %v6369 = vunpack.c.l.b16 %v6331
        %v6370 = vunpack.c.l.b16 %v6332
        %v6371 = vunpack.c.l.b16 %v6333
        %v6372 = vunpack.c.l.b16 %v6334
        %v6373 = vunpack.c.l.b16 %v6335
        %v6374 = vunpack.c.l.b16 %v6336
        %v6375 = vunpack.c.l.b16 %v6337
        %v6376 = vunpack.c.l.b16 %v6338
        %v6377 = vunpack.c.l.b16 %v6339
        %v6378 = vunpack.c.l.b16 %v6340
        %v6379 = vunpack.c.l.b16 %v6341
        %v6380 = vunpack.c.l.b16 %v6342
        %v6381 = vunpack.c.l.b16 %v6343
        %v6382 = vpack.c.b16 %v6367, %v6366
        %v6383 = vpack.c.b16 %v6369, %v6368
        %v6384 = vpack.c.b16 %v6371, %v6370
        %v6385 = vpack.c.b16 %v6373, %v6372
        %v6386 = vpack.c.b16 %v6375, %v6374
        %v6387 = vpack.c.b16 %v6377, %v6376
        %v6388 = vpack.c.b16 %v6379, %v6378
        %v6389 = vpack.c.b16 %v6381, %v6380
        %6398 = vmatprep.subr.bf16.mxu0 0
        %6399 = vmatpush1.bf16.msra.mxu0 %v6382
        %6400 = vmatprep.subr.bf16.mxu0 0
        %6401 = vmatpush1.bf16.msra.mxu0 %v6383
        %6402 = vmatprep.subr.bf16.mxu0 0
        %6403 = vmatpush1.bf16.msra.mxu0 %v6384
        %6404 = vmatprep.subr.bf16.mxu0 0
        %6405 = vmatpush1.bf16.msra.mxu0 %v6385
        %6406 = vmatprep.subr.bf16.mxu0 0
        %6407 = vmatpush1.bf16.msra.mxu0 %v6386
        %6408 = vmatprep.subr.bf16.mxu0 0
        %6409 = vmatpush1.bf16.msra.mxu0 %v6387
        %6410 = vmatprep.subr.bf16.mxu0 0
        %6411 = vmatpush1.bf16.msra.mxu0 %v6388
        %6412 = vmatprep.subr.bf16.mxu0 0
        %6413 = vmatpush1.bf16.msra.mxu0 %v6389
        %6414 = vmatprep.subr.bf16.mxu0 0
        %6415 = vmatpush1.bf16.msra.mxu0 0
        %6416 = vmatprep.subr.bf16.mxu0 0
        %6417 = vmatpush1.bf16.msra.mxu0 0
        %6418 = vmatprep.subr.bf16.mxu0 0
        %6419 = vmatpush1.bf16.msra.mxu0 0
        %6420 = vmatprep.subr.bf16.mxu0 0
        %6421 = vmatpush1.bf16.msra.mxu0 0
        %6422 = vmatprep.subr.bf16.mxu0 0
        %6423 = vmatpush1.bf16.msra.mxu0 0
        %6424 = vmatprep.subr.bf16.mxu0 0
        %6425 = vmatpush1.bf16.msra.mxu0 0
        %6426 = vmatprep.subr.bf16.mxu0 0
        %6427 = vmatpush1.bf16.msra.mxu0 0
        %6428 = vmatprep.subr.bf16.mxu0 0
        %6429 = vmatpush1.bf16.msra.mxu0 0
        %6430 = vmatprep.mubr.bf16.mxu0 0
        %6431 = vmatmul.mubr.bf16.gmra.mrb[0].mxu0 %v6027
        %v6432 = vpop.f32.mrb[0].mxu0
        %v6433 = vadd.f32 0.0, %v6432
        %v6434 = vpop.f32.mrb[0].mxu0
        %v6435 = vpop.f32.mrb[0].mxu0
        %v6436 = vadd.f32 0.0, %v6435
        %v6437 = vpop.f32.mrb[0].mxu0
        %6438 = vmatprep.mubr.bf16.mxu0 0
        %6439 = vmatmul.mubr.bf16.gmra.mrb[0].mxu0 %v6030
        %v6440 = vpop.f32.mrb[0].mxu0
        %v6441 = vadd.f32 0.0, %v6440
        %v6442 = vpop.f32.mrb[0].mxu0
        %v6443 = vpop.f32.mrb[0].mxu0
        %v6444 = vadd.f32 0.0, %v6443
        %v6445 = vpop.f32.mrb[0].mxu0
        %6446 = vmatprep.mubr.bf16.mxu0 0
        %6447 = vmatmul.mubr.bf16.gmra.mrb[0].mxu0 %v6033
        %v6448 = vpop.f32.mrb[0].mxu0
        %v6449 = vadd.f32 0.0, %v6448
        %v6450 = vpop.f32.mrb[0].mxu0
        %v6451 = vpop.f32.mrb[0].mxu0
        %v6452 = vadd.f32 0.0, %v6451
        %v6453 = vpop.f32.mrb[0].mxu0
        %6454 = vmatprep.mubr.bf16.mxu0 0
        %6455 = vmatmul.mubr.bf16.gmra.mrb[0].mxu0 %v6036
        %v6456 = vpop.f32.mrb[0].mxu0
        %v6457 = vadd.f32 0.0, %v6456
        %v6458 = vpop.f32.mrb[0].mxu0
        %v6459 = vpop.f32.mrb[0].mxu0
        %v6460 = vadd.f32 0.0, %v6459
        %v6461 = vpop.f32.mrb[0].mxu0
        %6462 = vmatprep.mubr.bf16.mxu0 0
        %6463 = vmatmul.mubr.bf16.gmra.mrb[0].mxu0 %v6039
        %v6464 = vpop.f32.mrb[0].mxu0
        %v6465 = vadd.f32 0.0, %v6464
        %v6466 = vpop.f32.mrb[0].mxu0
        %v6467 = vpop.f32.mrb[0].mxu0
        %v6468 = vadd.f32 0.0, %v6467
        %v6469 = vpop.f32.mrb[0].mxu0
        %6470 = vmatprep.mubr.bf16.mxu0 0
        %6471 = vmatmul.mubr.bf16.gmra.mrb[0].mxu0 %v6042
        %v6472 = vpop.f32.mrb[0].mxu0
        %v6473 = vadd.f32 0.0, %v6472
        %v6474 = vpop.f32.mrb[0].mxu0
        %v6475 = vpop.f32.mrb[0].mxu0
        %v6476 = vadd.f32 0.0, %v6475
        %v6477 = vpop.f32.mrb[0].mxu0
        %6478 = vmatprep.mubr.bf16.mxu0 0
        %6479 = vmatmul.mubr.bf16.gmra.mrb[0].mxu0 %v6045
        %v6480 = vpop.f32.mrb[0].mxu0
        %v6481 = vadd.f32 0.0, %v6480
        %v6482 = vpop.f32.mrb[0].mxu0
        %v6483 = vpop.f32.mrb[0].mxu0
        %v6484 = vadd.f32 0.0, %v6483
        %v6485 = vpop.f32.mrb[0].mxu0
        %6486 = vmatprep.mubr.bf16.mxu0 0
        %6487 = vmatmul.mubr.bf16.gmra.mrb[0].mxu0 %v6048
        %v6488 = vpop.f32.mrb[0].mxu0
        %v6489 = vadd.f32 0.0, %v6488
        %v6490 = vpop.f32.mrb[0].mxu0
        %v6491 = vpop.f32.mrb[0].mxu0
        %v6492 = vadd.f32 0.0, %v6491
        %v6493 = vpop.f32.mrb[0].mxu0
        %6494 = vmatprep.mubr.bf16.mxu0 0
        %6495 = vmatmul.mubr.bf16.gmra.mrb[0].mxu0 %v6051
        %v6496 = vpop.f32.mrb[0].mxu0
        %v6497 = vadd.f32 0.0, %v6496
        %v6498 = vpop.f32.mrb[0].mxu0
        %v6499 = vpop.f32.mrb[0].mxu0
        %v6500 = vadd.f32 0.0, %v6499
        %v6501 = vpop.f32.mrb[0].mxu0
        %6502 = vmatprep.mubr.bf16.mxu0 0
        %6503 = vmatmul.mubr.bf16.gmra.mrb[0].mxu0 %v6054
        %v6504 = vpop.f32.mrb[0].mxu0
        %v6505 = vadd.f32 0.0, %v6504
        %v6506 = vpop.f32.mrb[0].mxu0
        %v6507 = vpop.f32.mrb[0].mxu0
        %v6508 = vadd.f32 0.0, %v6507
        %v6509 = vpop.f32.mrb[0].mxu0
        %6510 = vmatprep.mubr.bf16.mxu0 0
        %6511 = vmatmul.mubr.bf16.gmra.mrb[0].mxu0 %v6057
        %v6512 = vpop.f32.mrb[0].mxu0
        %v6513 = vadd.f32 0.0, %v6512
        %v6514 = vpop.f32.mrb[0].mxu0
        %v6515 = vpop.f32.mrb[0].mxu0
        %v6516 = vadd.f32 0.0, %v6515
        %v6517 = vpop.f32.mrb[0].mxu0
        %6518 = vmatprep.mubr.bf16.mxu0 0
        %6519 = vmatmul.mubr.bf16.gmra.mrb[0].mxu0 %v6060
        %v6520 = vpop.f32.mrb[0].mxu0
        %v6521 = vadd.f32 0.0, %v6520
        %v6522 = vpop.f32.mrb[0].mxu0
        %v6523 = vpop.f32.mrb[0].mxu0
        %v6524 = vadd.f32 0.0, %v6523
        %v6525 = vpop.f32.mrb[0].mxu0
        %6526 = vmatprep.mubr.bf16.mxu0 0
        %6527 = vmatmul.mubr.bf16.gmra.mrb[0].mxu0 %v6063
        %v6528 = vpop.f32.mrb[0].mxu0
        %v6529 = vadd.f32 0.0, %v6528
        %v6530 = vpop.f32.mrb[0].mxu0
        %v6531 = vpop.f32.mrb[0].mxu0
        %v6532 = vadd.f32 0.0, %v6531
        %v6533 = vpop.f32.mrb[0].mxu0
        %6534 = vmatprep.mubr.bf16.mxu0 0
        %6535 = vmatmul.mubr.bf16.gmra.mrb[0].mxu0 %v6066
        %v6536 = vpop.f32.mrb[0].mxu0
        %v6537 = vadd.f32 0.0, %v6536
        %v6538 = vpop.f32.mrb[0].mxu0
        %v6539 = vpop.f32.mrb[0].mxu0
        %v6540 = vadd.f32 0.0, %v6539
        %v6541 = vpop.f32.mrb[0].mxu0
        %6542 = vmatprep.mubr.bf16.mxu0 0
        %6543 = vmatmul.mubr.bf16.gmra.mrb[0].mxu0 %v6069
        %v6544 = vpop.f32.mrb[0].mxu0
        %v6545 = vadd.f32 0.0, %v6544
        %v6546 = vpop.f32.mrb[0].mxu0
        %v6547 = vpop.f32.mrb[0].mxu0
        %v6548 = vadd.f32 0.0, %v6547
        %v6549 = vpop.f32.mrb[0].mxu0
        %6550 = vmatprep.mubr.bf16.mxu0 0
        %6551 = vmatmul.mubr.bf16.gmra.mrb[0].mxu0 %v6348
        %v6552 = vpop.f32.mrb[0].mxu0
        %v6553 = vadd.f32 0.0, %v6552
        %v6554 = vpop.f32.mrb[0].mxu0
        %v6555 = vpop.f32.mrb[0].mxu0
        %v6556 = vadd.f32 0.0, %v6555
        %v6557 = vpop.f32.mrb[0].mxu0
        %6558 = vdwg.mxu0
        %v6559 = vadd.f32 %v6295, %v6433
        %v6560 = vadd.f32 %v6296, %v6436
        %v6561 = vadd.f32 %v6297, %v6441
        %v6562 = vadd.f32 %v6298, %v6444
        %v6563 = vadd.f32 %v6299, %v6449
        %v6564 = vadd.f32 %v6300, %v6452
        %v6565 = vadd.f32 %v6301, %v6457
        %v6566 = vadd.f32 %v6302, %v6460
        %v6567 = vadd.f32 %v6303, %v6465
        %v6568 = vadd.f32 %v6304, %v6468
        %v6569 = vadd.f32 %v6305, %v6473
        %v6570 = vadd.f32 %v6306, %v6476
        %v6571 = vadd.f32 %v6307, %v6481
        %v6572 = vadd.f32 %v6308, %v6484
        %v6573 = vadd.f32 %v6309, %v6489
        %v6574 = vadd.f32 %v6310, %v6492
        %v6575 = vadd.f32 %v6311, %v6497
        %v6576 = vadd.f32 %v6312, %v6500
        %v6577 = vadd.f32 %v6313, %v6505
        %v6578 = vadd.f32 %v6314, %v6508
        %v6579 = vadd.f32 %v6315, %v6513
        %v6580 = vadd.f32 %v6316, %v6516
        %v6581 = vadd.f32 %v6317, %v6521
        %v6582 = vadd.f32 %v6318, %v6524
        %v6583 = vadd.f32 %v6319, %v6529
        %v6584 = vadd.f32 %v6320, %v6532
        %v6585 = vadd.f32 %v6321, %v6537
        %v6586 = vadd.f32 %v6322, %v6540
        %v6587 = vadd.f32 %v6323, %v6545
        %v6588 = vadd.f32 %v6324, %v6548
        %v6589 = vadd.f32 %v6325, %v6553
        %v6590 = vadd.f32 %v6326, %v6556
        %s6591 = scalar_lea.vmem [#allocation8], 512
        %v6592 = vld [vmem:[%s6591] sm:$0xf]
        %v6593 = vld [vmem:[%s6591 + $0x4] sm:$0xf]
        %v6594 = vld [vmem:[%s6591 + $0x8] sm:$0xf]
        %v6595 = vld [vmem:[%s6591 + $0xc] sm:$0xf]
        %v6596 = vld [vmem:[%s6591 + $0x10] sm:$0xf]
        %v6597 = vld [vmem:[%s6591 + $0x14] sm:$0xf]
        %v6598 = vld [vmem:[%s6591 + $0x18] sm:$0xf]
        %v6599 = vld [vmem:[%s6591 + $0x1c] sm:$0xf]
        %v6600 = vld [vmem:[%s6591 + $0x20] sm:$0xf]
        %v6601 = vld [vmem:[%s6591 + $0x24] sm:$0xf]
        %v6602 = vld [vmem:[%s6591 + $0x28] sm:$0xf]
        %v6603 = vld [vmem:[%s6591 + $0x2c] sm:$0xf]
        %v6604 = vld [vmem:[%s6591 + $0x30] sm:$0xf]
        %v6605 = vld [vmem:[%s6591 + $0x34] sm:$0xf]
        %v6606 = vld [vmem:[%s6591 + $0x38] sm:$0xf]
        %v6607 = vld [vmem:[%s6591 + $0x3c] sm:$0xf]
        %v6610 = vrot.slane %v5972, 1
        %v6611 = vrot.slane %v4946, 1
        %v6612 = vsel %vm2653, %v6610, %v6611
        %v6630 = vunpack.c.l.b16 %v6592
        %v6631 = vunpack.c.l.b16 %v6593
        %v6632 = vunpack.c.l.b16 %v6594
        %v6633 = vunpack.c.l.b16 %v6595
        %v6634 = vunpack.c.l.b16 %v6596
        %v6635 = vunpack.c.l.b16 %v6597
        %v6636 = vunpack.c.l.b16 %v6598
        %v6637 = vunpack.c.l.b16 %v6599
        %v6638 = vunpack.c.l.b16 %v6600
        %v6639 = vunpack.c.l.b16 %v6601
        %v6640 = vunpack.c.l.b16 %v6602
        %v6641 = vunpack.c.l.b16 %v6603
        %v6642 = vunpack.c.l.b16 %v6604
        %v6643 = vunpack.c.l.b16 %v6605
        %v6644 = vunpack.c.l.b16 %v6606
        %v6645 = vunpack.c.l.b16 %v6607
        %v6646 = vpack.c.b16 %v6631, %v6630
        %v6647 = vpack.c.b16 %v6633, %v6632
        %v6648 = vpack.c.b16 %v6635, %v6634
        %v6649 = vpack.c.b16 %v6637, %v6636
        %v6650 = vpack.c.b16 %v6639, %v6638
        %v6651 = vpack.c.b16 %v6641, %v6640
        %v6652 = vpack.c.b16 %v6643, %v6642
        %v6653 = vpack.c.b16 %v6645, %v6644
        %6662 = vmatprep.subr.bf16.mxu0 0
        %6663 = vmatpush1.bf16.msra.mxu0 %v6646
        %6664 = vmatprep.subr.bf16.mxu0 0
        %6665 = vmatpush1.bf16.msra.mxu0 %v6647
        %6666 = vmatprep.subr.bf16.mxu0 0
        %6667 = vmatpush1.bf16.msra.mxu0 %v6648
        %6668 = vmatprep.subr.bf16.mxu0 0
        %6669 = vmatpush1.bf16.msra.mxu0 %v6649
        %6670 = vmatprep.subr.bf16.mxu0 0
        %6671 = vmatpush1.bf16.msra.mxu0 %v6650
        %6672 = vmatprep.subr.bf16.mxu0 0
        %6673 = vmatpush1.bf16.msra.mxu0 %v6651
        %6674 = vmatprep.subr.bf16.mxu0 0
        %6675 = vmatpush1.bf16.msra.mxu0 %v6652
        %6676 = vmatprep.subr.bf16.mxu0 0
        %6677 = vmatpush1.bf16.msra.mxu0 %v6653
        %6678 = vmatprep.subr.bf16.mxu0 0
        %6679 = vmatpush1.bf16.msra.mxu0 0
        %6680 = vmatprep.subr.bf16.mxu0 0
        %6681 = vmatpush1.bf16.msra.mxu0 0
        %6682 = vmatprep.subr.bf16.mxu0 0
        %6683 = vmatpush1.bf16.msra.mxu0 0
        %6684 = vmatprep.subr.bf16.mxu0 0
        %6685 = vmatpush1.bf16.msra.mxu0 0
        %6686 = vmatprep.subr.bf16.mxu0 0
        %6687 = vmatpush1.bf16.msra.mxu0 0
        %6688 = vmatprep.subr.bf16.mxu0 0
        %6689 = vmatpush1.bf16.msra.mxu0 0
        %6690 = vmatprep.subr.bf16.mxu0 0
        %6691 = vmatpush1.bf16.msra.mxu0 0
        %6692 = vmatprep.subr.bf16.mxu0 0
        %6693 = vmatpush1.bf16.msra.mxu0 0
        %6694 = vmatprep.mubr.bf16.mxu0 0
        %6695 = vmatmul.mubr.bf16.gmra.mrb[0].mxu0 %v6030
        %v6696 = vpop.f32.mrb[0].mxu0
        %v6697 = vadd.f32 0.0, %v6696
        %v6698 = vpop.f32.mrb[0].mxu0
        %v6699 = vpop.f32.mrb[0].mxu0
        %v6700 = vadd.f32 0.0, %v6699
        %v6701 = vpop.f32.mrb[0].mxu0
        %6702 = vmatprep.mubr.bf16.mxu0 0
        %6703 = vmatmul.mubr.bf16.gmra.mrb[0].mxu0 %v6033
        %v6704 = vpop.f32.mrb[0].mxu0
        %v6705 = vadd.f32 0.0, %v6704
        %v6706 = vpop.f32.mrb[0].mxu0
        %v6707 = vpop.f32.mrb[0].mxu0
        %v6708 = vadd.f32 0.0, %v6707
        %v6709 = vpop.f32.mrb[0].mxu0
        %6710 = vmatprep.mubr.bf16.mxu0 0
        %6711 = vmatmul.mubr.bf16.gmra.mrb[0].mxu0 %v6036
        %v6712 = vpop.f32.mrb[0].mxu0
        %v6713 = vadd.f32 0.0, %v6712
        %v6714 = vpop.f32.mrb[0].mxu0
        %v6715 = vpop.f32.mrb[0].mxu0
        %v6716 = vadd.f32 0.0, %v6715
        %v6717 = vpop.f32.mrb[0].mxu0
        %6718 = vmatprep.mubr.bf16.mxu0 0
        %6719 = vmatmul.mubr.bf16.gmra.mrb[0].mxu0 %v6039
        %v6720 = vpop.f32.mrb[0].mxu0
        %v6721 = vadd.f32 0.0, %v6720
        %v6722 = vpop.f32.mrb[0].mxu0
        %v6723 = vpop.f32.mrb[0].mxu0
        %v6724 = vadd.f32 0.0, %v6723
        %v6725 = vpop.f32.mrb[0].mxu0
        %6726 = vmatprep.mubr.bf16.mxu0 0
        %6727 = vmatmul.mubr.bf16.gmra.mrb[0].mxu0 %v6042
        %v6728 = vpop.f32.mrb[0].mxu0
        %v6729 = vadd.f32 0.0, %v6728
        %v6730 = vpop.f32.mrb[0].mxu0
        %v6731 = vpop.f32.mrb[0].mxu0
        %v6732 = vadd.f32 0.0, %v6731
        %v6733 = vpop.f32.mrb[0].mxu0
        %6734 = vmatprep.mubr.bf16.mxu0 0
        %6735 = vmatmul.mubr.bf16.gmra.mrb[0].mxu0 %v6045
        %v6736 = vpop.f32.mrb[0].mxu0
        %v6737 = vadd.f32 0.0, %v6736
        %v6738 = vpop.f32.mrb[0].mxu0
        %v6739 = vpop.f32.mrb[0].mxu0
        %v6740 = vadd.f32 0.0, %v6739
        %v6741 = vpop.f32.mrb[0].mxu0
        %6742 = vmatprep.mubr.bf16.mxu0 0
        %6743 = vmatmul.mubr.bf16.gmra.mrb[0].mxu0 %v6048
        %v6744 = vpop.f32.mrb[0].mxu0
        %v6745 = vadd.f32 0.0, %v6744
        %v6746 = vpop.f32.mrb[0].mxu0
        %v6747 = vpop.f32.mrb[0].mxu0
        %v6748 = vadd.f32 0.0, %v6747
        %v6749 = vpop.f32.mrb[0].mxu0
        %6750 = vmatprep.mubr.bf16.mxu0 0
        %6751 = vmatmul.mubr.bf16.gmra.mrb[0].mxu0 %v6051
        %v6752 = vpop.f32.mrb[0].mxu0
        %v6753 = vadd.f32 0.0, %v6752
        %v6754 = vpop.f32.mrb[0].mxu0
        %v6755 = vpop.f32.mrb[0].mxu0
        %v6756 = vadd.f32 0.0, %v6755
        %v6757 = vpop.f32.mrb[0].mxu0
        %6758 = vmatprep.mubr.bf16.mxu0 0
        %6759 = vmatmul.mubr.bf16.gmra.mrb[0].mxu0 %v6054
        %v6760 = vpop.f32.mrb[0].mxu0
        %v6761 = vadd.f32 0.0, %v6760
        %v6762 = vpop.f32.mrb[0].mxu0
        %v6763 = vpop.f32.mrb[0].mxu0
        %v6764 = vadd.f32 0.0, %v6763
        %v6765 = vpop.f32.mrb[0].mxu0
        %6766 = vmatprep.mubr.bf16.mxu0 0
        %6767 = vmatmul.mubr.bf16.gmra.mrb[0].mxu0 %v6057
        %v6768 = vpop.f32.mrb[0].mxu0
        %v6769 = vadd.f32 0.0, %v6768
        %v6770 = vpop.f32.mrb[0].mxu0
        %v6771 = vpop.f32.mrb[0].mxu0
        %v6772 = vadd.f32 0.0, %v6771
        %v6773 = vpop.f32.mrb[0].mxu0
        %6774 = vmatprep.mubr.bf16.mxu0 0
        %6775 = vmatmul.mubr.bf16.gmra.mrb[0].mxu0 %v6060
        %v6776 = vpop.f32.mrb[0].mxu0
        %v6777 = vadd.f32 0.0, %v6776
        %v6778 = vpop.f32.mrb[0].mxu0
        %v6779 = vpop.f32.mrb[0].mxu0
        %v6780 = vadd.f32 0.0, %v6779
        %v6781 = vpop.f32.mrb[0].mxu0
        %6782 = vmatprep.mubr.bf16.mxu0 0
        %6783 = vmatmul.mubr.bf16.gmra.mrb[0].mxu0 %v6063
        %v6784 = vpop.f32.mrb[0].mxu0
        %v6785 = vadd.f32 0.0, %v6784
        %v6786 = vpop.f32.mrb[0].mxu0
        %v6787 = vpop.f32.mrb[0].mxu0
        %v6788 = vadd.f32 0.0, %v6787
        %v6789 = vpop.f32.mrb[0].mxu0
        %6790 = vmatprep.mubr.bf16.mxu0 0
        %6791 = vmatmul.mubr.bf16.gmra.mrb[0].mxu0 %v6066
        %v6792 = vpop.f32.mrb[0].mxu0
        %v6793 = vadd.f32 0.0, %v6792
        %v6794 = vpop.f32.mrb[0].mxu0
        %v6795 = vpop.f32.mrb[0].mxu0
        %v6796 = vadd.f32 0.0, %v6795
        %v6797 = vpop.f32.mrb[0].mxu0
        %6798 = vmatprep.mubr.bf16.mxu0 0
        %6799 = vmatmul.mubr.bf16.gmra.mrb[0].mxu0 %v6069
        %v6800 = vpop.f32.mrb[0].mxu0
        %v6801 = vadd.f32 0.0, %v6800
        %v6802 = vpop.f32.mrb[0].mxu0
        %v6803 = vpop.f32.mrb[0].mxu0
        %v6804 = vadd.f32 0.0, %v6803
        %v6805 = vpop.f32.mrb[0].mxu0
        %6806 = vmatprep.mubr.bf16.mxu0 0
        %6807 = vmatmul.mubr.bf16.gmra.mrb[0].mxu0 %v6348
        %v6808 = vpop.f32.mrb[0].mxu0
        %v6809 = vadd.f32 0.0, %v6808
        %v6810 = vpop.f32.mrb[0].mxu0
        %v6811 = vpop.f32.mrb[0].mxu0
        %v6812 = vadd.f32 0.0, %v6811
        %v6813 = vpop.f32.mrb[0].mxu0
        %6814 = vmatprep.mubr.bf16.mxu0 0
        %6815 = vmatmul.mubr.bf16.gmra.mrb[0].mxu0 %v6612
        %v6816 = vpop.f32.mrb[0].mxu0
        %v6817 = vadd.f32 0.0, %v6816
        %v6818 = vpop.f32.mrb[0].mxu0
        %v6819 = vpop.f32.mrb[0].mxu0
        %v6820 = vadd.f32 0.0, %v6819
        %v6821 = vpop.f32.mrb[0].mxu0
        %6822 = vdwg.mxu0
        %v6823 = vadd.f32 %v6559, %v6697
        %v6824 = vadd.f32 %v6560, %v6700
        %v6825 = vadd.f32 %v6561, %v6705
        %v6826 = vadd.f32 %v6562, %v6708
        %v6827 = vadd.f32 %v6563, %v6713
        %v6828 = vadd.f32 %v6564, %v6716
        %v6829 = vadd.f32 %v6565, %v6721
        %v6830 = vadd.f32 %v6566, %v6724
        %v6831 = vadd.f32 %v6567, %v6729
        %v6832 = vadd.f32 %v6568, %v6732
        %v6833 = vadd.f32 %v6569, %v6737
        %v6834 = vadd.f32 %v6570, %v6740
        %v6835 = vadd.f32 %v6571, %v6745
        %v6836 = vadd.f32 %v6572, %v6748
        %v6837 = vadd.f32 %v6573, %v6753
        %v6838 = vadd.f32 %v6574, %v6756
        %v6839 = vadd.f32 %v6575, %v6761
        %v6840 = vadd.f32 %v6576, %v6764
        %v6841 = vadd.f32 %v6577, %v6769
        %v6842 = vadd.f32 %v6578, %v6772
        %v6843 = vadd.f32 %v6579, %v6777
        %v6844 = vadd.f32 %v6580, %v6780
        %v6845 = vadd.f32 %v6581, %v6785
        %v6846 = vadd.f32 %v6582, %v6788
        %v6847 = vadd.f32 %v6583, %v6793
        %v6848 = vadd.f32 %v6584, %v6796
        %v6849 = vadd.f32 %v6585, %v6801
        %v6850 = vadd.f32 %v6586, %v6804
        %v6851 = vadd.f32 %v6587, %v6809
        %v6852 = vadd.f32 %v6588, %v6812
        %v6853 = vadd.f32 %v6589, %v6817
        %v6854 = vadd.f32 %v6590, %v6820
        %v6855 = vadd.f32 %v6823, %v6824
        %v6856 = vadd.f32 %v6855, %v6825
        %v6857 = vadd.f32 %v6856, %v6826
        %v6858 = vadd.f32 %v6857, %v6827
        %v6859 = vadd.f32 %v6858, %v6828
        %v6860 = vadd.f32 %v6859, %v6829
        %v6861 = vadd.f32 %v6860, %v6830
        %v6862 = vadd.f32 %v6861, %v6831
        %v6863 = vadd.f32 %v6862, %v6832
        %v6864 = vadd.f32 %v6863, %v6833
        %v6865 = vadd.f32 %v6864, %v6834
        %v6866 = vadd.f32 %v6865, %v6835
        %v6867 = vadd.f32 %v6866, %v6836
        %v6868 = vadd.f32 %v6867, %v6837
        %v6869 = vadd.f32 %v6868, %v6838
        %v6870 = vadd.f32 %v6869, %v6839
        %v6871 = vadd.f32 %v6870, %v6840
        %v6872 = vadd.f32 %v6871, %v6841
        %v6873 = vadd.f32 %v6872, %v6842
        %v6874 = vadd.f32 %v6873, %v6843
        %v6875 = vadd.f32 %v6874, %v6844
        %v6876 = vadd.f32 %v6875, %v6845
        %v6877 = vadd.f32 %v6876, %v6846
        %v6878 = vadd.f32 %v6877, %v6847
        %v6879 = vadd.f32 %v6878, %v6848
        %v6880 = vadd.f32 %v6879, %v6849
        %v6881 = vadd.f32 %v6880, %v6850
        %v6882 = vadd.f32 %v6881, %v6851
        %v6883 = vadd.f32 %v6882, %v6852
        %v6884 = vadd.f32 %v6883, %v6853
        %v6885 = vadd.f32 %v6884, %v6854
        %v6886 = vrot.slane %v6885, 4
        %v6887 = vadd.f32 %v6885, %v6886
        %v6888 = vrot.slane %v6887, 2
        %v6889 = vadd.f32 %v6887, %v6888
        %v6890 = vrot.slane %v6889, 1
        %v6891 = vadd.f32 %v6889, %v6890
        %v6892 = vmul.f32 %v6823, %v6823
        %v6893 = vmul.f32 %v6824, %v6824
        %v6894 = vmul.f32 %v6825, %v6825
        %v6895 = vmul.f32 %v6826, %v6826
        %v6896 = vmul.f32 %v6827, %v6827
        %v6897 = vmul.f32 %v6828, %v6828
        %v6898 = vmul.f32 %v6829, %v6829
        %v6899 = vmul.f32 %v6830, %v6830
        %v6900 = vmul.f32 %v6831, %v6831
        %v6901 = vmul.f32 %v6832, %v6832
        %v6902 = vmul.f32 %v6833, %v6833
        %v6903 = vmul.f32 %v6834, %v6834
        %v6904 = vmul.f32 %v6835, %v6835
        %v6905 = vmul.f32 %v6836, %v6836
        %v6906 = vmul.f32 %v6837, %v6837
        %v6907 = vmul.f32 %v6838, %v6838
        %v6908 = vmul.f32 %v6839, %v6839
        %v6909 = vmul.f32 %v6840, %v6840
        %v6910 = vmul.f32 %v6841, %v6841
        %v6911 = vmul.f32 %v6842, %v6842
        %v6912 = vmul.f32 %v6843, %v6843
        %v6913 = vmul.f32 %v6844, %v6844
        %v6914 = vmul.f32 %v6845, %v6845
        %v6915 = vmul.f32 %v6846, %v6846
        %v6916 = vmul.f32 %v6847, %v6847
        %v6917 = vmul.f32 %v6848, %v6848
        %v6918 = vmul.f32 %v6849, %v6849
        %v6919 = vmul.f32 %v6850, %v6850
        %v6920 = vmul.f32 %v6851, %v6851
        %v6921 = vmul.f32 %v6852, %v6852
        %v6922 = vmul.f32 %v6853, %v6853
        %v6923 = vmul.f32 %v6854, %v6854
        %v6924 = vadd.f32 %v6892, %v6893
        %v6925 = vadd.f32 %v6924, %v6894
        %v6926 = vadd.f32 %v6925, %v6895
        %v6927 = vadd.f32 %v6926, %v6896
        %v6928 = vadd.f32 %v6927, %v6897
        %v6929 = vadd.f32 %v6928, %v6898
        %v6930 = vadd.f32 %v6929, %v6899
        %v6931 = vadd.f32 %v6930, %v6900
        %v6932 = vadd.f32 %v6931, %v6901
        %v6933 = vadd.f32 %v6932, %v6902
        %v6934 = vadd.f32 %v6933, %v6903
        %v6935 = vadd.f32 %v6934, %v6904
        %v6936 = vadd.f32 %v6935, %v6905
        %v6937 = vadd.f32 %v6936, %v6906
        %v6938 = vadd.f32 %v6937, %v6907
        %v6939 = vadd.f32 %v6938, %v6908
        %v6940 = vadd.f32 %v6939, %v6909
        %v6941 = vadd.f32 %v6940, %v6910
        %v6942 = vadd.f32 %v6941, %v6911
        %v6943 = vadd.f32 %v6942, %v6912
        %v6944 = vadd.f32 %v6943, %v6913
        %v6945 = vadd.f32 %v6944, %v6914
        %v6946 = vadd.f32 %v6945, %v6915
        %v6947 = vadd.f32 %v6946, %v6916
        %v6948 = vadd.f32 %v6947, %v6917
        %v6949 = vadd.f32 %v6948, %v6918
        %v6950 = vadd.f32 %v6949, %v6919
        %v6951 = vadd.f32 %v6950, %v6920
        %v6952 = vadd.f32 %v6951, %v6921
        %v6953 = vadd.f32 %v6952, %v6922
        %v6954 = vadd.f32 %v6953, %v6923
        %v6955 = vrot.slane %v6954, 4
        %v6956 = vadd.f32 %v6954, %v6955
        %v6957 = vrot.slane %v6956, 2
        %v6958 = vadd.f32 %v6956, %v6957
        %v6959 = vrot.slane %v6958, 1
        %v6960 = vadd.f32 %v6958, %v6959
        %v6961 = vmul.f32 %v6891, 0.00390625
        %v6962 = vmul.f32 %v6960, 0.00390625
        %v6963 = vmul.f32 %v6961, %v6961
        %v6964 = vsub.f32 %v6962, %v6963
        %v6965 = vmax.f32 %v6964, 0.0
        %v6966 = vadd.f32 %v6965, 1e-05
        %v6967 = vrsqrt.pop %v6966
        %v6968 = vsub.f32 %v6823, %v6961
        %v6969 = vsub.f32 %v6824, %v6961
        %v6970 = vsub.f32 %v6825, %v6961
        %v6971 = vsub.f32 %v6826, %v6961
        %v6972 = vsub.f32 %v6827, %v6961
        %v6973 = vsub.f32 %v6828, %v6961
        %v6974 = vsub.f32 %v6829, %v6961
        %v6975 = vsub.f32 %v6830, %v6961
        %v6976 = vsub.f32 %v6831, %v6961
        %v6977 = vsub.f32 %v6832, %v6961
        %v6978 = vsub.f32 %v6833, %v6961
        %v6979 = vsub.f32 %v6834, %v6961
        %v6980 = vsub.f32 %v6835, %v6961
        %v6981 = vsub.f32 %v6836, %v6961
        %v6982 = vsub.f32 %v6837, %v6961
        %v6983 = vsub.f32 %v6838, %v6961
        %v6984 = vsub.f32 %v6839, %v6961
        %v6985 = vsub.f32 %v6840, %v6961
        %v6986 = vsub.f32 %v6841, %v6961
        %v6987 = vsub.f32 %v6842, %v6961
        %v6988 = vsub.f32 %v6843, %v6961
        %v6989 = vsub.f32 %v6844, %v6961
        %v6990 = vsub.f32 %v6845, %v6961
        %v6991 = vsub.f32 %v6846, %v6961
        %v6992 = vsub.f32 %v6847, %v6961
        %v6993 = vsub.f32 %v6848, %v6961
        %v6994 = vsub.f32 %v6849, %v6961
        %v6995 = vsub.f32 %v6850, %v6961
        %v6996 = vsub.f32 %v6851, %v6961
        %v6997 = vsub.f32 %v6852, %v6961
        %v6998 = vsub.f32 %v6853, %v6961
        %v6999 = vsub.f32 %v6854, %v6961
        %v7000 = vmul.f32 %v6968, %v6967
        %v7001 = vmul.f32 %v6969, %v6967
        %v7002 = vmul.f32 %v6970, %v6967
        %v7003 = vmul.f32 %v6971, %v6967
        %v7004 = vmul.f32 %v6972, %v6967
        %v7005 = vmul.f32 %v6973, %v6967
        %v7006 = vmul.f32 %v6974, %v6967
        %v7007 = vmul.f32 %v6975, %v6967
        %v7008 = vmul.f32 %v6976, %v6967
        %v7009 = vmul.f32 %v6977, %v6967
        %v7010 = vmul.f32 %v6978, %v6967
        %v7011 = vmul.f32 %v6979, %v6967
        %v7012 = vmul.f32 %v6980, %v6967
        %v7013 = vmul.f32 %v6981, %v6967
        %v7014 = vmul.f32 %v6982, %v6967
        %v7015 = vmul.f32 %v6983, %v6967
        %v7016 = vmul.f32 %v6984, %v6967
        %v7017 = vmul.f32 %v6985, %v6967
        %v7018 = vmul.f32 %v6986, %v6967
        %v7019 = vmul.f32 %v6987, %v6967
        %v7020 = vmul.f32 %v6988, %v6967
        %v7021 = vmul.f32 %v6989, %v6967
        %v7022 = vmul.f32 %v6990, %v6967
        %v7023 = vmul.f32 %v6991, %v6967
        %v7024 = vmul.f32 %v6992, %v6967
        %v7025 = vmul.f32 %v6993, %v6967
        %v7026 = vmul.f32 %v6994, %v6967
        %v7027 = vmul.f32 %v6995, %v6967
        %v7028 = vmul.f32 %v6996, %v6967
        %v7029 = vmul.f32 %v6997, %v6967
        %v7030 = vmul.f32 %v6998, %v6967
        %v7031 = vmul.f32 %v6999, %v6967
        %v7032 = vpack.c.bf16 %v7001, %v7000
        %v7033 = vpack.c.bf16 %v7003, %v7002
        %v7034 = vpack.c.bf16 %v7005, %v7004
        %v7035 = vpack.c.bf16 %v7007, %v7006
        %v7036 = vpack.c.bf16 %v7009, %v7008
        %v7037 = vpack.c.bf16 %v7011, %v7010
        %v7038 = vpack.c.bf16 %v7013, %v7012
        %v7039 = vpack.c.bf16 %v7015, %v7014
        %v7040 = vpack.c.bf16 %v7017, %v7016
        %v7041 = vpack.c.bf16 %v7019, %v7018
        %v7042 = vpack.c.bf16 %v7021, %v7020
        %v7043 = vpack.c.bf16 %v7023, %v7022
        %v7044 = vpack.c.bf16 %v7025, %v7024
        %v7045 = vpack.c.bf16 %v7027, %v7026
        %v7046 = vpack.c.bf16 %v7029, %v7028
        %v7047 = vpack.c.bf16 %v7031, %v7030
        %v7064 = vunpack.c.l.b16 %v7032
        %v7065 = vunpack.c.h.b16 %v7032
        %v7066 = vunpack.c.l.b16 %v7033
        %v7067 = vunpack.c.h.b16 %v7033
        %v7068 = vunpack.c.l.b16 %v7034
        %v7069 = vunpack.c.h.b16 %v7034
        %v7070 = vunpack.c.l.b16 %v7035
        %v7071 = vunpack.c.h.b16 %v7035
        %v7072 = vunpack.c.l.b16 %v7036
        %v7073 = vunpack.c.h.b16 %v7036
        %v7074 = vunpack.c.l.b16 %v7037
        %v7075 = vunpack.c.h.b16 %v7037
        %v7076 = vunpack.c.l.b16 %v7038
        %v7077 = vunpack.c.h.b16 %v7038
        %v7078 = vunpack.c.l.b16 %v7039
        %v7079 = vunpack.c.h.b16 %v7039
        %v7080 = vunpack.c.l.b16 %v7040
        %v7081 = vunpack.c.h.b16 %v7040
        %v7082 = vunpack.c.l.b16 %v7041
        %v7083 = vunpack.c.h.b16 %v7041
        %v7084 = vunpack.c.l.b16 %v7042
        %v7085 = vunpack.c.h.b16 %v7042
        %v7086 = vunpack.c.l.b16 %v7043
        %v7087 = vunpack.c.h.b16 %v7043
        %v7088 = vunpack.c.l.b16 %v7044
        %v7089 = vunpack.c.h.b16 %v7044
        %v7090 = vunpack.c.l.b16 %v7045
        %v7091 = vunpack.c.h.b16 %v7045
        %v7092 = vunpack.c.l.b16 %v7046
        %v7093 = vunpack.c.h.b16 %v7046
        %v7094 = vunpack.c.l.b16 %v7047
        %v7095 = vunpack.c.h.b16 %v7047
        %v7096 = vpack.c.b16 %v7064, %v7064
        %v7097 = vpack.c.b16 %v7065, %v7065
        %v7098 = vpack.c.b16 %v7066, %v7066
        %v7099 = vpack.c.b16 %v7067, %v7067
        %v7100 = vpack.c.b16 %v7068, %v7068
        %v7101 = vpack.c.b16 %v7069, %v7069
        %v7102 = vpack.c.b16 %v7070, %v7070
        %v7103 = vpack.c.b16 %v7071, %v7071
        %v7104 = vpack.c.b16 %v7072, %v7072
        %v7105 = vpack.c.b16 %v7073, %v7073
        %v7106 = vpack.c.b16 %v7074, %v7074
        %v7107 = vpack.c.b16 %v7075, %v7075
        %v7108 = vpack.c.b16 %v7076, %v7076
        %v7109 = vpack.c.b16 %v7077, %v7077
        %v7110 = vpack.c.b16 %v7078, %v7078
        %v7111 = vpack.c.b16 %v7079, %v7079
        %v7112 = vpack.c.b16 %v7080, %v7080
        %v7113 = vpack.c.b16 %v7081, %v7081
        %v7114 = vpack.c.b16 %v7082, %v7082
        %v7115 = vpack.c.b16 %v7083, %v7083
        %v7116 = vpack.c.b16 %v7084, %v7084
        %v7117 = vpack.c.b16 %v7085, %v7085
        %v7118 = vpack.c.b16 %v7086, %v7086
        %v7119 = vpack.c.b16 %v7087, %v7087
        %v7120 = vpack.c.b16 %v7088, %v7088
        %v7121 = vpack.c.b16 %v7089, %v7089
        %v7122 = vpack.c.b16 %v7090, %v7090
        %v7123 = vpack.c.b16 %v7091, %v7091
        %v7124 = vpack.c.b16 %v7092, %v7092
        %v7125 = vpack.c.b16 %v7093, %v7093
        %v7126 = vpack.c.b16 %v7094, %v7094
        %v7127 = vpack.c.b16 %v7095, %v7095
        %7160 = vst [vmem:[%s217] sm:$0xf] %v7096
        %7161 = vst [vmem:[%s217 + $0x4] sm:$0xf] %v7097
        %7162 = vst [vmem:[%s217 + $0x8] sm:$0xf] %v7098
        %7163 = vst [vmem:[%s217 + $0xc] sm:$0xf] %v7099
        %7164 = vst [vmem:[%s217 + $0x10] sm:$0xf] %v7100
        %7165 = vst [vmem:[%s217 + $0x14] sm:$0xf] %v7101
        %7166 = vst [vmem:[%s217 + $0x18] sm:$0xf] %v7102
        %7167 = vst [vmem:[%s217 + $0x1c] sm:$0xf] %v7103
        %7168 = vst [vmem:[%s217 + $0x20] sm:$0xf] %v7104
        %7169 = vst [vmem:[%s217 + $0x24] sm:$0xf] %v7105
        %7170 = vst [vmem:[%s217 + $0x28] sm:$0xf] %v7106
        %7171 = vst [vmem:[%s217 + $0x2c] sm:$0xf] %v7107
        %7172 = vst [vmem:[%s217 + $0x30] sm:$0xf] %v7108
        %7173 = vst [vmem:[%s217 + $0x34] sm:$0xf] %v7109
        %7174 = vst [vmem:[%s217 + $0x38] sm:$0xf] %v7110
        %7175 = vst [vmem:[%s217 + $0x3c] sm:$0xf] %v7111
        %7176 = vst [vmem:[%s217 + $0x40] sm:$0xf] %v7112
        %7177 = vst [vmem:[%s217 + $0x44] sm:$0xf] %v7113
        %7178 = vst [vmem:[%s217 + $0x48] sm:$0xf] %v7114
        %7179 = vst [vmem:[%s217 + $0x4c] sm:$0xf] %v7115
        %7180 = vst [vmem:[%s217 + $0x50] sm:$0xf] %v7116
        %7181 = vst [vmem:[%s217 + $0x54] sm:$0xf] %v7117
        %7182 = vst [vmem:[%s217 + $0x58] sm:$0xf] %v7118
        %7183 = vst [vmem:[%s217 + $0x5c] sm:$0xf] %v7119
        %7184 = vst [vmem:[%s217 + $0x60] sm:$0xf] %v7120
        %7185 = vst [vmem:[%s217 + $0x64] sm:$0xf] %v7121
        %7186 = vst [vmem:[%s217 + $0x68] sm:$0xf] %v7122
        %7187 = vst [vmem:[%s217 + $0x6c] sm:$0xf] %v7123
        %7188 = vst [vmem:[%s217 + $0x70] sm:$0xf] %v7124
        %7189 = vst [vmem:[%s217 + $0x74] sm:$0xf] %v7125
        %7190 = vst [vmem:[%s217 + $0x78] sm:$0xf] %v7126
        %7191 = vst [vmem:[%s217 + $0x7c] sm:$0xf] %v7127
        %s7192 = sand.u32 %s97, 1
        %s7193 = scalar_lea.sflag [#allocation5], %s7192
        %s7194 = sand.u32 %s97, 1
        %s7195 = smul.addr %s7194, 128
        %s7196 = scalar_lea.vmem [#allocation9], %s7195
        // Predicated region
        $region45: #{tpu_custom_call.1} parent=31 // pred_check
          %p7197 = pneg %p107
        $region46: #{tpu_custom_call.1} parent=31 // pred_check_branch
          %7199 = sbr.rel (%p7197) target = $region48
        $region47: #{tpu_custom_call.1} parent=31 // pred_region
          %s7201 = ssub.s32 2048, 2048
          %7202 = vsyncadd %s7193, %s7201
          %s7203 = smul.addr %s21, 32
          %s7204 = smul.addr %s7203, 64
          %s7205 = scalar_lea.hbm %s3, %s7204
          %s7206 = sshll.u32 %s7196, 4
          %s7207 = int_to_ptr.vmem [resolvable:$true] %s7206
          %7212 = dma.vmem_to_hbm [thread:$0]  %s7207, 2048, %s7205, %s7193, 64, 64, 4
        $region48: #{tpu_custom_call.1} parent=31 // pred_fallthru
          _
      $region32: #{tpu_custom_call.1} parent=5 // pred_fallthru
        _
      %p7213 = scmp.le.s32.totalorder 2, %s16
      // Predicated region
      $region49: #{tpu_custom_call.1} parent=5 // pred_check
        %p7214 = pneg %p7213
      $region50: #{tpu_custom_call.1} parent=5 // pred_check_branch
        %7216 = sbr.rel (%p7214) target = $region52
      $region51: #{tpu_custom_call.1} parent=5 // pred_region
        %s7217 = ssub.s32 %s16, 2
        // Predicated region
        $region53: #{tpu_custom_call.1} parent=51 // pred_check
          %p7218 = pneg %p113
        $region54: #{tpu_custom_call.1} parent=51 // pred_check_branch
          %7220 = sbr.rel (%p7218) target = $region56
        $region55: #{tpu_custom_call.1} parent=51 // pred_region
          %s7221 = sand.u32 %s98, 1
          %s7222 = scalar_lea.sflag [#allocation5], %s7221
          %s7223 = sand.u32 %s98, 1
          %s7224 = smul.addr %s7223, 128
          %s7225 = scalar_lea.vmem [#allocation9], %s7224
          %7226 = dma.done %s7222, 2048
        $region56: #{tpu_custom_call.1} parent=51 // pred_fallthru
          _
      $region52: #{tpu_custom_call.1} parent=5 // pred_fallthru
        _
    $region6: #{tpu_custom_call.1} parent=1 // loop_footer
      %s20 = sadd.s32 1, %s16
    $region7: #{tpu_custom_call.1} parent=1 // loop_footer_branch
      %15 = sbr.rel target = $region3
    $region8: #{tpu_custom_call.1} parent=1 // loop_exit
      _
    %7227 = vsyncpa [#allocation4], 1
    %s7228 = scalar_lea.sflag [#allocation4], 1
    %7229 = vsyncpa %s7228, 1
    %7230 = vsyncpa [#allocation7], 1
    %7231 = vsyncpa [#allocation5], 1
    %s7232 = scalar_lea.sflag [#allocation5], 1
    %7233 = vsyncpa %s7232, 1

</llo_original>
